<compile_context>
chip_gen: v5e
topology: v5e:2x2
jax: 0.10.0
libtpu: 0.0.40
codegen_flags: <defaults>
</compile_context>

<pallas_src>
import functools

import numpy as np
import jax
import jax.numpy as jnp
from jax import lax
from jax.experimental import pallas as pl
from jax.experimental.pallas import tpu as pltpu

NUM_STATES = 6  # b_id=0, i_id=1, e_id=2, s_id=3, o_id=4, eos_id=5
EOS_ID = 5


# --------------------------------------------------------------------------------------
# Bidirectional masked LSTM recurrence kernel (single invocation, unrolled over time)
# --------------------------------------------------------------------------------------
def _bilstm_kernel(gates_ref, mask_ref, whh_f_ref, whh_b_ref, out_ref,
                   out_f_scr, out_b_scr, *, L, H):
    # gates_ref: (L, B, 8H)  precomputed x@W_ih + b, [:, :, :4H] fwd / [:, :, 4H:] bwd
    # mask_ref : (L, B, 1)
    # whh_*    : (H, 4H)
    # out_ref  : (L, B, 2H)  lane-dense combined output
    B = mask_ref.shape[1]

    def cell(g, h_prev, c_prev, m):
        i_g = jax.nn.sigmoid(g[:, 0:H])
        f_g = jax.nn.sigmoid(g[:, H:2 * H])
        g_g = jnp.tanh(g[:, 2 * H:3 * H])
        o_g = jax.nn.sigmoid(g[:, 3 * H:4 * H])
        c_new = f_g * c_prev + i_g * g_g
        h_new = o_g * jnp.tanh(c_new)
        # VarMaskedFastLSTM semantics: state frozen (not zeroed) where mask == 0.
        c_u = m * c_new + (1.0 - m) * c_prev
        h_u = m * h_new + (1.0 - m) * h_prev
        return h_u, c_u

    def step(t, carry):
        h_f, c_f, h_b, c_b = carry
        rt = L - 1 - t

        gates_f_t = gates_ref[t]       # (B, 8H)
        gates_b_t = gates_ref[rt]      # (B, 8H)
        m_f = mask_ref[t]              # (B, 1)
        m_b = mask_ref[rt]             # (B, 1)

        g_f = gates_f_t[:, 0:4 * H] + jnp.dot(
            h_f, whh_f_ref[...], preferred_element_type=jnp.float32)
        g_b = gates_b_t[:, 4 * H:8 * H] + jnp.dot(
            h_b, whh_b_ref[...], preferred_element_type=jnp.float32)

        h_f, c_f = cell(g_f, h_f, c_f, m_f)
        h_b, c_b = cell(g_b, h_b, c_b, m_b)

        out_f_scr[t] = h_f
        out_b_scr[rt] = h_b
        return h_f, c_f, h_b, c_b

    z = jnp.zeros((B, H), jnp.float32)
    lax.fori_loop(0, L, step, (z, z, z, z), unroll=True)

    # Single lane-dense (L, B, 2H) output block; HBM writeback happens once.
    out_ref[:, :, 0:H] = out_f_scr[...]
    out_ref[:, :, H:2 * H] = out_b_scr[...]


def bilstm_forward(x_bld, mask_bl, params):
    """x_bld: (B, L, D) float32, mask_bl: (B, L) float32 -> (B, L, 2H) float32."""
    B, L, D = x_bld.shape
    H = params["whh_f"].shape[0]

    x_tm = jnp.transpose(x_bld, (1, 0, 2))             # (L, B, D) time-major
    m_tm = jnp.transpose(mask_bl, (1, 0))[:, :, None]  # (L, B, 1)

    # Hoisted input projection: one large MXU matmul for both directions (bf16 operands,
    # f32 accumulation).  Keeps W_ih out of the recurrent kernel's VMEM residency.
    w_ih_cat = jnp.concatenate([params["wih_f"], params["wih_b"]], axis=1)   # (D, 8H)
    b_cat = jnp.concatenate([params["b_f"], params["b_b"]], axis=1)          # (1, 8H)
    gates_in = jnp.dot(x_tm.reshape(L * B, D).astype(jnp.bfloat16),
                       w_ih_cat.astype(jnp.bfloat16),
                       preferred_element_type=jnp.float32) + b_cat
    gates_in = gates_in.reshape(L, B, 8 * H)

    kernel = functools.partial(_bilstm_kernel, L=L, H=H)

    out_tm = pl.pallas_call(
        kernel,
        grid=(1,),
        out_shape=jax.ShapeDtypeStruct((L, B, 2 * H), jnp.float32),
        in_specs=[
            pl.BlockSpec((L, B, 8 * H), lambda i: (0, 0, 0)),
            pl.BlockSpec((L, B, 1), lambda i: (0, 0, 0)),
            pl.BlockSpec((H, 4 * H), lambda i: (0, 0)),
            pl.BlockSpec((H, 4 * H), lambda i: (0, 0)),
        ],
        out_specs=pl.BlockSpec((L, B, 2 * H), lambda i: (0, 0, 0)),
        scratch_shapes=[
            pltpu.VMEM((L, B, H), jnp.float32),
            pltpu.VMEM((L, B, H), jnp.float32),
        ],
        compiler_params=pltpu.CompilerParams(dimension_semantics=("arbitrary",)),
    )(gates_in, m_tm, params["whh_f"], params["whh_b"])

    return jnp.transpose(out_tm, (1, 0, 2))             # (B, L, 2H)


# --------------------------------------------------------------------------------------
# ChainCRF4NestedNER loss kernel — all labels fused into one call (parallel label grid)
# --------------------------------------------------------------------------------------
def _crf_kernel(feat_ref, w_ref, b_ref, trans_ref, tgt_ref, mask_ref,
                loss_ref, state_scr, *, L, B, K):
    # feat_ref : (L*B, 2H) time-major flattened features (shared across labels)
    # w_ref    : (2H, K)   per-label state projection
    # b_ref    : (1, K)
    # trans_ref: (K, K)
    # tgt_ref  : (L, B, 1) int32 gold labels for this entity label
    # mask_ref : (L, B, 1)
    # loss_ref : (B, 1)
    state_scr[...] = jnp.dot(feat_ref[...], w_ref[...],
                             preferred_element_type=jnp.float32) + b_ref[...]
    trans = trans_ref[...]                                              # (K, K)

    iota_k = lax.broadcasted_iota(jnp.int32, (B, K), 1)
    eos_oh = (iota_k == (K - 1)).astype(jnp.float32)

    def body(t, carry):
        alpha, score, prev_oh = carry
        start = pl.multiple_of(t * B, B)
        state_t = state_scr[pl.ds(start, B), :]                         # (B, K)
        m_t = mask_ref[t]                                               # (B, 1)
        tgt_oh = (iota_k == tgt_ref[t]).astype(jnp.float32)             # (B, K)
        is_first = t == 0

        # Forward-algorithm (partition function) recursion.  The per-step emission
        # scores are factored OUT of the (B,K,K) logsumexp:
        #   alpha'[b,j] = state_t[b,j] + logsumexp_i(alpha[b,i] + trans[i,j])
        # (energy[b,i,j] = trans[i,j] + state_t[b,j] is never materialized/stored)
        tmp = alpha[:, :, None] + trans[None, :, :]                     # (B, K, K)
        mx = jnp.max(tmp, axis=1)                                       # (B, K)
        lse = mx + jnp.log(jnp.sum(jnp.exp(tmp - mx[:, None, :]), axis=1))
        alpha_rec = lse + state_t
        alpha_init = trans[K - 1:K, :] + state_t                        # start from EOS
        alpha_new = jnp.where(is_first, alpha_init, alpha_rec)
        alpha = jnp.where(jnp.logical_or(is_first, m_t > 0), alpha_new, alpha)

        # Gold-path score: trans[prev, tgt] + state_t[tgt], selected via one-hots
        # (prev_oh sums to 1, so this equals the full (B,K,K) double contraction).
        prev_trans = jnp.sum(prev_oh[:, :, None] * trans[None, :, :], axis=1)  # (B, K)
        s_t = jnp.sum(tgt_oh * (prev_trans + state_t), axis=1, keepdims=True)  # (B, 1)
        score = score + s_t * m_t
        prev_oh = jnp.where(m_t > 0, tgt_oh, prev_oh)
        return alpha, score, prev_oh

    alpha0 = jnp.zeros((B, K), jnp.float32)
    score0 = jnp.zeros((B, 1), jnp.float32)
    alpha, score, _ = lax.fori_loop(0, L, body, (alpha0, score0, eos_oh), unroll=True)

    mxa = jnp.max(alpha, axis=1, keepdims=True)                         # (B, 1)
    logz = mxa + jnp.log(jnp.sum(jnp.exp(alpha - mxa), axis=1, keepdims=True))
    loss_ref[...] = logz - score


def crf_all_labels_loss(feats_flat, crf_w, crf_b, crf_trans, tgt_tm, mask_tm, L, B, K):
    """feats_flat: (L*B, 2H); returns per-label per-batch loss (label_size, B)."""
    label_size = crf_w.shape[0]
    LB, H2 = feats_flat.shape
    kernel = functools.partial(_crf_kernel, L=L, B=B, K=K)

    loss = pl.pallas_call(
        kernel,
        grid=(label_size,),
        out_shape=jax.ShapeDtypeStruct((label_size, B, 1), jnp.float32),
        in_specs=[
            pl.BlockSpec((LB, H2), lambda l: (0, 0)),              # shared features
            pl.BlockSpec((None, H2, K), lambda l: (l, 0, 0)),      # per-label W
            pl.BlockSpec((None, 1, K), lambda l: (l, 0, 0)),       # per-label b
            pl.BlockSpec((None, K, K), lambda l: (l, 0, 0)),       # per-label transitions
            pl.BlockSpec((None, L, B, 1), lambda l: (l, 0, 0, 0)),  # per-label int targets
            pl.BlockSpec((L, B, 1), lambda l: (0, 0, 0)),          # shared mask
        ],
        out_specs=pl.BlockSpec((None, B, 1), lambda l: (l, 0, 0)),
        scratch_shapes=[pltpu.VMEM((LB, K), jnp.float32)],
        compiler_params=pltpu.CompilerParams(dimension_semantics=("parallel",)),
    )(feats_flat, crf_w, crf_b, crf_trans, tgt_tm, mask_tm)
    return loss[:, :, 0]


# --------------------------------------------------------------------------------------
# Glue: pooling matrix, parameter init, full forward
# --------------------------------------------------------------------------------------
def _build_pool_matrix(first_subtokens, last_subtokens, B, T, S):
    """(B, T, S) averaging matrix so pooled = P @ seq_out (one MXU einsum)."""
    P = np.zeros((B, T, S), np.float32)
    for i in range(B):
        for j in range(len(first_subtokens[i])):
            s, e = first_subtokens[i][j], last_subtokens[i][j]
            P[i, j, s:e] = 1.0 / float(e - s)
    return jnp.asarray(P)


def init_params(key, word_dim, hidden, label_size, num_states):
    ks = jax.random.split(key, 4)
    p = {}
    # Mirrors BiRecurrentConvCRF4NestedNER.reset_parameters(): all-zero LSTM weights except
    # gate index 2 ("g") of weight_ih (uniform), and forget-gate bias (gate index 1) = 1.
    bound = (6.0 / (word_dim + hidden)) ** 0.5
    for d, k in (("f", ks[0]), ("b", ks[1])):
        wih = jnp.zeros((word_dim, 4 * hidden), jnp.float32)
        g2 = jax.random.uniform(k, (word_dim, hidden), jnp.float32, -bound, bound)
        p["wih_" + d] = wih.at[:, 2 * hidden:3 * hidden].set(g2)
        p["whh_" + d] = jnp.zeros((hidden, 4 * hidden), jnp.float32)
        p["b_" + d] = jnp.zeros((1, 4 * hidden), jnp.float32).at[0, hidden:2 * hidden].set(1.0)
    # One ChainCRF4NestedNER per entity label: state projection (2H -> 6) + transition matrix.
    p["crf_w"] = 0.1 * jax.random.normal(ks[2], (label_size, 2 * hidden, num_states), jnp.float32)
    p["crf_b"] = jnp.zeros((label_size, 1, num_states), jnp.float32)
    p["crf_trans"] = 0.1 * jax.random.normal(ks[3], (label_size, num_states, num_states),
                                             jnp.float32)
    return p


@jax.jit
def _forward_core(params, seq_out, pool_mat, targets, mask):
    B_real = seq_out.shape[0]
    K = params["crf_trans"].shape[-1]

    # Sub-token mean pooling as a single batched matmul.
    pooled = jnp.einsum("bts,bsd->btd", pool_mat, seq_out)          # (B, T, D)
    T = pooled.shape[1]

    # Pad batch to a full f32 sublane group (8 rows) so MXU/VPU rows are not padding.
    B_pad = max(8, ((B_real + 7) // 8) * 8)
    pad = B_pad - B_real
    pooled_p = jnp.pad(pooled, ((0, pad), (0, 0), (0, 0)))
    mask_p = jnp.pad(mask, ((0, pad), (0, 0)))                      # padded rows: mask = 0
    tgt_p = jnp.pad(targets, ((0, 0), (0, pad), (0, 0)), constant_values=EOS_ID)

    rnn_out = bilstm_forward(pooled_p, mask_p, params)              # (B_pad, T, 2H)
    # self.dropout_out (Dropout2d) is identity in deterministic/eval mode.

    feats_tm = jnp.transpose(rnn_out, (1, 0, 2))                    # (T, B_pad, 2H)
    feats_flat = feats_tm.reshape(T * B_pad, rnn_out.shape[-1])
    mask_tm = jnp.transpose(mask_p, (1, 0))[:, :, None]             # (T, B_pad, 1)
    tgt_tm = jnp.transpose(tgt_p, (0, 2, 1))[:, :, :, None].astype(jnp.int32)  # (lbl,T,B_pad,1)

    loss_lb = crf_all_labels_loss(feats_flat, params["crf_w"], params["crf_b"],
                                  params["crf_trans"], tgt_tm, mask_tm,
                                  T, B_pad, K)                      # (label_size, B_pad)

    # Only real batch rows contribute (padded rows have all-zero mask and are discarded).
    # TODO(synk): nested-children recursive loss terms are skipped (tree recursion).
    return jnp.sum(loss_lb[:, :B_real]) / B_real


def forward(params, seq_out, first_subtokens, last_subtokens, targets, mask):
    """targets: (label_size, B, T) int32; mask: (B, T) float32 -> scalar loss."""
    B, S, _ = seq_out.shape
    T = max(len(f) for f in first_subtokens)
    pool_mat = _build_pool_matrix(first_subtokens, last_subtokens, B, T, S)
    return _forward_core(params, seq_out, pool_mat, targets, mask)


if __name__ == "__main__":
    key = jax.random.PRNGKey(0)
    B, S, WORD_DIM = 2, 12, 64   # WORD_DIM stands in for bert_hidden * bert_layers concat
    HIDDEN = 64                  # hidden per direction -> lane-dense 2H = 128 RNN output
    LABEL_SIZE = 2

    ks = jax.random.split(key, 4)
    # TODO(synk): synthesized stand-in for BERT sequence_output.
    seq_out = jax.random.normal(ks[0], (B, S, WORD_DIM), jnp.float32)

    first_subtokens = [[0, 1, 3, 4, 6, 7, 9, 10], [0, 2, 3, 5, 6, 8, 9, 11]]
    last_subtokens = [[1, 3, 4, 6, 7, 9, 10, 12], [2, 3, 5, 6, 8, 9, 11, 12]]
    T = max(len(f) for f in first_subtokens)  # 8

    mask = jnp.array([[1.0] * 8, [1.0] * 6 + [0.0] * 2], jnp.float32)  # (B, T)
    targets = jax.random.randint(ks[1], (LABEL_SIZE, B, T), 0, 5).astype(jnp.int32)
    targets = jnp.where(mask[None] > 0, targets, EOS_ID)

    params = init_params(ks[2], WORD_DIM, HIDDEN, LABEL_SIZE, NUM_STATES)

    loss = forward(params, seq_out, first_subtokens, last_subtokens, targets, mask)
    loss = jax.block_until_ready(loss)
    assert bool(jnp.isfinite(loss))
    print("KERNEL_OK")
</pallas_src>

<mosaic_0001>
module attributes {stable_mosaic.version = 11 : i64} {
  func.func @_crf_kernel(%arg0: i32, %arg1: memref<64x128xf32, #tpu.memory_space<vmem>>, %arg2: memref<1x128x6xf32, #tpu.memory_space<vmem>>, %arg3: memref<1x1x6xf32, #tpu.memory_space<vmem>>, %arg4: memref<1x6x6xf32, #tpu.memory_space<vmem>>, %arg5: memref<1x8x8x1xi32, #tpu.memory_space<vmem>>, %arg6: memref<8x8x1xf32, #tpu.memory_space<vmem>>, %arg7: memref<1x8x1xf32, #tpu.memory_space<vmem>>, %arg8: memref<64x6xf32, #tpu.memory_space<vmem>>) attributes {dimension_semantics = [#tpu.dimension_semantics<parallel>], iteration_bounds = array<i64: 2>, scalar_prefetch = 0 : i64, scratch_operands = 1 : i64, tpu.core_type = #tpu.core_type<tc>, window_params = [{pipeline_mode = #tpu.pipeline_mode<synchronous>, transform_indices = @transform_0, window_bounds = array<i64: 64, 128>}, {transform_indices = @transform_1, window_bounds = array<i64: 1, 128, 6>}, {transform_indices = @transform_2, window_bounds = array<i64: 1, 1, 6>}, {transform_indices = @transform_3, window_bounds = array<i64: 1, 6, 6>}, {transform_indices = @transform_4, window_bounds = array<i64: 1, 8, 8, 1>}, {pipeline_mode = #tpu.pipeline_mode<synchronous>, transform_indices = @transform_5, window_bounds = array<i64: 8, 8, 1>}, {transform_indices = @transform_6, window_bounds = array<i64: 1, 8, 1>}]} {
    %c0 = arith.constant 0 : index
    %c0_0 = arith.constant 0 : index
    %0 = vector.load %arg1[%c0, %c0_0] : memref<64x128xf32, #tpu.memory_space<vmem>>, vector<64x128xf32>
    %c0_1 = arith.constant 0 : index
    %c0_2 = arith.constant 0 : index
    %c0_3 = arith.constant 0 : index
    %1 = vector.load %arg2[%c0_1, %c0_2, %c0_3] : memref<1x128x6xf32, #tpu.memory_space<vmem>>, vector<1x128x6xf32>
    %2 = vector.shape_cast %1 : vector<1x128x6xf32> to vector<128x6xf32>
    %cst = arith.constant dense<0.000000e+00> : vector<64x6xf32>
    %3 = tpu.matmul %0, %2, %cst {dimension_numbers = #tpu.dot_dimension_numbers<[1], [0], [0], [1], [0, 0, 1, 1], [], []>} : vector<64x128xf32>, vector<128x6xf32>, vector<64x6xf32> -> vector<64x6xf32>
    %c0_4 = arith.constant 0 : index
    %c0_5 = arith.constant 0 : index
    %c0_6 = arith.constant 0 : index
    %4 = vector.load %arg3[%c0_4, %c0_5, %c0_6] : memref<1x1x6xf32, #tpu.memory_space<vmem>>, vector<1x1x6xf32>
    %5 = vector.shape_cast %4 : vector<1x1x6xf32> to vector<1x6xf32>
    %6 = vector.broadcast %5 : vector<1x6xf32> to vector<64x6xf32>
    %7 = arith.addf %3, %6 : vector<64x6xf32>
    %c0_7 = arith.constant 0 : index
    %c0_8 = arith.constant 0 : index
    %8 = vector.load %arg8[%c0_7, %c0_8] : memref<64x6xf32, #tpu.memory_space<vmem>>, vector<64x6xf32>
    tpu.vector_store %arg8[%c0_7, %c0_8], %7 {strides = array<i32>} : memref<64x6xf32, #tpu.memory_space<vmem>>, vector<64x6xf32>,
    %c0_9 = arith.constant 0 : index
    %c0_10 = arith.constant 0 : index
    %c0_11 = arith.constant 0 : index
    %9 = vector.load %arg4[%c0_9, %c0_10, %c0_11] : memref<1x6x6xf32, #tpu.memory_space<vmem>>, vector<1x6x6xf32>
    %10 = vector.shape_cast %9 : vector<1x6x6xf32> to vector<6x6xf32>
    %11 = tpu.iota {dimensions = array<i32: 1>} : vector<8x6xi32>
    %c5_i32 = arith.constant 5 : i32
    %12 = vector.broadcast %c5_i32 : i32 to vector<8x6xi32>
    %13 = arith.cmpi eq, %11, %12 : vector<8x6xi32>
    %14 = arith.extui %13 : vector<8x6xi1> to vector<8x6xi32>
    %15 = arith.sitofp %14 : vector<8x6xi32> to vector<8x6xf32>
    %cst_12 = arith.constant 0.000000e+00 : f32
    %16 = vector.broadcast %cst_12 : f32 to vector<8x6xf32>
    %cst_13 = arith.constant 0.000000e+00 : f32
    %17 = vector.broadcast %cst_13 : f32 to vector<8x1xf32>
    %c0_i32 = arith.constant 0 : i32
    %c8_i32 = arith.constant 8 : i32
    %18 = arith.muli %c0_i32, %c8_i32 : i32
    %19 = tpu.assume_multiple %18, 8 : i32
    %20 = arith.index_cast %19 : i32 to index
    %c0_14 = arith.constant 0 : index
    %21 = vector.load %arg8[%20, %c0_14] : memref<64x6xf32, #tpu.memory_space<vmem>>, vector<8x6xf32>
    %22 = arith.index_cast %c0_i32 : i32 to index
    %c0_15 = arith.constant 0 : index
    %c0_16 = arith.constant 0 : index
    %23 = vector.load %arg6[%22, %c0_15, %c0_16] : memref<8x8x1xf32, #tpu.memory_space<vmem>>, vector<1x8x1xf32>
    %24 = vector.shape_cast %23 : vector<1x8x1xf32> to vector<8x1xf32>
    %c0_17 = arith.constant 0 : index
    %25 = arith.index_cast %c0_i32 : i32 to index
    %c0_18 = arith.constant 0 : index
    %c0_19 = arith.constant 0 : index
    %26 = vector.load %arg5[%c0_17, %25, %c0_18, %c0_19] : memref<1x8x8x1xi32, #tpu.memory_space<vmem>>, vector<1x1x8x1xi32>
    %27 = vector.shape_cast %26 : vector<1x1x8x1xi32> to vector<8x1xi32>
    %28 = vector.broadcast %27 : vector<8x1xi32> to vector<8x6xi32>
    %29 = arith.cmpi eq, %11, %28 : vector<8x6xi32>
    %30 = arith.extui %29 : vector<8x6xi1> to vector<8x6xi32>
    %31 = arith.sitofp %30 : vector<8x6xi32> to vector<8x6xf32>
    %c0_i32_20 = arith.constant 0 : i32
    %32 = arith.cmpi eq, %c0_i32, %c0_i32_20 : i32
    %33 = vector.shape_cast %16 : vector<8x6xf32> to vector<8x6x1xf32>
    %34 = vector.shape_cast %10 : vector<6x6xf32> to vector<1x6x6xf32>
    %35 = vector.broadcast %33 : vector<8x6x1xf32> to vector<8x6x6xf32>
    %36 = vector.broadcast %34 : vector<1x6x6xf32> to vector<8x6x6xf32>
    %37 = arith.addf %35, %36 : vector<8x6x6xf32>
    %cst_21 = arith.constant dense<0xFF800000> : vector<8x6xf32>
    %38 = vector.multi_reduction <maximumf>, %37, %cst_21 [1] : vector<8x6x6xf32> to vector<8x6xf32>
    %39 = vector.shape_cast %38 : vector<8x6xf32> to vector<8x1x6xf32>
    %40 = vector.broadcast %39 : vector<8x1x6xf32> to vector<8x6x6xf32>
    %41 = arith.subf %37, %40 : vector<8x6x6xf32>
    %42 = math.exp %41 : vector<8x6x6xf32>
    %cst_22 = arith.constant dense<0.000000e+00> : vector<8x6xf32>
    %43 = vector.multi_reduction <add>, %42, %cst_22 [1] : vector<8x6x6xf32> to vector<8x6xf32>
    %44 = math.log %43 : vector<8x6xf32>
    %45 = arith.addf %38, %44 : vector<8x6xf32>
    %46 = arith.addf %45, %21 : vector<8x6xf32>
    %47 = vector.extract_strided_slice %10 {offsets = [5, 0], sizes = [1, 6], strides = [1, 1]} : vector<6x6xf32> to vector<1x6xf32>
    %48 = vector.broadcast %47 : vector<1x6xf32> to vector<8x6xf32>
    %49 = arith.addf %48, %21 : vector<8x6xf32>
    %50 = arith.select %32, %49, %46 : vector<8x6xf32>
    %cst_23 = arith.constant 0.000000e+00 : f32
    %51 = vector.broadcast %cst_23 : f32 to vector<8x1xf32>
    %52 = arith.cmpf ogt, %24, %51 : vector<8x1xf32>
    %53 = vector.broadcast %32 : i1 to vector<8x1xi1>
    %54 = arith.ori %53, %52 : vector<8x1xi1>
    %55 = vector.shape_cast %54 : vector<8x1xi1> to vector<8x1xi1>
    %56 = vector.broadcast %55 : vector<8x1xi1> to vector<8x6xi1>
    %57 = arith.select %56, %50, %16 : vector<8x6xi1>, vector<8x6xf32>
    %58 = vector.shape_cast %15 : vector<8x6xf32> to vector<8x6x1xf32>
    %59 = vector.shape_cast %10 : vector<6x6xf32> to vector<1x6x6xf32>
    %60 = vector.broadcast %58 : vector<8x6x1xf32> to vector<8x6x6xf32>
    %61 = vector.broadcast %59 : vector<1x6x6xf32> to vector<8x6x6xf32>
    %62 = arith.mulf %60, %61 : vector<8x6x6xf32>
    %cst_24 = arith.constant dense<0.000000e+00> : vector<8x6xf32>
    %63 = vector.multi_reduction <add>, %62, %cst_24 [1] : vector<8x6x6xf32> to vector<8x6xf32>
    %64 = arith.addf %63, %21 : vector<8x6xf32>
    %65 = arith.mulf %31, %64 : vector<8x6xf32>
    %cst_25 = arith.constant dense<0.000000e+00> : vector<8xf32>
    %66 = vector.multi_reduction <add>, %65, %cst_25 [1] : vector<8x6xf32> to vector<8xf32>
    %67 = vector.shape_cast %66 : vector<8xf32> to vector<8x1xf32>
    %68 = arith.mulf %67, %24 : vector<8x1xf32>
    %69 = arith.addf %17, %68 : vector<8x1xf32>
    %cst_26 = arith.constant 0.000000e+00 : f32
    %70 = vector.broadcast %cst_26 : f32 to vector<8x1xf32>
    %71 = arith.cmpf ogt, %24, %70 : vector<8x1xf32>
    %72 = vector.shape_cast %71 : vector<8x1xi1> to vector<8x1xi1>
    %73 = vector.broadcast %72 : vector<8x1xi1> to vector<8x6xi1>
    %74 = arith.select %73, %31, %15 : vector<8x6xi1>, vector<8x6xf32>
    %c1_i32 = arith.constant 1 : i32
    %c8_i32_27 = arith.constant 8 : i32
    %75 = arith.muli %c1_i32, %c8_i32_27 : i32
    %76 = tpu.assume_multiple %75, 8 : i32
    %77 = arith.index_cast %76 : i32 to index
    %c0_28 = arith.constant 0 : index
    %78 = vector.load %arg8[%77, %c0_28] : memref<64x6xf32, #tpu.memory_space<vmem>>, vector<8x6xf32>
    %79 = arith.index_cast %c1_i32 : i32 to index
    %c0_29 = arith.constant 0 : index
    %c0_30 = arith.constant 0 : index
    %80 = vector.load %arg6[%79, %c0_29, %c0_30] : memref<8x8x1xf32, #tpu.memory_space<vmem>>, vector<1x8x1xf32>
    %81 = vector.shape_cast %80 : vector<1x8x1xf32> to vector<8x1xf32>
    %c0_31 = arith.constant 0 : index
    %82 = arith.index_cast %c1_i32 : i32 to index
    %c0_32 = arith.constant 0 : index
    %c0_33 = arith.constant 0 : index
    %83 = vector.load %arg5[%c0_31, %82, %c0_32, %c0_33] : memref<1x8x8x1xi32, #tpu.memory_space<vmem>>, vector<1x1x8x1xi32>
    %84 = vector.shape_cast %83 : vector<1x1x8x1xi32> to vector<8x1xi32>
    %85 = vector.broadcast %84 : vector<8x1xi32> to vector<8x6xi32>
    %86 = arith.cmpi eq, %11, %85 : vector<8x6xi32>
    %87 = arith.extui %86 : vector<8x6xi1> to vector<8x6xi32>
    %88 = arith.sitofp %87 : vector<8x6xi32> to vector<8x6xf32>
    %c0_i32_34 = arith.constant 0 : i32
    %89 = arith.cmpi eq, %c1_i32, %c0_i32_34 : i32
    %90 = vector.shape_cast %57 : vector<8x6xf32> to vector<8x6x1xf32>
    %91 = vector.shape_cast %10 : vector<6x6xf32> to vector<1x6x6xf32>
    %92 = vector.broadcast %90 : vector<8x6x1xf32> to vector<8x6x6xf32>
    %93 = vector.broadcast %91 : vector<1x6x6xf32> to vector<8x6x6xf32>
    %94 = arith.addf %92, %93 : vector<8x6x6xf32>
    %cst_35 = arith.constant dense<0xFF800000> : vector<8x6xf32>
    %95 = vector.multi_reduction <maximumf>, %94, %cst_35 [1] : vector<8x6x6xf32> to vector<8x6xf32>
    %96 = vector.shape_cast %95 : vector<8x6xf32> to vector<8x1x6xf32>
    %97 = vector.broadcast %96 : vector<8x1x6xf32> to vector<8x6x6xf32>
    %98 = arith.subf %94, %97 : vector<8x6x6xf32>
    %99 = math.exp %98 : vector<8x6x6xf32>
    %cst_36 = arith.constant dense<0.000000e+00> : vector<8x6xf32>
    %100 = vector.multi_reduction <add>, %99, %cst_36 [1] : vector<8x6x6xf32> to vector<8x6xf32>
    %101 = math.log %100 : vector<8x6xf32>
    %102 = arith.addf %95, %101 : vector<8x6xf32>
    %103 = arith.addf %102, %78 : vector<8x6xf32>
    %104 = vector.extract_strided_slice %10 {offsets = [5, 0], sizes = [1, 6], strides = [1, 1]} : vector<6x6xf32> to vector<1x6xf32>
    %105 = vector.broadcast %104 : vector<1x6xf32> to vector<8x6xf32>
    %106 = arith.addf %105, %78 : vector<8x6xf32>
    %107 = arith.select %89, %106, %103 : vector<8x6xf32>
    %cst_37 = arith.constant 0.000000e+00 : f32
    %108 = vector.broadcast %cst_37 : f32 to vector<8x1xf32>
    %109 = arith.cmpf ogt, %81, %108 : vector<8x1xf32>
    %110 = vector.broadcast %89 : i1 to vector<8x1xi1>
    %111 = arith.ori %110, %109 : vector<8x1xi1>
    %112 = vector.shape_cast %111 : vector<8x1xi1> to vector<8x1xi1>
    %113 = vector.broadcast %112 : vector<8x1xi1> to vector<8x6xi1>
    %114 = arith.select %113, %107, %57 : vector<8x6xi1>, vector<8x6xf32>
    %115 = vector.shape_cast %74 : vector<8x6xf32> to vector<8x6x1xf32>
    %116 = vector.shape_cast %10 : vector<6x6xf32> to vector<1x6x6xf32>
    %117 = vector.broadcast %115 : vector<8x6x1xf32> to vector<8x6x6xf32>
    %118 = vector.broadcast %116 : vector<1x6x6xf32> to vector<8x6x6xf32>
    %119 = arith.mulf %117, %118 : vector<8x6x6xf32>
    %cst_38 = arith.constant dense<0.000000e+00> : vector<8x6xf32>
    %120 = vector.multi_reduction <add>, %119, %cst_38 [1] : vector<8x6x6xf32> to vector<8x6xf32>
    %121 = arith.addf %120, %78 : vector<8x6xf32>
    %122 = arith.mulf %88, %121 : vector<8x6xf32>
    %cst_39 = arith.constant dense<0.000000e+00> : vector<8xf32>
    %123 = vector.multi_reduction <add>, %122, %cst_39 [1] : vector<8x6xf32> to vector<8xf32>
    %124 = vector.shape_cast %123 : vector<8xf32> to vector<8x1xf32>
    %125 = arith.mulf %124, %81 : vector<8x1xf32>
    %126 = arith.addf %69, %125 : vector<8x1xf32>
    %cst_40 = arith.constant 0.000000e+00 : f32
    %127 = vector.broadcast %cst_40 : f32 to vector<8x1xf32>
    %128 = arith.cmpf ogt, %81, %127 : vector<8x1xf32>
    %129 = vector.shape_cast %128 : vector<8x1xi1> to vector<8x1xi1>
    %130 = vector.broadcast %129 : vector<8x1xi1> to vector<8x6xi1>
    %131 = arith.select %130, %88, %74 : vector<8x6xi1>, vector<8x6xf32>
    %c2_i32 = arith.constant 2 : i32
    %c8_i32_41 = arith.constant 8 : i32
    %132 = arith.muli %c2_i32, %c8_i32_41 : i32
    %133 = tpu.assume_multiple %132, 8 : i32
    %134 = arith.index_cast %133 : i32 to index
    %c0_42 = arith.constant 0 : index
    %135 = vector.load %arg8[%134, %c0_42] : memref<64x6xf32, #tpu.memory_space<vmem>>, vector<8x6xf32>
    %136 = arith.index_cast %c2_i32 : i32 to index
    %c0_43 = arith.constant 0 : index
    %c0_44 = arith.constant 0 : index
    %137 = vector.load %arg6[%136, %c0_43, %c0_44] : memref<8x8x1xf32, #tpu.memory_space<vmem>>, vector<1x8x1xf32>
    %138 = vector.shape_cast %137 : vector<1x8x1xf32> to vector<8x1xf32>
    %c0_45 = arith.constant 0 : index
    %139 = arith.index_cast %c2_i32 : i32 to index
    %c0_46 = arith.constant 0 : index
    %c0_47 = arith.constant 0 : index
    %140 = vector.load %arg5[%c0_45, %139, %c0_46, %c0_47] : memref<1x8x8x1xi32, #tpu.memory_space<vmem>>, vector<1x1x8x1xi32>
    %141 = vector.shape_cast %140 : vector<1x1x8x1xi32> to vector<8x1xi32>
    %142 = vector.broadcast %141 : vector<8x1xi32> to vector<8x6xi32>
    %143 = arith.cmpi eq, %11, %142 : vector<8x6xi32>
    %144 = arith.extui %143 : vector<8x6xi1> to vector<8x6xi32>
    %145 = arith.sitofp %144 : vector<8x6xi32> to vector<8x6xf32>
    %c0_i32_48 = arith.constant 0 : i32
    %146 = arith.cmpi eq, %c2_i32, %c0_i32_48 : i32
    %147 = vector.shape_cast %114 : vector<8x6xf32> to vector<8x6x1xf32>
    %148 = vector.shape_cast %10 : vector<6x6xf32> to vector<1x6x6xf32>
    %149 = vector.broadcast %147 : vector<8x6x1xf32> to vector<8x6x6xf32>
    %150 = vector.broadcast %148 : vector<1x6x6xf32> to vector<8x6x6xf32>
    %151 = arith.addf %149, %150 : vector<8x6x6xf32>
    %cst_49 = arith.constant dense<0xFF800000> : vector<8x6xf32>
    %152 = vector.multi_reduction <maximumf>, %151, %cst_49 [1] : vector<8x6x6xf32> to vector<8x6xf32>
    %153 = vector.shape_cast %152 : vector<8x6xf32> to vector<8x1x6xf32>
    %154 = vector.broadcast %153 : vector<8x1x6xf32> to vector<8x6x6xf32>
    %155 = arith.subf %151, %154 : vector<8x6x6xf32>
    %156 = math.exp %155 : vector<8x6x6xf32>
    %cst_50 = arith.constant dense<0.000000e+00> : vector<8x6xf32>
    %157 = vector.multi_reduction <add>, %156, %cst_50 [1] : vector<8x6x6xf32> to vector<8x6xf32>
    %158 = math.log %157 : vector<8x6xf32>
    %159 = arith.addf %152, %158 : vector<8x6xf32>
    %160 = arith.addf %159, %135 : vector<8x6xf32>
    %161 = vector.extract_strided_slice %10 {offsets = [5, 0], sizes = [1, 6], strides = [1, 1]} : vector<6x6xf32> to vector<1x6xf32>
    %162 = vector.broadcast %161 : vector<1x6xf32> to vector<8x6xf32>
    %163 = arith.addf %162, %135 : vector<8x6xf32>
    %164 = arith.select %146, %163, %160 : vector<8x6xf32>
    %cst_51 = arith.constant 0.000000e+00 : f32
    %165 = vector.broadcast %cst_51 : f32 to vector<8x1xf32>
    %166 = arith.cmpf ogt, %138, %165 : vector<8x1xf32>
    %167 = vector.broadcast %146 : i1 to vector<8x1xi1>
    %168 = arith.ori %167, %166 : vector<8x1xi1>
    %169 = vector.shape_cast %168 : vector<8x1xi1> to vector<8x1xi1>
    %170 = vector.broadcast %169 : vector<8x1xi1> to vector<8x6xi1>
    %171 = arith.select %170, %164, %114 : vector<8x6xi1>, vector<8x6xf32>
    %172 = vector.shape_cast %131 : vector<8x6xf32> to vector<8x6x1xf32>
    %173 = vector.shape_cast %10 : vector<6x6xf32> to vector<1x6x6xf32>
    %174 = vector.broadcast %172 : vector<8x6x1xf32> to vector<8x6x6xf32>
    %175 = vector.broadcast %173 : vector<1x6x6xf32> to vector<8x6x6xf32>
    %176 = arith.mulf %174, %175 : vector<8x6x6xf32>
    %cst_52 = arith.constant dense<0.000000e+00> : vector<8x6xf32>
    %177 = vector.multi_reduction <add>, %176, %cst_52 [1] : vector<8x6x6xf32> to vector<8x6xf32>
    %178 = arith.addf %177, %135 : vector<8x6xf32>
    %179 = arith.mulf %145, %178 : vector<8x6xf32>
    %cst_53 = arith.constant dense<0.000000e+00> : vector<8xf32>
    %180 = vector.multi_reduction <add>, %179, %cst_53 [1] : vector<8x6xf32> to vector<8xf32>
    %181 = vector.shape_cast %180 : vector<8xf32> to vector<8x1xf32>
    %182 = arith.mulf %181, %138 : vector<8x1xf32>
    %183 = arith.addf %126, %182 : vector<8x1xf32>
    %cst_54 = arith.constant 0.000000e+00 : f32
    %184 = vector.broadcast %cst_54 : f32 to vector<8x1xf32>
    %185 = arith.cmpf ogt, %138, %184 : vector<8x1xf32>
    %186 = vector.shape_cast %185 : vector<8x1xi1> to vector<8x1xi1>
    %187 = vector.broadcast %186 : vector<8x1xi1> to vector<8x6xi1>
    %188 = arith.select %187, %145, %131 : vector<8x6xi1>, vector<8x6xf32>
    %c3_i32 = arith.constant 3 : i32
    %c8_i32_55 = arith.constant 8 : i32
    %189 = arith.muli %c3_i32, %c8_i32_55 : i32
    %190 = tpu.assume_multiple %189, 8 : i32
    %191 = arith.index_cast %190 : i32 to index
    %c0_56 = arith.constant 0 : index
    %192 = vector.load %arg8[%191, %c0_56] : memref<64x6xf32, #tpu.memory_space<vmem>>, vector<8x6xf32>
    %193 = arith.index_cast %c3_i32 : i32 to index
    %c0_57 = arith.constant 0 : index
    %c0_58 = arith.constant 0 : index
    %194 = vector.load %arg6[%193, %c0_57, %c0_58] : memref<8x8x1xf32, #tpu.memory_space<vmem>>, vector<1x8x1xf32>
    %195 = vector.shape_cast %194 : vector<1x8x1xf32> to vector<8x1xf32>
    %c0_59 = arith.constant 0 : index
    %196 = arith.index_cast %c3_i32 : i32 to index
    %c0_60 = arith.constant 0 : index
    %c0_61 = arith.constant 0 : index
    %197 = vector.load %arg5[%c0_59, %196, %c0_60, %c0_61] : memref<1x8x8x1xi32, #tpu.memory_space<vmem>>, vector<1x1x8x1xi32>
    %198 = vector.shape_cast %197 : vector<1x1x8x1xi32> to vector<8x1xi32>
    %199 = vector.broadcast %198 : vector<8x1xi32> to vector<8x6xi32>
    %200 = arith.cmpi eq, %11, %199 : vector<8x6xi32>
    %201 = arith.extui %200 : vector<8x6xi1> to vector<8x6xi32>
    %202 = arith.sitofp %201 : vector<8x6xi32> to vector<8x6xf32>
    %c0_i32_62 = arith.constant 0 : i32
    %203 = arith.cmpi eq, %c3_i32, %c0_i32_62 : i32
    %204 = vector.shape_cast %171 : vector<8x6xf32> to vector<8x6x1xf32>
    %205 = vector.shape_cast %10 : vector<6x6xf32> to vector<1x6x6xf32>
    %206 = vector.broadcast %204 : vector<8x6x1xf32> to vector<8x6x6xf32>
    %207 = vector.broadcast %205 : vector<1x6x6xf32> to vector<8x6x6xf32>
    %208 = arith.addf %206, %207 : vector<8x6x6xf32>
    %cst_63 = arith.constant dense<0xFF800000> : vector<8x6xf32>
    %209 = vector.multi_reduction <maximumf>, %208, %cst_63 [1] : vector<8x6x6xf32> to vector<8x6xf32>
    %210 = vector.shape_cast %209 : vector<8x6xf32> to vector<8x1x6xf32>
    %211 = vector.broadcast %210 : vector<8x1x6xf32> to vector<8x6x6xf32>
    %212 = arith.subf %208, %211 : vector<8x6x6xf32>
    %213 = math.exp %212 : vector<8x6x6xf32>
    %cst_64 = arith.constant dense<0.000000e+00> : vector<8x6xf32>
    %214 = vector.multi_reduction <add>, %213, %cst_64 [1] : vector<8x6x6xf32> to vector<8x6xf32>
    %215 = math.log %214 : vector<8x6xf32>
    %216 = arith.addf %209, %215 : vector<8x6xf32>
    %217 = arith.addf %216, %192 : vector<8x6xf32>
    %218 = vector.extract_strided_slice %10 {offsets = [5, 0], sizes = [1, 6], strides = [1, 1]} : vector<6x6xf32> to vector<1x6xf32>
    %219 = vector.broadcast %218 : vector<1x6xf32> to vector<8x6xf32>
    %220 = arith.addf %219, %192 : vector<8x6xf32>
    %221 = arith.select %203, %220, %217 : vector<8x6xf32>
    %cst_65 = arith.constant 0.000000e+00 : f32
    %222 = vector.broadcast %cst_65 : f32 to vector<8x1xf32>
    %223 = arith.cmpf ogt, %195, %222 : vector<8x1xf32>
    %224 = vector.broadcast %203 : i1 to vector<8x1xi1>
    %225 = arith.ori %224, %223 : vector<8x1xi1>
    %226 = vector.shape_cast %225 : vector<8x1xi1> to vector<8x1xi1>
    %227 = vector.broadcast %226 : vector<8x1xi1> to vector<8x6xi1>
    %228 = arith.select %227, %221, %171 : vector<8x6xi1>, vector<8x6xf32>
    %229 = vector.shape_cast %188 : vector<8x6xf32> to vector<8x6x1xf32>
    %230 = vector.shape_cast %10 : vector<6x6xf32> to vector<1x6x6xf32>
    %231 = vector.broadcast %229 : vector<8x6x1xf32> to vector<8x6x6xf32>
    %232 = vector.broadcast %230 : vector<1x6x6xf32> to vector<8x6x6xf32>
    %233 = arith.mulf %231, %232 : vector<8x6x6xf32>
    %cst_66 = arith.constant dense<0.000000e+00> : vector<8x6xf32>
    %234 = vector.multi_reduction <add>, %233, %cst_66 [1] : vector<8x6x6xf32> to vector<8x6xf32>
    %235 = arith.addf %234, %192 : vector<8x6xf32>
    %236 = arith.mulf %202, %235 : vector<8x6xf32>
    %cst_67 = arith.constant dense<0.000000e+00> : vector<8xf32>
    %237 = vector.multi_reduction <add>, %236, %cst_67 [1] : vector<8x6xf32> to vector<8xf32>
    %238 = vector.shape_cast %237 : vector<8xf32> to vector<8x1xf32>
    %239 = arith.mulf %238, %195 : vector<8x1xf32>
    %240 = arith.addf %183, %239 : vector<8x1xf32>
    %cst_68 = arith.constant 0.000000e+00 : f32
    %241 = vector.broadcast %cst_68 : f32 to vector<8x1xf32>
    %242 = arith.cmpf ogt, %195, %241 : vector<8x1xf32>
    %243 = vector.shape_cast %242 : vector<8x1xi1> to vector<8x1xi1>
    %244 = vector.broadcast %243 : vector<8x1xi1> to vector<8x6xi1>
    %245 = arith.select %244, %202, %188 : vector<8x6xi1>, vector<8x6xf32>
    %c4_i32 = arith.constant 4 : i32
    %c8_i32_69 = arith.constant 8 : i32
    %246 = arith.muli %c4_i32, %c8_i32_69 : i32
    %247 = tpu.assume_multiple %246, 8 : i32
    %248 = arith.index_cast %247 : i32 to index
    %c0_70 = arith.constant 0 : index
    %249 = vector.load %arg8[%248, %c0_70] : memref<64x6xf32, #tpu.memory_space<vmem>>, vector<8x6xf32>
    %250 = arith.index_cast %c4_i32 : i32 to index
    %c0_71 = arith.constant 0 : index
    %c0_72 = arith.constant 0 : index
    %251 = vector.load %arg6[%250, %c0_71, %c0_72] : memref<8x8x1xf32, #tpu.memory_space<vmem>>, vector<1x8x1xf32>
    %252 = vector.shape_cast %251 : vector<1x8x1xf32> to vector<8x1xf32>
    %c0_73 = arith.constant 0 : index
    %253 = arith.index_cast %c4_i32 : i32 to index
    %c0_74 = arith.constant 0 : index
    %c0_75 = arith.constant 0 : index
    %254 = vector.load %arg5[%c0_73, %253, %c0_74, %c0_75] : memref<1x8x8x1xi32, #tpu.memory_space<vmem>>, vector<1x1x8x1xi32>
    %255 = vector.shape_cast %254 : vector<1x1x8x1xi32> to vector<8x1xi32>
    %256 = vector.broadcast %255 : vector<8x1xi32> to vector<8x6xi32>
    %257 = arith.cmpi eq, %11, %256 : vector<8x6xi32>
    %258 = arith.extui %257 : vector<8x6xi1> to vector<8x6xi32>
    %259 = arith.sitofp %258 : vector<8x6xi32> to vector<8x6xf32>
    %c0_i32_76 = arith.constant 0 : i32
    %260 = arith.cmpi eq, %c4_i32, %c0_i32_76 : i32
    %261 = vector.shape_cast %228 : vector<8x6xf32> to vector<8x6x1xf32>
    %262 = vector.shape_cast %10 : vector<6x6xf32> to vector<1x6x6xf32>
    %263 = vector.broadcast %261 : vector<8x6x1xf32> to vector<8x6x6xf32>
    %264 = vector.broadcast %262 : vector<1x6x6xf32> to vector<8x6x6xf32>
    %265 = arith.addf %263, %264 : vector<8x6x6xf32>
    %cst_77 = arith.constant dense<0xFF800000> : vector<8x6xf32>
    %266 = vector.multi_reduction <maximumf>, %265, %cst_77 [1] : vector<8x6x6xf32> to vector<8x6xf32>
    %267 = vector.shape_cast %266 : vector<8x6xf32> to vector<8x1x6xf32>
    %268 = vector.broadcast %267 : vector<8x1x6xf32> to vector<8x6x6xf32>
    %269 = arith.subf %265, %268 : vector<8x6x6xf32>
    %270 = math.exp %269 : vector<8x6x6xf32>
    %cst_78 = arith.constant dense<0.000000e+00> : vector<8x6xf32>
    %271 = vector.multi_reduction <add>, %270, %cst_78 [1] : vector<8x6x6xf32> to vector<8x6xf32>
    %272 = math.log %271 : vector<8x6xf32>
    %273 = arith.addf %266, %272 : vector<8x6xf32>
    %274 = arith.addf %273, %249 : vector<8x6xf32>
    %275 = vector.extract_strided_slice %10 {offsets = [5, 0], sizes = [1, 6], strides = [1, 1]} : vector<6x6xf32> to vector<1x6xf32>
    %276 = vector.broadcast %275 : vector<1x6xf32> to vector<8x6xf32>
    %277 = arith.addf %276, %249 : vector<8x6xf32>
    %278 = arith.select %260, %277, %274 : vector<8x6xf32>
    %cst_79 = arith.constant 0.000000e+00 : f32
    %279 = vector.broadcast %cst_79 : f32 to vector<8x1xf32>
    %280 = arith.cmpf ogt, %252, %279 : vector<8x1xf32>
    %281 = vector.broadcast %260 : i1 to vector<8x1xi1>
    %282 = arith.ori %281, %280 : vector<8x1xi1>
    %283 = vector.shape_cast %282 : vector<8x1xi1> to vector<8x1xi1>
    %284 = vector.broadcast %283 : vector<8x1xi1> to vector<8x6xi1>
    %285 = arith.select %284, %278, %228 : vector<8x6xi1>, vector<8x6xf32>
    %286 = vector.shape_cast %245 : vector<8x6xf32> to vector<8x6x1xf32>
    %287 = vector.shape_cast %10 : vector<6x6xf32> to vector<1x6x6xf32>
    %288 = vector.broadcast %286 : vector<8x6x1xf32> to vector<8x6x6xf32>
    %289 = vector.broadcast %287 : vector<1x6x6xf32> to vector<8x6x6xf32>
    %290 = arith.mulf %288, %289 : vector<8x6x6xf32>
    %cst_80 = arith.constant dense<0.000000e+00> : vector<8x6xf32>
    %291 = vector.multi_reduction <add>, %290, %cst_80 [1] : vector<8x6x6xf32> to vector<8x6xf32>
    %292 = arith.addf %291, %249 : vector<8x6xf32>
    %293 = arith.mulf %259, %292 : vector<8x6xf32>
    %cst_81 = arith.constant dense<0.000000e+00> : vector<8xf32>
    %294 = vector.multi_reduction <add>, %293, %cst_81 [1] : vector<8x6xf32> to vector<8xf32>
    %295 = vector.shape_cast %294 : vector<8xf32> to vector<8x1xf32>
    %296 = arith.mulf %295, %252 : vector<8x1xf32>
    %297 = arith.addf %240, %296 : vector<8x1xf32>
    %cst_82 = arith.constant 0.000000e+00 : f32
    %298 = vector.broadcast %cst_82 : f32 to vector<8x1xf32>
    %299 = arith.cmpf ogt, %252, %298 : vector<8x1xf32>
    %300 = vector.shape_cast %299 : vector<8x1xi1> to vector<8x1xi1>
    %301 = vector.broadcast %300 : vector<8x1xi1> to vector<8x6xi1>
    %302 = arith.select %301, %259, %245 : vector<8x6xi1>, vector<8x6xf32>
    %c5_i32_83 = arith.constant 5 : i32
    %c8_i32_84 = arith.constant 8 : i32
    %303 = arith.muli %c5_i32_83, %c8_i32_84 : i32
    %304 = tpu.assume_multiple %303, 8 : i32
    %305 = arith.index_cast %304 : i32 to index
    %c0_85 = arith.constant 0 : index
    %306 = vector.load %arg8[%305, %c0_85] : memref<64x6xf32, #tpu.memory_space<vmem>>, vector<8x6xf32>
    %307 = arith.index_cast %c5_i32_83 : i32 to index
    %c0_86 = arith.constant 0 : index
    %c0_87 = arith.constant 0 : index
    %308 = vector.load %arg6[%307, %c0_86, %c0_87] : memref<8x8x1xf32, #tpu.memory_space<vmem>>, vector<1x8x1xf32>
    %309 = vector.shape_cast %308 : vector<1x8x1xf32> to vector<8x1xf32>
    %c0_88 = arith.constant 0 : index
    %310 = arith.index_cast %c5_i32_83 : i32 to index
    %c0_89 = arith.constant 0 : index
    %c0_90 = arith.constant 0 : index
    %311 = vector.load %arg5[%c0_88, %310, %c0_89, %c0_90] : memref<1x8x8x1xi32, #tpu.memory_space<vmem>>, vector<1x1x8x1xi32>
    %312 = vector.shape_cast %311 : vector<1x1x8x1xi32> to vector<8x1xi32>
    %313 = vector.broadcast %312 : vector<8x1xi32> to vector<8x6xi32>
    %314 = arith.cmpi eq, %11, %313 : vector<8x6xi32>
    %315 = arith.extui %314 : vector<8x6xi1> to vector<8x6xi32>
    %316 = arith.sitofp %315 : vector<8x6xi32> to vector<8x6xf32>
    %c0_i32_91 = arith.constant 0 : i32
    %317 = arith.cmpi eq, %c5_i32_83, %c0_i32_91 : i32
    %318 = vector.shape_cast %285 : vector<8x6xf32> to vector<8x6x1xf32>
    %319 = vector.shape_cast %10 : vector<6x6xf32> to vector<1x6x6xf32>
    %320 = vector.broadcast %318 : vector<8x6x1xf32> to vector<8x6x6xf32>
    %321 = vector.broadcast %319 : vector<1x6x6xf32> to vector<8x6x6xf32>
    %322 = arith.addf %320, %321 : vector<8x6x6xf32>
    %cst_92 = arith.constant dense<0xFF800000> : vector<8x6xf32>
    %323 = vector.multi_reduction <maximumf>, %322, %cst_92 [1] : vector<8x6x6xf32> to vector<8x6xf32>
    %324 = vector.shape_cast %323 : vector<8x6xf32> to vector<8x1x6xf32>
    %325 = vector.broadcast %324 : vector<8x1x6xf32> to vector<8x6x6xf32>
    %326 = arith.subf %322, %325 : vector<8x6x6xf32>
    %327 = math.exp %326 : vector<8x6x6xf32>
    %cst_93 = arith.constant dense<0.000000e+00> : vector<8x6xf32>
    %328 = vector.multi_reduction <add>, %327, %cst_93 [1] : vector<8x6x6xf32> to vector<8x6xf32>
    %329 = math.log %328 : vector<8x6xf32>
    %330 = arith.addf %323, %329 : vector<8x6xf32>
    %331 = arith.addf %330, %306 : vector<8x6xf32>
    %332 = vector.extract_strided_slice %10 {offsets = [5, 0], sizes = [1, 6], strides = [1, 1]} : vector<6x6xf32> to vector<1x6xf32>
    %333 = vector.broadcast %332 : vector<1x6xf32> to vector<8x6xf32>
    %334 = arith.addf %333, %306 : vector<8x6xf32>
    %335 = arith.select %317, %334, %331 : vector<8x6xf32>
    %cst_94 = arith.constant 0.000000e+00 : f32
    %336 = vector.broadcast %cst_94 : f32 to vector<8x1xf32>
    %337 = arith.cmpf ogt, %309, %336 : vector<8x1xf32>
    %338 = vector.broadcast %317 : i1 to vector<8x1xi1>
    %339 = arith.ori %338, %337 : vector<8x1xi1>
    %340 = vector.shape_cast %339 : vector<8x1xi1> to vector<8x1xi1>
    %341 = vector.broadcast %340 : vector<8x1xi1> to vector<8x6xi1>
    %342 = arith.select %341, %335, %285 : vector<8x6xi1>, vector<8x6xf32>
    %343 = vector.shape_cast %302 : vector<8x6xf32> to vector<8x6x1xf32>
    %344 = vector.shape_cast %10 : vector<6x6xf32> to vector<1x6x6xf32>
    %345 = vector.broadcast %343 : vector<8x6x1xf32> to vector<8x6x6xf32>
    %346 = vector.broadcast %344 : vector<1x6x6xf32> to vector<8x6x6xf32>
    %347 = arith.mulf %345, %346 : vector<8x6x6xf32>
    %cst_95 = arith.constant dense<0.000000e+00> : vector<8x6xf32>
    %348 = vector.multi_reduction <add>, %347, %cst_95 [1] : vector<8x6x6xf32> to vector<8x6xf32>
    %349 = arith.addf %348, %306 : vector<8x6xf32>
    %350 = arith.mulf %316, %349 : vector<8x6xf32>
    %cst_96 = arith.constant dense<0.000000e+00> : vector<8xf32>
    %351 = vector.multi_reduction <add>, %350, %cst_96 [1] : vector<8x6xf32> to vector<8xf32>
    %352 = vector.shape_cast %351 : vector<8xf32> to vector<8x1xf32>
    %353 = arith.mulf %352, %309 : vector<8x1xf32>
    %354 = arith.addf %297, %353 : vector<8x1xf32>
    %cst_97 = arith.constant 0.000000e+00 : f32
    %355 = vector.broadcast %cst_97 : f32 to vector<8x1xf32>
    %356 = arith.cmpf ogt, %309, %355 : vector<8x1xf32>
    %357 = vector.shape_cast %356 : vector<8x1xi1> to vector<8x1xi1>
    %358 = vector.broadcast %357 : vector<8x1xi1> to vector<8x6xi1>
    %359 = arith.select %358, %316, %302 : vector<8x6xi1>, vector<8x6xf32>
    %c6_i32 = arith.constant 6 : i32
    %c8_i32_98 = arith.constant 8 : i32
    %360 = arith.muli %c6_i32, %c8_i32_98 : i32
    %361 = tpu.assume_multiple %360, 8 : i32
    %362 = arith.index_cast %361 : i32 to index
    %c0_99 = arith.constant 0 : index
    %363 = vector.load %arg8[%362, %c0_99] : memref<64x6xf32, #tpu.memory_space<vmem>>, vector<8x6xf32>
    %364 = arith.index_cast %c6_i32 : i32 to index
    %c0_100 = arith.constant 0 : index
    %c0_101 = arith.constant 0 : index
    %365 = vector.load %arg6[%364, %c0_100, %c0_101] : memref<8x8x1xf32, #tpu.memory_space<vmem>>, vector<1x8x1xf32>
    %366 = vector.shape_cast %365 : vector<1x8x1xf32> to vector<8x1xf32>
    %c0_102 = arith.constant 0 : index
    %367 = arith.index_cast %c6_i32 : i32 to index
    %c0_103 = arith.constant 0 : index
    %c0_104 = arith.constant 0 : index
    %368 = vector.load %arg5[%c0_102, %367, %c0_103, %c0_104] : memref<1x8x8x1xi32, #tpu.memory_space<vmem>>, vector<1x1x8x1xi32>
    %369 = vector.shape_cast %368 : vector<1x1x8x1xi32> to vector<8x1xi32>
    %370 = vector.broadcast %369 : vector<8x1xi32> to vector<8x6xi32>
    %371 = arith.cmpi eq, %11, %370 : vector<8x6xi32>
    %372 = arith.extui %371 : vector<8x6xi1> to vector<8x6xi32>
    %373 = arith.sitofp %372 : vector<8x6xi32> to vector<8x6xf32>
    %c0_i32_105 = arith.constant 0 : i32
    %374 = arith.cmpi eq, %c6_i32, %c0_i32_105 : i32
    %375 = vector.shape_cast %342 : vector<8x6xf32> to vector<8x6x1xf32>
    %376 = vector.shape_cast %10 : vector<6x6xf32> to vector<1x6x6xf32>
    %377 = vector.broadcast %375 : vector<8x6x1xf32> to vector<8x6x6xf32>
    %378 = vector.broadcast %376 : vector<1x6x6xf32> to vector<8x6x6xf32>
    %379 = arith.addf %377, %378 : vector<8x6x6xf32>
    %cst_106 = arith.constant dense<0xFF800000> : vector<8x6xf32>
    %380 = vector.multi_reduction <maximumf>, %379, %cst_106 [1] : vector<8x6x6xf32> to vector<8x6xf32>
    %381 = vector.shape_cast %380 : vector<8x6xf32> to vector<8x1x6xf32>
    %382 = vector.broadcast %381 : vector<8x1x6xf32> to vector<8x6x6xf32>
    %383 = arith.subf %379, %382 : vector<8x6x6xf32>
    %384 = math.exp %383 : vector<8x6x6xf32>
    %cst_107 = arith.constant dense<0.000000e+00> : vector<8x6xf32>
    %385 = vector.multi_reduction <add>, %384, %cst_107 [1] : vector<8x6x6xf32> to vector<8x6xf32>
    %386 = math.log %385 : vector<8x6xf32>
    %387 = arith.addf %380, %386 : vector<8x6xf32>
    %388 = arith.addf %387, %363 : vector<8x6xf32>
    %389 = vector.extract_strided_slice %10 {offsets = [5, 0], sizes = [1, 6], strides = [1, 1]} : vector<6x6xf32> to vector<1x6xf32>
    %390 = vector.broadcast %389 : vector<1x6xf32> to vector<8x6xf32>
    %391 = arith.addf %390, %363 : vector<8x6xf32>
    %392 = arith.select %374, %391, %388 : vector<8x6xf32>
    %cst_108 = arith.constant 0.000000e+00 : f32
    %393 = vector.broadcast %cst_108 : f32 to vector<8x1xf32>
    %394 = arith.cmpf ogt, %366, %393 : vector<8x1xf32>
    %395 = vector.broadcast %374 : i1 to vector<8x1xi1>
    %396 = arith.ori %395, %394 : vector<8x1xi1>
    %397 = vector.shape_cast %396 : vector<8x1xi1> to vector<8x1xi1>
    %398 = vector.broadcast %397 : vector<8x1xi1> to vector<8x6xi1>
    %399 = arith.select %398, %392, %342 : vector<8x6xi1>, vector<8x6xf32>
    %400 = vector.shape_cast %359 : vector<8x6xf32> to vector<8x6x1xf32>
    %401 = vector.shape_cast %10 : vector<6x6xf32> to vector<1x6x6xf32>
    %402 = vector.broadcast %400 : vector<8x6x1xf32> to vector<8x6x6xf32>
    %403 = vector.broadcast %401 : vector<1x6x6xf32> to vector<8x6x6xf32>
    %404 = arith.mulf %402, %403 : vector<8x6x6xf32>
    %cst_109 = arith.constant dense<0.000000e+00> : vector<8x6xf32>
    %405 = vector.multi_reduction <add>, %404, %cst_109 [1] : vector<8x6x6xf32> to vector<8x6xf32>
    %406 = arith.addf %405, %363 : vector<8x6xf32>
    %407 = arith.mulf %373, %406 : vector<8x6xf32>
    %cst_110 = arith.constant dense<0.000000e+00> : vector<8xf32>
    %408 = vector.multi_reduction <add>, %407, %cst_110 [1] : vector<8x6xf32> to vector<8xf32>
    %409 = vector.shape_cast %408 : vector<8xf32> to vector<8x1xf32>
    %410 = arith.mulf %409, %366 : vector<8x1xf32>
    %411 = arith.addf %354, %410 : vector<8x1xf32>
    %cst_111 = arith.constant 0.000000e+00 : f32
    %412 = vector.broadcast %cst_111 : f32 to vector<8x1xf32>
    %413 = arith.cmpf ogt, %366, %412 : vector<8x1xf32>
    %414 = vector.shape_cast %413 : vector<8x1xi1> to vector<8x1xi1>
    %415 = vector.broadcast %414 : vector<8x1xi1> to vector<8x6xi1>
    %416 = arith.select %415, %373, %359 : vector<8x6xi1>, vector<8x6xf32>
    %c7_i32 = arith.constant 7 : i32
    %c8_i32_112 = arith.constant 8 : i32
    %417 = arith.muli %c7_i32, %c8_i32_112 : i32
    %418 = tpu.assume_multiple %417, 8 : i32
    %419 = arith.index_cast %418 : i32 to index
    %c0_113 = arith.constant 0 : index
    %420 = vector.load %arg8[%419, %c0_113] : memref<64x6xf32, #tpu.memory_space<vmem>>, vector<8x6xf32>
    %421 = arith.index_cast %c7_i32 : i32 to index
    %c0_114 = arith.constant 0 : index
    %c0_115 = arith.constant 0 : index
    %422 = vector.load %arg6[%421, %c0_114, %c0_115] : memref<8x8x1xf32, #tpu.memory_space<vmem>>, vector<1x8x1xf32>
    %423 = vector.shape_cast %422 : vector<1x8x1xf32> to vector<8x1xf32>
    %c0_116 = arith.constant 0 : index
    %424 = arith.index_cast %c7_i32 : i32 to index
    %c0_117 = arith.constant 0 : index
    %c0_118 = arith.constant 0 : index
    %425 = vector.load %arg5[%c0_116, %424, %c0_117, %c0_118] : memref<1x8x8x1xi32, #tpu.memory_space<vmem>>, vector<1x1x8x1xi32>
    %426 = vector.shape_cast %425 : vector<1x1x8x1xi32> to vector<8x1xi32>
    %427 = vector.broadcast %426 : vector<8x1xi32> to vector<8x6xi32>
    %428 = arith.cmpi eq, %11, %427 : vector<8x6xi32>
    %429 = arith.extui %428 : vector<8x6xi1> to vector<8x6xi32>
    %430 = arith.sitofp %429 : vector<8x6xi32> to vector<8x6xf32>
    %c0_i32_119 = arith.constant 0 : i32
    %431 = arith.cmpi eq, %c7_i32, %c0_i32_119 : i32
    %432 = vector.shape_cast %399 : vector<8x6xf32> to vector<8x6x1xf32>
    %433 = vector.shape_cast %10 : vector<6x6xf32> to vector<1x6x6xf32>
    %434 = vector.broadcast %432 : vector<8x6x1xf32> to vector<8x6x6xf32>
    %435 = vector.broadcast %433 : vector<1x6x6xf32> to vector<8x6x6xf32>
    %436 = arith.addf %434, %435 : vector<8x6x6xf32>
    %cst_120 = arith.constant dense<0xFF800000> : vector<8x6xf32>
    %437 = vector.multi_reduction <maximumf>, %436, %cst_120 [1] : vector<8x6x6xf32> to vector<8x6xf32>
    %438 = vector.shape_cast %437 : vector<8x6xf32> to vector<8x1x6xf32>
    %439 = vector.broadcast %438 : vector<8x1x6xf32> to vector<8x6x6xf32>
    %440 = arith.subf %436, %439 : vector<8x6x6xf32>
    %441 = math.exp %440 : vector<8x6x6xf32>
    %cst_121 = arith.constant dense<0.000000e+00> : vector<8x6xf32>
    %442 = vector.multi_reduction <add>, %441, %cst_121 [1] : vector<8x6x6xf32> to vector<8x6xf32>
    %443 = math.log %442 : vector<8x6xf32>
    %444 = arith.addf %437, %443 : vector<8x6xf32>
    %445 = arith.addf %444, %420 : vector<8x6xf32>
    %446 = vector.extract_strided_slice %10 {offsets = [5, 0], sizes = [1, 6], strides = [1, 1]} : vector<6x6xf32> to vector<1x6xf32>
    %447 = vector.broadcast %446 : vector<1x6xf32> to vector<8x6xf32>
    %448 = arith.addf %447, %420 : vector<8x6xf32>
    %449 = arith.select %431, %448, %445 : vector<8x6xf32>
    %cst_122 = arith.constant 0.000000e+00 : f32
    %450 = vector.broadcast %cst_122 : f32 to vector<8x1xf32>
    %451 = arith.cmpf ogt, %423, %450 : vector<8x1xf32>
    %452 = vector.broadcast %431 : i1 to vector<8x1xi1>
    %453 = arith.ori %452, %451 : vector<8x1xi1>
    %454 = vector.shape_cast %453 : vector<8x1xi1> to vector<8x1xi1>
    %455 = vector.broadcast %454 : vector<8x1xi1> to vector<8x6xi1>
    %456 = arith.select %455, %449, %399 : vector<8x6xi1>, vector<8x6xf32>
    %457 = vector.shape_cast %416 : vector<8x6xf32> to vector<8x6x1xf32>
    %458 = vector.shape_cast %10 : vector<6x6xf32> to vector<1x6x6xf32>
    %459 = vector.broadcast %457 : vector<8x6x1xf32> to vector<8x6x6xf32>
    %460 = vector.broadcast %458 : vector<1x6x6xf32> to vector<8x6x6xf32>
    %461 = arith.mulf %459, %460 : vector<8x6x6xf32>
    %cst_123 = arith.constant dense<0.000000e+00> : vector<8x6xf32>
    %462 = vector.multi_reduction <add>, %461, %cst_123 [1] : vector<8x6x6xf32> to vector<8x6xf32>
    %463 = arith.addf %462, %420 : vector<8x6xf32>
    %464 = arith.mulf %430, %463 : vector<8x6xf32>
    %cst_124 = arith.constant dense<0.000000e+00> : vector<8xf32>
    %465 = vector.multi_reduction <add>, %464, %cst_124 [1] : vector<8x6xf32> to vector<8xf32>
    %466 = vector.shape_cast %465 : vector<8xf32> to vector<8x1xf32>
    %467 = arith.mulf %466, %423 : vector<8x1xf32>
    %468 = arith.addf %411, %467 : vector<8x1xf32>
    %cst_125 = arith.constant 0.000000e+00 : f32
    %469 = vector.broadcast %cst_125 : f32 to vector<8x1xf32>
    %470 = arith.cmpf ogt, %423, %469 : vector<8x1xf32>
    %471 = vector.shape_cast %470 : vector<8x1xi1> to vector<8x1xi1>
    %472 = vector.broadcast %471 : vector<8x1xi1> to vector<8x6xi1>
    %473 = arith.select %472, %430, %416 : vector<8x6xi1>, vector<8x6xf32>
    %c8_i32_126 = arith.constant 8 : i32
    %cst_127 = arith.constant dense<0xFF800000> : vector<8xf32>
    %474 = vector.multi_reduction <maximumf>, %456, %cst_127 [1] : vector<8x6xf32> to vector<8xf32>
    %475 = vector.shape_cast %474 : vector<8xf32> to vector<8x1xf32>
    %476 = vector.broadcast %475 : vector<8x1xf32> to vector<8x6xf32>
    %477 = arith.subf %456, %476 : vector<8x6xf32>
    %478 = math.exp %477 : vector<8x6xf32>
    %cst_128 = arith.constant dense<0.000000e+00> : vector<8xf32>
    %479 = vector.multi_reduction <add>, %478, %cst_128 [1] : vector<8x6xf32> to vector<8xf32>
    %480 = vector.shape_cast %479 : vector<8xf32> to vector<8x1xf32>
    %481 = math.log %480 : vector<8x1xf32>
    %482 = arith.addf %475, %481 : vector<8x1xf32>
    %483 = arith.subf %482, %468 : vector<8x1xf32>
    %c0_129 = arith.constant 0 : index
    %c0_130 = arith.constant 0 : index
    %c0_131 = arith.constant 0 : index
    %484 = vector.load %arg7[%c0_129, %c0_130, %c0_131] : memref<1x8x1xf32, #tpu.memory_space<vmem>>, vector<1x8x1xf32>
    %485 = vector.shape_cast %484 : vector<1x8x1xf32> to vector<8x1xf32>
    %486 = vector.shape_cast %483 : vector<8x1xf32> to vector<1x8x1xf32>
    tpu.vector_store %arg7[%c0_129, %c0_130, %c0_131], %486 {strides = array<i32>} : memref<1x8x1xf32, #tpu.memory_space<vmem>>, vector<1x8x1xf32>,
    return
  }
  func.func @transform_0(%arg0: i32) -> (i32, i32) {
    %c0_i32 = arith.constant 0 : i32
    %c0_i32_0 = arith.constant 0 : i32
    %c0_i32_1 = arith.constant 0 : i32
    return %c0_i32, %c0_i32_0 : i32, i32
  }
  func.func @transform_1(%arg0: i32) -> (i32, i32, i32) {
    %c0_i32 = arith.constant 0 : i32
    %c0_i32_0 = arith.constant 0 : i32
    %c0_i32_1 = arith.constant 0 : i32
    return %arg0, %c0_i32, %c0_i32_0 : i32, i32, i32
  }
  func.func @transform_2(%arg0: i32) -> (i32, i32, i32) {
    %c0_i32 = arith.constant 0 : i32
    %c0_i32_0 = arith.constant 0 : i32
    %c0_i32_1 = arith.constant 0 : i32
    return %arg0, %c0_i32, %c0_i32_0 : i32, i32, i32
  }
  func.func @transform_3(%arg0: i32) -> (i32, i32, i32) {
    %c0_i32 = arith.constant 0 : i32
    %c0_i32_0 = arith.constant 0 : i32
    %c0_i32_1 = arith.constant 0 : i32
    return %arg0, %c0_i32, %c0_i32_0 : i32, i32, i32
  }
  func.func @transform_4(%arg0: i32) -> (i32, i32, i32, i32) {
    %c0_i32 = arith.constant 0 : i32
    %c0_i32_0 = arith.constant 0 : i32
    %c0_i32_1 = arith.constant 0 : i32
    %c0_i32_2 = arith.constant 0 : i32
    return %arg0, %c0_i32, %c0_i32_0, %c0_i32_1 : i32, i32, i32, i32
  }
  func.func @transform_5(%arg0: i32) -> (i32, i32, i32) {
    %c0_i32 = arith.constant 0 : i32
    %c0_i32_0 = arith.constant 0 : i32
    %c0_i32_1 = arith.constant 0 : i32
    %c0_i32_2 = arith.constant 0 : i32
    return %c0_i32, %c0_i32_0, %c0_i32_1 : i32, i32, i32
  }
  func.func @transform_6(%arg0: i32) -> (i32, i32, i32) {
    %c0_i32 = arith.constant 0 : i32
    %c0_i32_0 = arith.constant 0 : i32
    %c0_i32_1 = arith.constant 0 : i32
    return %arg0, %c0_i32, %c0_i32_0 : i32, i32, i32
  }
}

module attributes {stable_mosaic.version = 11 : i64} {
  func.func @_bilstm_kernel(%arg0: i32, %arg1: memref<8x8x512xf32, #tpu.memory_space<vmem>>, %arg2: memref<8x8x1xf32, #tpu.memory_space<vmem>>, %arg3: memref<64x256xf32, #tpu.memory_space<vmem>>, %arg4: memref<64x256xf32, #tpu.memory_space<vmem>>, %arg5: memref<8x8x128xf32, #tpu.memory_space<vmem>>, %arg6: memref<8x8x64xf32, #tpu.memory_space<vmem>>, %arg7: memref<8x8x64xf32, #tpu.memory_space<vmem>>) attributes {dimension_semantics = [#tpu.dimension_semantics<arbitrary>], iteration_bounds = array<i64: 1>, scalar_prefetch = 0 : i64, scratch_operands = 2 : i64, tpu.core_type = #tpu.core_type<tc>, window_params = [{pipeline_mode = #tpu.pipeline_mode<synchronous>, transform_indices = @transform_0, window_bounds = array<i64: 8, 8, 512>}, {pipeline_mode = #tpu.pipeline_mode<synchronous>, transform_indices = @transform_1, window_bounds = array<i64: 8, 8, 1>}, {pipeline_mode = #tpu.pipeline_mode<synchronous>, transform_indices = @transform_2, window_bounds = array<i64: 64, 256>}, {pipeline_mode = #tpu.pipeline_mode<synchronous>, transform_indices = @transform_3, window_bounds = array<i64: 64, 256>}, {pipeline_mode = #tpu.pipeline_mode<synchronous>, transform_indices = @transform_4, window_bounds = array<i64: 8, 8, 128>}]} {
    %cst = arith.constant 0.000000e+00 : f32
    %0 = vector.broadcast %cst : f32 to vector<8x64xf32>
    %c0_i32 = arith.constant 0 : i32
    %c7_i32 = arith.constant 7 : i32
    %1 = arith.subi %c7_i32, %c0_i32 : i32
    %2 = arith.index_cast %c0_i32 : i32 to index
    %c0 = arith.constant 0 : index
    %c0_0 = arith.constant 0 : index
    %3 = vector.load %arg1[%2, %c0, %c0_0] : memref<8x8x512xf32, #tpu.memory_space<vmem>>, vector<1x8x512xf32>
    %4 = vector.shape_cast %3 : vector<1x8x512xf32> to vector<8x512xf32>
    %5 = arith.index_cast %1 : i32 to index
    %c0_1 = arith.constant 0 : index
    %c0_2 = arith.constant 0 : index
    %6 = vector.load %arg1[%5, %c0_1, %c0_2] : memref<8x8x512xf32, #tpu.memory_space<vmem>>, vector<1x8x512xf32>
    %7 = vector.shape_cast %6 : vector<1x8x512xf32> to vector<8x512xf32>
    %8 = arith.index_cast %c0_i32 : i32 to index
    %c0_3 = arith.constant 0 : index
    %c0_4 = arith.constant 0 : index
    %9 = vector.load %arg2[%8, %c0_3, %c0_4] : memref<8x8x1xf32, #tpu.memory_space<vmem>>, vector<1x8x1xf32>
    %10 = vector.shape_cast %9 : vector<1x8x1xf32> to vector<8x1xf32>
    %11 = arith.index_cast %1 : i32 to index
    %c0_5 = arith.constant 0 : index
    %c0_6 = arith.constant 0 : index
    %12 = vector.load %arg2[%11, %c0_5, %c0_6] : memref<8x8x1xf32, #tpu.memory_space<vmem>>, vector<1x8x1xf32>
    %13 = vector.shape_cast %12 : vector<1x8x1xf32> to vector<8x1xf32>
    %14 = vector.extract_strided_slice %4 {offsets = [0, 0], sizes = [8, 256], strides = [1, 1]} : vector<8x512xf32> to vector<8x256xf32>
    %c0_7 = arith.constant 0 : index
    %c0_8 = arith.constant 0 : index
    %15 = vector.load %arg3[%c0_7, %c0_8] : memref<64x256xf32, #tpu.memory_space<vmem>>, vector<64x256xf32>
    %cst_9 = arith.constant dense<0.000000e+00> : vector<8x256xf32>
    %16 = tpu.matmul %0, %15, %cst_9 {dimension_numbers = #tpu.dot_dimension_numbers<[1], [0], [0], [1], [0, 0, 1, 1], [], []>} : vector<8x64xf32>, vector<64x256xf32>, vector<8x256xf32> -> vector<8x256xf32>
    %17 = arith.addf %14, %16 : vector<8x256xf32>
    %18 = vector.extract_strided_slice %7 {offsets = [0, 256], sizes = [8, 256], strides = [1, 1]} : vector<8x512xf32> to vector<8x256xf32>
    %c0_10 = arith.constant 0 : index
    %c0_11 = arith.constant 0 : index
    %19 = vector.load %arg4[%c0_10, %c0_11] : memref<64x256xf32, #tpu.memory_space<vmem>>, vector<64x256xf32>
    %cst_12 = arith.constant dense<0.000000e+00> : vector<8x256xf32>
    %20 = tpu.matmul %0, %19, %cst_12 {dimension_numbers = #tpu.dot_dimension_numbers<[1], [0], [0], [1], [0, 0, 1, 1], [], []>} : vector<8x64xf32>, vector<64x256xf32>, vector<8x256xf32> -> vector<8x256xf32>
    %21 = arith.addf %18, %20 : vector<8x256xf32>
    %22 = vector.extract_strided_slice %17 {offsets = [0, 0], sizes = [8, 64], strides = [1, 1]} : vector<8x256xf32> to vector<8x64xf32>
    %23 = arith.negf %22 : vector<8x64xf32>
    %24 = math.exp %23 : vector<8x64xf32>
    %cst_13 = arith.constant 1.000000e+00 : f32
    %25 = vector.broadcast %cst_13 : f32 to vector<8x64xf32>
    %26 = arith.addf %25, %24 : vector<8x64xf32>
    %27 = arith.divf %25, %26 : vector<8x64xf32>
    %28 = vector.extract_strided_slice %17 {offsets = [0, 64], sizes = [8, 64], strides = [1, 1]} : vector<8x256xf32> to vector<8x64xf32>
    %29 = arith.negf %28 : vector<8x64xf32>
    %30 = math.exp %29 : vector<8x64xf32>
    %cst_14 = arith.constant 1.000000e+00 : f32
    %31 = vector.broadcast %cst_14 : f32 to vector<8x64xf32>
    %32 = arith.addf %31, %30 : vector<8x64xf32>
    %33 = arith.divf %31, %32 : vector<8x64xf32>
    %34 = vector.extract_strided_slice %17 {offsets = [0, 128], sizes = [8, 64], strides = [1, 1]} : vector<8x256xf32> to vector<8x64xf32>
    %35 = math.tanh %34 : vector<8x64xf32>
    %36 = vector.extract_strided_slice %17 {offsets = [0, 192], sizes = [8, 64], strides = [1, 1]} : vector<8x256xf32> to vector<8x64xf32>
    %37 = arith.negf %36 : vector<8x64xf32>
    %38 = math.exp %37 : vector<8x64xf32>
    %cst_15 = arith.constant 1.000000e+00 : f32
    %39 = vector.broadcast %cst_15 : f32 to vector<8x64xf32>
    %40 = arith.addf %39, %38 : vector<8x64xf32>
    %41 = arith.divf %39, %40 : vector<8x64xf32>
    %42 = arith.mulf %33, %0 : vector<8x64xf32>
    %43 = arith.mulf %27, %35 : vector<8x64xf32>
    %44 = arith.addf %42, %43 : vector<8x64xf32>
    %45 = math.tanh %44 : vector<8x64xf32>
    %46 = arith.mulf %41, %45 : vector<8x64xf32>
    %47 = vector.broadcast %10 : vector<8x1xf32> to vector<8x64xf32>
    %48 = arith.mulf %47, %44 : vector<8x64xf32>
    %cst_16 = arith.constant 1.000000e+00 : f32
    %49 = vector.broadcast %cst_16 : f32 to vector<8x1xf32>
    %50 = arith.subf %49, %10 : vector<8x1xf32>
    %51 = vector.broadcast %50 : vector<8x1xf32> to vector<8x64xf32>
    %52 = arith.mulf %51, %0 : vector<8x64xf32>
    %53 = arith.addf %48, %52 : vector<8x64xf32>
    %54 = vector.broadcast %10 : vector<8x1xf32> to vector<8x64xf32>
    %55 = arith.mulf %54, %46 : vector<8x64xf32>
    %cst_17 = arith.constant 1.000000e+00 : f32
    %56 = vector.broadcast %cst_17 : f32 to vector<8x1xf32>
    %57 = arith.subf %56, %10 : vector<8x1xf32>
    %58 = vector.broadcast %57 : vector<8x1xf32> to vector<8x64xf32>
    %59 = arith.mulf %58, %0 : vector<8x64xf32>
    %60 = arith.addf %55, %59 : vector<8x64xf32>
    %61 = vector.extract_strided_slice %21 {offsets = [0, 0], sizes = [8, 64], strides = [1, 1]} : vector<8x256xf32> to vector<8x64xf32>
    %62 = arith.negf %61 : vector<8x64xf32>
    %63 = math.exp %62 : vector<8x64xf32>
    %cst_18 = arith.constant 1.000000e+00 : f32
    %64 = vector.broadcast %cst_18 : f32 to vector<8x64xf32>
    %65 = arith.addf %64, %63 : vector<8x64xf32>
    %66 = arith.divf %64, %65 : vector<8x64xf32>
    %67 = vector.extract_strided_slice %21 {offsets = [0, 64], sizes = [8, 64], strides = [1, 1]} : vector<8x256xf32> to vector<8x64xf32>
    %68 = arith.negf %67 : vector<8x64xf32>
    %69 = math.exp %68 : vector<8x64xf32>
    %cst_19 = arith.constant 1.000000e+00 : f32
    %70 = vector.broadcast %cst_19 : f32 to vector<8x64xf32>
    %71 = arith.addf %70, %69 : vector<8x64xf32>
    %72 = arith.divf %70, %71 : vector<8x64xf32>
    %73 = vector.extract_strided_slice %21 {offsets = [0, 128], sizes = [8, 64], strides = [1, 1]} : vector<8x256xf32> to vector<8x64xf32>
    %74 = math.tanh %73 : vector<8x64xf32>
    %75 = vector.extract_strided_slice %21 {offsets = [0, 192], sizes = [8, 64], strides = [1, 1]} : vector<8x256xf32> to vector<8x64xf32>
    %76 = arith.negf %75 : vector<8x64xf32>
    %77 = math.exp %76 : vector<8x64xf32>
    %cst_20 = arith.constant 1.000000e+00 : f32
    %78 = vector.broadcast %cst_20 : f32 to vector<8x64xf32>
    %79 = arith.addf %78, %77 : vector<8x64xf32>
    %80 = arith.divf %78, %79 : vector<8x64xf32>
    %81 = arith.mulf %72, %0 : vector<8x64xf32>
    %82 = arith.mulf %66, %74 : vector<8x64xf32>
    %83 = arith.addf %81, %82 : vector<8x64xf32>
    %84 = math.tanh %83 : vector<8x64xf32>
    %85 = arith.mulf %80, %84 : vector<8x64xf32>
    %86 = vector.broadcast %13 : vector<8x1xf32> to vector<8x64xf32>
    %87 = arith.mulf %86, %83 : vector<8x64xf32>
    %cst_21 = arith.constant 1.000000e+00 : f32
    %88 = vector.broadcast %cst_21 : f32 to vector<8x1xf32>
    %89 = arith.subf %88, %13 : vector<8x1xf32>
    %90 = vector.broadcast %89 : vector<8x1xf32> to vector<8x64xf32>
    %91 = arith.mulf %90, %0 : vector<8x64xf32>
    %92 = arith.addf %87, %91 : vector<8x64xf32>
    %93 = vector.broadcast %13 : vector<8x1xf32> to vector<8x64xf32>
    %94 = arith.mulf %93, %85 : vector<8x64xf32>
    %cst_22 = arith.constant 1.000000e+00 : f32
    %95 = vector.broadcast %cst_22 : f32 to vector<8x1xf32>
    %96 = arith.subf %95, %13 : vector<8x1xf32>
    %97 = vector.broadcast %96 : vector<8x1xf32> to vector<8x64xf32>
    %98 = arith.mulf %97, %0 : vector<8x64xf32>
    %99 = arith.addf %94, %98 : vector<8x64xf32>
    %100 = arith.index_cast %c0_i32 : i32 to index
    %c0_23 = arith.constant 0 : index
    %c0_24 = arith.constant 0 : index
    %101 = vector.load %arg6[%100, %c0_23, %c0_24] : memref<8x8x64xf32, #tpu.memory_space<vmem>>, vector<1x8x64xf32>
    %102 = vector.shape_cast %101 : vector<1x8x64xf32> to vector<8x64xf32>
    %103 = vector.shape_cast %60 : vector<8x64xf32> to vector<1x8x64xf32>
    tpu.vector_store %arg6[%100, %c0_23, %c0_24], %103 {strides = array<i32>} : memref<8x8x64xf32, #tpu.memory_space<vmem>>, vector<1x8x64xf32>,
    %104 = arith.index_cast %1 : i32 to index
    %c0_25 = arith.constant 0 : index
    %c0_26 = arith.constant 0 : index
    %105 = vector.load %arg7[%104, %c0_25, %c0_26] : memref<8x8x64xf32, #tpu.memory_space<vmem>>, vector<1x8x64xf32>
    %106 = vector.shape_cast %105 : vector<1x8x64xf32> to vector<8x64xf32>
    %107 = vector.shape_cast %99 : vector<8x64xf32> to vector<1x8x64xf32>
    tpu.vector_store %arg7[%104, %c0_25, %c0_26], %107 {strides = array<i32>} : memref<8x8x64xf32, #tpu.memory_space<vmem>>, vector<1x8x64xf32>,
    %c1_i32 = arith.constant 1 : i32
    %c7_i32_27 = arith.constant 7 : i32
    %108 = arith.subi %c7_i32_27, %c1_i32 : i32
    %109 = arith.index_cast %c1_i32 : i32 to index
    %c0_28 = arith.constant 0 : index
    %c0_29 = arith.constant 0 : index
    %110 = vector.load %arg1[%109, %c0_28, %c0_29] : memref<8x8x512xf32, #tpu.memory_space<vmem>>, vector<1x8x512xf32>
    %111 = vector.shape_cast %110 : vector<1x8x512xf32> to vector<8x512xf32>
    %112 = arith.index_cast %108 : i32 to index
    %c0_30 = arith.constant 0 : index
    %c0_31 = arith.constant 0 : index
    %113 = vector.load %arg1[%112, %c0_30, %c0_31] : memref<8x8x512xf32, #tpu.memory_space<vmem>>, vector<1x8x512xf32>
    %114 = vector.shape_cast %113 : vector<1x8x512xf32> to vector<8x512xf32>
    %115 = arith.index_cast %c1_i32 : i32 to index
    %c0_32 = arith.constant 0 : index
    %c0_33 = arith.constant 0 : index
    %116 = vector.load %arg2[%115, %c0_32, %c0_33] : memref<8x8x1xf32, #tpu.memory_space<vmem>>, vector<1x8x1xf32>
    %117 = vector.shape_cast %116 : vector<1x8x1xf32> to vector<8x1xf32>
    %118 = arith.index_cast %108 : i32 to index
    %c0_34 = arith.constant 0 : index
    %c0_35 = arith.constant 0 : index
    %119 = vector.load %arg2[%118, %c0_34, %c0_35] : memref<8x8x1xf32, #tpu.memory_space<vmem>>, vector<1x8x1xf32>
    %120 = vector.shape_cast %119 : vector<1x8x1xf32> to vector<8x1xf32>
    %121 = vector.extract_strided_slice %111 {offsets = [0, 0], sizes = [8, 256], strides = [1, 1]} : vector<8x512xf32> to vector<8x256xf32>
    %c0_36 = arith.constant 0 : index
    %c0_37 = arith.constant 0 : index
    %122 = vector.load %arg3[%c0_36, %c0_37] : memref<64x256xf32, #tpu.memory_space<vmem>>, vector<64x256xf32>
    %cst_38 = arith.constant dense<0.000000e+00> : vector<8x256xf32>
    %123 = tpu.matmul %60, %122, %cst_38 {dimension_numbers = #tpu.dot_dimension_numbers<[1], [0], [0], [1], [0, 0, 1, 1], [], []>} : vector<8x64xf32>, vector<64x256xf32>, vector<8x256xf32> -> vector<8x256xf32>
    %124 = arith.addf %121, %123 : vector<8x256xf32>
    %125 = vector.extract_strided_slice %114 {offsets = [0, 256], sizes = [8, 256], strides = [1, 1]} : vector<8x512xf32> to vector<8x256xf32>
    %c0_39 = arith.constant 0 : index
    %c0_40 = arith.constant 0 : index
    %126 = vector.load %arg4[%c0_39, %c0_40] : memref<64x256xf32, #tpu.memory_space<vmem>>, vector<64x256xf32>
    %cst_41 = arith.constant dense<0.000000e+00> : vector<8x256xf32>
    %127 = tpu.matmul %99, %126, %cst_41 {dimension_numbers = #tpu.dot_dimension_numbers<[1], [0], [0], [1], [0, 0, 1, 1], [], []>} : vector<8x64xf32>, vector<64x256xf32>, vector<8x256xf32> -> vector<8x256xf32>
    %128 = arith.addf %125, %127 : vector<8x256xf32>
    %129 = vector.extract_strided_slice %124 {offsets = [0, 0], sizes = [8, 64], strides = [1, 1]} : vector<8x256xf32> to vector<8x64xf32>
    %130 = arith.negf %129 : vector<8x64xf32>
    %131 = math.exp %130 : vector<8x64xf32>
    %cst_42 = arith.constant 1.000000e+00 : f32
    %132 = vector.broadcast %cst_42 : f32 to vector<8x64xf32>
    %133 = arith.addf %132, %131 : vector<8x64xf32>
    %134 = arith.divf %132, %133 : vector<8x64xf32>
    %135 = vector.extract_strided_slice %124 {offsets = [0, 64], sizes = [8, 64], strides = [1, 1]} : vector<8x256xf32> to vector<8x64xf32>
    %136 = arith.negf %135 : vector<8x64xf32>
    %137 = math.exp %136 : vector<8x64xf32>
    %cst_43 = arith.constant 1.000000e+00 : f32
    %138 = vector.broadcast %cst_43 : f32 to vector<8x64xf32>
    %139 = arith.addf %138, %137 : vector<8x64xf32>
    %140 = arith.divf %138, %139 : vector<8x64xf32>
    %141 = vector.extract_strided_slice %124 {offsets = [0, 128], sizes = [8, 64], strides = [1, 1]} : vector<8x256xf32> to vector<8x64xf32>
    %142 = math.tanh %141 : vector<8x64xf32>
    %143 = vector.extract_strided_slice %124 {offsets = [0, 192], sizes = [8, 64], strides = [1, 1]} : vector<8x256xf32> to vector<8x64xf32>
    %144 = arith.negf %143 : vector<8x64xf32>
    %145 = math.exp %144 : vector<8x64xf32>
    %cst_44 = arith.constant 1.000000e+00 : f32
    %146 = vector.broadcast %cst_44 : f32 to vector<8x64xf32>
    %147 = arith.addf %146, %145 : vector<8x64xf32>
    %148 = arith.divf %146, %147 : vector<8x64xf32>
    %149 = arith.mulf %140, %53 : vector<8x64xf32>
    %150 = arith.mulf %134, %142 : vector<8x64xf32>
    %151 = arith.addf %149, %150 : vector<8x64xf32>
    %152 = math.tanh %151 : vector<8x64xf32>
    %153 = arith.mulf %148, %152 : vector<8x64xf32>
    %154 = vector.broadcast %117 : vector<8x1xf32> to vector<8x64xf32>
    %155 = arith.mulf %154, %151 : vector<8x64xf32>
    %cst_45 = arith.constant 1.000000e+00 : f32
    %156 = vector.broadcast %cst_45 : f32 to vector<8x1xf32>
    %157 = arith.subf %156, %117 : vector<8x1xf32>
    %158 = vector.broadcast %157 : vector<8x1xf32> to vector<8x64xf32>
    %159 = arith.mulf %158, %53 : vector<8x64xf32>
    %160 = arith.addf %155, %159 : vector<8x64xf32>
    %161 = vector.broadcast %117 : vector<8x1xf32> to vector<8x64xf32>
    %162 = arith.mulf %161, %153 : vector<8x64xf32>
    %cst_46 = arith.constant 1.000000e+00 : f32
    %163 = vector.broadcast %cst_46 : f32 to vector<8x1xf32>
    %164 = arith.subf %163, %117 : vector<8x1xf32>
    %165 = vector.broadcast %164 : vector<8x1xf32> to vector<8x64xf32>
    %166 = arith.mulf %165, %60 : vector<8x64xf32>
    %167 = arith.addf %162, %166 : vector<8x64xf32>
    %168 = vector.extract_strided_slice %128 {offsets = [0, 0], sizes = [8, 64], strides = [1, 1]} : vector<8x256xf32> to vector<8x64xf32>
    %169 = arith.negf %168 : vector<8x64xf32>
    %170 = math.exp %169 : vector<8x64xf32>
    %cst_47 = arith.constant 1.000000e+00 : f32
    %171 = vector.broadcast %cst_47 : f32 to vector<8x64xf32>
    %172 = arith.addf %171, %170 : vector<8x64xf32>
    %173 = arith.divf %171, %172 : vector<8x64xf32>
    %174 = vector.extract_strided_slice %128 {offsets = [0, 64], sizes = [8, 64], strides = [1, 1]} : vector<8x256xf32> to vector<8x64xf32>
    %175 = arith.negf %174 : vector<8x64xf32>
    %176 = math.exp %175 : vector<8x64xf32>
    %cst_48 = arith.constant 1.000000e+00 : f32
    %177 = vector.broadcast %cst_48 : f32 to vector<8x64xf32>
    %178 = arith.addf %177, %176 : vector<8x64xf32>
    %179 = arith.divf %177, %178 : vector<8x64xf32>
    %180 = vector.extract_strided_slice %128 {offsets = [0, 128], sizes = [8, 64], strides = [1, 1]} : vector<8x256xf32> to vector<8x64xf32>
    %181 = math.tanh %180 : vector<8x64xf32>
    %182 = vector.extract_strided_slice %128 {offsets = [0, 192], sizes = [8, 64], strides = [1, 1]} : vector<8x256xf32> to vector<8x64xf32>
    %183 = arith.negf %182 : vector<8x64xf32>
    %184 = math.exp %183 : vector<8x64xf32>
    %cst_49 = arith.constant 1.000000e+00 : f32
    %185 = vector.broadcast %cst_49 : f32 to vector<8x64xf32>
    %186 = arith.addf %185, %184 : vector<8x64xf32>
    %187 = arith.divf %185, %186 : vector<8x64xf32>
    %188 = arith.mulf %179, %92 : vector<8x64xf32>
    %189 = arith.mulf %173, %181 : vector<8x64xf32>
    %190 = arith.addf %188, %189 : vector<8x64xf32>
    %191 = math.tanh %190 : vector<8x64xf32>
    %192 = arith.mulf %187, %191 : vector<8x64xf32>
    %193 = vector.broadcast %120 : vector<8x1xf32> to vector<8x64xf32>
    %194 = arith.mulf %193, %190 : vector<8x64xf32>
    %cst_50 = arith.constant 1.000000e+00 : f32
    %195 = vector.broadcast %cst_50 : f32 to vector<8x1xf32>
    %196 = arith.subf %195, %120 : vector<8x1xf32>
    %197 = vector.broadcast %196 : vector<8x1xf32> to vector<8x64xf32>
    %198 = arith.mulf %197, %92 : vector<8x64xf32>
    %199 = arith.addf %194, %198 : vector<8x64xf32>
    %200 = vector.broadcast %120 : vector<8x1xf32> to vector<8x64xf32>
    %201 = arith.mulf %200, %192 : vector<8x64xf32>
    %cst_51 = arith.constant 1.000000e+00 : f32
    %202 = vector.broadcast %cst_51 : f32 to vector<8x1xf32>
    %203 = arith.subf %202, %120 : vector<8x1xf32>
    %204 = vector.broadcast %203 : vector<8x1xf32> to vector<8x64xf32>
    %205 = arith.mulf %204, %99 : vector<8x64xf32>
    %206 = arith.addf %201, %205 : vector<8x64xf32>
    %207 = arith.index_cast %c1_i32 : i32 to index
    %c0_52 = arith.constant 0 : index
    %c0_53 = arith.constant 0 : index
    %208 = vector.load %arg6[%207, %c0_52, %c0_53] : memref<8x8x64xf32, #tpu.memory_space<vmem>>, vector<1x8x64xf32>
    %209 = vector.shape_cast %208 : vector<1x8x64xf32> to vector<8x64xf32>
    %210 = vector.shape_cast %167 : vector<8x64xf32> to vector<1x8x64xf32>
    tpu.vector_store %arg6[%207, %c0_52, %c0_53], %210 {strides = array<i32>} : memref<8x8x64xf32, #tpu.memory_space<vmem>>, vector<1x8x64xf32>,
    %211 = arith.index_cast %108 : i32 to index
    %c0_54 = arith.constant 0 : index
    %c0_55 = arith.constant 0 : index
    %212 = vector.load %arg7[%211, %c0_54, %c0_55] : memref<8x8x64xf32, #tpu.memory_space<vmem>>, vector<1x8x64xf32>
    %213 = vector.shape_cast %212 : vector<1x8x64xf32> to vector<8x64xf32>
    %214 = vector.shape_cast %206 : vector<8x64xf32> to vector<1x8x64xf32>
    tpu.vector_store %arg7[%211, %c0_54, %c0_55], %214 {strides = array<i32>} : memref<8x8x64xf32, #tpu.memory_space<vmem>>, vector<1x8x64xf32>,
    %c2_i32 = arith.constant 2 : i32
    %c7_i32_56 = arith.constant 7 : i32
    %215 = arith.subi %c7_i32_56, %c2_i32 : i32
    %216 = arith.index_cast %c2_i32 : i32 to index
    %c0_57 = arith.constant 0 : index
    %c0_58 = arith.constant 0 : index
    %217 = vector.load %arg1[%216, %c0_57, %c0_58] : memref<8x8x512xf32, #tpu.memory_space<vmem>>, vector<1x8x512xf32>
    %218 = vector.shape_cast %217 : vector<1x8x512xf32> to vector<8x512xf32>
    %219 = arith.index_cast %215 : i32 to index
    %c0_59 = arith.constant 0 : index
    %c0_60 = arith.constant 0 : index
    %220 = vector.load %arg1[%219, %c0_59, %c0_60] : memref<8x8x512xf32, #tpu.memory_space<vmem>>, vector<1x8x512xf32>
    %221 = vector.shape_cast %220 : vector<1x8x512xf32> to vector<8x512xf32>
    %222 = arith.index_cast %c2_i32 : i32 to index
    %c0_61 = arith.constant 0 : index
    %c0_62 = arith.constant 0 : index
    %223 = vector.load %arg2[%222, %c0_61, %c0_62] : memref<8x8x1xf32, #tpu.memory_space<vmem>>, vector<1x8x1xf32>
    %224 = vector.shape_cast %223 : vector<1x8x1xf32> to vector<8x1xf32>
    %225 = arith.index_cast %215 : i32 to index
    %c0_63 = arith.constant 0 : index
    %c0_64 = arith.constant 0 : index
    %226 = vector.load %arg2[%225, %c0_63, %c0_64] : memref<8x8x1xf32, #tpu.memory_space<vmem>>, vector<1x8x1xf32>
    %227 = vector.shape_cast %226 : vector<1x8x1xf32> to vector<8x1xf32>
    %228 = vector.extract_strided_slice %218 {offsets = [0, 0], sizes = [8, 256], strides = [1, 1]} : vector<8x512xf32> to vector<8x256xf32>
    %c0_65 = arith.constant 0 : index
    %c0_66 = arith.constant 0 : index
    %229 = vector.load %arg3[%c0_65, %c0_66] : memref<64x256xf32, #tpu.memory_space<vmem>>, vector<64x256xf32>
    %cst_67 = arith.constant dense<0.000000e+00> : vector<8x256xf32>
    %230 = tpu.matmul %167, %229, %cst_67 {dimension_numbers = #tpu.dot_dimension_numbers<[1], [0], [0], [1], [0, 0, 1, 1], [], []>} : vector<8x64xf32>, vector<64x256xf32>, vector<8x256xf32> -> vector<8x256xf32>
    %231 = arith.addf %228, %230 : vector<8x256xf32>
    %232 = vector.extract_strided_slice %221 {offsets = [0, 256], sizes = [8, 256], strides = [1, 1]} : vector<8x512xf32> to vector<8x256xf32>
    %c0_68 = arith.constant 0 : index
    %c0_69 = arith.constant 0 : index
    %233 = vector.load %arg4[%c0_68, %c0_69] : memref<64x256xf32, #tpu.memory_space<vmem>>, vector<64x256xf32>
    %cst_70 = arith.constant dense<0.000000e+00> : vector<8x256xf32>
    %234 = tpu.matmul %206, %233, %cst_70 {dimension_numbers = #tpu.dot_dimension_numbers<[1], [0], [0], [1], [0, 0, 1, 1], [], []>} : vector<8x64xf32>, vector<64x256xf32>, vector<8x256xf32> -> vector<8x256xf32>
    %235 = arith.addf %232, %234 : vector<8x256xf32>
    %236 = vector.extract_strided_slice %231 {offsets = [0, 0], sizes = [8, 64], strides = [1, 1]} : vector<8x256xf32> to vector<8x64xf32>
    %237 = arith.negf %236 : vector<8x64xf32>
    %238 = math.exp %237 : vector<8x64xf32>
    %cst_71 = arith.constant 1.000000e+00 : f32
    %239 = vector.broadcast %cst_71 : f32 to vector<8x64xf32>
    %240 = arith.addf %239, %238 : vector<8x64xf32>
    %241 = arith.divf %239, %240 : vector<8x64xf32>
    %242 = vector.extract_strided_slice %231 {offsets = [0, 64], sizes = [8, 64], strides = [1, 1]} : vector<8x256xf32> to vector<8x64xf32>
    %243 = arith.negf %242 : vector<8x64xf32>
    %244 = math.exp %243 : vector<8x64xf32>
    %cst_72 = arith.constant 1.000000e+00 : f32
    %245 = vector.broadcast %cst_72 : f32 to vector<8x64xf32>
    %246 = arith.addf %245, %244 : vector<8x64xf32>
    %247 = arith.divf %245, %246 : vector<8x64xf32>
    %248 = vector.extract_strided_slice %231 {offsets = [0, 128], sizes = [8, 64], strides = [1, 1]} : vector<8x256xf32> to vector<8x64xf32>
    %249 = math.tanh %248 : vector<8x64xf32>
    %250 = vector.extract_strided_slice %231 {offsets = [0, 192], sizes = [8, 64], strides = [1, 1]} : vector<8x256xf32> to vector<8x64xf32>
    %251 = arith.negf %250 : vector<8x64xf32>
    %252 = math.exp %251 : vector<8x64xf32>
    %cst_73 = arith.constant 1.000000e+00 : f32
    %253 = vector.broadcast %cst_73 : f32 to vector<8x64xf32>
    %254 = arith.addf %253, %252 : vector<8x64xf32>
    %255 = arith.divf %253, %254 : vector<8x64xf32>
    %256 = arith.mulf %247, %160 : vector<8x64xf32>
    %257 = arith.mulf %241, %249 : vector<8x64xf32>
    %258 = arith.addf %256, %257 : vector<8x64xf32>
    %259 = math.tanh %258 : vector<8x64xf32>
    %260 = arith.mulf %255, %259 : vector<8x64xf32>
    %261 = vector.broadcast %224 : vector<8x1xf32> to vector<8x64xf32>
    %262 = arith.mulf %261, %258 : vector<8x64xf32>
    %cst_74 = arith.constant 1.000000e+00 : f32
    %263 = vector.broadcast %cst_74 : f32 to vector<8x1xf32>
    %264 = arith.subf %263, %224 : vector<8x1xf32>
    %265 = vector.broadcast %264 : vector<8x1xf32> to vector<8x64xf32>
    %266 = arith.mulf %265, %160 : vector<8x64xf32>
    %267 = arith.addf %262, %266 : vector<8x64xf32>
    %268 = vector.broadcast %224 : vector<8x1xf32> to vector<8x64xf32>
    %269 = arith.mulf %268, %260 : vector<8x64xf32>
    %cst_75 = arith.constant 1.000000e+00 : f32
    %270 = vector.broadcast %cst_75 : f32 to vector<8x1xf32>
    %271 = arith.subf %270, %224 : vector<8x1xf32>
    %272 = vector.broadcast %271 : vector<8x1xf32> to vector<8x64xf32>
    %273 = arith.mulf %272, %167 : vector<8x64xf32>
    %274 = arith.addf %269, %273 : vector<8x64xf32>
    %275 = vector.extract_strided_slice %235 {offsets = [0, 0], sizes = [8, 64], strides = [1, 1]} : vector<8x256xf32> to vector<8x64xf32>
    %276 = arith.negf %275 : vector<8x64xf32>
    %277 = math.exp %276 : vector<8x64xf32>
    %cst_76 = arith.constant 1.000000e+00 : f32
    %278 = vector.broadcast %cst_76 : f32 to vector<8x64xf32>
    %279 = arith.addf %278, %277 : vector<8x64xf32>
    %280 = arith.divf %278, %279 : vector<8x64xf32>
    %281 = vector.extract_strided_slice %235 {offsets = [0, 64], sizes = [8, 64], strides = [1, 1]} : vector<8x256xf32> to vector<8x64xf32>
    %282 = arith.negf %281 : vector<8x64xf32>
    %283 = math.exp %282 : vector<8x64xf32>
    %cst_77 = arith.constant 1.000000e+00 : f32
    %284 = vector.broadcast %cst_77 : f32 to vector<8x64xf32>
    %285 = arith.addf %284, %283 : vector<8x64xf32>
    %286 = arith.divf %284, %285 : vector<8x64xf32>
    %287 = vector.extract_strided_slice %235 {offsets = [0, 128], sizes = [8, 64], strides = [1, 1]} : vector<8x256xf32> to vector<8x64xf32>
    %288 = math.tanh %287 : vector<8x64xf32>
    %289 = vector.extract_strided_slice %235 {offsets = [0, 192], sizes = [8, 64], strides = [1, 1]} : vector<8x256xf32> to vector<8x64xf32>
    %290 = arith.negf %289 : vector<8x64xf32>
    %291 = math.exp %290 : vector<8x64xf32>
    %cst_78 = arith.constant 1.000000e+00 : f32
    %292 = vector.broadcast %cst_78 : f32 to vector<8x64xf32>
    %293 = arith.addf %292, %291 : vector<8x64xf32>
    %294 = arith.divf %292, %293 : vector<8x64xf32>
    %295 = arith.mulf %286, %199 : vector<8x64xf32>
    %296 = arith.mulf %280, %288 : vector<8x64xf32>
    %297 = arith.addf %295, %296 : vector<8x64xf32>
    %298 = math.tanh %297 : vector<8x64xf32>
    %299 = arith.mulf %294, %298 : vector<8x64xf32>
    %300 = vector.broadcast %227 : vector<8x1xf32> to vector<8x64xf32>
    %301 = arith.mulf %300, %297 : vector<8x64xf32>
    %cst_79 = arith.constant 1.000000e+00 : f32
    %302 = vector.broadcast %cst_79 : f32 to vector<8x1xf32>
    %303 = arith.subf %302, %227 : vector<8x1xf32>
    %304 = vector.broadcast %303 : vector<8x1xf32> to vector<8x64xf32>
    %305 = arith.mulf %304, %199 : vector<8x64xf32>
    %306 = arith.addf %301, %305 : vector<8x64xf32>
    %307 = vector.broadcast %227 : vector<8x1xf32> to vector<8x64xf32>
    %308 = arith.mulf %307, %299 : vector<8x64xf32>
    %cst_80 = arith.constant 1.000000e+00 : f32
    %309 = vector.broadcast %cst_80 : f32 to vector<8x1xf32>
    %310 = arith.subf %309, %227 : vector<8x1xf32>
    %311 = vector.broadcast %310 : vector<8x1xf32> to vector<8x64xf32>
    %312 = arith.mulf %311, %206 : vector<8x64xf32>
    %313 = arith.addf %308, %312 : vector<8x64xf32>
    %314 = arith.index_cast %c2_i32 : i32 to index
    %c0_81 = arith.constant 0 : index
    %c0_82 = arith.constant 0 : index
    %315 = vector.load %arg6[%314, %c0_81, %c0_82] : memref<8x8x64xf32, #tpu.memory_space<vmem>>, vector<1x8x64xf32>
    %316 = vector.shape_cast %315 : vector<1x8x64xf32> to vector<8x64xf32>
    %317 = vector.shape_cast %274 : vector<8x64xf32> to vector<1x8x64xf32>
    tpu.vector_store %arg6[%314, %c0_81, %c0_82], %317 {strides = array<i32>} : memref<8x8x64xf32, #tpu.memory_space<vmem>>, vector<1x8x64xf32>,
    %318 = arith.index_cast %215 : i32 to index
    %c0_83 = arith.constant 0 : index
    %c0_84 = arith.constant 0 : index
    %319 = vector.load %arg7[%318, %c0_83, %c0_84] : memref<8x8x64xf32, #tpu.memory_space<vmem>>, vector<1x8x64xf32>
    %320 = vector.shape_cast %319 : vector<1x8x64xf32> to vector<8x64xf32>
    %321 = vector.shape_cast %313 : vector<8x64xf32> to vector<1x8x64xf32>
    tpu.vector_store %arg7[%318, %c0_83, %c0_84], %321 {strides = array<i32>} : memref<8x8x64xf32, #tpu.memory_space<vmem>>, vector<1x8x64xf32>,
    %c3_i32 = arith.constant 3 : i32
    %c7_i32_85 = arith.constant 7 : i32
    %322 = arith.subi %c7_i32_85, %c3_i32 : i32
    %323 = arith.index_cast %c3_i32 : i32 to index
    %c0_86 = arith.constant 0 : index
    %c0_87 = arith.constant 0 : index
    %324 = vector.load %arg1[%323, %c0_86, %c0_87] : memref<8x8x512xf32, #tpu.memory_space<vmem>>, vector<1x8x512xf32>
    %325 = vector.shape_cast %324 : vector<1x8x512xf32> to vector<8x512xf32>
    %326 = arith.index_cast %322 : i32 to index
    %c0_88 = arith.constant 0 : index
    %c0_89 = arith.constant 0 : index
    %327 = vector.load %arg1[%326, %c0_88, %c0_89] : memref<8x8x512xf32, #tpu.memory_space<vmem>>, vector<1x8x512xf32>
    %328 = vector.shape_cast %327 : vector<1x8x512xf32> to vector<8x512xf32>
    %329 = arith.index_cast %c3_i32 : i32 to index
    %c0_90 = arith.constant 0 : index
    %c0_91 = arith.constant 0 : index
    %330 = vector.load %arg2[%329, %c0_90, %c0_91] : memref<8x8x1xf32, #tpu.memory_space<vmem>>, vector<1x8x1xf32>
    %331 = vector.shape_cast %330 : vector<1x8x1xf32> to vector<8x1xf32>
    %332 = arith.index_cast %322 : i32 to index
    %c0_92 = arith.constant 0 : index
    %c0_93 = arith.constant 0 : index
    %333 = vector.load %arg2[%332, %c0_92, %c0_93] : memref<8x8x1xf32, #tpu.memory_space<vmem>>, vector<1x8x1xf32>
    %334 = vector.shape_cast %333 : vector<1x8x1xf32> to vector<8x1xf32>
    %335 = vector.extract_strided_slice %325 {offsets = [0, 0], sizes = [8, 256], strides = [1, 1]} : vector<8x512xf32> to vector<8x256xf32>
    %c0_94 = arith.constant 0 : index
    %c0_95 = arith.constant 0 : index
    %336 = vector.load %arg3[%c0_94, %c0_95] : memref<64x256xf32, #tpu.memory_space<vmem>>, vector<64x256xf32>
    %cst_96 = arith.constant dense<0.000000e+00> : vector<8x256xf32>
    %337 = tpu.matmul %274, %336, %cst_96 {dimension_numbers = #tpu.dot_dimension_numbers<[1], [0], [0], [1], [0, 0, 1, 1], [], []>} : vector<8x64xf32>, vector<64x256xf32>, vector<8x256xf32> -> vector<8x256xf32>
    %338 = arith.addf %335, %337 : vector<8x256xf32>
    %339 = vector.extract_strided_slice %328 {offsets = [0, 256], sizes = [8, 256], strides = [1, 1]} : vector<8x512xf32> to vector<8x256xf32>
    %c0_97 = arith.constant 0 : index
    %c0_98 = arith.constant 0 : index
    %340 = vector.load %arg4[%c0_97, %c0_98] : memref<64x256xf32, #tpu.memory_space<vmem>>, vector<64x256xf32>
    %cst_99 = arith.constant dense<0.000000e+00> : vector<8x256xf32>
    %341 = tpu.matmul %313, %340, %cst_99 {dimension_numbers = #tpu.dot_dimension_numbers<[1], [0], [0], [1], [0, 0, 1, 1], [], []>} : vector<8x64xf32>, vector<64x256xf32>, vector<8x256xf32> -> vector<8x256xf32>
    %342 = arith.addf %339, %341 : vector<8x256xf32>
    %343 = vector.extract_strided_slice %338 {offsets = [0, 0], sizes = [8, 64], strides = [1, 1]} : vector<8x256xf32> to vector<8x64xf32>
    %344 = arith.negf %343 : vector<8x64xf32>
    %345 = math.exp %344 : vector<8x64xf32>
    %cst_100 = arith.constant 1.000000e+00 : f32
    %346 = vector.broadcast %cst_100 : f32 to vector<8x64xf32>
    %347 = arith.addf %346, %345 : vector<8x64xf32>
    %348 = arith.divf %346, %347 : vector<8x64xf32>
    %349 = vector.extract_strided_slice %338 {offsets = [0, 64], sizes = [8, 64], strides = [1, 1]} : vector<8x256xf32> to vector<8x64xf32>
    %350 = arith.negf %349 : vector<8x64xf32>
    %351 = math.exp %350 : vector<8x64xf32>
    %cst_101 = arith.constant 1.000000e+00 : f32
    %352 = vector.broadcast %cst_101 : f32 to vector<8x64xf32>
    %353 = arith.addf %352, %351 : vector<8x64xf32>
    %354 = arith.divf %352, %353 : vector<8x64xf32>
    %355 = vector.extract_strided_slice %338 {offsets = [0, 128], sizes = [8, 64], strides = [1, 1]} : vector<8x256xf32> to vector<8x64xf32>
    %356 = math.tanh %355 : vector<8x64xf32>
    %357 = vector.extract_strided_slice %338 {offsets = [0, 192], sizes = [8, 64], strides = [1, 1]} : vector<8x256xf32> to vector<8x64xf32>
    %358 = arith.negf %357 : vector<8x64xf32>
    %359 = math.exp %358 : vector<8x64xf32>
    %cst_102 = arith.constant 1.000000e+00 : f32
    %360 = vector.broadcast %cst_102 : f32 to vector<8x64xf32>
    %361 = arith.addf %360, %359 : vector<8x64xf32>
    %362 = arith.divf %360, %361 : vector<8x64xf32>
    %363 = arith.mulf %354, %267 : vector<8x64xf32>
    %364 = arith.mulf %348, %356 : vector<8x64xf32>
    %365 = arith.addf %363, %364 : vector<8x64xf32>
    %366 = math.tanh %365 : vector<8x64xf32>
    %367 = arith.mulf %362, %366 : vector<8x64xf32>
    %368 = vector.broadcast %331 : vector<8x1xf32> to vector<8x64xf32>
    %369 = arith.mulf %368, %365 : vector<8x64xf32>
    %cst_103 = arith.constant 1.000000e+00 : f32
    %370 = vector.broadcast %cst_103 : f32 to vector<8x1xf32>
    %371 = arith.subf %370, %331 : vector<8x1xf32>
    %372 = vector.broadcast %371 : vector<8x1xf32> to vector<8x64xf32>
    %373 = arith.mulf %372, %267 : vector<8x64xf32>
    %374 = arith.addf %369, %373 : vector<8x64xf32>
    %375 = vector.broadcast %331 : vector<8x1xf32> to vector<8x64xf32>
    %376 = arith.mulf %375, %367 : vector<8x64xf32>
    %cst_104 = arith.constant 1.000000e+00 : f32
    %377 = vector.broadcast %cst_104 : f32 to vector<8x1xf32>
    %378 = arith.subf %377, %331 : vector<8x1xf32>
    %379 = vector.broadcast %378 : vector<8x1xf32> to vector<8x64xf32>
    %380 = arith.mulf %379, %274 : vector<8x64xf32>
    %381 = arith.addf %376, %380 : vector<8x64xf32>
    %382 = vector.extract_strided_slice %342 {offsets = [0, 0], sizes = [8, 64], strides = [1, 1]} : vector<8x256xf32> to vector<8x64xf32>
    %383 = arith.negf %382 : vector<8x64xf32>
    %384 = math.exp %383 : vector<8x64xf32>
    %cst_105 = arith.constant 1.000000e+00 : f32
    %385 = vector.broadcast %cst_105 : f32 to vector<8x64xf32>
    %386 = arith.addf %385, %384 : vector<8x64xf32>
    %387 = arith.divf %385, %386 : vector<8x64xf32>
    %388 = vector.extract_strided_slice %342 {offsets = [0, 64], sizes = [8, 64], strides = [1, 1]} : vector<8x256xf32> to vector<8x64xf32>
    %389 = arith.negf %388 : vector<8x64xf32>
    %390 = math.exp %389 : vector<8x64xf32>
    %cst_106 = arith.constant 1.000000e+00 : f32
    %391 = vector.broadcast %cst_106 : f32 to vector<8x64xf32>
    %392 = arith.addf %391, %390 : vector<8x64xf32>
    %393 = arith.divf %391, %392 : vector<8x64xf32>
    %394 = vector.extract_strided_slice %342 {offsets = [0, 128], sizes = [8, 64], strides = [1, 1]} : vector<8x256xf32> to vector<8x64xf32>
    %395 = math.tanh %394 : vector<8x64xf32>
    %396 = vector.extract_strided_slice %342 {offsets = [0, 192], sizes = [8, 64], strides = [1, 1]} : vector<8x256xf32> to vector<8x64xf32>
    %397 = arith.negf %396 : vector<8x64xf32>
    %398 = math.exp %397 : vector<8x64xf32>
    %cst_107 = arith.constant 1.000000e+00 : f32
    %399 = vector.broadcast %cst_107 : f32 to vector<8x64xf32>
    %400 = arith.addf %399, %398 : vector<8x64xf32>
    %401 = arith.divf %399, %400 : vector<8x64xf32>
    %402 = arith.mulf %393, %306 : vector<8x64xf32>
    %403 = arith.mulf %387, %395 : vector<8x64xf32>
    %404 = arith.addf %402, %403 : vector<8x64xf32>
    %405 = math.tanh %404 : vector<8x64xf32>
    %406 = arith.mulf %401, %405 : vector<8x64xf32>
    %407 = vector.broadcast %334 : vector<8x1xf32> to vector<8x64xf32>
    %408 = arith.mulf %407, %404 : vector<8x64xf32>
    %cst_108 = arith.constant 1.000000e+00 : f32
    %409 = vector.broadcast %cst_108 : f32 to vector<8x1xf32>
    %410 = arith.subf %409, %334 : vector<8x1xf32>
    %411 = vector.broadcast %410 : vector<8x1xf32> to vector<8x64xf32>
    %412 = arith.mulf %411, %306 : vector<8x64xf32>
    %413 = arith.addf %408, %412 : vector<8x64xf32>
    %414 = vector.broadcast %334 : vector<8x1xf32> to vector<8x64xf32>
    %415 = arith.mulf %414, %406 : vector<8x64xf32>
    %cst_109 = arith.constant 1.000000e+00 : f32
    %416 = vector.broadcast %cst_109 : f32 to vector<8x1xf32>
    %417 = arith.subf %416, %334 : vector<8x1xf32>
    %418 = vector.broadcast %417 : vector<8x1xf32> to vector<8x64xf32>
    %419 = arith.mulf %418, %313 : vector<8x64xf32>
    %420 = arith.addf %415, %419 : vector<8x64xf32>
    %421 = arith.index_cast %c3_i32 : i32 to index
    %c0_110 = arith.constant 0 : index
    %c0_111 = arith.constant 0 : index
    %422 = vector.load %arg6[%421, %c0_110, %c0_111] : memref<8x8x64xf32, #tpu.memory_space<vmem>>, vector<1x8x64xf32>
    %423 = vector.shape_cast %422 : vector<1x8x64xf32> to vector<8x64xf32>
    %424 = vector.shape_cast %381 : vector<8x64xf32> to vector<1x8x64xf32>
    tpu.vector_store %arg6[%421, %c0_110, %c0_111], %424 {strides = array<i32>} : memref<8x8x64xf32, #tpu.memory_space<vmem>>, vector<1x8x64xf32>,
    %425 = arith.index_cast %322 : i32 to index
    %c0_112 = arith.constant 0 : index
    %c0_113 = arith.constant 0 : index
    %426 = vector.load %arg7[%425, %c0_112, %c0_113] : memref<8x8x64xf32, #tpu.memory_space<vmem>>, vector<1x8x64xf32>
    %427 = vector.shape_cast %426 : vector<1x8x64xf32> to vector<8x64xf32>
    %428 = vector.shape_cast %420 : vector<8x64xf32> to vector<1x8x64xf32>
    tpu.vector_store %arg7[%425, %c0_112, %c0_113], %428 {strides = array<i32>} : memref<8x8x64xf32, #tpu.memory_space<vmem>>, vector<1x8x64xf32>,
    %c4_i32 = arith.constant 4 : i32
    %c7_i32_114 = arith.constant 7 : i32
    %429 = arith.subi %c7_i32_114, %c4_i32 : i32
    %430 = arith.index_cast %c4_i32 : i32 to index
    %c0_115 = arith.constant 0 : index
    %c0_116 = arith.constant 0 : index
    %431 = vector.load %arg1[%430, %c0_115, %c0_116] : memref<8x8x512xf32, #tpu.memory_space<vmem>>, vector<1x8x512xf32>
    %432 = vector.shape_cast %431 : vector<1x8x512xf32> to vector<8x512xf32>
    %433 = arith.index_cast %429 : i32 to index
    %c0_117 = arith.constant 0 : index
    %c0_118 = arith.constant 0 : index
    %434 = vector.load %arg1[%433, %c0_117, %c0_118] : memref<8x8x512xf32, #tpu.memory_space<vmem>>, vector<1x8x512xf32>
    %435 = vector.shape_cast %434 : vector<1x8x512xf32> to vector<8x512xf32>
    %436 = arith.index_cast %c4_i32 : i32 to index
    %c0_119 = arith.constant 0 : index
    %c0_120 = arith.constant 0 : index
    %437 = vector.load %arg2[%436, %c0_119, %c0_120] : memref<8x8x1xf32, #tpu.memory_space<vmem>>, vector<1x8x1xf32>
    %438 = vector.shape_cast %437 : vector<1x8x1xf32> to vector<8x1xf32>
    %439 = arith.index_cast %429 : i32 to index
    %c0_121 = arith.constant 0 : index
    %c0_122 = arith.constant 0 : index
    %440 = vector.load %arg2[%439, %c0_121, %c0_122] : memref<8x8x1xf32, #tpu.memory_space<vmem>>, vector<1x8x1xf32>
    %441 = vector.shape_cast %440 : vector<1x8x1xf32> to vector<8x1xf32>
    %442 = vector.extract_strided_slice %432 {offsets = [0, 0], sizes = [8, 256], strides = [1, 1]} : vector<8x512xf32> to vector<8x256xf32>
    %c0_123 = arith.constant 0 : index
    %c0_124 = arith.constant 0 : index
    %443 = vector.load %arg3[%c0_123, %c0_124] : memref<64x256xf32, #tpu.memory_space<vmem>>, vector<64x256xf32>
    %cst_125 = arith.constant dense<0.000000e+00> : vector<8x256xf32>
    %444 = tpu.matmul %381, %443, %cst_125 {dimension_numbers = #tpu.dot_dimension_numbers<[1], [0], [0], [1], [0, 0, 1, 1], [], []>} : vector<8x64xf32>, vector<64x256xf32>, vector<8x256xf32> -> vector<8x256xf32>
    %445 = arith.addf %442, %444 : vector<8x256xf32>
    %446 = vector.extract_strided_slice %435 {offsets = [0, 256], sizes = [8, 256], strides = [1, 1]} : vector<8x512xf32> to vector<8x256xf32>
    %c0_126 = arith.constant 0 : index
    %c0_127 = arith.constant 0 : index
    %447 = vector.load %arg4[%c0_126, %c0_127] : memref<64x256xf32, #tpu.memory_space<vmem>>, vector<64x256xf32>
    %cst_128 = arith.constant dense<0.000000e+00> : vector<8x256xf32>
    %448 = tpu.matmul %420, %447, %cst_128 {dimension_numbers = #tpu.dot_dimension_numbers<[1], [0], [0], [1], [0, 0, 1, 1], [], []>} : vector<8x64xf32>, vector<64x256xf32>, vector<8x256xf32> -> vector<8x256xf32>
    %449 = arith.addf %446, %448 : vector<8x256xf32>
    %450 = vector.extract_strided_slice %445 {offsets = [0, 0], sizes = [8, 64], strides = [1, 1]} : vector<8x256xf32> to vector<8x64xf32>
    %451 = arith.negf %450 : vector<8x64xf32>
    %452 = math.exp %451 : vector<8x64xf32>
    %cst_129 = arith.constant 1.000000e+00 : f32
    %453 = vector.broadcast %cst_129 : f32 to vector<8x64xf32>
    %454 = arith.addf %453, %452 : vector<8x64xf32>
    %455 = arith.divf %453, %454 : vector<8x64xf32>
    %456 = vector.extract_strided_slice %445 {offsets = [0, 64], sizes = [8, 64], strides = [1, 1]} : vector<8x256xf32> to vector<8x64xf32>
    %457 = arith.negf %456 : vector<8x64xf32>
    %458 = math.exp %457 : vector<8x64xf32>
    %cst_130 = arith.constant 1.000000e+00 : f32
    %459 = vector.broadcast %cst_130 : f32 to vector<8x64xf32>
    %460 = arith.addf %459, %458 : vector<8x64xf32>
    %461 = arith.divf %459, %460 : vector<8x64xf32>
    %462 = vector.extract_strided_slice %445 {offsets = [0, 128], sizes = [8, 64], strides = [1, 1]} : vector<8x256xf32> to vector<8x64xf32>
    %463 = math.tanh %462 : vector<8x64xf32>
    %464 = vector.extract_strided_slice %445 {offsets = [0, 192], sizes = [8, 64], strides = [1, 1]} : vector<8x256xf32> to vector<8x64xf32>
    %465 = arith.negf %464 : vector<8x64xf32>
    %466 = math.exp %465 : vector<8x64xf32>
    %cst_131 = arith.constant 1.000000e+00 : f32
    %467 = vector.broadcast %cst_131 : f32 to vector<8x64xf32>
    %468 = arith.addf %467, %466 : vector<8x64xf32>
    %469 = arith.divf %467, %468 : vector<8x64xf32>
    %470 = arith.mulf %461, %374 : vector<8x64xf32>
    %471 = arith.mulf %455, %463 : vector<8x64xf32>
    %472 = arith.addf %470, %471 : vector<8x64xf32>
    %473 = math.tanh %472 : vector<8x64xf32>
    %474 = arith.mulf %469, %473 : vector<8x64xf32>
    %475 = vector.broadcast %438 : vector<8x1xf32> to vector<8x64xf32>
    %476 = arith.mulf %475, %472 : vector<8x64xf32>
    %cst_132 = arith.constant 1.000000e+00 : f32
    %477 = vector.broadcast %cst_132 : f32 to vector<8x1xf32>
    %478 = arith.subf %477, %438 : vector<8x1xf32>
    %479 = vector.broadcast %478 : vector<8x1xf32> to vector<8x64xf32>
    %480 = arith.mulf %479, %374 : vector<8x64xf32>
    %481 = arith.addf %476, %480 : vector<8x64xf32>
    %482 = vector.broadcast %438 : vector<8x1xf32> to vector<8x64xf32>
    %483 = arith.mulf %482, %474 : vector<8x64xf32>
    %cst_133 = arith.constant 1.000000e+00 : f32
    %484 = vector.broadcast %cst_133 : f32 to vector<8x1xf32>
    %485 = arith.subf %484, %438 : vector<8x1xf32>
    %486 = vector.broadcast %485 : vector<8x1xf32> to vector<8x64xf32>
    %487 = arith.mulf %486, %381 : vector<8x64xf32>
    %488 = arith.addf %483, %487 : vector<8x64xf32>
    %489 = vector.extract_strided_slice %449 {offsets = [0, 0], sizes = [8, 64], strides = [1, 1]} : vector<8x256xf32> to vector<8x64xf32>
    %490 = arith.negf %489 : vector<8x64xf32>
    %491 = math.exp %490 : vector<8x64xf32>
    %cst_134 = arith.constant 1.000000e+00 : f32
    %492 = vector.broadcast %cst_134 : f32 to vector<8x64xf32>
    %493 = arith.addf %492, %491 : vector<8x64xf32>
    %494 = arith.divf %492, %493 : vector<8x64xf32>
    %495 = vector.extract_strided_slice %449 {offsets = [0, 64], sizes = [8, 64], strides = [1, 1]} : vector<8x256xf32> to vector<8x64xf32>
    %496 = arith.negf %495 : vector<8x64xf32>
    %497 = math.exp %496 : vector<8x64xf32>
    %cst_135 = arith.constant 1.000000e+00 : f32
    %498 = vector.broadcast %cst_135 : f32 to vector<8x64xf32>
    %499 = arith.addf %498, %497 : vector<8x64xf32>
    %500 = arith.divf %498, %499 : vector<8x64xf32>
    %501 = vector.extract_strided_slice %449 {offsets = [0, 128], sizes = [8, 64], strides = [1, 1]} : vector<8x256xf32> to vector<8x64xf32>
    %502 = math.tanh %501 : vector<8x64xf32>
    %503 = vector.extract_strided_slice %449 {offsets = [0, 192], sizes = [8, 64], strides = [1, 1]} : vector<8x256xf32> to vector<8x64xf32>
    %504 = arith.negf %503 : vector<8x64xf32>
    %505 = math.exp %504 : vector<8x64xf32>
    %cst_136 = arith.constant 1.000000e+00 : f32
    %506 = vector.broadcast %cst_136 : f32 to vector<8x64xf32>
    %507 = arith.addf %506, %505 : vector<8x64xf32>
    %508 = arith.divf %506, %507 : vector<8x64xf32>
    %509 = arith.mulf %500, %413 : vector<8x64xf32>
    %510 = arith.mulf %494, %502 : vector<8x64xf32>
    %511 = arith.addf %509, %510 : vector<8x64xf32>
    %512 = math.tanh %511 : vector<8x64xf32>
    %513 = arith.mulf %508, %512 : vector<8x64xf32>
    %514 = vector.broadcast %441 : vector<8x1xf32> to vector<8x64xf32>
    %515 = arith.mulf %514, %511 : vector<8x64xf32>
    %cst_137 = arith.constant 1.000000e+00 : f32
    %516 = vector.broadcast %cst_137 : f32 to vector<8x1xf32>
    %517 = arith.subf %516, %441 : vector<8x1xf32>
    %518 = vector.broadcast %517 : vector<8x1xf32> to vector<8x64xf32>
    %519 = arith.mulf %518, %413 : vector<8x64xf32>
    %520 = arith.addf %515, %519 : vector<8x64xf32>
    %521 = vector.broadcast %441 : vector<8x1xf32> to vector<8x64xf32>
    %522 = arith.mulf %521, %513 : vector<8x64xf32>
    %cst_138 = arith.constant 1.000000e+00 : f32
    %523 = vector.broadcast %cst_138 : f32 to vector<8x1xf32>
    %524 = arith.subf %523, %441 : vector<8x1xf32>
    %525 = vector.broadcast %524 : vector<8x1xf32> to vector<8x64xf32>
    %526 = arith.mulf %525, %420 : vector<8x64xf32>
    %527 = arith.addf %522, %526 : vector<8x64xf32>
    %528 = arith.index_cast %c4_i32 : i32 to index
    %c0_139 = arith.constant 0 : index
    %c0_140 = arith.constant 0 : index
    %529 = vector.load %arg6[%528, %c0_139, %c0_140] : memref<8x8x64xf32, #tpu.memory_space<vmem>>, vector<1x8x64xf32>
    %530 = vector.shape_cast %529 : vector<1x8x64xf32> to vector<8x64xf32>
    %531 = vector.shape_cast %488 : vector<8x64xf32> to vector<1x8x64xf32>
    tpu.vector_store %arg6[%528, %c0_139, %c0_140], %531 {strides = array<i32>} : memref<8x8x64xf32, #tpu.memory_space<vmem>>, vector<1x8x64xf32>,
    %532 = arith.index_cast %429 : i32 to index
    %c0_141 = arith.constant 0 : index
    %c0_142 = arith.constant 0 : index
    %533 = vector.load %arg7[%532, %c0_141, %c0_142] : memref<8x8x64xf32, #tpu.memory_space<vmem>>, vector<1x8x64xf32>
    %534 = vector.shape_cast %533 : vector<1x8x64xf32> to vector<8x64xf32>
    %535 = vector.shape_cast %527 : vector<8x64xf32> to vector<1x8x64xf32>
    tpu.vector_store %arg7[%532, %c0_141, %c0_142], %535 {strides = array<i32>} : memref<8x8x64xf32, #tpu.memory_space<vmem>>, vector<1x8x64xf32>,
    %c5_i32 = arith.constant 5 : i32
    %c7_i32_143 = arith.constant 7 : i32
    %536 = arith.subi %c7_i32_143, %c5_i32 : i32
    %537 = arith.index_cast %c5_i32 : i32 to index
    %c0_144 = arith.constant 0 : index
    %c0_145 = arith.constant 0 : index
    %538 = vector.load %arg1[%537, %c0_144, %c0_145] : memref<8x8x512xf32, #tpu.memory_space<vmem>>, vector<1x8x512xf32>
    %539 = vector.shape_cast %538 : vector<1x8x512xf32> to vector<8x512xf32>
    %540 = arith.index_cast %536 : i32 to index
    %c0_146 = arith.constant 0 : index
    %c0_147 = arith.constant 0 : index
    %541 = vector.load %arg1[%540, %c0_146, %c0_147] : memref<8x8x512xf32, #tpu.memory_space<vmem>>, vector<1x8x512xf32>
    %542 = vector.shape_cast %541 : vector<1x8x512xf32> to vector<8x512xf32>
    %543 = arith.index_cast %c5_i32 : i32 to index
    %c0_148 = arith.constant 0 : index
    %c0_149 = arith.constant 0 : index
    %544 = vector.load %arg2[%543, %c0_148, %c0_149] : memref<8x8x1xf32, #tpu.memory_space<vmem>>, vector<1x8x1xf32>
    %545 = vector.shape_cast %544 : vector<1x8x1xf32> to vector<8x1xf32>
    %546 = arith.index_cast %536 : i32 to index
    %c0_150 = arith.constant 0 : index
    %c0_151 = arith.constant 0 : index
    %547 = vector.load %arg2[%546, %c0_150, %c0_151] : memref<8x8x1xf32, #tpu.memory_space<vmem>>, vector<1x8x1xf32>
    %548 = vector.shape_cast %547 : vector<1x8x1xf32> to vector<8x1xf32>
    %549 = vector.extract_strided_slice %539 {offsets = [0, 0], sizes = [8, 256], strides = [1, 1]} : vector<8x512xf32> to vector<8x256xf32>
    %c0_152 = arith.constant 0 : index
    %c0_153 = arith.constant 0 : index
    %550 = vector.load %arg3[%c0_152, %c0_153] : memref<64x256xf32, #tpu.memory_space<vmem>>, vector<64x256xf32>
    %cst_154 = arith.constant dense<0.000000e+00> : vector<8x256xf32>
    %551 = tpu.matmul %488, %550, %cst_154 {dimension_numbers = #tpu.dot_dimension_numbers<[1], [0], [0], [1], [0, 0, 1, 1], [], []>} : vector<8x64xf32>, vector<64x256xf32>, vector<8x256xf32> -> vector<8x256xf32>
    %552 = arith.addf %549, %551 : vector<8x256xf32>
    %553 = vector.extract_strided_slice %542 {offsets = [0, 256], sizes = [8, 256], strides = [1, 1]} : vector<8x512xf32> to vector<8x256xf32>
    %c0_155 = arith.constant 0 : index
    %c0_156 = arith.constant 0 : index
    %554 = vector.load %arg4[%c0_155, %c0_156] : memref<64x256xf32, #tpu.memory_space<vmem>>, vector<64x256xf32>
    %cst_157 = arith.constant dense<0.000000e+00> : vector<8x256xf32>
    %555 = tpu.matmul %527, %554, %cst_157 {dimension_numbers = #tpu.dot_dimension_numbers<[1], [0], [0], [1], [0, 0, 1, 1], [], []>} : vector<8x64xf32>, vector<64x256xf32>, vector<8x256xf32> -> vector<8x256xf32>
    %556 = arith.addf %553, %555 : vector<8x256xf32>
    %557 = vector.extract_strided_slice %552 {offsets = [0, 0], sizes = [8, 64], strides = [1, 1]} : vector<8x256xf32> to vector<8x64xf32>
    %558 = arith.negf %557 : vector<8x64xf32>
    %559 = math.exp %558 : vector<8x64xf32>
    %cst_158 = arith.constant 1.000000e+00 : f32
    %560 = vector.broadcast %cst_158 : f32 to vector<8x64xf32>
    %561 = arith.addf %560, %559 : vector<8x64xf32>
    %562 = arith.divf %560, %561 : vector<8x64xf32>
    %563 = vector.extract_strided_slice %552 {offsets = [0, 64], sizes = [8, 64], strides = [1, 1]} : vector<8x256xf32> to vector<8x64xf32>
    %564 = arith.negf %563 : vector<8x64xf32>
    %565 = math.exp %564 : vector<8x64xf32>
    %cst_159 = arith.constant 1.000000e+00 : f32
    %566 = vector.broadcast %cst_159 : f32 to vector<8x64xf32>
    %567 = arith.addf %566, %565 : vector<8x64xf32>
    %568 = arith.divf %566, %567 : vector<8x64xf32>
    %569 = vector.extract_strided_slice %552 {offsets = [0, 128], sizes = [8, 64], strides = [1, 1]} : vector<8x256xf32> to vector<8x64xf32>
    %570 = math.tanh %569 : vector<8x64xf32>
    %571 = vector.extract_strided_slice %552 {offsets = [0, 192], sizes = [8, 64], strides = [1, 1]} : vector<8x256xf32> to vector<8x64xf32>
    %572 = arith.negf %571 : vector<8x64xf32>
    %573 = math.exp %572 : vector<8x64xf32>
    %cst_160 = arith.constant 1.000000e+00 : f32
    %574 = vector.broadcast %cst_160 : f32 to vector<8x64xf32>
    %575 = arith.addf %574, %573 : vector<8x64xf32>
    %576 = arith.divf %574, %575 : vector<8x64xf32>
    %577 = arith.mulf %568, %481 : vector<8x64xf32>
    %578 = arith.mulf %562, %570 : vector<8x64xf32>
    %579 = arith.addf %577, %578 : vector<8x64xf32>
    %580 = math.tanh %579 : vector<8x64xf32>
    %581 = arith.mulf %576, %580 : vector<8x64xf32>
    %582 = vector.broadcast %545 : vector<8x1xf32> to vector<8x64xf32>
    %583 = arith.mulf %582, %579 : vector<8x64xf32>
    %cst_161 = arith.constant 1.000000e+00 : f32
    %584 = vector.broadcast %cst_161 : f32 to vector<8x1xf32>
    %585 = arith.subf %584, %545 : vector<8x1xf32>
    %586 = vector.broadcast %585 : vector<8x1xf32> to vector<8x64xf32>
    %587 = arith.mulf %586, %481 : vector<8x64xf32>
    %588 = arith.addf %583, %587 : vector<8x64xf32>
    %589 = vector.broadcast %545 : vector<8x1xf32> to vector<8x64xf32>
    %590 = arith.mulf %589, %581 : vector<8x64xf32>
    %cst_162 = arith.constant 1.000000e+00 : f32
    %591 = vector.broadcast %cst_162 : f32 to vector<8x1xf32>
    %592 = arith.subf %591, %545 : vector<8x1xf32>
    %593 = vector.broadcast %592 : vector<8x1xf32> to vector<8x64xf32>
    %594 = arith.mulf %593, %488 : vector<8x64xf32>
    %595 = arith.addf %590, %594 : vector<8x64xf32>
    %596 = vector.extract_strided_slice %556 {offsets = [0, 0], sizes = [8, 64], strides = [1, 1]} : vector<8x256xf32> to vector<8x64xf32>
    %597 = arith.negf %596 : vector<8x64xf32>
    %598 = math.exp %597 : vector<8x64xf32>
    %cst_163 = arith.constant 1.000000e+00 : f32
    %599 = vector.broadcast %cst_163 : f32 to vector<8x64xf32>
    %600 = arith.addf %599, %598 : vector<8x64xf32>
    %601 = arith.divf %599, %600 : vector<8x64xf32>
    %602 = vector.extract_strided_slice %556 {offsets = [0, 64], sizes = [8, 64], strides = [1, 1]} : vector<8x256xf32> to vector<8x64xf32>
    %603 = arith.negf %602 : vector<8x64xf32>
    %604 = math.exp %603 : vector<8x64xf32>
    %cst_164 = arith.constant 1.000000e+00 : f32
    %605 = vector.broadcast %cst_164 : f32 to vector<8x64xf32>
    %606 = arith.addf %605, %604 : vector<8x64xf32>
    %607 = arith.divf %605, %606 : vector<8x64xf32>
    %608 = vector.extract_strided_slice %556 {offsets = [0, 128], sizes = [8, 64], strides = [1, 1]} : vector<8x256xf32> to vector<8x64xf32>
    %609 = math.tanh %608 : vector<8x64xf32>
    %610 = vector.extract_strided_slice %556 {offsets = [0, 192], sizes = [8, 64], strides = [1, 1]} : vector<8x256xf32> to vector<8x64xf32>
    %611 = arith.negf %610 : vector<8x64xf32>
    %612 = math.exp %611 : vector<8x64xf32>
    %cst_165 = arith.constant 1.000000e+00 : f32
    %613 = vector.broadcast %cst_165 : f32 to vector<8x64xf32>
    %614 = arith.addf %613, %612 : vector<8x64xf32>
    %615 = arith.divf %613, %614 : vector<8x64xf32>
    %616 = arith.mulf %607, %520 : vector<8x64xf32>
    %617 = arith.mulf %601, %609 : vector<8x64xf32>
    %618 = arith.addf %616, %617 : vector<8x64xf32>
    %619 = math.tanh %618 : vector<8x64xf32>
    %620 = arith.mulf %615, %619 : vector<8x64xf32>
    %621 = vector.broadcast %548 : vector<8x1xf32> to vector<8x64xf32>
    %622 = arith.mulf %621, %618 : vector<8x64xf32>
    %cst_166 = arith.constant 1.000000e+00 : f32
    %623 = vector.broadcast %cst_166 : f32 to vector<8x1xf32>
    %624 = arith.subf %623, %548 : vector<8x1xf32>
    %625 = vector.broadcast %624 : vector<8x1xf32> to vector<8x64xf32>
    %626 = arith.mulf %625, %520 : vector<8x64xf32>
    %627 = arith.addf %622, %626 : vector<8x64xf32>
    %628 = vector.broadcast %548 : vector<8x1xf32> to vector<8x64xf32>
    %629 = arith.mulf %628, %620 : vector<8x64xf32>
    %cst_167 = arith.constant 1.000000e+00 : f32
    %630 = vector.broadcast %cst_167 : f32 to vector<8x1xf32>
    %631 = arith.subf %630, %548 : vector<8x1xf32>
    %632 = vector.broadcast %631 : vector<8x1xf32> to vector<8x64xf32>
    %633 = arith.mulf %632, %527 : vector<8x64xf32>
    %634 = arith.addf %629, %633 : vector<8x64xf32>
    %635 = arith.index_cast %c5_i32 : i32 to index
    %c0_168 = arith.constant 0 : index
    %c0_169 = arith.constant 0 : index
    %636 = vector.load %arg6[%635, %c0_168, %c0_169] : memref<8x8x64xf32, #tpu.memory_space<vmem>>, vector<1x8x64xf32>
    %637 = vector.shape_cast %636 : vector<1x8x64xf32> to vector<8x64xf32>
    %638 = vector.shape_cast %595 : vector<8x64xf32> to vector<1x8x64xf32>
    tpu.vector_store %arg6[%635, %c0_168, %c0_169], %638 {strides = array<i32>} : memref<8x8x64xf32, #tpu.memory_space<vmem>>, vector<1x8x64xf32>,
    %639 = arith.index_cast %536 : i32 to index
    %c0_170 = arith.constant 0 : index
    %c0_171 = arith.constant 0 : index
    %640 = vector.load %arg7[%639, %c0_170, %c0_171] : memref<8x8x64xf32, #tpu.memory_space<vmem>>, vector<1x8x64xf32>
    %641 = vector.shape_cast %640 : vector<1x8x64xf32> to vector<8x64xf32>
    %642 = vector.shape_cast %634 : vector<8x64xf32> to vector<1x8x64xf32>
    tpu.vector_store %arg7[%639, %c0_170, %c0_171], %642 {strides = array<i32>} : memref<8x8x64xf32, #tpu.memory_space<vmem>>, vector<1x8x64xf32>,
    %c6_i32 = arith.constant 6 : i32
    %c7_i32_172 = arith.constant 7 : i32
    %643 = arith.subi %c7_i32_172, %c6_i32 : i32
    %644 = arith.index_cast %c6_i32 : i32 to index
    %c0_173 = arith.constant 0 : index
    %c0_174 = arith.constant 0 : index
    %645 = vector.load %arg1[%644, %c0_173, %c0_174] : memref<8x8x512xf32, #tpu.memory_space<vmem>>, vector<1x8x512xf32>
    %646 = vector.shape_cast %645 : vector<1x8x512xf32> to vector<8x512xf32>
    %647 = arith.index_cast %643 : i32 to index
    %c0_175 = arith.constant 0 : index
    %c0_176 = arith.constant 0 : index
    %648 = vector.load %arg1[%647, %c0_175, %c0_176] : memref<8x8x512xf32, #tpu.memory_space<vmem>>, vector<1x8x512xf32>
    %649 = vector.shape_cast %648 : vector<1x8x512xf32> to vector<8x512xf32>
    %650 = arith.index_cast %c6_i32 : i32 to index
    %c0_177 = arith.constant 0 : index
    %c0_178 = arith.constant 0 : index
    %651 = vector.load %arg2[%650, %c0_177, %c0_178] : memref<8x8x1xf32, #tpu.memory_space<vmem>>, vector<1x8x1xf32>
    %652 = vector.shape_cast %651 : vector<1x8x1xf32> to vector<8x1xf32>
    %653 = arith.index_cast %643 : i32 to index
    %c0_179 = arith.constant 0 : index
    %c0_180 = arith.constant 0 : index
    %654 = vector.load %arg2[%653, %c0_179, %c0_180] : memref<8x8x1xf32, #tpu.memory_space<vmem>>, vector<1x8x1xf32>
    %655 = vector.shape_cast %654 : vector<1x8x1xf32> to vector<8x1xf32>
    %656 = vector.extract_strided_slice %646 {offsets = [0, 0], sizes = [8, 256], strides = [1, 1]} : vector<8x512xf32> to vector<8x256xf32>
    %c0_181 = arith.constant 0 : index
    %c0_182 = arith.constant 0 : index
    %657 = vector.load %arg3[%c0_181, %c0_182] : memref<64x256xf32, #tpu.memory_space<vmem>>, vector<64x256xf32>
    %cst_183 = arith.constant dense<0.000000e+00> : vector<8x256xf32>
    %658 = tpu.matmul %595, %657, %cst_183 {dimension_numbers = #tpu.dot_dimension_numbers<[1], [0], [0], [1], [0, 0, 1, 1], [], []>} : vector<8x64xf32>, vector<64x256xf32>, vector<8x256xf32> -> vector<8x256xf32>
    %659 = arith.addf %656, %658 : vector<8x256xf32>
    %660 = vector.extract_strided_slice %649 {offsets = [0, 256], sizes = [8, 256], strides = [1, 1]} : vector<8x512xf32> to vector<8x256xf32>
    %c0_184 = arith.constant 0 : index
    %c0_185 = arith.constant 0 : index
    %661 = vector.load %arg4[%c0_184, %c0_185] : memref<64x256xf32, #tpu.memory_space<vmem>>, vector<64x256xf32>
    %cst_186 = arith.constant dense<0.000000e+00> : vector<8x256xf32>
    %662 = tpu.matmul %634, %661, %cst_186 {dimension_numbers = #tpu.dot_dimension_numbers<[1], [0], [0], [1], [0, 0, 1, 1], [], []>} : vector<8x64xf32>, vector<64x256xf32>, vector<8x256xf32> -> vector<8x256xf32>
    %663 = arith.addf %660, %662 : vector<8x256xf32>
    %664 = vector.extract_strided_slice %659 {offsets = [0, 0], sizes = [8, 64], strides = [1, 1]} : vector<8x256xf32> to vector<8x64xf32>
    %665 = arith.negf %664 : vector<8x64xf32>
    %666 = math.exp %665 : vector<8x64xf32>
    %cst_187 = arith.constant 1.000000e+00 : f32
    %667 = vector.broadcast %cst_187 : f32 to vector<8x64xf32>
    %668 = arith.addf %667, %666 : vector<8x64xf32>
    %669 = arith.divf %667, %668 : vector<8x64xf32>
    %670 = vector.extract_strided_slice %659 {offsets = [0, 64], sizes = [8, 64], strides = [1, 1]} : vector<8x256xf32> to vector<8x64xf32>
    %671 = arith.negf %670 : vector<8x64xf32>
    %672 = math.exp %671 : vector<8x64xf32>
    %cst_188 = arith.constant 1.000000e+00 : f32
    %673 = vector.broadcast %cst_188 : f32 to vector<8x64xf32>
    %674 = arith.addf %673, %672 : vector<8x64xf32>
    %675 = arith.divf %673, %674 : vector<8x64xf32>
    %676 = vector.extract_strided_slice %659 {offsets = [0, 128], sizes = [8, 64], strides = [1, 1]} : vector<8x256xf32> to vector<8x64xf32>
    %677 = math.tanh %676 : vector<8x64xf32>
    %678 = vector.extract_strided_slice %659 {offsets = [0, 192], sizes = [8, 64], strides = [1, 1]} : vector<8x256xf32> to vector<8x64xf32>
    %679 = arith.negf %678 : vector<8x64xf32>
    %680 = math.exp %679 : vector<8x64xf32>
    %cst_189 = arith.constant 1.000000e+00 : f32
    %681 = vector.broadcast %cst_189 : f32 to vector<8x64xf32>
    %682 = arith.addf %681, %680 : vector<8x64xf32>
    %683 = arith.divf %681, %682 : vector<8x64xf32>
    %684 = arith.mulf %675, %588 : vector<8x64xf32>
    %685 = arith.mulf %669, %677 : vector<8x64xf32>
    %686 = arith.addf %684, %685 : vector<8x64xf32>
    %687 = math.tanh %686 : vector<8x64xf32>
    %688 = arith.mulf %683, %687 : vector<8x64xf32>
    %689 = vector.broadcast %652 : vector<8x1xf32> to vector<8x64xf32>
    %690 = arith.mulf %689, %686 : vector<8x64xf32>
    %cst_190 = arith.constant 1.000000e+00 : f32
    %691 = vector.broadcast %cst_190 : f32 to vector<8x1xf32>
    %692 = arith.subf %691, %652 : vector<8x1xf32>
    %693 = vector.broadcast %692 : vector<8x1xf32> to vector<8x64xf32>
    %694 = arith.mulf %693, %588 : vector<8x64xf32>
    %695 = arith.addf %690, %694 : vector<8x64xf32>
    %696 = vector.broadcast %652 : vector<8x1xf32> to vector<8x64xf32>
    %697 = arith.mulf %696, %688 : vector<8x64xf32>
    %cst_191 = arith.constant 1.000000e+00 : f32
    %698 = vector.broadcast %cst_191 : f32 to vector<8x1xf32>
    %699 = arith.subf %698, %652 : vector<8x1xf32>
    %700 = vector.broadcast %699 : vector<8x1xf32> to vector<8x64xf32>
    %701 = arith.mulf %700, %595 : vector<8x64xf32>
    %702 = arith.addf %697, %701 : vector<8x64xf32>
    %703 = vector.extract_strided_slice %663 {offsets = [0, 0], sizes = [8, 64], strides = [1, 1]} : vector<8x256xf32> to vector<8x64xf32>
    %704 = arith.negf %703 : vector<8x64xf32>
    %705 = math.exp %704 : vector<8x64xf32>
    %cst_192 = arith.constant 1.000000e+00 : f32
    %706 = vector.broadcast %cst_192 : f32 to vector<8x64xf32>
    %707 = arith.addf %706, %705 : vector<8x64xf32>
    %708 = arith.divf %706, %707 : vector<8x64xf32>
    %709 = vector.extract_strided_slice %663 {offsets = [0, 64], sizes = [8, 64], strides = [1, 1]} : vector<8x256xf32> to vector<8x64xf32>
    %710 = arith.negf %709 : vector<8x64xf32>
    %711 = math.exp %710 : vector<8x64xf32>
    %cst_193 = arith.constant 1.000000e+00 : f32
    %712 = vector.broadcast %cst_193 : f32 to vector<8x64xf32>
    %713 = arith.addf %712, %711 : vector<8x64xf32>
    %714 = arith.divf %712, %713 : vector<8x64xf32>
    %715 = vector.extract_strided_slice %663 {offsets = [0, 128], sizes = [8, 64], strides = [1, 1]} : vector<8x256xf32> to vector<8x64xf32>
    %716 = math.tanh %715 : vector<8x64xf32>
    %717 = vector.extract_strided_slice %663 {offsets = [0, 192], sizes = [8, 64], strides = [1, 1]} : vector<8x256xf32> to vector<8x64xf32>
    %718 = arith.negf %717 : vector<8x64xf32>
    %719 = math.exp %718 : vector<8x64xf32>
    %cst_194 = arith.constant 1.000000e+00 : f32
    %720 = vector.broadcast %cst_194 : f32 to vector<8x64xf32>
    %721 = arith.addf %720, %719 : vector<8x64xf32>
    %722 = arith.divf %720, %721 : vector<8x64xf32>
    %723 = arith.mulf %714, %627 : vector<8x64xf32>
    %724 = arith.mulf %708, %716 : vector<8x64xf32>
    %725 = arith.addf %723, %724 : vector<8x64xf32>
    %726 = math.tanh %725 : vector<8x64xf32>
    %727 = arith.mulf %722, %726 : vector<8x64xf32>
    %728 = vector.broadcast %655 : vector<8x1xf32> to vector<8x64xf32>
    %729 = arith.mulf %728, %725 : vector<8x64xf32>
    %cst_195 = arith.constant 1.000000e+00 : f32
    %730 = vector.broadcast %cst_195 : f32 to vector<8x1xf32>
    %731 = arith.subf %730, %655 : vector<8x1xf32>
    %732 = vector.broadcast %731 : vector<8x1xf32> to vector<8x64xf32>
    %733 = arith.mulf %732, %627 : vector<8x64xf32>
    %734 = arith.addf %729, %733 : vector<8x64xf32>
    %735 = vector.broadcast %655 : vector<8x1xf32> to vector<8x64xf32>
    %736 = arith.mulf %735, %727 : vector<8x64xf32>
    %cst_196 = arith.constant 1.000000e+00 : f32
    %737 = vector.broadcast %cst_196 : f32 to vector<8x1xf32>
    %738 = arith.subf %737, %655 : vector<8x1xf32>
    %739 = vector.broadcast %738 : vector<8x1xf32> to vector<8x64xf32>
    %740 = arith.mulf %739, %634 : vector<8x64xf32>
    %741 = arith.addf %736, %740 : vector<8x64xf32>
    %742 = arith.index_cast %c6_i32 : i32 to index
    %c0_197 = arith.constant 0 : index
    %c0_198 = arith.constant 0 : index
    %743 = vector.load %arg6[%742, %c0_197, %c0_198] : memref<8x8x64xf32, #tpu.memory_space<vmem>>, vector<1x8x64xf32>
    %744 = vector.shape_cast %743 : vector<1x8x64xf32> to vector<8x64xf32>
    %745 = vector.shape_cast %702 : vector<8x64xf32> to vector<1x8x64xf32>
    tpu.vector_store %arg6[%742, %c0_197, %c0_198], %745 {strides = array<i32>} : memref<8x8x64xf32, #tpu.memory_space<vmem>>, vector<1x8x64xf32>,
    %746 = arith.index_cast %643 : i32 to index
    %c0_199 = arith.constant 0 : index
    %c0_200 = arith.constant 0 : index
    %747 = vector.load %arg7[%746, %c0_199, %c0_200] : memref<8x8x64xf32, #tpu.memory_space<vmem>>, vector<1x8x64xf32>
    %748 = vector.shape_cast %747 : vector<1x8x64xf32> to vector<8x64xf32>
    %749 = vector.shape_cast %741 : vector<8x64xf32> to vector<1x8x64xf32>
    tpu.vector_store %arg7[%746, %c0_199, %c0_200], %749 {strides = array<i32>} : memref<8x8x64xf32, #tpu.memory_space<vmem>>, vector<1x8x64xf32>,
    %c7_i32_201 = arith.constant 7 : i32
    %c7_i32_202 = arith.constant 7 : i32
    %750 = arith.subi %c7_i32_202, %c7_i32_201 : i32
    %751 = arith.index_cast %c7_i32_201 : i32 to index
    %c0_203 = arith.constant 0 : index
    %c0_204 = arith.constant 0 : index
    %752 = vector.load %arg1[%751, %c0_203, %c0_204] : memref<8x8x512xf32, #tpu.memory_space<vmem>>, vector<1x8x512xf32>
    %753 = vector.shape_cast %752 : vector<1x8x512xf32> to vector<8x512xf32>
    %754 = arith.index_cast %750 : i32 to index
    %c0_205 = arith.constant 0 : index
    %c0_206 = arith.constant 0 : index
    %755 = vector.load %arg1[%754, %c0_205, %c0_206] : memref<8x8x512xf32, #tpu.memory_space<vmem>>, vector<1x8x512xf32>
    %756 = vector.shape_cast %755 : vector<1x8x512xf32> to vector<8x512xf32>
    %757 = arith.index_cast %c7_i32_201 : i32 to index
    %c0_207 = arith.constant 0 : index
    %c0_208 = arith.constant 0 : index
    %758 = vector.load %arg2[%757, %c0_207, %c0_208] : memref<8x8x1xf32, #tpu.memory_space<vmem>>, vector<1x8x1xf32>
    %759 = vector.shape_cast %758 : vector<1x8x1xf32> to vector<8x1xf32>
    %760 = arith.index_cast %750 : i32 to index
    %c0_209 = arith.constant 0 : index
    %c0_210 = arith.constant 0 : index
    %761 = vector.load %arg2[%760, %c0_209, %c0_210] : memref<8x8x1xf32, #tpu.memory_space<vmem>>, vector<1x8x1xf32>
    %762 = vector.shape_cast %761 : vector<1x8x1xf32> to vector<8x1xf32>
    %763 = vector.extract_strided_slice %753 {offsets = [0, 0], sizes = [8, 256], strides = [1, 1]} : vector<8x512xf32> to vector<8x256xf32>
    %c0_211 = arith.constant 0 : index
    %c0_212 = arith.constant 0 : index
    %764 = vector.load %arg3[%c0_211, %c0_212] : memref<64x256xf32, #tpu.memory_space<vmem>>, vector<64x256xf32>
    %cst_213 = arith.constant dense<0.000000e+00> : vector<8x256xf32>
    %765 = tpu.matmul %702, %764, %cst_213 {dimension_numbers = #tpu.dot_dimension_numbers<[1], [0], [0], [1], [0, 0, 1, 1], [], []>} : vector<8x64xf32>, vector<64x256xf32>, vector<8x256xf32> -> vector<8x256xf32>
    %766 = arith.addf %763, %765 : vector<8x256xf32>
    %767 = vector.extract_strided_slice %756 {offsets = [0, 256], sizes = [8, 256], strides = [1, 1]} : vector<8x512xf32> to vector<8x256xf32>
    %c0_214 = arith.constant 0 : index
    %c0_215 = arith.constant 0 : index
    %768 = vector.load %arg4[%c0_214, %c0_215] : memref<64x256xf32, #tpu.memory_space<vmem>>, vector<64x256xf32>
    %cst_216 = arith.constant dense<0.000000e+00> : vector<8x256xf32>
    %769 = tpu.matmul %741, %768, %cst_216 {dimension_numbers = #tpu.dot_dimension_numbers<[1], [0], [0], [1], [0, 0, 1, 1], [], []>} : vector<8x64xf32>, vector<64x256xf32>, vector<8x256xf32> -> vector<8x256xf32>
    %770 = arith.addf %767, %769 : vector<8x256xf32>
    %771 = vector.extract_strided_slice %766 {offsets = [0, 0], sizes = [8, 64], strides = [1, 1]} : vector<8x256xf32> to vector<8x64xf32>
    %772 = arith.negf %771 : vector<8x64xf32>
    %773 = math.exp %772 : vector<8x64xf32>
    %cst_217 = arith.constant 1.000000e+00 : f32
    %774 = vector.broadcast %cst_217 : f32 to vector<8x64xf32>
    %775 = arith.addf %774, %773 : vector<8x64xf32>
    %776 = arith.divf %774, %775 : vector<8x64xf32>
    %777 = vector.extract_strided_slice %766 {offsets = [0, 64], sizes = [8, 64], strides = [1, 1]} : vector<8x256xf32> to vector<8x64xf32>
    %778 = arith.negf %777 : vector<8x64xf32>
    %779 = math.exp %778 : vector<8x64xf32>
    %cst_218 = arith.constant 1.000000e+00 : f32
    %780 = vector.broadcast %cst_218 : f32 to vector<8x64xf32>
    %781 = arith.addf %780, %779 : vector<8x64xf32>
    %782 = arith.divf %780, %781 : vector<8x64xf32>
    %783 = vector.extract_strided_slice %766 {offsets = [0, 128], sizes = [8, 64], strides = [1, 1]} : vector<8x256xf32> to vector<8x64xf32>
    %784 = math.tanh %783 : vector<8x64xf32>
    %785 = vector.extract_strided_slice %766 {offsets = [0, 192], sizes = [8, 64], strides = [1, 1]} : vector<8x256xf32> to vector<8x64xf32>
    %786 = arith.negf %785 : vector<8x64xf32>
    %787 = math.exp %786 : vector<8x64xf32>
    %cst_219 = arith.constant 1.000000e+00 : f32
    %788 = vector.broadcast %cst_219 : f32 to vector<8x64xf32>
    %789 = arith.addf %788, %787 : vector<8x64xf32>
    %790 = arith.divf %788, %789 : vector<8x64xf32>
    %791 = arith.mulf %782, %695 : vector<8x64xf32>
    %792 = arith.mulf %776, %784 : vector<8x64xf32>
    %793 = arith.addf %791, %792 : vector<8x64xf32>
    %794 = math.tanh %793 : vector<8x64xf32>
    %795 = arith.mulf %790, %794 : vector<8x64xf32>
    %796 = vector.broadcast %759 : vector<8x1xf32> to vector<8x64xf32>
    %797 = arith.mulf %796, %793 : vector<8x64xf32>
    %cst_220 = arith.constant 1.000000e+00 : f32
    %798 = vector.broadcast %cst_220 : f32 to vector<8x1xf32>
    %799 = arith.subf %798, %759 : vector<8x1xf32>
    %800 = vector.broadcast %799 : vector<8x1xf32> to vector<8x64xf32>
    %801 = arith.mulf %800, %695 : vector<8x64xf32>
    %802 = arith.addf %797, %801 : vector<8x64xf32>
    %803 = vector.broadcast %759 : vector<8x1xf32> to vector<8x64xf32>
    %804 = arith.mulf %803, %795 : vector<8x64xf32>
    %cst_221 = arith.constant 1.000000e+00 : f32
    %805 = vector.broadcast %cst_221 : f32 to vector<8x1xf32>
    %806 = arith.subf %805, %759 : vector<8x1xf32>
    %807 = vector.broadcast %806 : vector<8x1xf32> to vector<8x64xf32>
    %808 = arith.mulf %807, %702 : vector<8x64xf32>
    %809 = arith.addf %804, %808 : vector<8x64xf32>
    %810 = vector.extract_strided_slice %770 {offsets = [0, 0], sizes = [8, 64], strides = [1, 1]} : vector<8x256xf32> to vector<8x64xf32>
    %811 = arith.negf %810 : vector<8x64xf32>
    %812 = math.exp %811 : vector<8x64xf32>
    %cst_222 = arith.constant 1.000000e+00 : f32
    %813 = vector.broadcast %cst_222 : f32 to vector<8x64xf32>
    %814 = arith.addf %813, %812 : vector<8x64xf32>
    %815 = arith.divf %813, %814 : vector<8x64xf32>
    %816 = vector.extract_strided_slice %770 {offsets = [0, 64], sizes = [8, 64], strides = [1, 1]} : vector<8x256xf32> to vector<8x64xf32>
    %817 = arith.negf %816 : vector<8x64xf32>
    %818 = math.exp %817 : vector<8x64xf32>
    %cst_223 = arith.constant 1.000000e+00 : f32
    %819 = vector.broadcast %cst_223 : f32 to vector<8x64xf32>
    %820 = arith.addf %819, %818 : vector<8x64xf32>
    %821 = arith.divf %819, %820 : vector<8x64xf32>
    %822 = vector.extract_strided_slice %770 {offsets = [0, 128], sizes = [8, 64], strides = [1, 1]} : vector<8x256xf32> to vector<8x64xf32>
    %823 = math.tanh %822 : vector<8x64xf32>
    %824 = vector.extract_strided_slice %770 {offsets = [0, 192], sizes = [8, 64], strides = [1, 1]} : vector<8x256xf32> to vector<8x64xf32>
    %825 = arith.negf %824 : vector<8x64xf32>
    %826 = math.exp %825 : vector<8x64xf32>
    %cst_224 = arith.constant 1.000000e+00 : f32
    %827 = vector.broadcast %cst_224 : f32 to vector<8x64xf32>
    %828 = arith.addf %827, %826 : vector<8x64xf32>
    %829 = arith.divf %827, %828 : vector<8x64xf32>
    %830 = arith.mulf %821, %734 : vector<8x64xf32>
    %831 = arith.mulf %815, %823 : vector<8x64xf32>
    %832 = arith.addf %830, %831 : vector<8x64xf32>
    %833 = math.tanh %832 : vector<8x64xf32>
    %834 = arith.mulf %829, %833 : vector<8x64xf32>
    %835 = vector.broadcast %762 : vector<8x1xf32> to vector<8x64xf32>
    %836 = arith.mulf %835, %832 : vector<8x64xf32>
    %cst_225 = arith.constant 1.000000e+00 : f32
    %837 = vector.broadcast %cst_225 : f32 to vector<8x1xf32>
    %838 = arith.subf %837, %762 : vector<8x1xf32>
    %839 = vector.broadcast %838 : vector<8x1xf32> to vector<8x64xf32>
    %840 = arith.mulf %839, %734 : vector<8x64xf32>
    %841 = arith.addf %836, %840 : vector<8x64xf32>
    %842 = vector.broadcast %762 : vector<8x1xf32> to vector<8x64xf32>
    %843 = arith.mulf %842, %834 : vector<8x64xf32>
    %cst_226 = arith.constant 1.000000e+00 : f32
    %844 = vector.broadcast %cst_226 : f32 to vector<8x1xf32>
    %845 = arith.subf %844, %762 : vector<8x1xf32>
    %846 = vector.broadcast %845 : vector<8x1xf32> to vector<8x64xf32>
    %847 = arith.mulf %846, %741 : vector<8x64xf32>
    %848 = arith.addf %843, %847 : vector<8x64xf32>
    %849 = arith.index_cast %c7_i32_201 : i32 to index
    %c0_227 = arith.constant 0 : index
    %c0_228 = arith.constant 0 : index
    %850 = vector.load %arg6[%849, %c0_227, %c0_228] : memref<8x8x64xf32, #tpu.memory_space<vmem>>, vector<1x8x64xf32>
    %851 = vector.shape_cast %850 : vector<1x8x64xf32> to vector<8x64xf32>
    %852 = vector.shape_cast %809 : vector<8x64xf32> to vector<1x8x64xf32>
    tpu.vector_store %arg6[%849, %c0_227, %c0_228], %852 {strides = array<i32>} : memref<8x8x64xf32, #tpu.memory_space<vmem>>, vector<1x8x64xf32>,
    %853 = arith.index_cast %750 : i32 to index
    %c0_229 = arith.constant 0 : index
    %c0_230 = arith.constant 0 : index
    %854 = vector.load %arg7[%853, %c0_229, %c0_230] : memref<8x8x64xf32, #tpu.memory_space<vmem>>, vector<1x8x64xf32>
    %855 = vector.shape_cast %854 : vector<1x8x64xf32> to vector<8x64xf32>
    %856 = vector.shape_cast %848 : vector<8x64xf32> to vector<1x8x64xf32>
    tpu.vector_store %arg7[%853, %c0_229, %c0_230], %856 {strides = array<i32>} : memref<8x8x64xf32, #tpu.memory_space<vmem>>, vector<1x8x64xf32>,
    %c8_i32 = arith.constant 8 : i32
    %c0_231 = arith.constant 0 : index
    %c0_232 = arith.constant 0 : index
    %c0_233 = arith.constant 0 : index
    %857 = vector.load %arg6[%c0_231, %c0_232, %c0_233] : memref<8x8x64xf32, #tpu.memory_space<vmem>>, vector<8x8x64xf32>
    %c0_234 = arith.constant 0 : index
    %c0_235 = arith.constant 0 : index
    %c0_236 = arith.constant 0 : index
    %858 = vector.load %arg5[%c0_234, %c0_235, %c0_236] : memref<8x8x128xf32, #tpu.memory_space<vmem>>, vector<8x8x64xf32>
    tpu.vector_store %arg5[%c0_234, %c0_235, %c0_236], %857 {strides = array<i32>} : memref<8x8x128xf32, #tpu.memory_space<vmem>>, vector<8x8x64xf32>,
    %c0_237 = arith.constant 0 : index
    %c0_238 = arith.constant 0 : index
    %c0_239 = arith.constant 0 : index
    %859 = vector.load %arg7[%c0_237, %c0_238, %c0_239] : memref<8x8x64xf32, #tpu.memory_space<vmem>>, vector<8x8x64xf32>
    %c0_240 = arith.constant 0 : index
    %c0_241 = arith.constant 0 : index
    %c64 = arith.constant 64 : index
    %860 = vector.load %arg5[%c0_240, %c0_241, %c64] : memref<8x8x128xf32, #tpu.memory_space<vmem>>, vector<8x8x64xf32>
    tpu.vector_store %arg5[%c0_240, %c0_241, %c64], %859 {strides = array<i32>} : memref<8x8x128xf32, #tpu.memory_space<vmem>>, vector<8x8x64xf32>,
    return
  }
  func.func @transform_0(%arg0: i32) -> (i32, i32, i32) {
    %c0_i32 = arith.constant 0 : i32
    %c0_i32_0 = arith.constant 0 : i32
    %c0_i32_1 = arith.constant 0 : i32
    %c0_i32_2 = arith.constant 0 : i32
    return %c0_i32, %c0_i32_0, %c0_i32_1 : i32, i32, i32
  }
  func.func @transform_1(%arg0: i32) -> (i32, i32, i32) {
    %c0_i32 = arith.constant 0 : i32
    %c0_i32_0 = arith.constant 0 : i32
    %c0_i32_1 = arith.constant 0 : i32
    %c0_i32_2 = arith.constant 0 : i32
    return %c0_i32, %c0_i32_0, %c0_i32_1 : i32, i32, i32
  }
  func.func @transform_2(%arg0: i32) -> (i32, i32) {
    %c0_i32 = arith.constant 0 : i32
    %c0_i32_0 = arith.constant 0 : i32
    %c0_i32_1 = arith.constant 0 : i32
    return %c0_i32, %c0_i32_0 : i32, i32
  }
  func.func @transform_3(%arg0: i32) -> (i32, i32) {
    %c0_i32 = arith.constant 0 : i32
    %c0_i32_0 = arith.constant 0 : i32
    %c0_i32_1 = arith.constant 0 : i32
    return %c0_i32, %c0_i32_0 : i32, i32
  }
  func.func @transform_4(%arg0: i32) -> (i32, i32, i32) {
    %c0_i32 = arith.constant 0 : i32
    %c0_i32_0 = arith.constant 0 : i32
    %c0_i32_1 = arith.constant 0 : i32
    %c0_i32_2 = arith.constant 0 : i32
    return %c0_i32, %c0_i32_0, %c0_i32_1 : i32, i32, i32
  }
}

</mosaic_0001>

<llo_original>
// kernel: _forward_core.3
$region0: #{_forward_core.3}
  #allocation0 [shape = 'u32[]', space=smem, size = 0x4, offset = 0x4, fixed_abs, tag = 'smem constant byte address 0x4 - core index']
  #allocation1 [shape = 'u32[72,128]{1,0:T(1,128)}', space=vmem, size = 0x9000, scoped, tag = 'internal scratch']
  #allocation2 [shape = 'f32[64,6]{1,0:T(8,128)}', space=vmem, size = 0x8000, scoped, tag = 'scratch operand']
  %s0 = inlined_call_operand.vmem [shape: f32[64,128], index: 0, kind: input, shape index: {}]
  %s1 = inlined_call_operand.vmem [shape: f32[2,128,6], index: 1, kind: input, shape index: {}]
  %s2 = inlined_call_operand.vmem [shape: f32[2,1,6], index: 2, kind: input, shape index: {}]
  %s3 = inlined_call_operand.vmem [shape: f32[2,6,6], index: 3, kind: input, shape index: {}]
  %s4 = inlined_call_operand.vmem [shape: s32[2,8,8,1], index: 4, kind: input, shape index: {}]
  %s5 = inlined_call_operand.vmem [shape: f32[8,8,1], index: 5, kind: input, shape index: {}]
  %s6 = inlined_call_operand.vmem [shape: f32[2,8,1], index: 6, kind: output, shape index: {}]
  %s7 = sld [smem:[#allocation0]]
  $region57: #{_forward_core.3} parent=0
    _
  %s9 = ssub.s32 1, %s7
  %s10 = scalar_select 0, %s9, %s7
  loop: start=0, step=1, limit=4
  $region2: #{_forward_core.3} parent=0 // loop_pre_header
    _
  $region3: #{_forward_core.3} parent=0 // loop_header
    %s12 = sphi 0, %s16
    %p13 = scmp.ge.s32.totalorder %s12, 4
    %s20 = sphi 0, %s20
    %s22 = sphi 0, %s20
    %s23 = sphi 0, %s22
    %s37 = sphi 0, %s23
    %s43 = sphi 0, %s45
    %s46 = sphi 0, %s43
    %s47 = sphi 0, %s46
    %s63 = sphi 0, %s47
    %s69 = sphi 0, %s71
    %s72 = sphi 0, %s69
    %s73 = sphi 0, %s72
    %s89 = sphi 0, %s73
    %s95 = sphi 0, %s97
    %s98 = sphi 0, %s95
    %s99 = sphi 0, %s98
    %s115 = sphi 0, %s99
    %s121 = sphi 0, %s123
    %s124 = sphi 0, %s121
    %s125 = sphi 0, %s124
    %s141 = sphi 0, %s125
    %s145 = sphi 0, %s145
    %s147 = sphi 0, %s145
    %s148 = sphi 0, %s147
    %s162 = sphi 0, %s148
    %s168 = sphi 0, %s170
    %s171 = sphi 0, %s168
    %s172 = sphi 0, %s171
    %s188 = sphi 0, %s172
  $region4: #{_forward_core.3} parent=0 // loop_header_branch
    %15 = sbr.rel (%p13) target = $region8
  $region5: #{_forward_core.3} parent=0 // loop_body
    %s17 = ssub.s32 %s12, 1
    %s18 = ssub.s32 %s12, 2
    %s19 = sadd.s32 %s12, 1
    %s21 = sadd.s32 %s20, 1
    %p24 = scmp.eq.s32.totalorder %s12, 1
    %p25 = scmp.ne.s32.totalorder %s20, %s22
    %p26 = scmp.eq.s32.totalorder %s12, 0
    %p27 = por %p25, %p26
    %p28 = scmp.ne.s32.totalorder %s20, %s22
    %p29 = scmp.eq.s32.totalorder %s17, 1
    %p30 = por %p28, %p29
    %p31 = scmp.ne.s32.totalorder %s22, %s23
    %p32 = scmp.eq.s32.totalorder %s17, 0
    %p33 = por %p31, %p32
    %p34 = scmp.ne.s32.totalorder %s22, %s23
    %p35 = scmp.eq.s32.totalorder %s18, 1
    %p36 = por %p34, %p35
    %p38 = scmp.ne.s32.totalorder %s23, %s37
    %p39 = scmp.eq.s32.totalorder %s18, 0
    %p40 = por %p38, %p39
    %s41 = ssub.s32 %s12, %s19
    %p42 = scmp.eq.s32.totalorder %s41, 0
    %s44 = sadd.s32 %s43, 1
    %s45 = scalar_select %p42, %s43, %s44
    %p48 = pneg %p42
    %p49 = scmp.eq.s32.totalorder %s12, 1
    %p50 = por %p48, %p49
    %p51 = scmp.ne.s32.totalorder %s43, %s46
    %p52 = scmp.eq.s32.totalorder %s12, 0
    %p53 = por %p51, %p52
    %p54 = scmp.ne.s32.totalorder %s43, %s46
    %p55 = scmp.eq.s32.totalorder %s17, 1
    %p56 = por %p54, %p55
    %p57 = scmp.ne.s32.totalorder %s46, %s47
    %p58 = scmp.eq.s32.totalorder %s17, 0
    %p59 = por %p57, %p58
    %p60 = scmp.ne.s32.totalorder %s46, %s47
    %p61 = scmp.eq.s32.totalorder %s18, 1
    %p62 = por %p60, %p61
    %p64 = scmp.ne.s32.totalorder %s47, %s63
    %p65 = scmp.eq.s32.totalorder %s18, 0
    %p66 = por %p64, %p65
    %s67 = ssub.s32 %s12, %s19
    %p68 = scmp.eq.s32.totalorder %s67, 0
    %s70 = sadd.s32 %s69, 1
    %s71 = scalar_select %p68, %s69, %s70
    %p74 = pneg %p68
    %p75 = scmp.eq.s32.totalorder %s12, 1
    %p76 = por %p74, %p75
    %p77 = scmp.ne.s32.totalorder %s69, %s72
    %p78 = scmp.eq.s32.totalorder %s12, 0
    %p79 = por %p77, %p78
    %p80 = scmp.ne.s32.totalorder %s69, %s72
    %p81 = scmp.eq.s32.totalorder %s17, 1
    %p82 = por %p80, %p81
    %p83 = scmp.ne.s32.totalorder %s72, %s73
    %p84 = scmp.eq.s32.totalorder %s17, 0
    %p85 = por %p83, %p84
    %p86 = scmp.ne.s32.totalorder %s72, %s73
    %p87 = scmp.eq.s32.totalorder %s18, 1
    %p88 = por %p86, %p87
    %p90 = scmp.ne.s32.totalorder %s73, %s89
    %p91 = scmp.eq.s32.totalorder %s18, 0
    %p92 = por %p90, %p91
    %s93 = ssub.s32 %s12, %s19
    %p94 = scmp.eq.s32.totalorder %s93, 0
    %s96 = sadd.s32 %s95, 1
    %s97 = scalar_select %p94, %s95, %s96
    %p100 = pneg %p94
    %p101 = scmp.eq.s32.totalorder %s12, 1
    %p102 = por %p100, %p101
    %p103 = scmp.ne.s32.totalorder %s95, %s98
    %p104 = scmp.eq.s32.totalorder %s12, 0
    %p105 = por %p103, %p104
    %p106 = scmp.ne.s32.totalorder %s95, %s98
    %p107 = scmp.eq.s32.totalorder %s17, 1
    %p108 = por %p106, %p107
    %p109 = scmp.ne.s32.totalorder %s98, %s99
    %p110 = scmp.eq.s32.totalorder %s17, 0
    %p111 = por %p109, %p110
    %p112 = scmp.ne.s32.totalorder %s98, %s99
    %p113 = scmp.eq.s32.totalorder %s18, 1
    %p114 = por %p112, %p113
    %p116 = scmp.ne.s32.totalorder %s99, %s115
    %p117 = scmp.eq.s32.totalorder %s18, 0
    %p118 = por %p116, %p117
    %s119 = ssub.s32 %s12, %s19
    %p120 = scmp.eq.s32.totalorder %s119, 0
    %s122 = sadd.s32 %s121, 1
    %s123 = scalar_select %p120, %s121, %s122
    %p126 = pneg %p120
    %p127 = scmp.eq.s32.totalorder %s12, 1
    %p128 = por %p126, %p127
    %p129 = scmp.ne.s32.totalorder %s121, %s124
    %p130 = scmp.eq.s32.totalorder %s12, 0
    %p131 = por %p129, %p130
    %p132 = scmp.ne.s32.totalorder %s121, %s124
    %p133 = scmp.eq.s32.totalorder %s17, 1
    %p134 = por %p132, %p133
    %p135 = scmp.ne.s32.totalorder %s124, %s125
    %p136 = scmp.eq.s32.totalorder %s17, 0
    %p137 = por %p135, %p136
    %p138 = scmp.ne.s32.totalorder %s124, %s125
    %p139 = scmp.eq.s32.totalorder %s18, 1
    %p140 = por %p138, %p139
    %p142 = scmp.ne.s32.totalorder %s125, %s141
    %p143 = scmp.eq.s32.totalorder %s18, 0
    %p144 = por %p142, %p143
    %s146 = sadd.s32 %s145, 1
    %p149 = scmp.eq.s32.totalorder %s12, 1
    %p150 = scmp.ne.s32.totalorder %s145, %s147
    %p151 = scmp.eq.s32.totalorder %s12, 0
    %p152 = por %p150, %p151
    %p153 = scmp.ne.s32.totalorder %s145, %s147
    %p154 = scmp.eq.s32.totalorder %s17, 1
    %p155 = por %p153, %p154
    %p156 = scmp.ne.s32.totalorder %s147, %s148
    %p157 = scmp.eq.s32.totalorder %s17, 0
    %p158 = por %p156, %p157
    %p159 = scmp.ne.s32.totalorder %s147, %s148
    %p160 = scmp.eq.s32.totalorder %s18, 1
    %p161 = por %p159, %p160
    %p163 = scmp.ne.s32.totalorder %s148, %s162
    %p164 = scmp.eq.s32.totalorder %s18, 0
    %p165 = por %p163, %p164
    %s166 = ssub.s32 %s12, %s19
    %p167 = scmp.eq.s32.totalorder %s166, 0
    %s169 = sadd.s32 %s168, 1
    %s170 = scalar_select %p167, %s168, %s169
    %p173 = pneg %p167
    %p174 = scmp.eq.s32.totalorder %s12, 1
    %p175 = por %p173, %p174
    %p176 = scmp.ne.s32.totalorder %s168, %s171
    %p177 = scmp.eq.s32.totalorder %s12, 0
    %p178 = por %p176, %p177
    %p179 = scmp.ne.s32.totalorder %s168, %s171
    %p180 = scmp.eq.s32.totalorder %s17, 1
    %p181 = por %p179, %p180
    %p182 = scmp.ne.s32.totalorder %s171, %s172
    %p183 = scmp.eq.s32.totalorder %s17, 0
    %p184 = por %p182, %p183
    %p185 = scmp.ne.s32.totalorder %s171, %s172
    %p186 = scmp.eq.s32.totalorder %s18, 1
    %p187 = por %p185, %p186
    %p189 = scmp.ne.s32.totalorder %s172, %s188
    %p190 = scmp.eq.s32.totalorder %s18, 0
    %p191 = por %p189, %p190
    %p192 = scmp.le.s32.totalorder 1, %s12
    %p193 = scmp.lt.s32.totalorder %s12, 3
    %p194 = pnand %p192, %p193
    %p195 = pneg %p194
    // Predicated region
    $region9: #{_forward_core.3} parent=5 // pred_check
      _
    $region10: #{_forward_core.3} parent=5 // pred_check_branch
      %197 = sbr.rel (%p194) target = $region12
    $region11: #{_forward_core.3} parent=5 // pred_region
      %s198 = ssub.s32 %s12, 1
      // Predicated region
      $region13: #{_forward_core.3} parent=11 // pred_check
        %p199 = pneg %p33
      $region14: #{_forward_core.3} parent=11 // pred_check_branch
        %201 = sbr.rel (%p199) target = $region16
      $region15: #{_forward_core.3} parent=11 // pred_region
        _
      $region16: #{_forward_core.3} parent=11 // pred_fallthru
        _
      // Predicated region
      $region17: #{_forward_core.3} parent=11 // pred_check
        %p202 = pneg %p158
      $region18: #{_forward_core.3} parent=11 // pred_check_branch
        %204 = sbr.rel (%p202) target = $region20
      $region19: #{_forward_core.3} parent=11 // pred_region
        _
      $region20: #{_forward_core.3} parent=11 // pred_fallthru
        _
    $region12: #{_forward_core.3} parent=5 // pred_fallthru
      _
    %p205 = scmp.lt.s32.totalorder %s12, 2
    // Predicated region
    $region21: #{_forward_core.3} parent=5 // pred_check
      %p206 = pneg %p205
    $region22: #{_forward_core.3} parent=5 // pred_check_branch
      %208 = sbr.rel (%p206) target = $region24
    $region23: #{_forward_core.3} parent=5 // pred_region
      // Predicated region
      $region25: #{_forward_core.3} parent=23 // pred_check
        %p209 = pneg %p53
      $region26: #{_forward_core.3} parent=23 // pred_check_branch
        %211 = sbr.rel (%p209) target = $region28
      $region27: #{_forward_core.3} parent=23 // pred_region
        %p212 = scmp.lt.s32.totalorder %s12, 1
        %s213 = scalar_select %p212, %s12, 1
        %s214 = smul.addr %s213, 16
        %s215 = smul.addr %s214, 8
        %s216 = scalar_lea.vmem %s1, %s215
      $region28: #{_forward_core.3} parent=23 // pred_fallthru
        _
      // Predicated region
      $region29: #{_forward_core.3} parent=23 // pred_check
        %p217 = pneg %p79
      $region30: #{_forward_core.3} parent=23 // pred_check_branch
        %219 = sbr.rel (%p217) target = $region32
      $region31: #{_forward_core.3} parent=23 // pred_region
        %p220 = scmp.lt.s32.totalorder %s12, 1
        %s221 = scalar_select %p220, %s12, 1
        %s222 = scalar_lea.vmem %s2, %s221
      $region32: #{_forward_core.3} parent=23 // pred_fallthru
        _
      // Predicated region
      $region33: #{_forward_core.3} parent=23 // pred_check
        %p223 = pneg %p105
      $region34: #{_forward_core.3} parent=23 // pred_check_branch
        %225 = sbr.rel (%p223) target = $region36
      $region35: #{_forward_core.3} parent=23 // pred_region
        %p226 = scmp.lt.s32.totalorder %s12, 1
        %s227 = scalar_select %p226, %s12, 1
        %s228 = smul.addr %s227, 8
        %s229 = scalar_lea.vmem %s3, %s228
      $region36: #{_forward_core.3} parent=23 // pred_fallthru
        _
      // Predicated region
      $region37: #{_forward_core.3} parent=23 // pred_check
        %p230 = pneg %p131
      $region38: #{_forward_core.3} parent=23 // pred_check_branch
        %232 = sbr.rel (%p230) target = $region40
      $region39: #{_forward_core.3} parent=23 // pred_region
        %p233 = scmp.lt.s32.totalorder %s12, 1
        %s234 = scalar_select %p233, %s12, 1
        %s235 = smul.addr %s234, 8
        %s236 = smul.addr %s235, 8
        %s237 = scalar_lea.vmem %s4, %s236
      $region40: #{_forward_core.3} parent=23 // pred_fallthru
        _
    $region24: #{_forward_core.3} parent=5 // pred_fallthru
      _
    %p238 = scmp.le.s32.totalorder 1, %s12
    %p239 = scmp.lt.s32.totalorder %s12, 3
    %p240 = pnand %p238, %p239
    %p241 = pneg %p240
    // Predicated region
    $region41: #{_forward_core.3} parent=5 // pred_check
      _
    $region42: #{_forward_core.3} parent=5 // pred_check_branch
      %243 = sbr.rel (%p240) target = $region44
    $region43: #{_forward_core.3} parent=5 // pred_region
      %s244 = ssub.s32 %s12, 1
      %p245 = pneg %p33
      %p246 = pneg %p30
      %p247 = scmp.lt.s32.totalorder %s17, 1
      %s248 = scalar_select %p247, %s17, 1
      %s249 = smul.addr %s248, 16
      %s250 = smul.addr %s249, 8
      %s251 = scalar_lea.vmem %s1, %s250
      %p252 = pneg %p59
      %p253 = pneg %p56
      %p254 = scmp.lt.s32.totalorder %s17, 1
      %s255 = scalar_select %p254, %s17, 1
      %s256 = scalar_lea.vmem %s2, %s255
      %p257 = pneg %p85
      %p258 = pneg %p82
      %p259 = scmp.lt.s32.totalorder %s17, 1
      %s260 = scalar_select %p259, %s17, 1
      %s261 = smul.addr %s260, 8
      %s262 = scalar_lea.vmem %s3, %s261
      %p263 = pneg %p111
      %p264 = pneg %p108
      %p265 = scmp.lt.s32.totalorder %s17, 1
      %s266 = scalar_select %p265, %s17, 1
      %s267 = smul.addr %s266, 8
      %s268 = smul.addr %s267, 8
      %s269 = scalar_lea.vmem %s4, %s268
      %p270 = pneg %p137
      %p271 = pneg %p134
      %p272 = pneg %p158
      %p273 = pneg %p155
      %p274 = pneg %p184
      %p275 = pneg %p181
      %p276 = scmp.lt.s32.totalorder %s17, 1
      %s277 = scalar_select %p276, %s17, 1
      %s278 = smul.addr %s277, 8
      %s279 = scalar_lea.vmem %s6, %s278
      %p280 = scmp.lt.s32.totalorder %s17, 1
      %s281 = scalar_select %p280, %s17, 1
      %s282 = smul.addr %s281, 16
      %s283 = smul.addr %s282, 8
      %s284 = scalar_lea.vmem %s1, %s283
      %p285 = scmp.lt.s32.totalorder %s17, 1
      %s286 = scalar_select %p285, %s17, 1
      %s287 = scalar_lea.vmem %s2, %s286
      %p288 = scmp.lt.s32.totalorder %s17, 1
      %s289 = scalar_select %p288, %s17, 1
      %s290 = smul.addr %s289, 8
      %s291 = scalar_lea.vmem %s3, %s290
      %p292 = scmp.lt.s32.totalorder %s17, 1
      %s293 = scalar_select %p292, %s17, 1
      %s294 = smul.addr %s293, 8
      %s295 = smul.addr %s294, 8
      %s296 = scalar_lea.vmem %s4, %s295
      %p297 = scmp.lt.s32.totalorder %s17, 1
      %s298 = scalar_select %p297, %s17, 1
      %s299 = smul.addr %s298, 8
      %s300 = scalar_lea.vmem %s6, %s299
      %v301 = vld [vmem:[%s0] sm:$0xff]
      %v302 = vld [vmem:[%s0 + $0x8] sm:$0xff]
      %v303 = vld [vmem:[%s0 + $0x10] sm:$0xff]
      %v304 = vld [vmem:[%s0 + $0x18] sm:$0xff]
      %v305 = vld [vmem:[%s0 + $0x20] sm:$0xff]
      %v306 = vld [vmem:[%s0 + $0x28] sm:$0xff]
      %v307 = vld [vmem:[%s0 + $0x30] sm:$0xff]
      %v308 = vld [vmem:[%s0 + $0x38] sm:$0xff]
      %v309 = vld [vmem:[%s284] sm:$0xff]
      %v310 = vld [vmem:[%s284 + $0x8] sm:$0xff]
      %v311 = vld [vmem:[%s284 + $0x10] sm:$0xff]
      %v312 = vld [vmem:[%s284 + $0x18] sm:$0xff]
      %v313 = vld [vmem:[%s284 + $0x20] sm:$0xff]
      %v314 = vld [vmem:[%s284 + $0x28] sm:$0xff]
      %v315 = vld [vmem:[%s284 + $0x30] sm:$0xff]
      %v316 = vld [vmem:[%s284 + $0x38] sm:$0xff]
      %v317 = vld [vmem:[%s284 + $0x40] sm:$0xff]
      %v318 = vld [vmem:[%s284 + $0x48] sm:$0xff]
      %v319 = vld [vmem:[%s284 + $0x50] sm:$0xff]
      %v320 = vld [vmem:[%s284 + $0x58] sm:$0xff]
      %v321 = vld [vmem:[%s284 + $0x60] sm:$0xff]
      %v322 = vld [vmem:[%s284 + $0x68] sm:$0xff]
      %v323 = vld [vmem:[%s284 + $0x70] sm:$0xff]
      %v324 = vld [vmem:[%s284 + $0x78] sm:$0xff]
      %v325 = vld [vmem:[%s287] sm:$0x1]
      %v327 = vperm.slane %v325, 0
      %329 = vmatpush.msra.mxu0 %v324
      %330 = vmatpush.msra.mxu0 %v323
      %331 = vmatpush.msra.mxu0 %v322
      %332 = vmatpush.msra.mxu0 %v321
      %333 = vmatpush.msra.mxu0 %v320
      %334 = vmatpush.msra.mxu0 %v319
      %335 = vmatpush.msra.mxu0 %v318
      %336 = vmatpush.msra.mxu0 %v317
      %337 = vmatpush.msra.mxu0 %v316
      %338 = vmatpush.msra.mxu0 %v315
      %339 = vmatpush.msra.mxu0 %v314
      %340 = vmatpush.msra.mxu0 %v313
      %341 = vmatpush.msra.mxu0 %v312
      %342 = vmatpush.msra.mxu0 %v311
      %343 = vmatpush.msra.mxu0 %v310
      %344 = vmatpush.msra.mxu0 %v309
      %345 = vmatmul.f32.gmra.mxu0 %v301
      %v346 = vpop.f32.mrf.mxu0
      %v347 = vadd.f32 %v327, %v346
      %348 = vmatmul.f32.gmra.mxu0 %v302
      %v349 = vpop.f32.mrf.mxu0
      %v350 = vadd.f32 %v327, %v349
      %351 = vmatmul.f32.gmra.mxu0 %v303
      %v352 = vpop.f32.mrf.mxu0
      %v353 = vadd.f32 %v327, %v352
      %354 = vmatmul.f32.gmra.mxu0 %v304
      %v355 = vpop.f32.mrf.mxu0
      %v356 = vadd.f32 %v327, %v355
      %357 = vmatmul.f32.gmra.mxu0 %v305
      %v358 = vpop.f32.mrf.mxu0
      %v359 = vadd.f32 %v327, %v358
      %360 = vmatmul.f32.gmra.mxu0 %v306
      %v361 = vpop.f32.mrf.mxu0
      %v362 = vadd.f32 %v327, %v361
      %363 = vmatmul.f32.gmra.mxu0 %v307
      %v364 = vpop.f32.mrf.mxu0
      %v365 = vadd.f32 %v327, %v364
      %366 = vmatmul.f32.gmra.mxu0 %v308
      %v367 = vpop.f32.mrf.mxu0
      %v368 = vadd.f32 %v327, %v367
      %369 = vdwg.mxu0
      %vm370 = vcmask 48128
      %371 = vst.msk [vmem:[#allocation2] sm:$0xff] %vm370, %v347
      %372 = vst.msk [vmem:[#allocation2 + $0x8] sm:$0xff] %vm370, %v350
      %373 = vst.msk [vmem:[#allocation2 + $0x10] sm:$0xff] %vm370, %v353
      %374 = vst.msk [vmem:[#allocation2 + $0x18] sm:$0xff] %vm370, %v356
      %375 = vst.msk [vmem:[#allocation2 + $0x20] sm:$0xff] %vm370, %v359
      %376 = vst.msk [vmem:[#allocation2 + $0x28] sm:$0xff] %vm370, %v362
      %377 = vst.msk [vmem:[#allocation2 + $0x30] sm:$0xff] %vm370, %v365
      %378 = vst.msk [vmem:[#allocation2 + $0x38] sm:$0xff] %vm370, %v368
      %v379 = vld [vmem:[%s291] sm:$0x3f]
      %v380 = vlaneseq
      %v381 = vand.u32 %v380, 127
      %vm382 = vcmp.eq.s32.totalorder %v381, 5
      %v383 = vsel %vm382, 1, 0
      %v384 = vcvt.s32.f32 %v383
      %v385 = vld [vmem:[#allocation2] sm:$0xff]
      %v386 = vld [vmem:[%s5] sm:$0xff]
      %v387 = vld [vmem:[%s296] sm:$0xff]
      %388 = vset.pattern.permute.xlu0 0
      %389 = vperm.xlu0 %388, %v387
      %v390 = vpop.permute.xlu0 %389
      %vm391 = vcmp.eq.s32.totalorder %v381, %v390
      %v392 = vsel %vm391, 1, 0
      %v393 = vcvt.s32.f32 %v392
      %v394 = vperm.slane %v379, 5
      %v395 = vadd.f32 %v394, %v385
      %v396 = vlaneseq
      %v397 = vshrl.u32 %v396, 7
      %399 = vset.pattern.permute.xlu0 %v397
      %400 = vperm.xlu0 %399, %v384
      %v401 = vpop.permute.xlu0 %400
      %v402 = vmul.f32 %v401, %v379
      %vm403 = vcmask 46080
      %v404 = vsel %vm403, %v402, 0.0
      %v405 = vrot.slane %v404, 4
      %v406 = vadd.f32 %v404, %v405
      %v407 = vrot.slane %v406, 2
      %v408 = vadd.f32 %v406, %v407
      %v409 = vrot.slane %v408, 1
      %v410 = vadd.f32 %v408, %v409
      %v412 = vrot.slane %v385, 1
      %v413 = vrot.slane %v385, 2
      %v414 = vrot.slane %v385, 3
      %v415 = vrot.slane %v385, 4
      %v416 = vrot.slane %v385, 5
      %v417 = vrot.slane %v385, 6
      %v418 = vrot.slane %v385, 7
      %v427 = vadd.f32 %v410, %v385
      %v428 = vadd.f32 %v410, %v412
      %v429 = vadd.f32 %v410, %v413
      %v430 = vadd.f32 %v410, %v414
      %v431 = vadd.f32 %v410, %v415
      %v432 = vadd.f32 %v410, %v416
      %v433 = vadd.f32 %v410, %v417
      %v434 = vadd.f32 %v410, %v418
      %v443 = vrot.slane %v428, 7
      %vm444 = vcmask 1041409
      %v445 = vsel %vm444, %v443, %v427
      %v446 = vrot.slane %v429, 6
      %vm447 = vcmask 1042434
      %v448 = vsel %vm447, %v446, %v445
      %v449 = vrot.slane %v430, 5
      %vm450 = vcmask 1043459
      %v451 = vsel %vm450, %v449, %v448
      %v452 = vrot.slane %v431, 4
      %vm453 = vcmask 1044484
      %v454 = vsel %vm453, %v452, %v451
      %v455 = vrot.slane %v432, 3
      %vm456 = vcmask 1045509
      %v457 = vsel %vm456, %v455, %v454
      %v458 = vrot.slane %v433, 2
      %vm459 = vcmask 1046534
      %v460 = vsel %vm459, %v458, %v457
      %v461 = vrot.slane %v434, 1
      %vm462 = vcmask 1047559
      %v463 = vsel %vm462, %v461, %v460
      %v465 = vmul.f32 %v393, %v463
      %v466 = vsel %vm370, %v465, 0.0
      %467 = vadd.xlane.f32.xlu0 %v466
      %v468 = vpop.xlane.xlu0 %467
      %v469 = vmul.f32 %v468, %v386
      %v470 = vadd.f32 %v469, 0.0
      %vm471 = vcmp.gt.f32.partialorder %v386, 0.0
      %v472 = vsel %vm471, 1, 0
      %473 = vset.pattern.permute.xlu0 0
      %474 = vperm.xlu0 %473, %v472
      %v475 = vpop.permute.xlu0 %474
      %vm476 = vcmp.eq.s32.totalorder %v475, 1
      %v477 = vsel %vm476, %v393, %v384
      %s478 = scalar_lea.vmem [#allocation2], 8
      %v479 = vld [vmem:[%s478] sm:$0xff]
      %s480 = scalar_lea.vmem %s5, 8
      %v481 = vld [vmem:[%s480] sm:$0xff]
      %s482 = scalar_lea.vmem %s296, 8
      %v483 = vld [vmem:[%s482] sm:$0xff]
      %484 = vset.pattern.permute.xlu0 0
      %485 = vperm.xlu0 %484, %v483
      %v486 = vpop.permute.xlu0 %485
      %vm487 = vcmp.eq.s32.totalorder %v381, %v486
      %v488 = vsel %vm487, 1, 0
      %v489 = vcvt.s32.f32 %v488
      %v490 = vperm.slane %v395, 0
      %v491 = vlaneseq
      %v492 = vshrl.u32 %v491, 7
      %494 = vset.pattern.permute.xlu0 %v492
      %495 = vperm.xlu0 %494, %v490
      %v496 = vpop.permute.xlu0 %495
      %v497 = vperm.slane %v395, 1
      %v498 = vlaneseq
      %v499 = vshrl.u32 %v498, 7
      %501 = vset.pattern.permute.xlu0 %v499
      %502 = vperm.xlu0 %501, %v497
      %v503 = vpop.permute.xlu0 %502
      %v504 = vperm.slane %v395, 2
      %v505 = vlaneseq
      %v506 = vshrl.u32 %v505, 7
      %508 = vset.pattern.permute.xlu0 %v506
      %509 = vperm.xlu0 %508, %v504
      %v510 = vpop.permute.xlu0 %509
      %v511 = vperm.slane %v395, 3
      %v512 = vlaneseq
      %v513 = vshrl.u32 %v512, 7
      %515 = vset.pattern.permute.xlu0 %v513
      %516 = vperm.xlu0 %515, %v511
      %v517 = vpop.permute.xlu0 %516
      %v518 = vperm.slane %v395, 4
      %v519 = vlaneseq
      %v520 = vshrl.u32 %v519, 7
      %522 = vset.pattern.permute.xlu0 %v520
      %523 = vperm.xlu0 %522, %v518
      %v524 = vpop.permute.xlu0 %523
      %v525 = vperm.slane %v395, 5
      %v526 = vlaneseq
      %v527 = vshrl.u32 %v526, 7
      %529 = vset.pattern.permute.xlu0 %v527
      %530 = vperm.xlu0 %529, %v525
      %v531 = vpop.permute.xlu0 %530
      %v532 = vperm.slane %v395, 6
      %v533 = vlaneseq
      %v534 = vshrl.u32 %v533, 7
      %536 = vset.pattern.permute.xlu0 %v534
      %537 = vperm.xlu0 %536, %v532
      %v538 = vpop.permute.xlu0 %537
      %v539 = vperm.slane %v395, 7
      %v540 = vlaneseq
      %v541 = vshrl.u32 %v540, 7
      %543 = vset.pattern.permute.xlu0 %v541
      %544 = vperm.xlu0 %543, %v539
      %v545 = vpop.permute.xlu0 %544
      %v546 = vadd.f32 %v496, %v379
      %v547 = vadd.f32 %v503, %v379
      %v548 = vadd.f32 %v510, %v379
      %v549 = vadd.f32 %v517, %v379
      %v550 = vadd.f32 %v524, %v379
      %v551 = vadd.f32 %v531, %v379
      %v552 = vadd.f32 %v538, %v379
      %v553 = vadd.f32 %v545, %v379
      %v554 = vsel %vm403, %v546, -inf
      %v555 = vrot.slane %v554, 4
      %v556 = vmax.f32 %v554, %v555
      %v557 = vrot.slane %v556, 2
      %v558 = vmax.f32 %v556, %v557
      %v559 = vrot.slane %v558, 1
      %v560 = vmax.f32 %v558, %v559
      %v561 = vsel %vm403, %v547, -inf
      %v562 = vrot.slane %v561, 4
      %v563 = vmax.f32 %v561, %v562
      %v564 = vrot.slane %v563, 2
      %v565 = vmax.f32 %v563, %v564
      %v566 = vrot.slane %v565, 1
      %v567 = vmax.f32 %v565, %v566
      %v568 = vsel %vm403, %v548, -inf
      %v569 = vrot.slane %v568, 4
      %v570 = vmax.f32 %v568, %v569
      %v571 = vrot.slane %v570, 2
      %v572 = vmax.f32 %v570, %v571
      %v573 = vrot.slane %v572, 1
      %v574 = vmax.f32 %v572, %v573
      %v575 = vsel %vm403, %v549, -inf
      %v576 = vrot.slane %v575, 4
      %v577 = vmax.f32 %v575, %v576
      %v578 = vrot.slane %v577, 2
      %v579 = vmax.f32 %v577, %v578
      %v580 = vrot.slane %v579, 1
      %v581 = vmax.f32 %v579, %v580
      %v582 = vsel %vm403, %v550, -inf
      %v583 = vrot.slane %v582, 4
      %v584 = vmax.f32 %v582, %v583
      %v585 = vrot.slane %v584, 2
      %v586 = vmax.f32 %v584, %v585
      %v587 = vrot.slane %v586, 1
      %v588 = vmax.f32 %v586, %v587
      %v589 = vsel %vm403, %v551, -inf
      %v590 = vrot.slane %v589, 4
      %v591 = vmax.f32 %v589, %v590
      %v592 = vrot.slane %v591, 2
      %v593 = vmax.f32 %v591, %v592
      %v594 = vrot.slane %v593, 1
      %v595 = vmax.f32 %v593, %v594
      %v596 = vsel %vm403, %v552, -inf
      %v597 = vrot.slane %v596, 4
      %v598 = vmax.f32 %v596, %v597
      %v599 = vrot.slane %v598, 2
      %v600 = vmax.f32 %v598, %v599
      %v601 = vrot.slane %v600, 1
      %v602 = vmax.f32 %v600, %v601
      %v603 = vsel %vm403, %v553, -inf
      %v604 = vrot.slane %v603, 4
      %v605 = vmax.f32 %v603, %v604
      %v606 = vrot.slane %v605, 2
      %v607 = vmax.f32 %v605, %v606
      %v608 = vrot.slane %v607, 1
      %v609 = vmax.f32 %v607, %v608
      %v610 = vsub.f32 %v546, %v560
      %v611 = vsub.f32 %v547, %v567
      %v612 = vsub.f32 %v548, %v574
      %v613 = vsub.f32 %v549, %v581
      %v614 = vsub.f32 %v550, %v588
      %v615 = vsub.f32 %v551, %v595
      %v616 = vsub.f32 %v552, %v602
      %v617 = vsub.f32 %v553, %v609
      %v618 = vmul.f32 %v610, 1.442695
      %v619 = vpow.pop %v618
      %v620 = vmul.f32 %v611, 1.442695
      %v621 = vpow.pop %v620
      %v622 = vmul.f32 %v612, 1.442695
      %v623 = vpow.pop %v622
      %v624 = vmul.f32 %v613, 1.442695
      %v625 = vpow.pop %v624
      %v626 = vmul.f32 %v614, 1.442695
      %v627 = vpow.pop %v626
      %v628 = vmul.f32 %v615, 1.442695
      %v629 = vpow.pop %v628
      %v630 = vmul.f32 %v616, 1.442695
      %v631 = vpow.pop %v630
      %v632 = vmul.f32 %v617, 1.442695
      %v633 = vpow.pop %v632
      %v634 = vsel %vm403, %v619, 0.0
      %v635 = vrot.slane %v634, 4
      %v636 = vadd.f32 %v634, %v635
      %v637 = vrot.slane %v636, 2
      %v638 = vadd.f32 %v636, %v637
      %v639 = vrot.slane %v638, 1
      %v640 = vadd.f32 %v638, %v639
      %v641 = vsel %vm403, %v621, 0.0
      %v642 = vrot.slane %v641, 4
      %v643 = vadd.f32 %v641, %v642
      %v644 = vrot.slane %v643, 2
      %v645 = vadd.f32 %v643, %v644
      %v646 = vrot.slane %v645, 1
      %v647 = vadd.f32 %v645, %v646
      %v648 = vsel %vm403, %v623, 0.0
      %v649 = vrot.slane %v648, 4
      %v650 = vadd.f32 %v648, %v649
      %v651 = vrot.slane %v650, 2
      %v652 = vadd.f32 %v650, %v651
      %v653 = vrot.slane %v652, 1
      %v654 = vadd.f32 %v652, %v653
      %v655 = vsel %vm403, %v625, 0.0
      %v656 = vrot.slane %v655, 4
      %v657 = vadd.f32 %v655, %v656
      %v658 = vrot.slane %v657, 2
      %v659 = vadd.f32 %v657, %v658
      %v660 = vrot.slane %v659, 1
      %v661 = vadd.f32 %v659, %v660
      %v662 = vsel %vm403, %v627, 0.0
      %v663 = vrot.slane %v662, 4
      %v664 = vadd.f32 %v662, %v663
      %v665 = vrot.slane %v664, 2
      %v666 = vadd.f32 %v664, %v665
      %v667 = vrot.slane %v666, 1
      %v668 = vadd.f32 %v666, %v667
      %v669 = vsel %vm403, %v629, 0.0
      %v670 = vrot.slane %v669, 4
      %v671 = vadd.f32 %v669, %v670
      %v672 = vrot.slane %v671, 2
      %v673 = vadd.f32 %v671, %v672
      %v674 = vrot.slane %v673, 1
      %v675 = vadd.f32 %v673, %v674
      %v676 = vsel %vm403, %v631, 0.0
      %v677 = vrot.slane %v676, 4
      %v678 = vadd.f32 %v676, %v677
      %v679 = vrot.slane %v678, 2
      %v680 = vadd.f32 %v678, %v679
      %v681 = vrot.slane %v680, 1
      %v682 = vadd.f32 %v680, %v681
      %v683 = vsel %vm403, %v633, 0.0
      %v684 = vrot.slane %v683, 4
      %v685 = vadd.f32 %v683, %v684
      %v686 = vrot.slane %v685, 2
      %v687 = vadd.f32 %v685, %v686
      %v688 = vrot.slane %v687, 1
      %v689 = vadd.f32 %v687, %v688
      %v690 = vlog2.pop %v640
      %v691 = vmul.f32 %v690, 0.6931472
      %v692 = vlog2.pop %v647
      %v693 = vmul.f32 %v692, 0.6931472
      %v694 = vlog2.pop %v654
      %v695 = vmul.f32 %v694, 0.6931472
      %v696 = vlog2.pop %v661
      %v697 = vmul.f32 %v696, 0.6931472
      %v698 = vlog2.pop %v668
      %v699 = vmul.f32 %v698, 0.6931472
      %v700 = vlog2.pop %v675
      %v701 = vmul.f32 %v700, 0.6931472
      %v702 = vlog2.pop %v682
      %v703 = vmul.f32 %v702, 0.6931472
      %v704 = vlog2.pop %v689
      %v705 = vmul.f32 %v704, 0.6931472
      %v706 = vadd.f32 %v560, %v691
      %v707 = vadd.f32 %v567, %v693
      %v708 = vadd.f32 %v574, %v695
      %v709 = vadd.f32 %v581, %v697
      %v710 = vadd.f32 %v588, %v699
      %v711 = vadd.f32 %v595, %v701
      %v712 = vadd.f32 %v602, %v703
      %v713 = vadd.f32 %v609, %v705
      %v715 = vrot.slane %v479, 1
      %v716 = vrot.slane %v479, 2
      %v717 = vrot.slane %v479, 3
      %v718 = vrot.slane %v479, 4
      %v719 = vrot.slane %v479, 5
      %v720 = vrot.slane %v479, 6
      %v721 = vrot.slane %v479, 7
      %v730 = vadd.f32 %v706, %v479
      %v731 = vadd.f32 %v707, %v715
      %v732 = vadd.f32 %v708, %v716
      %v733 = vadd.f32 %v709, %v717
      %v734 = vadd.f32 %v710, %v718
      %v735 = vadd.f32 %v711, %v719
      %v736 = vadd.f32 %v712, %v720
      %v737 = vadd.f32 %v713, %v721
      %vm738 = vcmp.gt.f32.partialorder %v481, 0.0
      %v739 = vsel %vm738, 1, 0
      %740 = vset.pattern.permute.xlu0 0
      %741 = vperm.xlu0 %740, %v739
      %v742 = vpop.permute.xlu0 %741
      %vm743 = vcmp.eq.s32.totalorder %v742, 1
      %v752 = vrot.slane %v731, 7
      %v753 = vsel %vm444, %v752, %v730
      %v754 = vrot.slane %v732, 6
      %v755 = vsel %vm447, %v754, %v753
      %v756 = vrot.slane %v733, 5
      %v757 = vsel %vm450, %v756, %v755
      %v758 = vrot.slane %v734, 4
      %v759 = vsel %vm453, %v758, %v757
      %v760 = vrot.slane %v735, 3
      %v761 = vsel %vm456, %v760, %v759
      %v762 = vrot.slane %v736, 2
      %v763 = vsel %vm459, %v762, %v761
      %v764 = vrot.slane %v737, 1
      %v765 = vsel %vm462, %v764, %v763
      %v767 = vsel %vm743, %v765, %v395
      %v768 = vperm.slane %v477, 0
      %v769 = vlaneseq
      %v770 = vshrl.u32 %v769, 7
      %772 = vset.pattern.permute.xlu0 %v770
      %773 = vperm.xlu0 %772, %v768
      %v774 = vpop.permute.xlu0 %773
      %v775 = vperm.slane %v477, 1
      %v776 = vlaneseq
      %v777 = vshrl.u32 %v776, 7
      %779 = vset.pattern.permute.xlu0 %v777
      %780 = vperm.xlu0 %779, %v775
      %v781 = vpop.permute.xlu0 %780
      %v782 = vperm.slane %v477, 2
      %v783 = vlaneseq
      %v784 = vshrl.u32 %v783, 7
      %786 = vset.pattern.permute.xlu0 %v784
      %787 = vperm.xlu0 %786, %v782
      %v788 = vpop.permute.xlu0 %787
      %v789 = vperm.slane %v477, 3
      %v790 = vlaneseq
      %v791 = vshrl.u32 %v790, 7
      %793 = vset.pattern.permute.xlu0 %v791
      %794 = vperm.xlu0 %793, %v789
      %v795 = vpop.permute.xlu0 %794
      %v796 = vperm.slane %v477, 4
      %v797 = vlaneseq
      %v798 = vshrl.u32 %v797, 7
      %800 = vset.pattern.permute.xlu0 %v798
      %801 = vperm.xlu0 %800, %v796
      %v802 = vpop.permute.xlu0 %801
      %v803 = vperm.slane %v477, 5
      %v804 = vlaneseq
      %v805 = vshrl.u32 %v804, 7
      %807 = vset.pattern.permute.xlu0 %v805
      %808 = vperm.xlu0 %807, %v803
      %v809 = vpop.permute.xlu0 %808
      %v810 = vperm.slane %v477, 6
      %v811 = vlaneseq
      %v812 = vshrl.u32 %v811, 7
      %814 = vset.pattern.permute.xlu0 %v812
      %815 = vperm.xlu0 %814, %v810
      %v816 = vpop.permute.xlu0 %815
      %v817 = vperm.slane %v477, 7
      %v818 = vlaneseq
      %v819 = vshrl.u32 %v818, 7
      %821 = vset.pattern.permute.xlu0 %v819
      %822 = vperm.xlu0 %821, %v817
      %v823 = vpop.permute.xlu0 %822
      %v824 = vmul.f32 %v774, %v379
      %v825 = vmul.f32 %v781, %v379
      %v826 = vmul.f32 %v788, %v379
      %v827 = vmul.f32 %v795, %v379
      %v828 = vmul.f32 %v802, %v379
      %v829 = vmul.f32 %v809, %v379
      %v830 = vmul.f32 %v816, %v379
      %v831 = vmul.f32 %v823, %v379
      %v832 = vsel %vm403, %v824, 0.0
      %v833 = vrot.slane %v832, 4
      %v834 = vadd.f32 %v832, %v833
      %v835 = vrot.slane %v834, 2
      %v836 = vadd.f32 %v834, %v835
      %v837 = vrot.slane %v836, 1
      %v838 = vadd.f32 %v836, %v837
      %v839 = vsel %vm403, %v825, 0.0
      %v840 = vrot.slane %v839, 4
      %v841 = vadd.f32 %v839, %v840
      %v842 = vrot.slane %v841, 2
      %v843 = vadd.f32 %v841, %v842
      %v844 = vrot.slane %v843, 1
      %v845 = vadd.f32 %v843, %v844
      %v846 = vsel %vm403, %v826, 0.0
      %v847 = vrot.slane %v846, 4
      %v848 = vadd.f32 %v846, %v847
      %v849 = vrot.slane %v848, 2
      %v850 = vadd.f32 %v848, %v849
      %v851 = vrot.slane %v850, 1
      %v852 = vadd.f32 %v850, %v851
      %v853 = vsel %vm403, %v827, 0.0
      %v854 = vrot.slane %v853, 4
      %v855 = vadd.f32 %v853, %v854
      %v856 = vrot.slane %v855, 2
      %v857 = vadd.f32 %v855, %v856
      %v858 = vrot.slane %v857, 1
      %v859 = vadd.f32 %v857, %v858
      %v860 = vsel %vm403, %v828, 0.0
      %v861 = vrot.slane %v860, 4
      %v862 = vadd.f32 %v860, %v861
      %v863 = vrot.slane %v862, 2
      %v864 = vadd.f32 %v862, %v863
      %v865 = vrot.slane %v864, 1
      %v866 = vadd.f32 %v864, %v865
      %v867 = vsel %vm403, %v829, 0.0
      %v868 = vrot.slane %v867, 4
      %v869 = vadd.f32 %v867, %v868
      %v870 = vrot.slane %v869, 2
      %v871 = vadd.f32 %v869, %v870
      %v872 = vrot.slane %v871, 1
      %v873 = vadd.f32 %v871, %v872
      %v874 = vsel %vm403, %v830, 0.0
      %v875 = vrot.slane %v874, 4
      %v876 = vadd.f32 %v874, %v875
      %v877 = vrot.slane %v876, 2
      %v878 = vadd.f32 %v876, %v877
      %v879 = vrot.slane %v878, 1
      %v880 = vadd.f32 %v878, %v879
      %v881 = vsel %vm403, %v831, 0.0
      %v882 = vrot.slane %v881, 4
      %v883 = vadd.f32 %v881, %v882
      %v884 = vrot.slane %v883, 2
      %v885 = vadd.f32 %v883, %v884
      %v886 = vrot.slane %v885, 1
      %v887 = vadd.f32 %v885, %v886
      %v888 = vadd.f32 %v838, %v479
      %v889 = vadd.f32 %v845, %v715
      %v890 = vadd.f32 %v852, %v716
      %v891 = vadd.f32 %v859, %v717
      %v892 = vadd.f32 %v866, %v718
      %v893 = vadd.f32 %v873, %v719
      %v894 = vadd.f32 %v880, %v720
      %v895 = vadd.f32 %v887, %v721
      %v904 = vrot.slane %v889, 7
      %v905 = vsel %vm444, %v904, %v888
      %v906 = vrot.slane %v890, 6
      %v907 = vsel %vm447, %v906, %v905
      %v908 = vrot.slane %v891, 5
      %v909 = vsel %vm450, %v908, %v907
      %v910 = vrot.slane %v892, 4
      %v911 = vsel %vm453, %v910, %v909
      %v912 = vrot.slane %v893, 3
      %v913 = vsel %vm456, %v912, %v911
      %v914 = vrot.slane %v894, 2
      %v915 = vsel %vm459, %v914, %v913
      %v916 = vrot.slane %v895, 1
      %v917 = vsel %vm462, %v916, %v915
      %v919 = vmul.f32 %v489, %v917
      %v920 = vsel %vm370, %v919, 0.0
      %921 = vadd.xlane.f32.xlu0 %v920
      %v922 = vpop.xlane.xlu0 %921
      %v923 = vmul.f32 %v922, %v481
      %v924 = vadd.f32 %v470, %v923
      %v925 = vsel %vm743, %v489, %v477
      %s926 = scalar_lea.vmem [#allocation2], 16
      %v927 = vld [vmem:[%s926] sm:$0xff]
      %s928 = scalar_lea.vmem %s5, 16
      %v929 = vld [vmem:[%s928] sm:$0xff]
      %s930 = scalar_lea.vmem %s296, 16
      %v931 = vld [vmem:[%s930] sm:$0xff]
      %932 = vset.pattern.permute.xlu0 0
      %933 = vperm.xlu0 %932, %v931
      %v934 = vpop.permute.xlu0 %933
      %vm935 = vcmp.eq.s32.totalorder %v381, %v934
      %v936 = vsel %vm935, 1, 0
      %v937 = vcvt.s32.f32 %v936
      %v938 = vperm.slane %v767, 0
      %v939 = vlaneseq
      %v940 = vshrl.u32 %v939, 7
      %942 = vset.pattern.permute.xlu0 %v940
      %943 = vperm.xlu0 %942, %v938
      %v944 = vpop.permute.xlu0 %943
      %v945 = vperm.slane %v767, 1
      %v946 = vlaneseq
      %v947 = vshrl.u32 %v946, 7
      %949 = vset.pattern.permute.xlu0 %v947
      %950 = vperm.xlu0 %949, %v945
      %v951 = vpop.permute.xlu0 %950
      %v952 = vperm.slane %v767, 2
      %v953 = vlaneseq
      %v954 = vshrl.u32 %v953, 7
      %956 = vset.pattern.permute.xlu0 %v954
      %957 = vperm.xlu0 %956, %v952
      %v958 = vpop.permute.xlu0 %957
      %v959 = vperm.slane %v767, 3
      %v960 = vlaneseq
      %v961 = vshrl.u32 %v960, 7
      %963 = vset.pattern.permute.xlu0 %v961
      %964 = vperm.xlu0 %963, %v959
      %v965 = vpop.permute.xlu0 %964
      %v966 = vperm.slane %v767, 4
      %v967 = vlaneseq
      %v968 = vshrl.u32 %v967, 7
      %970 = vset.pattern.permute.xlu0 %v968
      %971 = vperm.xlu0 %970, %v966
      %v972 = vpop.permute.xlu0 %971
      %v973 = vperm.slane %v767, 5
      %v974 = vlaneseq
      %v975 = vshrl.u32 %v974, 7
      %977 = vset.pattern.permute.xlu0 %v975
      %978 = vperm.xlu0 %977, %v973
      %v979 = vpop.permute.xlu0 %978
      %v980 = vperm.slane %v767, 6
      %v981 = vlaneseq
      %v982 = vshrl.u32 %v981, 7
      %984 = vset.pattern.permute.xlu0 %v982
      %985 = vperm.xlu0 %984, %v980
      %v986 = vpop.permute.xlu0 %985
      %v987 = vperm.slane %v767, 7
      %v988 = vlaneseq
      %v989 = vshrl.u32 %v988, 7
      %991 = vset.pattern.permute.xlu0 %v989
      %992 = vperm.xlu0 %991, %v987
      %v993 = vpop.permute.xlu0 %992
      %v994 = vadd.f32 %v944, %v379
      %v995 = vadd.f32 %v951, %v379
      %v996 = vadd.f32 %v958, %v379
      %v997 = vadd.f32 %v965, %v379
      %v998 = vadd.f32 %v972, %v379
      %v999 = vadd.f32 %v979, %v379
      %v1000 = vadd.f32 %v986, %v379
      %v1001 = vadd.f32 %v993, %v379
      %v1002 = vsel %vm403, %v994, -inf
      %v1003 = vrot.slane %v1002, 4
      %v1004 = vmax.f32 %v1002, %v1003
      %v1005 = vrot.slane %v1004, 2
      %v1006 = vmax.f32 %v1004, %v1005
      %v1007 = vrot.slane %v1006, 1
      %v1008 = vmax.f32 %v1006, %v1007
      %v1009 = vsel %vm403, %v995, -inf
      %v1010 = vrot.slane %v1009, 4
      %v1011 = vmax.f32 %v1009, %v1010
      %v1012 = vrot.slane %v1011, 2
      %v1013 = vmax.f32 %v1011, %v1012
      %v1014 = vrot.slane %v1013, 1
      %v1015 = vmax.f32 %v1013, %v1014
      %v1016 = vsel %vm403, %v996, -inf
      %v1017 = vrot.slane %v1016, 4
      %v1018 = vmax.f32 %v1016, %v1017
      %v1019 = vrot.slane %v1018, 2
      %v1020 = vmax.f32 %v1018, %v1019
      %v1021 = vrot.slane %v1020, 1
      %v1022 = vmax.f32 %v1020, %v1021
      %v1023 = vsel %vm403, %v997, -inf
      %v1024 = vrot.slane %v1023, 4
      %v1025 = vmax.f32 %v1023, %v1024
      %v1026 = vrot.slane %v1025, 2
      %v1027 = vmax.f32 %v1025, %v1026
      %v1028 = vrot.slane %v1027, 1
      %v1029 = vmax.f32 %v1027, %v1028
      %v1030 = vsel %vm403, %v998, -inf
      %v1031 = vrot.slane %v1030, 4
      %v1032 = vmax.f32 %v1030, %v1031
      %v1033 = vrot.slane %v1032, 2
      %v1034 = vmax.f32 %v1032, %v1033
      %v1035 = vrot.slane %v1034, 1
      %v1036 = vmax.f32 %v1034, %v1035
      %v1037 = vsel %vm403, %v999, -inf
      %v1038 = vrot.slane %v1037, 4
      %v1039 = vmax.f32 %v1037, %v1038
      %v1040 = vrot.slane %v1039, 2
      %v1041 = vmax.f32 %v1039, %v1040
      %v1042 = vrot.slane %v1041, 1
      %v1043 = vmax.f32 %v1041, %v1042
      %v1044 = vsel %vm403, %v1000, -inf
      %v1045 = vrot.slane %v1044, 4
      %v1046 = vmax.f32 %v1044, %v1045
      %v1047 = vrot.slane %v1046, 2
      %v1048 = vmax.f32 %v1046, %v1047
      %v1049 = vrot.slane %v1048, 1
      %v1050 = vmax.f32 %v1048, %v1049
      %v1051 = vsel %vm403, %v1001, -inf
      %v1052 = vrot.slane %v1051, 4
      %v1053 = vmax.f32 %v1051, %v1052
      %v1054 = vrot.slane %v1053, 2
      %v1055 = vmax.f32 %v1053, %v1054
      %v1056 = vrot.slane %v1055, 1
      %v1057 = vmax.f32 %v1055, %v1056
      %v1058 = vsub.f32 %v994, %v1008
      %v1059 = vsub.f32 %v995, %v1015
      %v1060 = vsub.f32 %v996, %v1022
      %v1061 = vsub.f32 %v997, %v1029
      %v1062 = vsub.f32 %v998, %v1036
      %v1063 = vsub.f32 %v999, %v1043
      %v1064 = vsub.f32 %v1000, %v1050
      %v1065 = vsub.f32 %v1001, %v1057
      %v1066 = vmul.f32 %v1058, 1.442695
      %v1067 = vpow.pop %v1066
      %v1068 = vmul.f32 %v1059, 1.442695
      %v1069 = vpow.pop %v1068
      %v1070 = vmul.f32 %v1060, 1.442695
      %v1071 = vpow.pop %v1070
      %v1072 = vmul.f32 %v1061, 1.442695
      %v1073 = vpow.pop %v1072
      %v1074 = vmul.f32 %v1062, 1.442695
      %v1075 = vpow.pop %v1074
      %v1076 = vmul.f32 %v1063, 1.442695
      %v1077 = vpow.pop %v1076
      %v1078 = vmul.f32 %v1064, 1.442695
      %v1079 = vpow.pop %v1078
      %v1080 = vmul.f32 %v1065, 1.442695
      %v1081 = vpow.pop %v1080
      %v1082 = vsel %vm403, %v1067, 0.0
      %v1083 = vrot.slane %v1082, 4
      %v1084 = vadd.f32 %v1082, %v1083
      %v1085 = vrot.slane %v1084, 2
      %v1086 = vadd.f32 %v1084, %v1085
      %v1087 = vrot.slane %v1086, 1
      %v1088 = vadd.f32 %v1086, %v1087
      %v1089 = vsel %vm403, %v1069, 0.0
      %v1090 = vrot.slane %v1089, 4
      %v1091 = vadd.f32 %v1089, %v1090
      %v1092 = vrot.slane %v1091, 2
      %v1093 = vadd.f32 %v1091, %v1092
      %v1094 = vrot.slane %v1093, 1
      %v1095 = vadd.f32 %v1093, %v1094
      %v1096 = vsel %vm403, %v1071, 0.0
      %v1097 = vrot.slane %v1096, 4
      %v1098 = vadd.f32 %v1096, %v1097
      %v1099 = vrot.slane %v1098, 2
      %v1100 = vadd.f32 %v1098, %v1099
      %v1101 = vrot.slane %v1100, 1
      %v1102 = vadd.f32 %v1100, %v1101
      %v1103 = vsel %vm403, %v1073, 0.0
      %v1104 = vrot.slane %v1103, 4
      %v1105 = vadd.f32 %v1103, %v1104
      %v1106 = vrot.slane %v1105, 2
      %v1107 = vadd.f32 %v1105, %v1106
      %v1108 = vrot.slane %v1107, 1
      %v1109 = vadd.f32 %v1107, %v1108
      %v1110 = vsel %vm403, %v1075, 0.0
      %v1111 = vrot.slane %v1110, 4
      %v1112 = vadd.f32 %v1110, %v1111
      %v1113 = vrot.slane %v1112, 2
      %v1114 = vadd.f32 %v1112, %v1113
      %v1115 = vrot.slane %v1114, 1
      %v1116 = vadd.f32 %v1114, %v1115
      %v1117 = vsel %vm403, %v1077, 0.0
      %v1118 = vrot.slane %v1117, 4
      %v1119 = vadd.f32 %v1117, %v1118
      %v1120 = vrot.slane %v1119, 2
      %v1121 = vadd.f32 %v1119, %v1120
      %v1122 = vrot.slane %v1121, 1
      %v1123 = vadd.f32 %v1121, %v1122
      %v1124 = vsel %vm403, %v1079, 0.0
      %v1125 = vrot.slane %v1124, 4
      %v1126 = vadd.f32 %v1124, %v1125
      %v1127 = vrot.slane %v1126, 2
      %v1128 = vadd.f32 %v1126, %v1127
      %v1129 = vrot.slane %v1128, 1
      %v1130 = vadd.f32 %v1128, %v1129
      %v1131 = vsel %vm403, %v1081, 0.0
      %v1132 = vrot.slane %v1131, 4
      %v1133 = vadd.f32 %v1131, %v1132
      %v1134 = vrot.slane %v1133, 2
      %v1135 = vadd.f32 %v1133, %v1134
      %v1136 = vrot.slane %v1135, 1
      %v1137 = vadd.f32 %v1135, %v1136
      %v1138 = vlog2.pop %v1088
      %v1139 = vmul.f32 %v1138, 0.6931472
      %v1140 = vlog2.pop %v1095
      %v1141 = vmul.f32 %v1140, 0.6931472
      %v1142 = vlog2.pop %v1102
      %v1143 = vmul.f32 %v1142, 0.6931472
      %v1144 = vlog2.pop %v1109
      %v1145 = vmul.f32 %v1144, 0.6931472
      %v1146 = vlog2.pop %v1116
      %v1147 = vmul.f32 %v1146, 0.6931472
      %v1148 = vlog2.pop %v1123
      %v1149 = vmul.f32 %v1148, 0.6931472
      %v1150 = vlog2.pop %v1130
      %v1151 = vmul.f32 %v1150, 0.6931472
      %v1152 = vlog2.pop %v1137
      %v1153 = vmul.f32 %v1152, 0.6931472
      %v1154 = vadd.f32 %v1008, %v1139
      %v1155 = vadd.f32 %v1015, %v1141
      %v1156 = vadd.f32 %v1022, %v1143
      %v1157 = vadd.f32 %v1029, %v1145
      %v1158 = vadd.f32 %v1036, %v1147
      %v1159 = vadd.f32 %v1043, %v1149
      %v1160 = vadd.f32 %v1050, %v1151
      %v1161 = vadd.f32 %v1057, %v1153
      %v1163 = vrot.slane %v927, 1
      %v1164 = vrot.slane %v927, 2
      %v1165 = vrot.slane %v927, 3
      %v1166 = vrot.slane %v927, 4
      %v1167 = vrot.slane %v927, 5
      %v1168 = vrot.slane %v927, 6
      %v1169 = vrot.slane %v927, 7
      %v1178 = vadd.f32 %v1154, %v927
      %v1179 = vadd.f32 %v1155, %v1163
      %v1180 = vadd.f32 %v1156, %v1164
      %v1181 = vadd.f32 %v1157, %v1165
      %v1182 = vadd.f32 %v1158, %v1166
      %v1183 = vadd.f32 %v1159, %v1167
      %v1184 = vadd.f32 %v1160, %v1168
      %v1185 = vadd.f32 %v1161, %v1169
      %vm1186 = vcmp.gt.f32.partialorder %v929, 0.0
      %v1187 = vsel %vm1186, 1, 0
      %1188 = vset.pattern.permute.xlu0 0
      %1189 = vperm.xlu0 %1188, %v1187
      %v1190 = vpop.permute.xlu0 %1189
      %vm1191 = vcmp.eq.s32.totalorder %v1190, 1
      %v1200 = vrot.slane %v1179, 7
      %v1201 = vsel %vm444, %v1200, %v1178
      %v1202 = vrot.slane %v1180, 6
      %v1203 = vsel %vm447, %v1202, %v1201
      %v1204 = vrot.slane %v1181, 5
      %v1205 = vsel %vm450, %v1204, %v1203
      %v1206 = vrot.slane %v1182, 4
      %v1207 = vsel %vm453, %v1206, %v1205
      %v1208 = vrot.slane %v1183, 3
      %v1209 = vsel %vm456, %v1208, %v1207
      %v1210 = vrot.slane %v1184, 2
      %v1211 = vsel %vm459, %v1210, %v1209
      %v1212 = vrot.slane %v1185, 1
      %v1213 = vsel %vm462, %v1212, %v1211
      %v1215 = vsel %vm1191, %v1213, %v767
      %v1216 = vperm.slane %v925, 0
      %v1217 = vlaneseq
      %v1218 = vshrl.u32 %v1217, 7
      %1220 = vset.pattern.permute.xlu0 %v1218
      %1221 = vperm.xlu0 %1220, %v1216
      %v1222 = vpop.permute.xlu0 %1221
      %v1223 = vperm.slane %v925, 1
      %v1224 = vlaneseq
      %v1225 = vshrl.u32 %v1224, 7
      %1227 = vset.pattern.permute.xlu0 %v1225
      %1228 = vperm.xlu0 %1227, %v1223
      %v1229 = vpop.permute.xlu0 %1228
      %v1230 = vperm.slane %v925, 2
      %v1231 = vlaneseq
      %v1232 = vshrl.u32 %v1231, 7
      %1234 = vset.pattern.permute.xlu0 %v1232
      %1235 = vperm.xlu0 %1234, %v1230
      %v1236 = vpop.permute.xlu0 %1235
      %v1237 = vperm.slane %v925, 3
      %v1238 = vlaneseq
      %v1239 = vshrl.u32 %v1238, 7
      %1241 = vset.pattern.permute.xlu0 %v1239
      %1242 = vperm.xlu0 %1241, %v1237
      %v1243 = vpop.permute.xlu0 %1242
      %v1244 = vperm.slane %v925, 4
      %v1245 = vlaneseq
      %v1246 = vshrl.u32 %v1245, 7
      %1248 = vset.pattern.permute.xlu0 %v1246
      %1249 = vperm.xlu0 %1248, %v1244
      %v1250 = vpop.permute.xlu0 %1249
      %v1251 = vperm.slane %v925, 5
      %v1252 = vlaneseq
      %v1253 = vshrl.u32 %v1252, 7
      %1255 = vset.pattern.permute.xlu0 %v1253
      %1256 = vperm.xlu0 %1255, %v1251
      %v1257 = vpop.permute.xlu0 %1256
      %v1258 = vperm.slane %v925, 6
      %v1259 = vlaneseq
      %v1260 = vshrl.u32 %v1259, 7
      %1262 = vset.pattern.permute.xlu0 %v1260
      %1263 = vperm.xlu0 %1262, %v1258
      %v1264 = vpop.permute.xlu0 %1263
      %v1265 = vperm.slane %v925, 7
      %v1266 = vlaneseq
      %v1267 = vshrl.u32 %v1266, 7
      %1269 = vset.pattern.permute.xlu0 %v1267
      %1270 = vperm.xlu0 %1269, %v1265
      %v1271 = vpop.permute.xlu0 %1270
      %v1272 = vmul.f32 %v1222, %v379
      %v1273 = vmul.f32 %v1229, %v379
      %v1274 = vmul.f32 %v1236, %v379
      %v1275 = vmul.f32 %v1243, %v379
      %v1276 = vmul.f32 %v1250, %v379
      %v1277 = vmul.f32 %v1257, %v379
      %v1278 = vmul.f32 %v1264, %v379
      %v1279 = vmul.f32 %v1271, %v379
      %v1280 = vsel %vm403, %v1272, 0.0
      %v1281 = vrot.slane %v1280, 4
      %v1282 = vadd.f32 %v1280, %v1281
      %v1283 = vrot.slane %v1282, 2
      %v1284 = vadd.f32 %v1282, %v1283
      %v1285 = vrot.slane %v1284, 1
      %v1286 = vadd.f32 %v1284, %v1285
      %v1287 = vsel %vm403, %v1273, 0.0
      %v1288 = vrot.slane %v1287, 4
      %v1289 = vadd.f32 %v1287, %v1288
      %v1290 = vrot.slane %v1289, 2
      %v1291 = vadd.f32 %v1289, %v1290
      %v1292 = vrot.slane %v1291, 1
      %v1293 = vadd.f32 %v1291, %v1292
      %v1294 = vsel %vm403, %v1274, 0.0
      %v1295 = vrot.slane %v1294, 4
      %v1296 = vadd.f32 %v1294, %v1295
      %v1297 = vrot.slane %v1296, 2
      %v1298 = vadd.f32 %v1296, %v1297
      %v1299 = vrot.slane %v1298, 1
      %v1300 = vadd.f32 %v1298, %v1299
      %v1301 = vsel %vm403, %v1275, 0.0
      %v1302 = vrot.slane %v1301, 4
      %v1303 = vadd.f32 %v1301, %v1302
      %v1304 = vrot.slane %v1303, 2
      %v1305 = vadd.f32 %v1303, %v1304
      %v1306 = vrot.slane %v1305, 1
      %v1307 = vadd.f32 %v1305, %v1306
      %v1308 = vsel %vm403, %v1276, 0.0
      %v1309 = vrot.slane %v1308, 4
      %v1310 = vadd.f32 %v1308, %v1309
      %v1311 = vrot.slane %v1310, 2
      %v1312 = vadd.f32 %v1310, %v1311
      %v1313 = vrot.slane %v1312, 1
      %v1314 = vadd.f32 %v1312, %v1313
      %v1315 = vsel %vm403, %v1277, 0.0
      %v1316 = vrot.slane %v1315, 4
      %v1317 = vadd.f32 %v1315, %v1316
      %v1318 = vrot.slane %v1317, 2
      %v1319 = vadd.f32 %v1317, %v1318
      %v1320 = vrot.slane %v1319, 1
      %v1321 = vadd.f32 %v1319, %v1320
      %v1322 = vsel %vm403, %v1278, 0.0
      %v1323 = vrot.slane %v1322, 4
      %v1324 = vadd.f32 %v1322, %v1323
      %v1325 = vrot.slane %v1324, 2
      %v1326 = vadd.f32 %v1324, %v1325
      %v1327 = vrot.slane %v1326, 1
      %v1328 = vadd.f32 %v1326, %v1327
      %v1329 = vsel %vm403, %v1279, 0.0
      %v1330 = vrot.slane %v1329, 4
      %v1331 = vadd.f32 %v1329, %v1330
      %v1332 = vrot.slane %v1331, 2
      %v1333 = vadd.f32 %v1331, %v1332
      %v1334 = vrot.slane %v1333, 1
      %v1335 = vadd.f32 %v1333, %v1334
      %v1336 = vadd.f32 %v1286, %v927
      %v1337 = vadd.f32 %v1293, %v1163
      %v1338 = vadd.f32 %v1300, %v1164
      %v1339 = vadd.f32 %v1307, %v1165
      %v1340 = vadd.f32 %v1314, %v1166
      %v1341 = vadd.f32 %v1321, %v1167
      %v1342 = vadd.f32 %v1328, %v1168
      %v1343 = vadd.f32 %v1335, %v1169
      %v1352 = vrot.slane %v1337, 7
      %v1353 = vsel %vm444, %v1352, %v1336
      %v1354 = vrot.slane %v1338, 6
      %v1355 = vsel %vm447, %v1354, %v1353
      %v1356 = vrot.slane %v1339, 5
      %v1357 = vsel %vm450, %v1356, %v1355
      %v1358 = vrot.slane %v1340, 4
      %v1359 = vsel %vm453, %v1358, %v1357
      %v1360 = vrot.slane %v1341, 3
      %v1361 = vsel %vm456, %v1360, %v1359
      %v1362 = vrot.slane %v1342, 2
      %v1363 = vsel %vm459, %v1362, %v1361
      %v1364 = vrot.slane %v1343, 1
      %v1365 = vsel %vm462, %v1364, %v1363
      %v1367 = vmul.f32 %v937, %v1365
      %v1368 = vsel %vm370, %v1367, 0.0
      %1369 = vadd.xlane.f32.xlu0 %v1368
      %v1370 = vpop.xlane.xlu0 %1369
      %v1371 = vmul.f32 %v1370, %v929
      %v1372 = vadd.f32 %v924, %v1371
      %v1373 = vsel %vm1191, %v937, %v925
      %s1374 = scalar_lea.vmem [#allocation2], 24
      %v1375 = vld [vmem:[%s1374] sm:$0xff]
      %s1376 = scalar_lea.vmem %s5, 24
      %v1377 = vld [vmem:[%s1376] sm:$0xff]
      %s1378 = scalar_lea.vmem %s296, 24
      %v1379 = vld [vmem:[%s1378] sm:$0xff]
      %1380 = vset.pattern.permute.xlu0 0
      %1381 = vperm.xlu0 %1380, %v1379
      %v1382 = vpop.permute.xlu0 %1381
      %vm1383 = vcmp.eq.s32.totalorder %v381, %v1382
      %v1384 = vsel %vm1383, 1, 0
      %v1385 = vcvt.s32.f32 %v1384
      %v1386 = vperm.slane %v1215, 0
      %v1387 = vlaneseq
      %v1388 = vshrl.u32 %v1387, 7
      %1390 = vset.pattern.permute.xlu0 %v1388
      %1391 = vperm.xlu0 %1390, %v1386
      %v1392 = vpop.permute.xlu0 %1391
      %v1393 = vperm.slane %v1215, 1
      %v1394 = vlaneseq
      %v1395 = vshrl.u32 %v1394, 7
      %1397 = vset.pattern.permute.xlu0 %v1395
      %1398 = vperm.xlu0 %1397, %v1393
      %v1399 = vpop.permute.xlu0 %1398
      %v1400 = vperm.slane %v1215, 2
      %v1401 = vlaneseq
      %v1402 = vshrl.u32 %v1401, 7
      %1404 = vset.pattern.permute.xlu0 %v1402
      %1405 = vperm.xlu0 %1404, %v1400
      %v1406 = vpop.permute.xlu0 %1405
      %v1407 = vperm.slane %v1215, 3
      %v1408 = vlaneseq
      %v1409 = vshrl.u32 %v1408, 7
      %1411 = vset.pattern.permute.xlu0 %v1409
      %1412 = vperm.xlu0 %1411, %v1407
      %v1413 = vpop.permute.xlu0 %1412
      %v1414 = vperm.slane %v1215, 4
      %v1415 = vlaneseq
      %v1416 = vshrl.u32 %v1415, 7
      %1418 = vset.pattern.permute.xlu0 %v1416
      %1419 = vperm.xlu0 %1418, %v1414
      %v1420 = vpop.permute.xlu0 %1419
      %v1421 = vperm.slane %v1215, 5
      %v1422 = vlaneseq
      %v1423 = vshrl.u32 %v1422, 7
      %1425 = vset.pattern.permute.xlu0 %v1423
      %1426 = vperm.xlu0 %1425, %v1421
      %v1427 = vpop.permute.xlu0 %1426
      %v1428 = vperm.slane %v1215, 6
      %v1429 = vlaneseq
      %v1430 = vshrl.u32 %v1429, 7
      %1432 = vset.pattern.permute.xlu0 %v1430
      %1433 = vperm.xlu0 %1432, %v1428
      %v1434 = vpop.permute.xlu0 %1433
      %v1435 = vperm.slane %v1215, 7
      %v1436 = vlaneseq
      %v1437 = vshrl.u32 %v1436, 7
      %1439 = vset.pattern.permute.xlu0 %v1437
      %1440 = vperm.xlu0 %1439, %v1435
      %v1441 = vpop.permute.xlu0 %1440
      %v1442 = vadd.f32 %v1392, %v379
      %v1443 = vadd.f32 %v1399, %v379
      %v1444 = vadd.f32 %v1406, %v379
      %v1445 = vadd.f32 %v1413, %v379
      %v1446 = vadd.f32 %v1420, %v379
      %v1447 = vadd.f32 %v1427, %v379
      %v1448 = vadd.f32 %v1434, %v379
      %v1449 = vadd.f32 %v1441, %v379
      %v1450 = vsel %vm403, %v1442, -inf
      %v1451 = vrot.slane %v1450, 4
      %v1452 = vmax.f32 %v1450, %v1451
      %v1453 = vrot.slane %v1452, 2
      %v1454 = vmax.f32 %v1452, %v1453
      %v1455 = vrot.slane %v1454, 1
      %v1456 = vmax.f32 %v1454, %v1455
      %v1457 = vsel %vm403, %v1443, -inf
      %v1458 = vrot.slane %v1457, 4
      %v1459 = vmax.f32 %v1457, %v1458
      %v1460 = vrot.slane %v1459, 2
      %v1461 = vmax.f32 %v1459, %v1460
      %v1462 = vrot.slane %v1461, 1
      %v1463 = vmax.f32 %v1461, %v1462
      %v1464 = vsel %vm403, %v1444, -inf
      %v1465 = vrot.slane %v1464, 4
      %v1466 = vmax.f32 %v1464, %v1465
      %v1467 = vrot.slane %v1466, 2
      %v1468 = vmax.f32 %v1466, %v1467
      %v1469 = vrot.slane %v1468, 1
      %v1470 = vmax.f32 %v1468, %v1469
      %v1471 = vsel %vm403, %v1445, -inf
      %v1472 = vrot.slane %v1471, 4
      %v1473 = vmax.f32 %v1471, %v1472
      %v1474 = vrot.slane %v1473, 2
      %v1475 = vmax.f32 %v1473, %v1474
      %v1476 = vrot.slane %v1475, 1
      %v1477 = vmax.f32 %v1475, %v1476
      %v1478 = vsel %vm403, %v1446, -inf
      %v1479 = vrot.slane %v1478, 4
      %v1480 = vmax.f32 %v1478, %v1479
      %v1481 = vrot.slane %v1480, 2
      %v1482 = vmax.f32 %v1480, %v1481
      %v1483 = vrot.slane %v1482, 1
      %v1484 = vmax.f32 %v1482, %v1483
      %v1485 = vsel %vm403, %v1447, -inf
      %v1486 = vrot.slane %v1485, 4
      %v1487 = vmax.f32 %v1485, %v1486
      %v1488 = vrot.slane %v1487, 2
      %v1489 = vmax.f32 %v1487, %v1488
      %v1490 = vrot.slane %v1489, 1
      %v1491 = vmax.f32 %v1489, %v1490
      %v1492 = vsel %vm403, %v1448, -inf
      %v1493 = vrot.slane %v1492, 4
      %v1494 = vmax.f32 %v1492, %v1493
      %v1495 = vrot.slane %v1494, 2
      %v1496 = vmax.f32 %v1494, %v1495
      %v1497 = vrot.slane %v1496, 1
      %v1498 = vmax.f32 %v1496, %v1497
      %v1499 = vsel %vm403, %v1449, -inf
      %v1500 = vrot.slane %v1499, 4
      %v1501 = vmax.f32 %v1499, %v1500
      %v1502 = vrot.slane %v1501, 2
      %v1503 = vmax.f32 %v1501, %v1502
      %v1504 = vrot.slane %v1503, 1
      %v1505 = vmax.f32 %v1503, %v1504
      %v1506 = vsub.f32 %v1442, %v1456
      %v1507 = vsub.f32 %v1443, %v1463
      %v1508 = vsub.f32 %v1444, %v1470
      %v1509 = vsub.f32 %v1445, %v1477
      %v1510 = vsub.f32 %v1446, %v1484
      %v1511 = vsub.f32 %v1447, %v1491
      %v1512 = vsub.f32 %v1448, %v1498
      %v1513 = vsub.f32 %v1449, %v1505
      %v1514 = vmul.f32 %v1506, 1.442695
      %v1515 = vpow.pop %v1514
      %v1516 = vmul.f32 %v1507, 1.442695
      %v1517 = vpow.pop %v1516
      %v1518 = vmul.f32 %v1508, 1.442695
      %v1519 = vpow.pop %v1518
      %v1520 = vmul.f32 %v1509, 1.442695
      %v1521 = vpow.pop %v1520
      %v1522 = vmul.f32 %v1510, 1.442695
      %v1523 = vpow.pop %v1522
      %v1524 = vmul.f32 %v1511, 1.442695
      %v1525 = vpow.pop %v1524
      %v1526 = vmul.f32 %v1512, 1.442695
      %v1527 = vpow.pop %v1526
      %v1528 = vmul.f32 %v1513, 1.442695
      %v1529 = vpow.pop %v1528
      %v1530 = vsel %vm403, %v1515, 0.0
      %v1531 = vrot.slane %v1530, 4
      %v1532 = vadd.f32 %v1530, %v1531
      %v1533 = vrot.slane %v1532, 2
      %v1534 = vadd.f32 %v1532, %v1533
      %v1535 = vrot.slane %v1534, 1
      %v1536 = vadd.f32 %v1534, %v1535
      %v1537 = vsel %vm403, %v1517, 0.0
      %v1538 = vrot.slane %v1537, 4
      %v1539 = vadd.f32 %v1537, %v1538
      %v1540 = vrot.slane %v1539, 2
      %v1541 = vadd.f32 %v1539, %v1540
      %v1542 = vrot.slane %v1541, 1
      %v1543 = vadd.f32 %v1541, %v1542
      %v1544 = vsel %vm403, %v1519, 0.0
      %v1545 = vrot.slane %v1544, 4
      %v1546 = vadd.f32 %v1544, %v1545
      %v1547 = vrot.slane %v1546, 2
      %v1548 = vadd.f32 %v1546, %v1547
      %v1549 = vrot.slane %v1548, 1
      %v1550 = vadd.f32 %v1548, %v1549
      %v1551 = vsel %vm403, %v1521, 0.0
      %v1552 = vrot.slane %v1551, 4
      %v1553 = vadd.f32 %v1551, %v1552
      %v1554 = vrot.slane %v1553, 2
      %v1555 = vadd.f32 %v1553, %v1554
      %v1556 = vrot.slane %v1555, 1
      %v1557 = vadd.f32 %v1555, %v1556
      %v1558 = vsel %vm403, %v1523, 0.0
      %v1559 = vrot.slane %v1558, 4
      %v1560 = vadd.f32 %v1558, %v1559
      %v1561 = vrot.slane %v1560, 2
      %v1562 = vadd.f32 %v1560, %v1561
      %v1563 = vrot.slane %v1562, 1
      %v1564 = vadd.f32 %v1562, %v1563
      %v1565 = vsel %vm403, %v1525, 0.0
      %v1566 = vrot.slane %v1565, 4
      %v1567 = vadd.f32 %v1565, %v1566
      %v1568 = vrot.slane %v1567, 2
      %v1569 = vadd.f32 %v1567, %v1568
      %v1570 = vrot.slane %v1569, 1
      %v1571 = vadd.f32 %v1569, %v1570
      %v1572 = vsel %vm403, %v1527, 0.0
      %v1573 = vrot.slane %v1572, 4
      %v1574 = vadd.f32 %v1572, %v1573
      %v1575 = vrot.slane %v1574, 2
      %v1576 = vadd.f32 %v1574, %v1575
      %v1577 = vrot.slane %v1576, 1
      %v1578 = vadd.f32 %v1576, %v1577
      %v1579 = vsel %vm403, %v1529, 0.0
      %v1580 = vrot.slane %v1579, 4
      %v1581 = vadd.f32 %v1579, %v1580
      %v1582 = vrot.slane %v1581, 2
      %v1583 = vadd.f32 %v1581, %v1582
      %v1584 = vrot.slane %v1583, 1
      %v1585 = vadd.f32 %v1583, %v1584
      %v1586 = vlog2.pop %v1536
      %v1587 = vmul.f32 %v1586, 0.6931472
      %v1588 = vlog2.pop %v1543
      %v1589 = vmul.f32 %v1588, 0.6931472
      %v1590 = vlog2.pop %v1550
      %v1591 = vmul.f32 %v1590, 0.6931472
      %v1592 = vlog2.pop %v1557
      %v1593 = vmul.f32 %v1592, 0.6931472
      %v1594 = vlog2.pop %v1564
      %v1595 = vmul.f32 %v1594, 0.6931472
      %v1596 = vlog2.pop %v1571
      %v1597 = vmul.f32 %v1596, 0.6931472
      %v1598 = vlog2.pop %v1578
      %v1599 = vmul.f32 %v1598, 0.6931472
      %v1600 = vlog2.pop %v1585
      %v1601 = vmul.f32 %v1600, 0.6931472
      %v1602 = vadd.f32 %v1456, %v1587
      %v1603 = vadd.f32 %v1463, %v1589
      %v1604 = vadd.f32 %v1470, %v1591
      %v1605 = vadd.f32 %v1477, %v1593
      %v1606 = vadd.f32 %v1484, %v1595
      %v1607 = vadd.f32 %v1491, %v1597
      %v1608 = vadd.f32 %v1498, %v1599
      %v1609 = vadd.f32 %v1505, %v1601
      %v1611 = vrot.slane %v1375, 1
      %v1612 = vrot.slane %v1375, 2
      %v1613 = vrot.slane %v1375, 3
      %v1614 = vrot.slane %v1375, 4
      %v1615 = vrot.slane %v1375, 5
      %v1616 = vrot.slane %v1375, 6
      %v1617 = vrot.slane %v1375, 7
      %v1626 = vadd.f32 %v1602, %v1375
      %v1627 = vadd.f32 %v1603, %v1611
      %v1628 = vadd.f32 %v1604, %v1612
      %v1629 = vadd.f32 %v1605, %v1613
      %v1630 = vadd.f32 %v1606, %v1614
      %v1631 = vadd.f32 %v1607, %v1615
      %v1632 = vadd.f32 %v1608, %v1616
      %v1633 = vadd.f32 %v1609, %v1617
      %vm1634 = vcmp.gt.f32.partialorder %v1377, 0.0
      %v1635 = vsel %vm1634, 1, 0
      %1636 = vset.pattern.permute.xlu0 0
      %1637 = vperm.xlu0 %1636, %v1635
      %v1638 = vpop.permute.xlu0 %1637
      %vm1639 = vcmp.eq.s32.totalorder %v1638, 1
      %v1648 = vrot.slane %v1627, 7
      %v1649 = vsel %vm444, %v1648, %v1626
      %v1650 = vrot.slane %v1628, 6
      %v1651 = vsel %vm447, %v1650, %v1649
      %v1652 = vrot.slane %v1629, 5
      %v1653 = vsel %vm450, %v1652, %v1651
      %v1654 = vrot.slane %v1630, 4
      %v1655 = vsel %vm453, %v1654, %v1653
      %v1656 = vrot.slane %v1631, 3
      %v1657 = vsel %vm456, %v1656, %v1655
      %v1658 = vrot.slane %v1632, 2
      %v1659 = vsel %vm459, %v1658, %v1657
      %v1660 = vrot.slane %v1633, 1
      %v1661 = vsel %vm462, %v1660, %v1659
      %v1663 = vsel %vm1639, %v1661, %v1215
      %v1664 = vperm.slane %v1373, 0
      %v1665 = vlaneseq
      %v1666 = vshrl.u32 %v1665, 7
      %1668 = vset.pattern.permute.xlu0 %v1666
      %1669 = vperm.xlu0 %1668, %v1664
      %v1670 = vpop.permute.xlu0 %1669
      %v1671 = vperm.slane %v1373, 1
      %v1672 = vlaneseq
      %v1673 = vshrl.u32 %v1672, 7
      %1675 = vset.pattern.permute.xlu0 %v1673
      %1676 = vperm.xlu0 %1675, %v1671
      %v1677 = vpop.permute.xlu0 %1676
      %v1678 = vperm.slane %v1373, 2
      %v1679 = vlaneseq
      %v1680 = vshrl.u32 %v1679, 7
      %1682 = vset.pattern.permute.xlu0 %v1680
      %1683 = vperm.xlu0 %1682, %v1678
      %v1684 = vpop.permute.xlu0 %1683
      %v1685 = vperm.slane %v1373, 3
      %v1686 = vlaneseq
      %v1687 = vshrl.u32 %v1686, 7
      %1689 = vset.pattern.permute.xlu0 %v1687
      %1690 = vperm.xlu0 %1689, %v1685
      %v1691 = vpop.permute.xlu0 %1690
      %v1692 = vperm.slane %v1373, 4
      %v1693 = vlaneseq
      %v1694 = vshrl.u32 %v1693, 7
      %1696 = vset.pattern.permute.xlu0 %v1694
      %1697 = vperm.xlu0 %1696, %v1692
      %v1698 = vpop.permute.xlu0 %1697
      %v1699 = vperm.slane %v1373, 5
      %v1700 = vlaneseq
      %v1701 = vshrl.u32 %v1700, 7
      %1703 = vset.pattern.permute.xlu0 %v1701
      %1704 = vperm.xlu0 %1703, %v1699
      %v1705 = vpop.permute.xlu0 %1704
      %v1706 = vperm.slane %v1373, 6
      %v1707 = vlaneseq
      %v1708 = vshrl.u32 %v1707, 7
      %1710 = vset.pattern.permute.xlu0 %v1708
      %1711 = vperm.xlu0 %1710, %v1706
      %v1712 = vpop.permute.xlu0 %1711
      %v1713 = vperm.slane %v1373, 7
      %v1714 = vlaneseq
      %v1715 = vshrl.u32 %v1714, 7
      %1717 = vset.pattern.permute.xlu0 %v1715
      %1718 = vperm.xlu0 %1717, %v1713
      %v1719 = vpop.permute.xlu0 %1718
      %v1720 = vmul.f32 %v1670, %v379
      %v1721 = vmul.f32 %v1677, %v379
      %v1722 = vmul.f32 %v1684, %v379
      %v1723 = vmul.f32 %v1691, %v379
      %v1724 = vmul.f32 %v1698, %v379
      %v1725 = vmul.f32 %v1705, %v379
      %v1726 = vmul.f32 %v1712, %v379
      %v1727 = vmul.f32 %v1719, %v379
      %v1728 = vsel %vm403, %v1720, 0.0
      %v1729 = vrot.slane %v1728, 4
      %v1730 = vadd.f32 %v1728, %v1729
      %v1731 = vrot.slane %v1730, 2
      %v1732 = vadd.f32 %v1730, %v1731
      %v1733 = vrot.slane %v1732, 1
      %v1734 = vadd.f32 %v1732, %v1733
      %v1735 = vsel %vm403, %v1721, 0.0
      %v1736 = vrot.slane %v1735, 4
      %v1737 = vadd.f32 %v1735, %v1736
      %v1738 = vrot.slane %v1737, 2
      %v1739 = vadd.f32 %v1737, %v1738
      %v1740 = vrot.slane %v1739, 1
      %v1741 = vadd.f32 %v1739, %v1740
      %v1742 = vsel %vm403, %v1722, 0.0
      %v1743 = vrot.slane %v1742, 4
      %v1744 = vadd.f32 %v1742, %v1743
      %v1745 = vrot.slane %v1744, 2
      %v1746 = vadd.f32 %v1744, %v1745
      %v1747 = vrot.slane %v1746, 1
      %v1748 = vadd.f32 %v1746, %v1747
      %v1749 = vsel %vm403, %v1723, 0.0
      %v1750 = vrot.slane %v1749, 4
      %v1751 = vadd.f32 %v1749, %v1750
      %v1752 = vrot.slane %v1751, 2
      %v1753 = vadd.f32 %v1751, %v1752
      %v1754 = vrot.slane %v1753, 1
      %v1755 = vadd.f32 %v1753, %v1754
      %v1756 = vsel %vm403, %v1724, 0.0
      %v1757 = vrot.slane %v1756, 4
      %v1758 = vadd.f32 %v1756, %v1757
      %v1759 = vrot.slane %v1758, 2
      %v1760 = vadd.f32 %v1758, %v1759
      %v1761 = vrot.slane %v1760, 1
      %v1762 = vadd.f32 %v1760, %v1761
      %v1763 = vsel %vm403, %v1725, 0.0
      %v1764 = vrot.slane %v1763, 4
      %v1765 = vadd.f32 %v1763, %v1764
      %v1766 = vrot.slane %v1765, 2
      %v1767 = vadd.f32 %v1765, %v1766
      %v1768 = vrot.slane %v1767, 1
      %v1769 = vadd.f32 %v1767, %v1768
      %v1770 = vsel %vm403, %v1726, 0.0
      %v1771 = vrot.slane %v1770, 4
      %v1772 = vadd.f32 %v1770, %v1771
      %v1773 = vrot.slane %v1772, 2
      %v1774 = vadd.f32 %v1772, %v1773
      %v1775 = vrot.slane %v1774, 1
      %v1776 = vadd.f32 %v1774, %v1775
      %v1777 = vsel %vm403, %v1727, 0.0
      %v1778 = vrot.slane %v1777, 4
      %v1779 = vadd.f32 %v1777, %v1778
      %v1780 = vrot.slane %v1779, 2
      %v1781 = vadd.f32 %v1779, %v1780
      %v1782 = vrot.slane %v1781, 1
      %v1783 = vadd.f32 %v1781, %v1782
      %v1784 = vadd.f32 %v1734, %v1375
      %v1785 = vadd.f32 %v1741, %v1611
      %v1786 = vadd.f32 %v1748, %v1612
      %v1787 = vadd.f32 %v1755, %v1613
      %v1788 = vadd.f32 %v1762, %v1614
      %v1789 = vadd.f32 %v1769, %v1615
      %v1790 = vadd.f32 %v1776, %v1616
      %v1791 = vadd.f32 %v1783, %v1617
      %v1800 = vrot.slane %v1785, 7
      %v1801 = vsel %vm444, %v1800, %v1784
      %v1802 = vrot.slane %v1786, 6
      %v1803 = vsel %vm447, %v1802, %v1801
      %v1804 = vrot.slane %v1787, 5
      %v1805 = vsel %vm450, %v1804, %v1803
      %v1806 = vrot.slane %v1788, 4
      %v1807 = vsel %vm453, %v1806, %v1805
      %v1808 = vrot.slane %v1789, 3
      %v1809 = vsel %vm456, %v1808, %v1807
      %v1810 = vrot.slane %v1790, 2
      %v1811 = vsel %vm459, %v1810, %v1809
      %v1812 = vrot.slane %v1791, 1
      %v1813 = vsel %vm462, %v1812, %v1811
      %v1815 = vmul.f32 %v1385, %v1813
      %v1816 = vsel %vm370, %v1815, 0.0
      %1817 = vadd.xlane.f32.xlu0 %v1816
      %v1818 = vpop.xlane.xlu0 %1817
      %v1819 = vmul.f32 %v1818, %v1377
      %v1820 = vadd.f32 %v1372, %v1819
      %v1821 = vsel %vm1639, %v1385, %v1373
      %s1822 = scalar_lea.vmem [#allocation2], 32
      %v1823 = vld [vmem:[%s1822] sm:$0xff]
      %s1824 = scalar_lea.vmem %s5, 32
      %v1825 = vld [vmem:[%s1824] sm:$0xff]
      %s1826 = scalar_lea.vmem %s296, 32
      %v1827 = vld [vmem:[%s1826] sm:$0xff]
      %1828 = vset.pattern.permute.xlu0 0
      %1829 = vperm.xlu0 %1828, %v1827
      %v1830 = vpop.permute.xlu0 %1829
      %vm1831 = vcmp.eq.s32.totalorder %v381, %v1830
      %v1832 = vsel %vm1831, 1, 0
      %v1833 = vcvt.s32.f32 %v1832
      %v1834 = vperm.slane %v1663, 0
      %v1835 = vlaneseq
      %v1836 = vshrl.u32 %v1835, 7
      %1838 = vset.pattern.permute.xlu0 %v1836
      %1839 = vperm.xlu0 %1838, %v1834
      %v1840 = vpop.permute.xlu0 %1839
      %v1841 = vperm.slane %v1663, 1
      %v1842 = vlaneseq
      %v1843 = vshrl.u32 %v1842, 7
      %1845 = vset.pattern.permute.xlu0 %v1843
      %1846 = vperm.xlu0 %1845, %v1841
      %v1847 = vpop.permute.xlu0 %1846
      %v1848 = vperm.slane %v1663, 2
      %v1849 = vlaneseq
      %v1850 = vshrl.u32 %v1849, 7
      %1852 = vset.pattern.permute.xlu0 %v1850
      %1853 = vperm.xlu0 %1852, %v1848
      %v1854 = vpop.permute.xlu0 %1853
      %v1855 = vperm.slane %v1663, 3
      %v1856 = vlaneseq
      %v1857 = vshrl.u32 %v1856, 7
      %1859 = vset.pattern.permute.xlu0 %v1857
      %1860 = vperm.xlu0 %1859, %v1855
      %v1861 = vpop.permute.xlu0 %1860
      %v1862 = vperm.slane %v1663, 4
      %v1863 = vlaneseq
      %v1864 = vshrl.u32 %v1863, 7
      %1866 = vset.pattern.permute.xlu0 %v1864
      %1867 = vperm.xlu0 %1866, %v1862
      %v1868 = vpop.permute.xlu0 %1867
      %v1869 = vperm.slane %v1663, 5
      %v1870 = vlaneseq
      %v1871 = vshrl.u32 %v1870, 7
      %1873 = vset.pattern.permute.xlu0 %v1871
      %1874 = vperm.xlu0 %1873, %v1869
      %v1875 = vpop.permute.xlu0 %1874
      %v1876 = vperm.slane %v1663, 6
      %v1877 = vlaneseq
      %v1878 = vshrl.u32 %v1877, 7
      %1880 = vset.pattern.permute.xlu0 %v1878
      %1881 = vperm.xlu0 %1880, %v1876
      %v1882 = vpop.permute.xlu0 %1881
      %v1883 = vperm.slane %v1663, 7
      %v1884 = vlaneseq
      %v1885 = vshrl.u32 %v1884, 7
      %1887 = vset.pattern.permute.xlu0 %v1885
      %1888 = vperm.xlu0 %1887, %v1883
      %v1889 = vpop.permute.xlu0 %1888
      %v1890 = vadd.f32 %v1840, %v379
      %v1891 = vadd.f32 %v1847, %v379
      %v1892 = vadd.f32 %v1854, %v379
      %v1893 = vadd.f32 %v1861, %v379
      %v1894 = vadd.f32 %v1868, %v379
      %v1895 = vadd.f32 %v1875, %v379
      %v1896 = vadd.f32 %v1882, %v379
      %v1897 = vadd.f32 %v1889, %v379
      %v1898 = vsel %vm403, %v1890, -inf
      %v1899 = vrot.slane %v1898, 4
      %v1900 = vmax.f32 %v1898, %v1899
      %v1901 = vrot.slane %v1900, 2
      %v1902 = vmax.f32 %v1900, %v1901
      %v1903 = vrot.slane %v1902, 1
      %v1904 = vmax.f32 %v1902, %v1903
      %v1905 = vsel %vm403, %v1891, -inf
      %v1906 = vrot.slane %v1905, 4
      %v1907 = vmax.f32 %v1905, %v1906
      %v1908 = vrot.slane %v1907, 2
      %v1909 = vmax.f32 %v1907, %v1908
      %v1910 = vrot.slane %v1909, 1
      %v1911 = vmax.f32 %v1909, %v1910
      %v1912 = vsel %vm403, %v1892, -inf
      %v1913 = vrot.slane %v1912, 4
      %v1914 = vmax.f32 %v1912, %v1913
      %v1915 = vrot.slane %v1914, 2
      %v1916 = vmax.f32 %v1914, %v1915
      %v1917 = vrot.slane %v1916, 1
      %v1918 = vmax.f32 %v1916, %v1917
      %v1919 = vsel %vm403, %v1893, -inf
      %v1920 = vrot.slane %v1919, 4
      %v1921 = vmax.f32 %v1919, %v1920
      %v1922 = vrot.slane %v1921, 2
      %v1923 = vmax.f32 %v1921, %v1922
      %v1924 = vrot.slane %v1923, 1
      %v1925 = vmax.f32 %v1923, %v1924
      %v1926 = vsel %vm403, %v1894, -inf
      %v1927 = vrot.slane %v1926, 4
      %v1928 = vmax.f32 %v1926, %v1927
      %v1929 = vrot.slane %v1928, 2
      %v1930 = vmax.f32 %v1928, %v1929
      %v1931 = vrot.slane %v1930, 1
      %v1932 = vmax.f32 %v1930, %v1931
      %v1933 = vsel %vm403, %v1895, -inf
      %v1934 = vrot.slane %v1933, 4
      %v1935 = vmax.f32 %v1933, %v1934
      %v1936 = vrot.slane %v1935, 2
      %v1937 = vmax.f32 %v1935, %v1936
      %v1938 = vrot.slane %v1937, 1
      %v1939 = vmax.f32 %v1937, %v1938
      %v1940 = vsel %vm403, %v1896, -inf
      %v1941 = vrot.slane %v1940, 4
      %v1942 = vmax.f32 %v1940, %v1941
      %v1943 = vrot.slane %v1942, 2
      %v1944 = vmax.f32 %v1942, %v1943
      %v1945 = vrot.slane %v1944, 1
      %v1946 = vmax.f32 %v1944, %v1945
      %v1947 = vsel %vm403, %v1897, -inf
      %v1948 = vrot.slane %v1947, 4
      %v1949 = vmax.f32 %v1947, %v1948
      %v1950 = vrot.slane %v1949, 2
      %v1951 = vmax.f32 %v1949, %v1950
      %v1952 = vrot.slane %v1951, 1
      %v1953 = vmax.f32 %v1951, %v1952
      %v1954 = vsub.f32 %v1890, %v1904
      %v1955 = vsub.f32 %v1891, %v1911
      %v1956 = vsub.f32 %v1892, %v1918
      %v1957 = vsub.f32 %v1893, %v1925
      %v1958 = vsub.f32 %v1894, %v1932
      %v1959 = vsub.f32 %v1895, %v1939
      %v1960 = vsub.f32 %v1896, %v1946
      %v1961 = vsub.f32 %v1897, %v1953
      %v1962 = vmul.f32 %v1954, 1.442695
      %v1963 = vpow.pop %v1962
      %v1964 = vmul.f32 %v1955, 1.442695
      %v1965 = vpow.pop %v1964
      %v1966 = vmul.f32 %v1956, 1.442695
      %v1967 = vpow.pop %v1966
      %v1968 = vmul.f32 %v1957, 1.442695
      %v1969 = vpow.pop %v1968
      %v1970 = vmul.f32 %v1958, 1.442695
      %v1971 = vpow.pop %v1970
      %v1972 = vmul.f32 %v1959, 1.442695
      %v1973 = vpow.pop %v1972
      %v1974 = vmul.f32 %v1960, 1.442695
      %v1975 = vpow.pop %v1974
      %v1976 = vmul.f32 %v1961, 1.442695
      %v1977 = vpow.pop %v1976
      %v1978 = vsel %vm403, %v1963, 0.0
      %v1979 = vrot.slane %v1978, 4
      %v1980 = vadd.f32 %v1978, %v1979
      %v1981 = vrot.slane %v1980, 2
      %v1982 = vadd.f32 %v1980, %v1981
      %v1983 = vrot.slane %v1982, 1
      %v1984 = vadd.f32 %v1982, %v1983
      %v1985 = vsel %vm403, %v1965, 0.0
      %v1986 = vrot.slane %v1985, 4
      %v1987 = vadd.f32 %v1985, %v1986
      %v1988 = vrot.slane %v1987, 2
      %v1989 = vadd.f32 %v1987, %v1988
      %v1990 = vrot.slane %v1989, 1
      %v1991 = vadd.f32 %v1989, %v1990
      %v1992 = vsel %vm403, %v1967, 0.0
      %v1993 = vrot.slane %v1992, 4
      %v1994 = vadd.f32 %v1992, %v1993
      %v1995 = vrot.slane %v1994, 2
      %v1996 = vadd.f32 %v1994, %v1995
      %v1997 = vrot.slane %v1996, 1
      %v1998 = vadd.f32 %v1996, %v1997
      %v1999 = vsel %vm403, %v1969, 0.0
      %v2000 = vrot.slane %v1999, 4
      %v2001 = vadd.f32 %v1999, %v2000
      %v2002 = vrot.slane %v2001, 2
      %v2003 = vadd.f32 %v2001, %v2002
      %v2004 = vrot.slane %v2003, 1
      %v2005 = vadd.f32 %v2003, %v2004
      %v2006 = vsel %vm403, %v1971, 0.0
      %v2007 = vrot.slane %v2006, 4
      %v2008 = vadd.f32 %v2006, %v2007
      %v2009 = vrot.slane %v2008, 2
      %v2010 = vadd.f32 %v2008, %v2009
      %v2011 = vrot.slane %v2010, 1
      %v2012 = vadd.f32 %v2010, %v2011
      %v2013 = vsel %vm403, %v1973, 0.0
      %v2014 = vrot.slane %v2013, 4
      %v2015 = vadd.f32 %v2013, %v2014
      %v2016 = vrot.slane %v2015, 2
      %v2017 = vadd.f32 %v2015, %v2016
      %v2018 = vrot.slane %v2017, 1
      %v2019 = vadd.f32 %v2017, %v2018
      %v2020 = vsel %vm403, %v1975, 0.0
      %v2021 = vrot.slane %v2020, 4
      %v2022 = vadd.f32 %v2020, %v2021
      %v2023 = vrot.slane %v2022, 2
      %v2024 = vadd.f32 %v2022, %v2023
      %v2025 = vrot.slane %v2024, 1
      %v2026 = vadd.f32 %v2024, %v2025
      %v2027 = vsel %vm403, %v1977, 0.0
      %v2028 = vrot.slane %v2027, 4
      %v2029 = vadd.f32 %v2027, %v2028
      %v2030 = vrot.slane %v2029, 2
      %v2031 = vadd.f32 %v2029, %v2030
      %v2032 = vrot.slane %v2031, 1
      %v2033 = vadd.f32 %v2031, %v2032
      %v2034 = vlog2.pop %v1984
      %v2035 = vmul.f32 %v2034, 0.6931472
      %v2036 = vlog2.pop %v1991
      %v2037 = vmul.f32 %v2036, 0.6931472
      %v2038 = vlog2.pop %v1998
      %v2039 = vmul.f32 %v2038, 0.6931472
      %v2040 = vlog2.pop %v2005
      %v2041 = vmul.f32 %v2040, 0.6931472
      %v2042 = vlog2.pop %v2012
      %v2043 = vmul.f32 %v2042, 0.6931472
      %v2044 = vlog2.pop %v2019
      %v2045 = vmul.f32 %v2044, 0.6931472
      %v2046 = vlog2.pop %v2026
      %v2047 = vmul.f32 %v2046, 0.6931472
      %v2048 = vlog2.pop %v2033
      %v2049 = vmul.f32 %v2048, 0.6931472
      %v2050 = vadd.f32 %v1904, %v2035
      %v2051 = vadd.f32 %v1911, %v2037
      %v2052 = vadd.f32 %v1918, %v2039
      %v2053 = vadd.f32 %v1925, %v2041
      %v2054 = vadd.f32 %v1932, %v2043
      %v2055 = vadd.f32 %v1939, %v2045
      %v2056 = vadd.f32 %v1946, %v2047
      %v2057 = vadd.f32 %v1953, %v2049
      %v2059 = vrot.slane %v1823, 1
      %v2060 = vrot.slane %v1823, 2
      %v2061 = vrot.slane %v1823, 3
      %v2062 = vrot.slane %v1823, 4
      %v2063 = vrot.slane %v1823, 5
      %v2064 = vrot.slane %v1823, 6
      %v2065 = vrot.slane %v1823, 7
      %v2074 = vadd.f32 %v2050, %v1823
      %v2075 = vadd.f32 %v2051, %v2059
      %v2076 = vadd.f32 %v2052, %v2060
      %v2077 = vadd.f32 %v2053, %v2061
      %v2078 = vadd.f32 %v2054, %v2062
      %v2079 = vadd.f32 %v2055, %v2063
      %v2080 = vadd.f32 %v2056, %v2064
      %v2081 = vadd.f32 %v2057, %v2065
      %vm2082 = vcmp.gt.f32.partialorder %v1825, 0.0
      %v2083 = vsel %vm2082, 1, 0
      %2084 = vset.pattern.permute.xlu0 0
      %2085 = vperm.xlu0 %2084, %v2083
      %v2086 = vpop.permute.xlu0 %2085
      %vm2087 = vcmp.eq.s32.totalorder %v2086, 1
      %v2096 = vrot.slane %v2075, 7
      %v2097 = vsel %vm444, %v2096, %v2074
      %v2098 = vrot.slane %v2076, 6
      %v2099 = vsel %vm447, %v2098, %v2097
      %v2100 = vrot.slane %v2077, 5
      %v2101 = vsel %vm450, %v2100, %v2099
      %v2102 = vrot.slane %v2078, 4
      %v2103 = vsel %vm453, %v2102, %v2101
      %v2104 = vrot.slane %v2079, 3
      %v2105 = vsel %vm456, %v2104, %v2103
      %v2106 = vrot.slane %v2080, 2
      %v2107 = vsel %vm459, %v2106, %v2105
      %v2108 = vrot.slane %v2081, 1
      %v2109 = vsel %vm462, %v2108, %v2107
      %v2111 = vsel %vm2087, %v2109, %v1663
      %v2112 = vperm.slane %v1821, 0
      %v2113 = vlaneseq
      %v2114 = vshrl.u32 %v2113, 7
      %2116 = vset.pattern.permute.xlu0 %v2114
      %2117 = vperm.xlu0 %2116, %v2112
      %v2118 = vpop.permute.xlu0 %2117
      %v2119 = vperm.slane %v1821, 1
      %v2120 = vlaneseq
      %v2121 = vshrl.u32 %v2120, 7
      %2123 = vset.pattern.permute.xlu0 %v2121
      %2124 = vperm.xlu0 %2123, %v2119
      %v2125 = vpop.permute.xlu0 %2124
      %v2126 = vperm.slane %v1821, 2
      %v2127 = vlaneseq
      %v2128 = vshrl.u32 %v2127, 7
      %2130 = vset.pattern.permute.xlu0 %v2128
      %2131 = vperm.xlu0 %2130, %v2126
      %v2132 = vpop.permute.xlu0 %2131
      %v2133 = vperm.slane %v1821, 3
      %v2134 = vlaneseq
      %v2135 = vshrl.u32 %v2134, 7
      %2137 = vset.pattern.permute.xlu0 %v2135
      %2138 = vperm.xlu0 %2137, %v2133
      %v2139 = vpop.permute.xlu0 %2138
      %v2140 = vperm.slane %v1821, 4
      %v2141 = vlaneseq
      %v2142 = vshrl.u32 %v2141, 7
      %2144 = vset.pattern.permute.xlu0 %v2142
      %2145 = vperm.xlu0 %2144, %v2140
      %v2146 = vpop.permute.xlu0 %2145
      %v2147 = vperm.slane %v1821, 5
      %v2148 = vlaneseq
      %v2149 = vshrl.u32 %v2148, 7
      %2151 = vset.pattern.permute.xlu0 %v2149
      %2152 = vperm.xlu0 %2151, %v2147
      %v2153 = vpop.permute.xlu0 %2152
      %v2154 = vperm.slane %v1821, 6
      %v2155 = vlaneseq
      %v2156 = vshrl.u32 %v2155, 7
      %2158 = vset.pattern.permute.xlu0 %v2156
      %2159 = vperm.xlu0 %2158, %v2154
      %v2160 = vpop.permute.xlu0 %2159
      %v2161 = vperm.slane %v1821, 7
      %v2162 = vlaneseq
      %v2163 = vshrl.u32 %v2162, 7
      %2165 = vset.pattern.permute.xlu0 %v2163
      %2166 = vperm.xlu0 %2165, %v2161
      %v2167 = vpop.permute.xlu0 %2166
      %v2168 = vmul.f32 %v2118, %v379
      %v2169 = vmul.f32 %v2125, %v379
      %v2170 = vmul.f32 %v2132, %v379
      %v2171 = vmul.f32 %v2139, %v379
      %v2172 = vmul.f32 %v2146, %v379
      %v2173 = vmul.f32 %v2153, %v379
      %v2174 = vmul.f32 %v2160, %v379
      %v2175 = vmul.f32 %v2167, %v379
      %v2176 = vsel %vm403, %v2168, 0.0
      %v2177 = vrot.slane %v2176, 4
      %v2178 = vadd.f32 %v2176, %v2177
      %v2179 = vrot.slane %v2178, 2
      %v2180 = vadd.f32 %v2178, %v2179
      %v2181 = vrot.slane %v2180, 1
      %v2182 = vadd.f32 %v2180, %v2181
      %v2183 = vsel %vm403, %v2169, 0.0
      %v2184 = vrot.slane %v2183, 4
      %v2185 = vadd.f32 %v2183, %v2184
      %v2186 = vrot.slane %v2185, 2
      %v2187 = vadd.f32 %v2185, %v2186
      %v2188 = vrot.slane %v2187, 1
      %v2189 = vadd.f32 %v2187, %v2188
      %v2190 = vsel %vm403, %v2170, 0.0
      %v2191 = vrot.slane %v2190, 4
      %v2192 = vadd.f32 %v2190, %v2191
      %v2193 = vrot.slane %v2192, 2
      %v2194 = vadd.f32 %v2192, %v2193
      %v2195 = vrot.slane %v2194, 1
      %v2196 = vadd.f32 %v2194, %v2195
      %v2197 = vsel %vm403, %v2171, 0.0
      %v2198 = vrot.slane %v2197, 4
      %v2199 = vadd.f32 %v2197, %v2198
      %v2200 = vrot.slane %v2199, 2
      %v2201 = vadd.f32 %v2199, %v2200
      %v2202 = vrot.slane %v2201, 1
      %v2203 = vadd.f32 %v2201, %v2202
      %v2204 = vsel %vm403, %v2172, 0.0
      %v2205 = vrot.slane %v2204, 4
      %v2206 = vadd.f32 %v2204, %v2205
      %v2207 = vrot.slane %v2206, 2
      %v2208 = vadd.f32 %v2206, %v2207
      %v2209 = vrot.slane %v2208, 1
      %v2210 = vadd.f32 %v2208, %v2209
      %v2211 = vsel %vm403, %v2173, 0.0
      %v2212 = vrot.slane %v2211, 4
      %v2213 = vadd.f32 %v2211, %v2212
      %v2214 = vrot.slane %v2213, 2
      %v2215 = vadd.f32 %v2213, %v2214
      %v2216 = vrot.slane %v2215, 1
      %v2217 = vadd.f32 %v2215, %v2216
      %v2218 = vsel %vm403, %v2174, 0.0
      %v2219 = vrot.slane %v2218, 4
      %v2220 = vadd.f32 %v2218, %v2219
      %v2221 = vrot.slane %v2220, 2
      %v2222 = vadd.f32 %v2220, %v2221
      %v2223 = vrot.slane %v2222, 1
      %v2224 = vadd.f32 %v2222, %v2223
      %v2225 = vsel %vm403, %v2175, 0.0
      %v2226 = vrot.slane %v2225, 4
      %v2227 = vadd.f32 %v2225, %v2226
      %v2228 = vrot.slane %v2227, 2
      %v2229 = vadd.f32 %v2227, %v2228
      %v2230 = vrot.slane %v2229, 1
      %v2231 = vadd.f32 %v2229, %v2230
      %v2232 = vadd.f32 %v2182, %v1823
      %v2233 = vadd.f32 %v2189, %v2059
      %v2234 = vadd.f32 %v2196, %v2060
      %v2235 = vadd.f32 %v2203, %v2061
      %v2236 = vadd.f32 %v2210, %v2062
      %v2237 = vadd.f32 %v2217, %v2063
      %v2238 = vadd.f32 %v2224, %v2064
      %v2239 = vadd.f32 %v2231, %v2065
      %v2248 = vrot.slane %v2233, 7
      %v2249 = vsel %vm444, %v2248, %v2232
      %v2250 = vrot.slane %v2234, 6
      %v2251 = vsel %vm447, %v2250, %v2249
      %v2252 = vrot.slane %v2235, 5
      %v2253 = vsel %vm450, %v2252, %v2251
      %v2254 = vrot.slane %v2236, 4
      %v2255 = vsel %vm453, %v2254, %v2253
      %v2256 = vrot.slane %v2237, 3
      %v2257 = vsel %vm456, %v2256, %v2255
      %v2258 = vrot.slane %v2238, 2
      %v2259 = vsel %vm459, %v2258, %v2257
      %v2260 = vrot.slane %v2239, 1
      %v2261 = vsel %vm462, %v2260, %v2259
      %v2263 = vmul.f32 %v1833, %v2261
      %v2264 = vsel %vm370, %v2263, 0.0
      %2265 = vadd.xlane.f32.xlu0 %v2264
      %v2266 = vpop.xlane.xlu0 %2265
      %v2267 = vmul.f32 %v2266, %v1825
      %v2268 = vadd.f32 %v1820, %v2267
      %v2269 = vsel %vm2087, %v1833, %v1821
      %s2270 = scalar_lea.vmem [#allocation2], 40
      %v2271 = vld [vmem:[%s2270] sm:$0xff]
      %s2272 = scalar_lea.vmem %s5, 40
      %v2273 = vld [vmem:[%s2272] sm:$0xff]
      %s2274 = scalar_lea.vmem %s296, 40
      %v2275 = vld [vmem:[%s2274] sm:$0xff]
      %2276 = vset.pattern.permute.xlu0 0
      %2277 = vperm.xlu0 %2276, %v2275
      %v2278 = vpop.permute.xlu0 %2277
      %vm2279 = vcmp.eq.s32.totalorder %v381, %v2278
      %v2280 = vsel %vm2279, 1, 0
      %v2281 = vcvt.s32.f32 %v2280
      %v2282 = vperm.slane %v2111, 0
      %v2283 = vlaneseq
      %v2284 = vshrl.u32 %v2283, 7
      %2286 = vset.pattern.permute.xlu0 %v2284
      %2287 = vperm.xlu0 %2286, %v2282
      %v2288 = vpop.permute.xlu0 %2287
      %v2289 = vperm.slane %v2111, 1
      %v2290 = vlaneseq
      %v2291 = vshrl.u32 %v2290, 7
      %2293 = vset.pattern.permute.xlu0 %v2291
      %2294 = vperm.xlu0 %2293, %v2289
      %v2295 = vpop.permute.xlu0 %2294
      %v2296 = vperm.slane %v2111, 2
      %v2297 = vlaneseq
      %v2298 = vshrl.u32 %v2297, 7
      %2300 = vset.pattern.permute.xlu0 %v2298
      %2301 = vperm.xlu0 %2300, %v2296
      %v2302 = vpop.permute.xlu0 %2301
      %v2303 = vperm.slane %v2111, 3
      %v2304 = vlaneseq
      %v2305 = vshrl.u32 %v2304, 7
      %2307 = vset.pattern.permute.xlu0 %v2305
      %2308 = vperm.xlu0 %2307, %v2303
      %v2309 = vpop.permute.xlu0 %2308
      %v2310 = vperm.slane %v2111, 4
      %v2311 = vlaneseq
      %v2312 = vshrl.u32 %v2311, 7
      %2314 = vset.pattern.permute.xlu0 %v2312
      %2315 = vperm.xlu0 %2314, %v2310
      %v2316 = vpop.permute.xlu0 %2315
      %v2317 = vperm.slane %v2111, 5
      %v2318 = vlaneseq
      %v2319 = vshrl.u32 %v2318, 7
      %2321 = vset.pattern.permute.xlu0 %v2319
      %2322 = vperm.xlu0 %2321, %v2317
      %v2323 = vpop.permute.xlu0 %2322
      %v2324 = vperm.slane %v2111, 6
      %v2325 = vlaneseq
      %v2326 = vshrl.u32 %v2325, 7
      %2328 = vset.pattern.permute.xlu0 %v2326
      %2329 = vperm.xlu0 %2328, %v2324
      %v2330 = vpop.permute.xlu0 %2329
      %v2331 = vperm.slane %v2111, 7
      %v2332 = vlaneseq
      %v2333 = vshrl.u32 %v2332, 7
      %2335 = vset.pattern.permute.xlu0 %v2333
      %2336 = vperm.xlu0 %2335, %v2331
      %v2337 = vpop.permute.xlu0 %2336
      %v2338 = vadd.f32 %v2288, %v379
      %v2339 = vadd.f32 %v2295, %v379
      %v2340 = vadd.f32 %v2302, %v379
      %v2341 = vadd.f32 %v2309, %v379
      %v2342 = vadd.f32 %v2316, %v379
      %v2343 = vadd.f32 %v2323, %v379
      %v2344 = vadd.f32 %v2330, %v379
      %v2345 = vadd.f32 %v2337, %v379
      %v2346 = vsel %vm403, %v2338, -inf
      %v2347 = vrot.slane %v2346, 4
      %v2348 = vmax.f32 %v2346, %v2347
      %v2349 = vrot.slane %v2348, 2
      %v2350 = vmax.f32 %v2348, %v2349
      %v2351 = vrot.slane %v2350, 1
      %v2352 = vmax.f32 %v2350, %v2351
      %v2353 = vsel %vm403, %v2339, -inf
      %v2354 = vrot.slane %v2353, 4
      %v2355 = vmax.f32 %v2353, %v2354
      %v2356 = vrot.slane %v2355, 2
      %v2357 = vmax.f32 %v2355, %v2356
      %v2358 = vrot.slane %v2357, 1
      %v2359 = vmax.f32 %v2357, %v2358
      %v2360 = vsel %vm403, %v2340, -inf
      %v2361 = vrot.slane %v2360, 4
      %v2362 = vmax.f32 %v2360, %v2361
      %v2363 = vrot.slane %v2362, 2
      %v2364 = vmax.f32 %v2362, %v2363
      %v2365 = vrot.slane %v2364, 1
      %v2366 = vmax.f32 %v2364, %v2365
      %v2367 = vsel %vm403, %v2341, -inf
      %v2368 = vrot.slane %v2367, 4
      %v2369 = vmax.f32 %v2367, %v2368
      %v2370 = vrot.slane %v2369, 2
      %v2371 = vmax.f32 %v2369, %v2370
      %v2372 = vrot.slane %v2371, 1
      %v2373 = vmax.f32 %v2371, %v2372
      %v2374 = vsel %vm403, %v2342, -inf
      %v2375 = vrot.slane %v2374, 4
      %v2376 = vmax.f32 %v2374, %v2375
      %v2377 = vrot.slane %v2376, 2
      %v2378 = vmax.f32 %v2376, %v2377
      %v2379 = vrot.slane %v2378, 1
      %v2380 = vmax.f32 %v2378, %v2379
      %v2381 = vsel %vm403, %v2343, -inf
      %v2382 = vrot.slane %v2381, 4
      %v2383 = vmax.f32 %v2381, %v2382
      %v2384 = vrot.slane %v2383, 2
      %v2385 = vmax.f32 %v2383, %v2384
      %v2386 = vrot.slane %v2385, 1
      %v2387 = vmax.f32 %v2385, %v2386
      %v2388 = vsel %vm403, %v2344, -inf
      %v2389 = vrot.slane %v2388, 4
      %v2390 = vmax.f32 %v2388, %v2389
      %v2391 = vrot.slane %v2390, 2
      %v2392 = vmax.f32 %v2390, %v2391
      %v2393 = vrot.slane %v2392, 1
      %v2394 = vmax.f32 %v2392, %v2393
      %v2395 = vsel %vm403, %v2345, -inf
      %v2396 = vrot.slane %v2395, 4
      %v2397 = vmax.f32 %v2395, %v2396
      %v2398 = vrot.slane %v2397, 2
      %v2399 = vmax.f32 %v2397, %v2398
      %v2400 = vrot.slane %v2399, 1
      %v2401 = vmax.f32 %v2399, %v2400
      %v2402 = vsub.f32 %v2338, %v2352
      %v2403 = vsub.f32 %v2339, %v2359
      %v2404 = vsub.f32 %v2340, %v2366
      %v2405 = vsub.f32 %v2341, %v2373
      %v2406 = vsub.f32 %v2342, %v2380
      %v2407 = vsub.f32 %v2343, %v2387
      %v2408 = vsub.f32 %v2344, %v2394
      %v2409 = vsub.f32 %v2345, %v2401
      %v2410 = vmul.f32 %v2402, 1.442695
      %v2411 = vpow.pop %v2410
      %v2412 = vmul.f32 %v2403, 1.442695
      %v2413 = vpow.pop %v2412
      %v2414 = vmul.f32 %v2404, 1.442695
      %v2415 = vpow.pop %v2414
      %v2416 = vmul.f32 %v2405, 1.442695
      %v2417 = vpow.pop %v2416
      %v2418 = vmul.f32 %v2406, 1.442695
      %v2419 = vpow.pop %v2418
      %v2420 = vmul.f32 %v2407, 1.442695
      %v2421 = vpow.pop %v2420
      %v2422 = vmul.f32 %v2408, 1.442695
      %v2423 = vpow.pop %v2422
      %v2424 = vmul.f32 %v2409, 1.442695
      %v2425 = vpow.pop %v2424
      %v2426 = vsel %vm403, %v2411, 0.0
      %v2427 = vrot.slane %v2426, 4
      %v2428 = vadd.f32 %v2426, %v2427
      %v2429 = vrot.slane %v2428, 2
      %v2430 = vadd.f32 %v2428, %v2429
      %v2431 = vrot.slane %v2430, 1
      %v2432 = vadd.f32 %v2430, %v2431
      %v2433 = vsel %vm403, %v2413, 0.0
      %v2434 = vrot.slane %v2433, 4
      %v2435 = vadd.f32 %v2433, %v2434
      %v2436 = vrot.slane %v2435, 2
      %v2437 = vadd.f32 %v2435, %v2436
      %v2438 = vrot.slane %v2437, 1
      %v2439 = vadd.f32 %v2437, %v2438
      %v2440 = vsel %vm403, %v2415, 0.0
      %v2441 = vrot.slane %v2440, 4
      %v2442 = vadd.f32 %v2440, %v2441
      %v2443 = vrot.slane %v2442, 2
      %v2444 = vadd.f32 %v2442, %v2443
      %v2445 = vrot.slane %v2444, 1
      %v2446 = vadd.f32 %v2444, %v2445
      %v2447 = vsel %vm403, %v2417, 0.0
      %v2448 = vrot.slane %v2447, 4
      %v2449 = vadd.f32 %v2447, %v2448
      %v2450 = vrot.slane %v2449, 2
      %v2451 = vadd.f32 %v2449, %v2450
      %v2452 = vrot.slane %v2451, 1
      %v2453 = vadd.f32 %v2451, %v2452
      %v2454 = vsel %vm403, %v2419, 0.0
      %v2455 = vrot.slane %v2454, 4
      %v2456 = vadd.f32 %v2454, %v2455
      %v2457 = vrot.slane %v2456, 2
      %v2458 = vadd.f32 %v2456, %v2457
      %v2459 = vrot.slane %v2458, 1
      %v2460 = vadd.f32 %v2458, %v2459
      %v2461 = vsel %vm403, %v2421, 0.0
      %v2462 = vrot.slane %v2461, 4
      %v2463 = vadd.f32 %v2461, %v2462
      %v2464 = vrot.slane %v2463, 2
      %v2465 = vadd.f32 %v2463, %v2464
      %v2466 = vrot.slane %v2465, 1
      %v2467 = vadd.f32 %v2465, %v2466
      %v2468 = vsel %vm403, %v2423, 0.0
      %v2469 = vrot.slane %v2468, 4
      %v2470 = vadd.f32 %v2468, %v2469
      %v2471 = vrot.slane %v2470, 2
      %v2472 = vadd.f32 %v2470, %v2471
      %v2473 = vrot.slane %v2472, 1
      %v2474 = vadd.f32 %v2472, %v2473
      %v2475 = vsel %vm403, %v2425, 0.0
      %v2476 = vrot.slane %v2475, 4
      %v2477 = vadd.f32 %v2475, %v2476
      %v2478 = vrot.slane %v2477, 2
      %v2479 = vadd.f32 %v2477, %v2478
      %v2480 = vrot.slane %v2479, 1
      %v2481 = vadd.f32 %v2479, %v2480
      %v2482 = vlog2.pop %v2432
      %v2483 = vmul.f32 %v2482, 0.6931472
      %v2484 = vlog2.pop %v2439
      %v2485 = vmul.f32 %v2484, 0.6931472
      %v2486 = vlog2.pop %v2446
      %v2487 = vmul.f32 %v2486, 0.6931472
      %v2488 = vlog2.pop %v2453
      %v2489 = vmul.f32 %v2488, 0.6931472
      %v2490 = vlog2.pop %v2460
      %v2491 = vmul.f32 %v2490, 0.6931472
      %v2492 = vlog2.pop %v2467
      %v2493 = vmul.f32 %v2492, 0.6931472
      %v2494 = vlog2.pop %v2474
      %v2495 = vmul.f32 %v2494, 0.6931472
      %v2496 = vlog2.pop %v2481
      %v2497 = vmul.f32 %v2496, 0.6931472
      %v2498 = vadd.f32 %v2352, %v2483
      %v2499 = vadd.f32 %v2359, %v2485
      %v2500 = vadd.f32 %v2366, %v2487
      %v2501 = vadd.f32 %v2373, %v2489
      %v2502 = vadd.f32 %v2380, %v2491
      %v2503 = vadd.f32 %v2387, %v2493
      %v2504 = vadd.f32 %v2394, %v2495
      %v2505 = vadd.f32 %v2401, %v2497
      %v2507 = vrot.slane %v2271, 1
      %v2508 = vrot.slane %v2271, 2
      %v2509 = vrot.slane %v2271, 3
      %v2510 = vrot.slane %v2271, 4
      %v2511 = vrot.slane %v2271, 5
      %v2512 = vrot.slane %v2271, 6
      %v2513 = vrot.slane %v2271, 7
      %v2522 = vadd.f32 %v2498, %v2271
      %v2523 = vadd.f32 %v2499, %v2507
      %v2524 = vadd.f32 %v2500, %v2508
      %v2525 = vadd.f32 %v2501, %v2509
      %v2526 = vadd.f32 %v2502, %v2510
      %v2527 = vadd.f32 %v2503, %v2511
      %v2528 = vadd.f32 %v2504, %v2512
      %v2529 = vadd.f32 %v2505, %v2513
      %vm2530 = vcmp.gt.f32.partialorder %v2273, 0.0
      %v2531 = vsel %vm2530, 1, 0
      %2532 = vset.pattern.permute.xlu0 0
      %2533 = vperm.xlu0 %2532, %v2531
      %v2534 = vpop.permute.xlu0 %2533
      %vm2535 = vcmp.eq.s32.totalorder %v2534, 1
      %v2544 = vrot.slane %v2523, 7
      %v2545 = vsel %vm444, %v2544, %v2522
      %v2546 = vrot.slane %v2524, 6
      %v2547 = vsel %vm447, %v2546, %v2545
      %v2548 = vrot.slane %v2525, 5
      %v2549 = vsel %vm450, %v2548, %v2547
      %v2550 = vrot.slane %v2526, 4
      %v2551 = vsel %vm453, %v2550, %v2549
      %v2552 = vrot.slane %v2527, 3
      %v2553 = vsel %vm456, %v2552, %v2551
      %v2554 = vrot.slane %v2528, 2
      %v2555 = vsel %vm459, %v2554, %v2553
      %v2556 = vrot.slane %v2529, 1
      %v2557 = vsel %vm462, %v2556, %v2555
      %v2559 = vsel %vm2535, %v2557, %v2111
      %v2560 = vperm.slane %v2269, 0
      %v2561 = vlaneseq
      %v2562 = vshrl.u32 %v2561, 7
      %2564 = vset.pattern.permute.xlu0 %v2562
      %2565 = vperm.xlu0 %2564, %v2560
      %v2566 = vpop.permute.xlu0 %2565
      %v2567 = vperm.slane %v2269, 1
      %v2568 = vlaneseq
      %v2569 = vshrl.u32 %v2568, 7
      %2571 = vset.pattern.permute.xlu0 %v2569
      %2572 = vperm.xlu0 %2571, %v2567
      %v2573 = vpop.permute.xlu0 %2572
      %v2574 = vperm.slane %v2269, 2
      %v2575 = vlaneseq
      %v2576 = vshrl.u32 %v2575, 7
      %2578 = vset.pattern.permute.xlu0 %v2576
      %2579 = vperm.xlu0 %2578, %v2574
      %v2580 = vpop.permute.xlu0 %2579
      %v2581 = vperm.slane %v2269, 3
      %v2582 = vlaneseq
      %v2583 = vshrl.u32 %v2582, 7
      %2585 = vset.pattern.permute.xlu0 %v2583
      %2586 = vperm.xlu0 %2585, %v2581
      %v2587 = vpop.permute.xlu0 %2586
      %v2588 = vperm.slane %v2269, 4
      %v2589 = vlaneseq
      %v2590 = vshrl.u32 %v2589, 7
      %2592 = vset.pattern.permute.xlu0 %v2590
      %2593 = vperm.xlu0 %2592, %v2588
      %v2594 = vpop.permute.xlu0 %2593
      %v2595 = vperm.slane %v2269, 5
      %v2596 = vlaneseq
      %v2597 = vshrl.u32 %v2596, 7
      %2599 = vset.pattern.permute.xlu0 %v2597
      %2600 = vperm.xlu0 %2599, %v2595
      %v2601 = vpop.permute.xlu0 %2600
      %v2602 = vperm.slane %v2269, 6
      %v2603 = vlaneseq
      %v2604 = vshrl.u32 %v2603, 7
      %2606 = vset.pattern.permute.xlu0 %v2604
      %2607 = vperm.xlu0 %2606, %v2602
      %v2608 = vpop.permute.xlu0 %2607
      %v2609 = vperm.slane %v2269, 7
      %v2610 = vlaneseq
      %v2611 = vshrl.u32 %v2610, 7
      %2613 = vset.pattern.permute.xlu0 %v2611
      %2614 = vperm.xlu0 %2613, %v2609
      %v2615 = vpop.permute.xlu0 %2614
      %v2616 = vmul.f32 %v2566, %v379
      %v2617 = vmul.f32 %v2573, %v379
      %v2618 = vmul.f32 %v2580, %v379
      %v2619 = vmul.f32 %v2587, %v379
      %v2620 = vmul.f32 %v2594, %v379
      %v2621 = vmul.f32 %v2601, %v379
      %v2622 = vmul.f32 %v2608, %v379
      %v2623 = vmul.f32 %v2615, %v379
      %v2624 = vsel %vm403, %v2616, 0.0
      %v2625 = vrot.slane %v2624, 4
      %v2626 = vadd.f32 %v2624, %v2625
      %v2627 = vrot.slane %v2626, 2
      %v2628 = vadd.f32 %v2626, %v2627
      %v2629 = vrot.slane %v2628, 1
      %v2630 = vadd.f32 %v2628, %v2629
      %v2631 = vsel %vm403, %v2617, 0.0
      %v2632 = vrot.slane %v2631, 4
      %v2633 = vadd.f32 %v2631, %v2632
      %v2634 = vrot.slane %v2633, 2
      %v2635 = vadd.f32 %v2633, %v2634
      %v2636 = vrot.slane %v2635, 1
      %v2637 = vadd.f32 %v2635, %v2636
      %v2638 = vsel %vm403, %v2618, 0.0
      %v2639 = vrot.slane %v2638, 4
      %v2640 = vadd.f32 %v2638, %v2639
      %v2641 = vrot.slane %v2640, 2
      %v2642 = vadd.f32 %v2640, %v2641
      %v2643 = vrot.slane %v2642, 1
      %v2644 = vadd.f32 %v2642, %v2643
      %v2645 = vsel %vm403, %v2619, 0.0
      %v2646 = vrot.slane %v2645, 4
      %v2647 = vadd.f32 %v2645, %v2646
      %v2648 = vrot.slane %v2647, 2
      %v2649 = vadd.f32 %v2647, %v2648
      %v2650 = vrot.slane %v2649, 1
      %v2651 = vadd.f32 %v2649, %v2650
      %v2652 = vsel %vm403, %v2620, 0.0
      %v2653 = vrot.slane %v2652, 4
      %v2654 = vadd.f32 %v2652, %v2653
      %v2655 = vrot.slane %v2654, 2
      %v2656 = vadd.f32 %v2654, %v2655
      %v2657 = vrot.slane %v2656, 1
      %v2658 = vadd.f32 %v2656, %v2657
      %v2659 = vsel %vm403, %v2621, 0.0
      %v2660 = vrot.slane %v2659, 4
      %v2661 = vadd.f32 %v2659, %v2660
      %v2662 = vrot.slane %v2661, 2
      %v2663 = vadd.f32 %v2661, %v2662
      %v2664 = vrot.slane %v2663, 1
      %v2665 = vadd.f32 %v2663, %v2664
      %v2666 = vsel %vm403, %v2622, 0.0
      %v2667 = vrot.slane %v2666, 4
      %v2668 = vadd.f32 %v2666, %v2667
      %v2669 = vrot.slane %v2668, 2
      %v2670 = vadd.f32 %v2668, %v2669
      %v2671 = vrot.slane %v2670, 1
      %v2672 = vadd.f32 %v2670, %v2671
      %v2673 = vsel %vm403, %v2623, 0.0
      %v2674 = vrot.slane %v2673, 4
      %v2675 = vadd.f32 %v2673, %v2674
      %v2676 = vrot.slane %v2675, 2
      %v2677 = vadd.f32 %v2675, %v2676
      %v2678 = vrot.slane %v2677, 1
      %v2679 = vadd.f32 %v2677, %v2678
      %v2680 = vadd.f32 %v2630, %v2271
      %v2681 = vadd.f32 %v2637, %v2507
      %v2682 = vadd.f32 %v2644, %v2508
      %v2683 = vadd.f32 %v2651, %v2509
      %v2684 = vadd.f32 %v2658, %v2510
      %v2685 = vadd.f32 %v2665, %v2511
      %v2686 = vadd.f32 %v2672, %v2512
      %v2687 = vadd.f32 %v2679, %v2513
      %v2696 = vrot.slane %v2681, 7
      %v2697 = vsel %vm444, %v2696, %v2680
      %v2698 = vrot.slane %v2682, 6
      %v2699 = vsel %vm447, %v2698, %v2697
      %v2700 = vrot.slane %v2683, 5
      %v2701 = vsel %vm450, %v2700, %v2699
      %v2702 = vrot.slane %v2684, 4
      %v2703 = vsel %vm453, %v2702, %v2701
      %v2704 = vrot.slane %v2685, 3
      %v2705 = vsel %vm456, %v2704, %v2703
      %v2706 = vrot.slane %v2686, 2
      %v2707 = vsel %vm459, %v2706, %v2705
      %v2708 = vrot.slane %v2687, 1
      %v2709 = vsel %vm462, %v2708, %v2707
      %v2711 = vmul.f32 %v2281, %v2709
      %v2712 = vsel %vm370, %v2711, 0.0
      %2713 = vadd.xlane.f32.xlu0 %v2712
      %v2714 = vpop.xlane.xlu0 %2713
      %v2715 = vmul.f32 %v2714, %v2273
      %v2716 = vadd.f32 %v2268, %v2715
      %v2717 = vsel %vm2535, %v2281, %v2269
      %s2718 = scalar_lea.vmem [#allocation2], 48
      %v2719 = vld [vmem:[%s2718] sm:$0xff]
      %s2720 = scalar_lea.vmem %s5, 48
      %v2721 = vld [vmem:[%s2720] sm:$0xff]
      %s2722 = scalar_lea.vmem %s296, 48
      %v2723 = vld [vmem:[%s2722] sm:$0xff]
      %2724 = vset.pattern.permute.xlu0 0
      %2725 = vperm.xlu0 %2724, %v2723
      %v2726 = vpop.permute.xlu0 %2725
      %vm2727 = vcmp.eq.s32.totalorder %v381, %v2726
      %v2728 = vsel %vm2727, 1, 0
      %v2729 = vcvt.s32.f32 %v2728
      %v2730 = vperm.slane %v2559, 0
      %v2731 = vlaneseq
      %v2732 = vshrl.u32 %v2731, 7
      %2734 = vset.pattern.permute.xlu0 %v2732
      %2735 = vperm.xlu0 %2734, %v2730
      %v2736 = vpop.permute.xlu0 %2735
      %v2737 = vperm.slane %v2559, 1
      %v2738 = vlaneseq
      %v2739 = vshrl.u32 %v2738, 7
      %2741 = vset.pattern.permute.xlu0 %v2739
      %2742 = vperm.xlu0 %2741, %v2737
      %v2743 = vpop.permute.xlu0 %2742
      %v2744 = vperm.slane %v2559, 2
      %v2745 = vlaneseq
      %v2746 = vshrl.u32 %v2745, 7
      %2748 = vset.pattern.permute.xlu0 %v2746
      %2749 = vperm.xlu0 %2748, %v2744
      %v2750 = vpop.permute.xlu0 %2749
      %v2751 = vperm.slane %v2559, 3
      %v2752 = vlaneseq
      %v2753 = vshrl.u32 %v2752, 7
      %2755 = vset.pattern.permute.xlu0 %v2753
      %2756 = vperm.xlu0 %2755, %v2751
      %v2757 = vpop.permute.xlu0 %2756
      %v2758 = vperm.slane %v2559, 4
      %v2759 = vlaneseq
      %v2760 = vshrl.u32 %v2759, 7
      %2762 = vset.pattern.permute.xlu0 %v2760
      %2763 = vperm.xlu0 %2762, %v2758
      %v2764 = vpop.permute.xlu0 %2763
      %v2765 = vperm.slane %v2559, 5
      %v2766 = vlaneseq
      %v2767 = vshrl.u32 %v2766, 7
      %2769 = vset.pattern.permute.xlu0 %v2767
      %2770 = vperm.xlu0 %2769, %v2765
      %v2771 = vpop.permute.xlu0 %2770
      %v2772 = vperm.slane %v2559, 6
      %v2773 = vlaneseq
      %v2774 = vshrl.u32 %v2773, 7
      %2776 = vset.pattern.permute.xlu0 %v2774
      %2777 = vperm.xlu0 %2776, %v2772
      %v2778 = vpop.permute.xlu0 %2777
      %v2779 = vperm.slane %v2559, 7
      %v2780 = vlaneseq
      %v2781 = vshrl.u32 %v2780, 7
      %2783 = vset.pattern.permute.xlu0 %v2781
      %2784 = vperm.xlu0 %2783, %v2779
      %v2785 = vpop.permute.xlu0 %2784
      %v2786 = vadd.f32 %v2736, %v379
      %v2787 = vadd.f32 %v2743, %v379
      %v2788 = vadd.f32 %v2750, %v379
      %v2789 = vadd.f32 %v2757, %v379
      %v2790 = vadd.f32 %v2764, %v379
      %v2791 = vadd.f32 %v2771, %v379
      %v2792 = vadd.f32 %v2778, %v379
      %v2793 = vadd.f32 %v2785, %v379
      %v2794 = vsel %vm403, %v2786, -inf
      %v2795 = vrot.slane %v2794, 4
      %v2796 = vmax.f32 %v2794, %v2795
      %v2797 = vrot.slane %v2796, 2
      %v2798 = vmax.f32 %v2796, %v2797
      %v2799 = vrot.slane %v2798, 1
      %v2800 = vmax.f32 %v2798, %v2799
      %v2801 = vsel %vm403, %v2787, -inf
      %v2802 = vrot.slane %v2801, 4
      %v2803 = vmax.f32 %v2801, %v2802
      %v2804 = vrot.slane %v2803, 2
      %v2805 = vmax.f32 %v2803, %v2804
      %v2806 = vrot.slane %v2805, 1
      %v2807 = vmax.f32 %v2805, %v2806
      %v2808 = vsel %vm403, %v2788, -inf
      %v2809 = vrot.slane %v2808, 4
      %v2810 = vmax.f32 %v2808, %v2809
      %v2811 = vrot.slane %v2810, 2
      %v2812 = vmax.f32 %v2810, %v2811
      %v2813 = vrot.slane %v2812, 1
      %v2814 = vmax.f32 %v2812, %v2813
      %v2815 = vsel %vm403, %v2789, -inf
      %v2816 = vrot.slane %v2815, 4
      %v2817 = vmax.f32 %v2815, %v2816
      %v2818 = vrot.slane %v2817, 2
      %v2819 = vmax.f32 %v2817, %v2818
      %v2820 = vrot.slane %v2819, 1
      %v2821 = vmax.f32 %v2819, %v2820
      %v2822 = vsel %vm403, %v2790, -inf
      %v2823 = vrot.slane %v2822, 4
      %v2824 = vmax.f32 %v2822, %v2823
      %v2825 = vrot.slane %v2824, 2
      %v2826 = vmax.f32 %v2824, %v2825
      %v2827 = vrot.slane %v2826, 1
      %v2828 = vmax.f32 %v2826, %v2827
      %v2829 = vsel %vm403, %v2791, -inf
      %v2830 = vrot.slane %v2829, 4
      %v2831 = vmax.f32 %v2829, %v2830
      %v2832 = vrot.slane %v2831, 2
      %v2833 = vmax.f32 %v2831, %v2832
      %v2834 = vrot.slane %v2833, 1
      %v2835 = vmax.f32 %v2833, %v2834
      %v2836 = vsel %vm403, %v2792, -inf
      %v2837 = vrot.slane %v2836, 4
      %v2838 = vmax.f32 %v2836, %v2837
      %v2839 = vrot.slane %v2838, 2
      %v2840 = vmax.f32 %v2838, %v2839
      %v2841 = vrot.slane %v2840, 1
      %v2842 = vmax.f32 %v2840, %v2841
      %v2843 = vsel %vm403, %v2793, -inf
      %v2844 = vrot.slane %v2843, 4
      %v2845 = vmax.f32 %v2843, %v2844
      %v2846 = vrot.slane %v2845, 2
      %v2847 = vmax.f32 %v2845, %v2846
      %v2848 = vrot.slane %v2847, 1
      %v2849 = vmax.f32 %v2847, %v2848
      %v2850 = vsub.f32 %v2786, %v2800
      %v2851 = vsub.f32 %v2787, %v2807
      %v2852 = vsub.f32 %v2788, %v2814
      %v2853 = vsub.f32 %v2789, %v2821
      %v2854 = vsub.f32 %v2790, %v2828
      %v2855 = vsub.f32 %v2791, %v2835
      %v2856 = vsub.f32 %v2792, %v2842
      %v2857 = vsub.f32 %v2793, %v2849
      %v2858 = vmul.f32 %v2850, 1.442695
      %v2859 = vpow.pop %v2858
      %v2860 = vmul.f32 %v2851, 1.442695
      %v2861 = vpow.pop %v2860
      %v2862 = vmul.f32 %v2852, 1.442695
      %v2863 = vpow.pop %v2862
      %v2864 = vmul.f32 %v2853, 1.442695
      %v2865 = vpow.pop %v2864
      %v2866 = vmul.f32 %v2854, 1.442695
      %v2867 = vpow.pop %v2866
      %v2868 = vmul.f32 %v2855, 1.442695
      %v2869 = vpow.pop %v2868
      %v2870 = vmul.f32 %v2856, 1.442695
      %v2871 = vpow.pop %v2870
      %v2872 = vmul.f32 %v2857, 1.442695
      %v2873 = vpow.pop %v2872
      %v2874 = vsel %vm403, %v2859, 0.0
      %v2875 = vrot.slane %v2874, 4
      %v2876 = vadd.f32 %v2874, %v2875
      %v2877 = vrot.slane %v2876, 2
      %v2878 = vadd.f32 %v2876, %v2877
      %v2879 = vrot.slane %v2878, 1
      %v2880 = vadd.f32 %v2878, %v2879
      %v2881 = vsel %vm403, %v2861, 0.0
      %v2882 = vrot.slane %v2881, 4
      %v2883 = vadd.f32 %v2881, %v2882
      %v2884 = vrot.slane %v2883, 2
      %v2885 = vadd.f32 %v2883, %v2884
      %v2886 = vrot.slane %v2885, 1
      %v2887 = vadd.f32 %v2885, %v2886
      %v2888 = vsel %vm403, %v2863, 0.0
      %v2889 = vrot.slane %v2888, 4
      %v2890 = vadd.f32 %v2888, %v2889
      %v2891 = vrot.slane %v2890, 2
      %v2892 = vadd.f32 %v2890, %v2891
      %v2893 = vrot.slane %v2892, 1
      %v2894 = vadd.f32 %v2892, %v2893
      %v2895 = vsel %vm403, %v2865, 0.0
      %v2896 = vrot.slane %v2895, 4
      %v2897 = vadd.f32 %v2895, %v2896
      %v2898 = vrot.slane %v2897, 2
      %v2899 = vadd.f32 %v2897, %v2898
      %v2900 = vrot.slane %v2899, 1
      %v2901 = vadd.f32 %v2899, %v2900
      %v2902 = vsel %vm403, %v2867, 0.0
      %v2903 = vrot.slane %v2902, 4
      %v2904 = vadd.f32 %v2902, %v2903
      %v2905 = vrot.slane %v2904, 2
      %v2906 = vadd.f32 %v2904, %v2905
      %v2907 = vrot.slane %v2906, 1
      %v2908 = vadd.f32 %v2906, %v2907
      %v2909 = vsel %vm403, %v2869, 0.0
      %v2910 = vrot.slane %v2909, 4
      %v2911 = vadd.f32 %v2909, %v2910
      %v2912 = vrot.slane %v2911, 2
      %v2913 = vadd.f32 %v2911, %v2912
      %v2914 = vrot.slane %v2913, 1
      %v2915 = vadd.f32 %v2913, %v2914
      %v2916 = vsel %vm403, %v2871, 0.0
      %v2917 = vrot.slane %v2916, 4
      %v2918 = vadd.f32 %v2916, %v2917
      %v2919 = vrot.slane %v2918, 2
      %v2920 = vadd.f32 %v2918, %v2919
      %v2921 = vrot.slane %v2920, 1
      %v2922 = vadd.f32 %v2920, %v2921
      %v2923 = vsel %vm403, %v2873, 0.0
      %v2924 = vrot.slane %v2923, 4
      %v2925 = vadd.f32 %v2923, %v2924
      %v2926 = vrot.slane %v2925, 2
      %v2927 = vadd.f32 %v2925, %v2926
      %v2928 = vrot.slane %v2927, 1
      %v2929 = vadd.f32 %v2927, %v2928
      %v2930 = vlog2.pop %v2880
      %v2931 = vmul.f32 %v2930, 0.6931472
      %v2932 = vlog2.pop %v2887
      %v2933 = vmul.f32 %v2932, 0.6931472
      %v2934 = vlog2.pop %v2894
      %v2935 = vmul.f32 %v2934, 0.6931472
      %v2936 = vlog2.pop %v2901
      %v2937 = vmul.f32 %v2936, 0.6931472
      %v2938 = vlog2.pop %v2908
      %v2939 = vmul.f32 %v2938, 0.6931472
      %v2940 = vlog2.pop %v2915
      %v2941 = vmul.f32 %v2940, 0.6931472
      %v2942 = vlog2.pop %v2922
      %v2943 = vmul.f32 %v2942, 0.6931472
      %v2944 = vlog2.pop %v2929
      %v2945 = vmul.f32 %v2944, 0.6931472
      %v2946 = vadd.f32 %v2800, %v2931
      %v2947 = vadd.f32 %v2807, %v2933
      %v2948 = vadd.f32 %v2814, %v2935
      %v2949 = vadd.f32 %v2821, %v2937
      %v2950 = vadd.f32 %v2828, %v2939
      %v2951 = vadd.f32 %v2835, %v2941
      %v2952 = vadd.f32 %v2842, %v2943
      %v2953 = vadd.f32 %v2849, %v2945
      %v2955 = vrot.slane %v2719, 1
      %v2956 = vrot.slane %v2719, 2
      %v2957 = vrot.slane %v2719, 3
      %v2958 = vrot.slane %v2719, 4
      %v2959 = vrot.slane %v2719, 5
      %v2960 = vrot.slane %v2719, 6
      %v2961 = vrot.slane %v2719, 7
      %v2970 = vadd.f32 %v2946, %v2719
      %v2971 = vadd.f32 %v2947, %v2955
      %v2972 = vadd.f32 %v2948, %v2956
      %v2973 = vadd.f32 %v2949, %v2957
      %v2974 = vadd.f32 %v2950, %v2958
      %v2975 = vadd.f32 %v2951, %v2959
      %v2976 = vadd.f32 %v2952, %v2960
      %v2977 = vadd.f32 %v2953, %v2961
      %vm2978 = vcmp.gt.f32.partialorder %v2721, 0.0
      %v2979 = vsel %vm2978, 1, 0
      %2980 = vset.pattern.permute.xlu0 0
      %2981 = vperm.xlu0 %2980, %v2979
      %v2982 = vpop.permute.xlu0 %2981
      %vm2983 = vcmp.eq.s32.totalorder %v2982, 1
      %v2992 = vrot.slane %v2971, 7
      %v2993 = vsel %vm444, %v2992, %v2970
      %v2994 = vrot.slane %v2972, 6
      %v2995 = vsel %vm447, %v2994, %v2993
      %v2996 = vrot.slane %v2973, 5
      %v2997 = vsel %vm450, %v2996, %v2995
      %v2998 = vrot.slane %v2974, 4
      %v2999 = vsel %vm453, %v2998, %v2997
      %v3000 = vrot.slane %v2975, 3
      %v3001 = vsel %vm456, %v3000, %v2999
      %v3002 = vrot.slane %v2976, 2
      %v3003 = vsel %vm459, %v3002, %v3001
      %v3004 = vrot.slane %v2977, 1
      %v3005 = vsel %vm462, %v3004, %v3003
      %v3007 = vsel %vm2983, %v3005, %v2559
      %v3008 = vperm.slane %v2717, 0
      %v3009 = vlaneseq
      %v3010 = vshrl.u32 %v3009, 7
      %3012 = vset.pattern.permute.xlu0 %v3010
      %3013 = vperm.xlu0 %3012, %v3008
      %v3014 = vpop.permute.xlu0 %3013
      %v3015 = vperm.slane %v2717, 1
      %v3016 = vlaneseq
      %v3017 = vshrl.u32 %v3016, 7
      %3019 = vset.pattern.permute.xlu0 %v3017
      %3020 = vperm.xlu0 %3019, %v3015
      %v3021 = vpop.permute.xlu0 %3020
      %v3022 = vperm.slane %v2717, 2
      %v3023 = vlaneseq
      %v3024 = vshrl.u32 %v3023, 7
      %3026 = vset.pattern.permute.xlu0 %v3024
      %3027 = vperm.xlu0 %3026, %v3022
      %v3028 = vpop.permute.xlu0 %3027
      %v3029 = vperm.slane %v2717, 3
      %v3030 = vlaneseq
      %v3031 = vshrl.u32 %v3030, 7
      %3033 = vset.pattern.permute.xlu0 %v3031
      %3034 = vperm.xlu0 %3033, %v3029
      %v3035 = vpop.permute.xlu0 %3034
      %v3036 = vperm.slane %v2717, 4
      %v3037 = vlaneseq
      %v3038 = vshrl.u32 %v3037, 7
      %3040 = vset.pattern.permute.xlu0 %v3038
      %3041 = vperm.xlu0 %3040, %v3036
      %v3042 = vpop.permute.xlu0 %3041
      %v3043 = vperm.slane %v2717, 5
      %v3044 = vlaneseq
      %v3045 = vshrl.u32 %v3044, 7
      %3047 = vset.pattern.permute.xlu0 %v3045
      %3048 = vperm.xlu0 %3047, %v3043
      %v3049 = vpop.permute.xlu0 %3048
      %v3050 = vperm.slane %v2717, 6
      %v3051 = vlaneseq
      %v3052 = vshrl.u32 %v3051, 7
      %3054 = vset.pattern.permute.xlu0 %v3052
      %3055 = vperm.xlu0 %3054, %v3050
      %v3056 = vpop.permute.xlu0 %3055
      %v3057 = vperm.slane %v2717, 7
      %v3058 = vlaneseq
      %v3059 = vshrl.u32 %v3058, 7
      %3061 = vset.pattern.permute.xlu0 %v3059
      %3062 = vperm.xlu0 %3061, %v3057
      %v3063 = vpop.permute.xlu0 %3062
      %v3064 = vmul.f32 %v3014, %v379
      %v3065 = vmul.f32 %v3021, %v379
      %v3066 = vmul.f32 %v3028, %v379
      %v3067 = vmul.f32 %v3035, %v379
      %v3068 = vmul.f32 %v3042, %v379
      %v3069 = vmul.f32 %v3049, %v379
      %v3070 = vmul.f32 %v3056, %v379
      %v3071 = vmul.f32 %v3063, %v379
      %v3072 = vsel %vm403, %v3064, 0.0
      %v3073 = vrot.slane %v3072, 4
      %v3074 = vadd.f32 %v3072, %v3073
      %v3075 = vrot.slane %v3074, 2
      %v3076 = vadd.f32 %v3074, %v3075
      %v3077 = vrot.slane %v3076, 1
      %v3078 = vadd.f32 %v3076, %v3077
      %v3079 = vsel %vm403, %v3065, 0.0
      %v3080 = vrot.slane %v3079, 4
      %v3081 = vadd.f32 %v3079, %v3080
      %v3082 = vrot.slane %v3081, 2
      %v3083 = vadd.f32 %v3081, %v3082
      %v3084 = vrot.slane %v3083, 1
      %v3085 = vadd.f32 %v3083, %v3084
      %v3086 = vsel %vm403, %v3066, 0.0
      %v3087 = vrot.slane %v3086, 4
      %v3088 = vadd.f32 %v3086, %v3087
      %v3089 = vrot.slane %v3088, 2
      %v3090 = vadd.f32 %v3088, %v3089
      %v3091 = vrot.slane %v3090, 1
      %v3092 = vadd.f32 %v3090, %v3091
      %v3093 = vsel %vm403, %v3067, 0.0
      %v3094 = vrot.slane %v3093, 4
      %v3095 = vadd.f32 %v3093, %v3094
      %v3096 = vrot.slane %v3095, 2
      %v3097 = vadd.f32 %v3095, %v3096
      %v3098 = vrot.slane %v3097, 1
      %v3099 = vadd.f32 %v3097, %v3098
      %v3100 = vsel %vm403, %v3068, 0.0
      %v3101 = vrot.slane %v3100, 4
      %v3102 = vadd.f32 %v3100, %v3101
      %v3103 = vrot.slane %v3102, 2
      %v3104 = vadd.f32 %v3102, %v3103
      %v3105 = vrot.slane %v3104, 1
      %v3106 = vadd.f32 %v3104, %v3105
      %v3107 = vsel %vm403, %v3069, 0.0
      %v3108 = vrot.slane %v3107, 4
      %v3109 = vadd.f32 %v3107, %v3108
      %v3110 = vrot.slane %v3109, 2
      %v3111 = vadd.f32 %v3109, %v3110
      %v3112 = vrot.slane %v3111, 1
      %v3113 = vadd.f32 %v3111, %v3112
      %v3114 = vsel %vm403, %v3070, 0.0
      %v3115 = vrot.slane %v3114, 4
      %v3116 = vadd.f32 %v3114, %v3115
      %v3117 = vrot.slane %v3116, 2
      %v3118 = vadd.f32 %v3116, %v3117
      %v3119 = vrot.slane %v3118, 1
      %v3120 = vadd.f32 %v3118, %v3119
      %v3121 = vsel %vm403, %v3071, 0.0
      %v3122 = vrot.slane %v3121, 4
      %v3123 = vadd.f32 %v3121, %v3122
      %v3124 = vrot.slane %v3123, 2
      %v3125 = vadd.f32 %v3123, %v3124
      %v3126 = vrot.slane %v3125, 1
      %v3127 = vadd.f32 %v3125, %v3126
      %v3128 = vadd.f32 %v3078, %v2719
      %v3129 = vadd.f32 %v3085, %v2955
      %v3130 = vadd.f32 %v3092, %v2956
      %v3131 = vadd.f32 %v3099, %v2957
      %v3132 = vadd.f32 %v3106, %v2958
      %v3133 = vadd.f32 %v3113, %v2959
      %v3134 = vadd.f32 %v3120, %v2960
      %v3135 = vadd.f32 %v3127, %v2961
      %v3144 = vrot.slane %v3129, 7
      %v3145 = vsel %vm444, %v3144, %v3128
      %v3146 = vrot.slane %v3130, 6
      %v3147 = vsel %vm447, %v3146, %v3145
      %v3148 = vrot.slane %v3131, 5
      %v3149 = vsel %vm450, %v3148, %v3147
      %v3150 = vrot.slane %v3132, 4
      %v3151 = vsel %vm453, %v3150, %v3149
      %v3152 = vrot.slane %v3133, 3
      %v3153 = vsel %vm456, %v3152, %v3151
      %v3154 = vrot.slane %v3134, 2
      %v3155 = vsel %vm459, %v3154, %v3153
      %v3156 = vrot.slane %v3135, 1
      %v3157 = vsel %vm462, %v3156, %v3155
      %v3159 = vmul.f32 %v2729, %v3157
      %v3160 = vsel %vm370, %v3159, 0.0
      %3161 = vadd.xlane.f32.xlu0 %v3160
      %v3162 = vpop.xlane.xlu0 %3161
      %v3163 = vmul.f32 %v3162, %v2721
      %v3164 = vadd.f32 %v2716, %v3163
      %v3165 = vsel %vm2983, %v2729, %v2717
      %s3166 = scalar_lea.vmem [#allocation2], 56
      %v3167 = vld [vmem:[%s3166] sm:$0xff]
      %s3168 = scalar_lea.vmem %s5, 56
      %v3169 = vld [vmem:[%s3168] sm:$0xff]
      %s3170 = scalar_lea.vmem %s296, 56
      %v3171 = vld [vmem:[%s3170] sm:$0xff]
      %3172 = vset.pattern.permute.xlu0 0
      %3173 = vperm.xlu0 %3172, %v3171
      %v3174 = vpop.permute.xlu0 %3173
      %vm3175 = vcmp.eq.s32.totalorder %v381, %v3174
      %v3176 = vsel %vm3175, 1, 0
      %v3177 = vcvt.s32.f32 %v3176
      %v3178 = vperm.slane %v3007, 0
      %v3179 = vlaneseq
      %v3180 = vshrl.u32 %v3179, 7
      %3182 = vset.pattern.permute.xlu0 %v3180
      %3183 = vperm.xlu0 %3182, %v3178
      %v3184 = vpop.permute.xlu0 %3183
      %v3185 = vperm.slane %v3007, 1
      %v3186 = vlaneseq
      %v3187 = vshrl.u32 %v3186, 7
      %3189 = vset.pattern.permute.xlu0 %v3187
      %3190 = vperm.xlu0 %3189, %v3185
      %v3191 = vpop.permute.xlu0 %3190
      %v3192 = vperm.slane %v3007, 2
      %v3193 = vlaneseq
      %v3194 = vshrl.u32 %v3193, 7
      %3196 = vset.pattern.permute.xlu0 %v3194
      %3197 = vperm.xlu0 %3196, %v3192
      %v3198 = vpop.permute.xlu0 %3197
      %v3199 = vperm.slane %v3007, 3
      %v3200 = vlaneseq
      %v3201 = vshrl.u32 %v3200, 7
      %3203 = vset.pattern.permute.xlu0 %v3201
      %3204 = vperm.xlu0 %3203, %v3199
      %v3205 = vpop.permute.xlu0 %3204
      %v3206 = vperm.slane %v3007, 4
      %v3207 = vlaneseq
      %v3208 = vshrl.u32 %v3207, 7
      %3210 = vset.pattern.permute.xlu0 %v3208
      %3211 = vperm.xlu0 %3210, %v3206
      %v3212 = vpop.permute.xlu0 %3211
      %v3213 = vperm.slane %v3007, 5
      %v3214 = vlaneseq
      %v3215 = vshrl.u32 %v3214, 7
      %3217 = vset.pattern.permute.xlu0 %v3215
      %3218 = vperm.xlu0 %3217, %v3213
      %v3219 = vpop.permute.xlu0 %3218
      %v3220 = vperm.slane %v3007, 6
      %v3221 = vlaneseq
      %v3222 = vshrl.u32 %v3221, 7
      %3224 = vset.pattern.permute.xlu0 %v3222
      %3225 = vperm.xlu0 %3224, %v3220
      %v3226 = vpop.permute.xlu0 %3225
      %v3227 = vperm.slane %v3007, 7
      %v3228 = vlaneseq
      %v3229 = vshrl.u32 %v3228, 7
      %3231 = vset.pattern.permute.xlu0 %v3229
      %3232 = vperm.xlu0 %3231, %v3227
      %v3233 = vpop.permute.xlu0 %3232
      %v3234 = vadd.f32 %v3184, %v379
      %v3235 = vadd.f32 %v3191, %v379
      %v3236 = vadd.f32 %v3198, %v379
      %v3237 = vadd.f32 %v3205, %v379
      %v3238 = vadd.f32 %v3212, %v379
      %v3239 = vadd.f32 %v3219, %v379
      %v3240 = vadd.f32 %v3226, %v379
      %v3241 = vadd.f32 %v3233, %v379
      %v3242 = vsel %vm403, %v3234, -inf
      %v3243 = vrot.slane %v3242, 4
      %v3244 = vmax.f32 %v3242, %v3243
      %v3245 = vrot.slane %v3244, 2
      %v3246 = vmax.f32 %v3244, %v3245
      %v3247 = vrot.slane %v3246, 1
      %v3248 = vmax.f32 %v3246, %v3247
      %v3249 = vsel %vm403, %v3235, -inf
      %v3250 = vrot.slane %v3249, 4
      %v3251 = vmax.f32 %v3249, %v3250
      %v3252 = vrot.slane %v3251, 2
      %v3253 = vmax.f32 %v3251, %v3252
      %v3254 = vrot.slane %v3253, 1
      %v3255 = vmax.f32 %v3253, %v3254
      %v3256 = vsel %vm403, %v3236, -inf
      %v3257 = vrot.slane %v3256, 4
      %v3258 = vmax.f32 %v3256, %v3257
      %v3259 = vrot.slane %v3258, 2
      %v3260 = vmax.f32 %v3258, %v3259
      %v3261 = vrot.slane %v3260, 1
      %v3262 = vmax.f32 %v3260, %v3261
      %v3263 = vsel %vm403, %v3237, -inf
      %v3264 = vrot.slane %v3263, 4
      %v3265 = vmax.f32 %v3263, %v3264
      %v3266 = vrot.slane %v3265, 2
      %v3267 = vmax.f32 %v3265, %v3266
      %v3268 = vrot.slane %v3267, 1
      %v3269 = vmax.f32 %v3267, %v3268
      %v3270 = vsel %vm403, %v3238, -inf
      %v3271 = vrot.slane %v3270, 4
      %v3272 = vmax.f32 %v3270, %v3271
      %v3273 = vrot.slane %v3272, 2
      %v3274 = vmax.f32 %v3272, %v3273
      %v3275 = vrot.slane %v3274, 1
      %v3276 = vmax.f32 %v3274, %v3275
      %v3277 = vsel %vm403, %v3239, -inf
      %v3278 = vrot.slane %v3277, 4
      %v3279 = vmax.f32 %v3277, %v3278
      %v3280 = vrot.slane %v3279, 2
      %v3281 = vmax.f32 %v3279, %v3280
      %v3282 = vrot.slane %v3281, 1
      %v3283 = vmax.f32 %v3281, %v3282
      %v3284 = vsel %vm403, %v3240, -inf
      %v3285 = vrot.slane %v3284, 4
      %v3286 = vmax.f32 %v3284, %v3285
      %v3287 = vrot.slane %v3286, 2
      %v3288 = vmax.f32 %v3286, %v3287
      %v3289 = vrot.slane %v3288, 1
      %v3290 = vmax.f32 %v3288, %v3289
      %v3291 = vsel %vm403, %v3241, -inf
      %v3292 = vrot.slane %v3291, 4
      %v3293 = vmax.f32 %v3291, %v3292
      %v3294 = vrot.slane %v3293, 2
      %v3295 = vmax.f32 %v3293, %v3294
      %v3296 = vrot.slane %v3295, 1
      %v3297 = vmax.f32 %v3295, %v3296
      %v3298 = vsub.f32 %v3234, %v3248
      %v3299 = vsub.f32 %v3235, %v3255
      %v3300 = vsub.f32 %v3236, %v3262
      %v3301 = vsub.f32 %v3237, %v3269
      %v3302 = vsub.f32 %v3238, %v3276
      %v3303 = vsub.f32 %v3239, %v3283
      %v3304 = vsub.f32 %v3240, %v3290
      %v3305 = vsub.f32 %v3241, %v3297
      %v3306 = vmul.f32 %v3298, 1.442695
      %v3307 = vpow.pop %v3306
      %v3308 = vmul.f32 %v3299, 1.442695
      %v3309 = vpow.pop %v3308
      %v3310 = vmul.f32 %v3300, 1.442695
      %v3311 = vpow.pop %v3310
      %v3312 = vmul.f32 %v3301, 1.442695
      %v3313 = vpow.pop %v3312
      %v3314 = vmul.f32 %v3302, 1.442695
      %v3315 = vpow.pop %v3314
      %v3316 = vmul.f32 %v3303, 1.442695
      %v3317 = vpow.pop %v3316
      %v3318 = vmul.f32 %v3304, 1.442695
      %v3319 = vpow.pop %v3318
      %v3320 = vmul.f32 %v3305, 1.442695
      %v3321 = vpow.pop %v3320
      %v3322 = vsel %vm403, %v3307, 0.0
      %v3323 = vrot.slane %v3322, 4
      %v3324 = vadd.f32 %v3322, %v3323
      %v3325 = vrot.slane %v3324, 2
      %v3326 = vadd.f32 %v3324, %v3325
      %v3327 = vrot.slane %v3326, 1
      %v3328 = vadd.f32 %v3326, %v3327
      %v3329 = vsel %vm403, %v3309, 0.0
      %v3330 = vrot.slane %v3329, 4
      %v3331 = vadd.f32 %v3329, %v3330
      %v3332 = vrot.slane %v3331, 2
      %v3333 = vadd.f32 %v3331, %v3332
      %v3334 = vrot.slane %v3333, 1
      %v3335 = vadd.f32 %v3333, %v3334
      %v3336 = vsel %vm403, %v3311, 0.0
      %v3337 = vrot.slane %v3336, 4
      %v3338 = vadd.f32 %v3336, %v3337
      %v3339 = vrot.slane %v3338, 2
      %v3340 = vadd.f32 %v3338, %v3339
      %v3341 = vrot.slane %v3340, 1
      %v3342 = vadd.f32 %v3340, %v3341
      %v3343 = vsel %vm403, %v3313, 0.0
      %v3344 = vrot.slane %v3343, 4
      %v3345 = vadd.f32 %v3343, %v3344
      %v3346 = vrot.slane %v3345, 2
      %v3347 = vadd.f32 %v3345, %v3346
      %v3348 = vrot.slane %v3347, 1
      %v3349 = vadd.f32 %v3347, %v3348
      %v3350 = vsel %vm403, %v3315, 0.0
      %v3351 = vrot.slane %v3350, 4
      %v3352 = vadd.f32 %v3350, %v3351
      %v3353 = vrot.slane %v3352, 2
      %v3354 = vadd.f32 %v3352, %v3353
      %v3355 = vrot.slane %v3354, 1
      %v3356 = vadd.f32 %v3354, %v3355
      %v3357 = vsel %vm403, %v3317, 0.0
      %v3358 = vrot.slane %v3357, 4
      %v3359 = vadd.f32 %v3357, %v3358
      %v3360 = vrot.slane %v3359, 2
      %v3361 = vadd.f32 %v3359, %v3360
      %v3362 = vrot.slane %v3361, 1
      %v3363 = vadd.f32 %v3361, %v3362
      %v3364 = vsel %vm403, %v3319, 0.0
      %v3365 = vrot.slane %v3364, 4
      %v3366 = vadd.f32 %v3364, %v3365
      %v3367 = vrot.slane %v3366, 2
      %v3368 = vadd.f32 %v3366, %v3367
      %v3369 = vrot.slane %v3368, 1
      %v3370 = vadd.f32 %v3368, %v3369
      %v3371 = vsel %vm403, %v3321, 0.0
      %v3372 = vrot.slane %v3371, 4
      %v3373 = vadd.f32 %v3371, %v3372
      %v3374 = vrot.slane %v3373, 2
      %v3375 = vadd.f32 %v3373, %v3374
      %v3376 = vrot.slane %v3375, 1
      %v3377 = vadd.f32 %v3375, %v3376
      %v3378 = vlog2.pop %v3328
      %v3379 = vmul.f32 %v3378, 0.6931472
      %v3380 = vlog2.pop %v3335
      %v3381 = vmul.f32 %v3380, 0.6931472
      %v3382 = vlog2.pop %v3342
      %v3383 = vmul.f32 %v3382, 0.6931472
      %v3384 = vlog2.pop %v3349
      %v3385 = vmul.f32 %v3384, 0.6931472
      %v3386 = vlog2.pop %v3356
      %v3387 = vmul.f32 %v3386, 0.6931472
      %v3388 = vlog2.pop %v3363
      %v3389 = vmul.f32 %v3388, 0.6931472
      %v3390 = vlog2.pop %v3370
      %v3391 = vmul.f32 %v3390, 0.6931472
      %v3392 = vlog2.pop %v3377
      %v3393 = vmul.f32 %v3392, 0.6931472
      %v3394 = vadd.f32 %v3248, %v3379
      %v3395 = vadd.f32 %v3255, %v3381
      %v3396 = vadd.f32 %v3262, %v3383
      %v3397 = vadd.f32 %v3269, %v3385
      %v3398 = vadd.f32 %v3276, %v3387
      %v3399 = vadd.f32 %v3283, %v3389
      %v3400 = vadd.f32 %v3290, %v3391
      %v3401 = vadd.f32 %v3297, %v3393
      %v3403 = vrot.slane %v3167, 1
      %v3404 = vrot.slane %v3167, 2
      %v3405 = vrot.slane %v3167, 3
      %v3406 = vrot.slane %v3167, 4
      %v3407 = vrot.slane %v3167, 5
      %v3408 = vrot.slane %v3167, 6
      %v3409 = vrot.slane %v3167, 7
      %v3418 = vadd.f32 %v3394, %v3167
      %v3419 = vadd.f32 %v3395, %v3403
      %v3420 = vadd.f32 %v3396, %v3404
      %v3421 = vadd.f32 %v3397, %v3405
      %v3422 = vadd.f32 %v3398, %v3406
      %v3423 = vadd.f32 %v3399, %v3407
      %v3424 = vadd.f32 %v3400, %v3408
      %v3425 = vadd.f32 %v3401, %v3409
      %vm3426 = vcmp.gt.f32.partialorder %v3169, 0.0
      %v3427 = vsel %vm3426, 1, 0
      %3428 = vset.pattern.permute.xlu0 0
      %3429 = vperm.xlu0 %3428, %v3427
      %v3430 = vpop.permute.xlu0 %3429
      %vm3431 = vcmp.eq.s32.totalorder %v3430, 1
      %v3440 = vrot.slane %v3419, 7
      %v3441 = vsel %vm444, %v3440, %v3418
      %v3442 = vrot.slane %v3420, 6
      %v3443 = vsel %vm447, %v3442, %v3441
      %v3444 = vrot.slane %v3421, 5
      %v3445 = vsel %vm450, %v3444, %v3443
      %v3446 = vrot.slane %v3422, 4
      %v3447 = vsel %vm453, %v3446, %v3445
      %v3448 = vrot.slane %v3423, 3
      %v3449 = vsel %vm456, %v3448, %v3447
      %v3450 = vrot.slane %v3424, 2
      %v3451 = vsel %vm459, %v3450, %v3449
      %v3452 = vrot.slane %v3425, 1
      %v3453 = vsel %vm462, %v3452, %v3451
      %v3455 = vsel %vm3431, %v3453, %v3007
      %v3456 = vperm.slane %v3165, 0
      %v3457 = vlaneseq
      %v3458 = vshrl.u32 %v3457, 7
      %3460 = vset.pattern.permute.xlu0 %v3458
      %3461 = vperm.xlu0 %3460, %v3456
      %v3462 = vpop.permute.xlu0 %3461
      %v3463 = vperm.slane %v3165, 1
      %v3464 = vlaneseq
      %v3465 = vshrl.u32 %v3464, 7
      %3467 = vset.pattern.permute.xlu0 %v3465
      %3468 = vperm.xlu0 %3467, %v3463
      %v3469 = vpop.permute.xlu0 %3468
      %v3470 = vperm.slane %v3165, 2
      %v3471 = vlaneseq
      %v3472 = vshrl.u32 %v3471, 7
      %3474 = vset.pattern.permute.xlu0 %v3472
      %3475 = vperm.xlu0 %3474, %v3470
      %v3476 = vpop.permute.xlu0 %3475
      %v3477 = vperm.slane %v3165, 3
      %v3478 = vlaneseq
      %v3479 = vshrl.u32 %v3478, 7
      %3481 = vset.pattern.permute.xlu0 %v3479
      %3482 = vperm.xlu0 %3481, %v3477
      %v3483 = vpop.permute.xlu0 %3482
      %v3484 = vperm.slane %v3165, 4
      %v3485 = vlaneseq
      %v3486 = vshrl.u32 %v3485, 7
      %3488 = vset.pattern.permute.xlu0 %v3486
      %3489 = vperm.xlu0 %3488, %v3484
      %v3490 = vpop.permute.xlu0 %3489
      %v3491 = vperm.slane %v3165, 5
      %v3492 = vlaneseq
      %v3493 = vshrl.u32 %v3492, 7
      %3495 = vset.pattern.permute.xlu0 %v3493
      %3496 = vperm.xlu0 %3495, %v3491
      %v3497 = vpop.permute.xlu0 %3496
      %v3498 = vperm.slane %v3165, 6
      %v3499 = vlaneseq
      %v3500 = vshrl.u32 %v3499, 7
      %3502 = vset.pattern.permute.xlu0 %v3500
      %3503 = vperm.xlu0 %3502, %v3498
      %v3504 = vpop.permute.xlu0 %3503
      %v3505 = vperm.slane %v3165, 7
      %v3506 = vlaneseq
      %v3507 = vshrl.u32 %v3506, 7
      %3509 = vset.pattern.permute.xlu0 %v3507
      %3510 = vperm.xlu0 %3509, %v3505
      %v3511 = vpop.permute.xlu0 %3510
      %v3512 = vmul.f32 %v3462, %v379
      %v3513 = vmul.f32 %v3469, %v379
      %v3514 = vmul.f32 %v3476, %v379
      %v3515 = vmul.f32 %v3483, %v379
      %v3516 = vmul.f32 %v3490, %v379
      %v3517 = vmul.f32 %v3497, %v379
      %v3518 = vmul.f32 %v3504, %v379
      %v3519 = vmul.f32 %v3511, %v379
      %v3520 = vsel %vm403, %v3512, 0.0
      %v3521 = vrot.slane %v3520, 4
      %v3522 = vadd.f32 %v3520, %v3521
      %v3523 = vrot.slane %v3522, 2
      %v3524 = vadd.f32 %v3522, %v3523
      %v3525 = vrot.slane %v3524, 1
      %v3526 = vadd.f32 %v3524, %v3525
      %v3527 = vsel %vm403, %v3513, 0.0
      %v3528 = vrot.slane %v3527, 4
      %v3529 = vadd.f32 %v3527, %v3528
      %v3530 = vrot.slane %v3529, 2
      %v3531 = vadd.f32 %v3529, %v3530
      %v3532 = vrot.slane %v3531, 1
      %v3533 = vadd.f32 %v3531, %v3532
      %v3534 = vsel %vm403, %v3514, 0.0
      %v3535 = vrot.slane %v3534, 4
      %v3536 = vadd.f32 %v3534, %v3535
      %v3537 = vrot.slane %v3536, 2
      %v3538 = vadd.f32 %v3536, %v3537
      %v3539 = vrot.slane %v3538, 1
      %v3540 = vadd.f32 %v3538, %v3539
      %v3541 = vsel %vm403, %v3515, 0.0
      %v3542 = vrot.slane %v3541, 4
      %v3543 = vadd.f32 %v3541, %v3542
      %v3544 = vrot.slane %v3543, 2
      %v3545 = vadd.f32 %v3543, %v3544
      %v3546 = vrot.slane %v3545, 1
      %v3547 = vadd.f32 %v3545, %v3546
      %v3548 = vsel %vm403, %v3516, 0.0
      %v3549 = vrot.slane %v3548, 4
      %v3550 = vadd.f32 %v3548, %v3549
      %v3551 = vrot.slane %v3550, 2
      %v3552 = vadd.f32 %v3550, %v3551
      %v3553 = vrot.slane %v3552, 1
      %v3554 = vadd.f32 %v3552, %v3553
      %v3555 = vsel %vm403, %v3517, 0.0
      %v3556 = vrot.slane %v3555, 4
      %v3557 = vadd.f32 %v3555, %v3556
      %v3558 = vrot.slane %v3557, 2
      %v3559 = vadd.f32 %v3557, %v3558
      %v3560 = vrot.slane %v3559, 1
      %v3561 = vadd.f32 %v3559, %v3560
      %v3562 = vsel %vm403, %v3518, 0.0
      %v3563 = vrot.slane %v3562, 4
      %v3564 = vadd.f32 %v3562, %v3563
      %v3565 = vrot.slane %v3564, 2
      %v3566 = vadd.f32 %v3564, %v3565
      %v3567 = vrot.slane %v3566, 1
      %v3568 = vadd.f32 %v3566, %v3567
      %v3569 = vsel %vm403, %v3519, 0.0
      %v3570 = vrot.slane %v3569, 4
      %v3571 = vadd.f32 %v3569, %v3570
      %v3572 = vrot.slane %v3571, 2
      %v3573 = vadd.f32 %v3571, %v3572
      %v3574 = vrot.slane %v3573, 1
      %v3575 = vadd.f32 %v3573, %v3574
      %v3576 = vadd.f32 %v3526, %v3167
      %v3577 = vadd.f32 %v3533, %v3403
      %v3578 = vadd.f32 %v3540, %v3404
      %v3579 = vadd.f32 %v3547, %v3405
      %v3580 = vadd.f32 %v3554, %v3406
      %v3581 = vadd.f32 %v3561, %v3407
      %v3582 = vadd.f32 %v3568, %v3408
      %v3583 = vadd.f32 %v3575, %v3409
      %v3592 = vrot.slane %v3577, 7
      %v3593 = vsel %vm444, %v3592, %v3576
      %v3594 = vrot.slane %v3578, 6
      %v3595 = vsel %vm447, %v3594, %v3593
      %v3596 = vrot.slane %v3579, 5
      %v3597 = vsel %vm450, %v3596, %v3595
      %v3598 = vrot.slane %v3580, 4
      %v3599 = vsel %vm453, %v3598, %v3597
      %v3600 = vrot.slane %v3581, 3
      %v3601 = vsel %vm456, %v3600, %v3599
      %v3602 = vrot.slane %v3582, 2
      %v3603 = vsel %vm459, %v3602, %v3601
      %v3604 = vrot.slane %v3583, 1
      %v3605 = vsel %vm462, %v3604, %v3603
      %v3607 = vmul.f32 %v3177, %v3605
      %v3608 = vsel %vm370, %v3607, 0.0
      %3609 = vadd.xlane.f32.xlu0 %v3608
      %v3610 = vpop.xlane.xlu0 %3609
      %v3611 = vmul.f32 %v3610, %v3169
      %v3612 = vadd.f32 %v3164, %v3611
      %v3613 = vsel %vm370, %v3455, -inf
      %3614 = vmax.xlane.f32.xlu0 %v3613
      %v3615 = vpop.xlane.xlu0 %3614
      %v3616 = vsub.f32 %v3455, %v3615
      %v3617 = vmul.f32 %v3616, 1.442695
      %v3618 = vpow.pop %v3617
      %v3619 = vsel %vm370, %v3618, 0.0
      %3620 = vadd.xlane.f32.xlu0 %v3619
      %v3621 = vpop.xlane.xlu0 %3620
      %v3622 = vlog2.pop %v3621
      %v3623 = vmul.f32 %v3622, 0.6931472
      %v3624 = vadd.f32 %v3615, %v3623
      %v3625 = vsub.f32 %v3624, %v3612
      %vm3626 = vcmask 7168
      %3627 = vst.msk [vmem:[%s300] sm:$0xff] %vm3626, %v3625
      %p3628 = scmp.lt.s32.totalorder %s17, 1
      %s3629 = scalar_select %p3628, %s17, 1
      %s3630 = smul.addr %s3629, 8
      %s3631 = scalar_lea.vmem %s6, %s3630
      // Predicated region
      $region45: #{_forward_core.3} parent=43 // pred_check
        %p3632 = pneg %p181
      $region46: #{_forward_core.3} parent=43 // pred_check_branch
        %3634 = sbr.rel (%p3632) target = $region48
      $region47: #{_forward_core.3} parent=43 // pred_region
        _
      $region48: #{_forward_core.3} parent=43 // pred_fallthru
        _
    $region44: #{_forward_core.3} parent=5 // pred_fallthru
      _
    %p3635 = scmp.le.s32.totalorder 2, %s12
    // Predicated region
    $region49: #{_forward_core.3} parent=5 // pred_check
      %p3636 = pneg %p3635
    $region50: #{_forward_core.3} parent=5 // pred_check_branch
      %3638 = sbr.rel (%p3636) target = $region52
    $region51: #{_forward_core.3} parent=5 // pred_region
      %s3639 = ssub.s32 %s12, 2
      // Predicated region
      $region53: #{_forward_core.3} parent=51 // pred_check
        %p3640 = pneg %p187
      $region54: #{_forward_core.3} parent=51 // pred_check_branch
        %3642 = sbr.rel (%p3640) target = $region56
      $region55: #{_forward_core.3} parent=51 // pred_region
        %p3643 = scmp.lt.s32.totalorder %s18, 1
        %s3644 = scalar_select %p3643, %s18, 1
        %s3645 = smul.addr %s3644, 8
        %s3646 = scalar_lea.vmem %s6, %s3645
      $region56: #{_forward_core.3} parent=51 // pred_fallthru
        _
    $region52: #{_forward_core.3} parent=5 // pred_fallthru
      _
  $region6: #{_forward_core.3} parent=0 // loop_footer
    %s16 = sadd.s32 1, %s12
  $region7: #{_forward_core.3} parent=0 // loop_footer_branch
    %11 = sbr.rel target = $region3
  $region8: #{_forward_core.3} parent=0 // loop_exit
    _

// kernel: _forward_core.2
$region0: #{_forward_core.2}
  #allocation0 [shape = 'u32[]', space=smem, size = 0x4, offset = 0x4, fixed_abs, tag = 'smem constant byte address 0x4 - core index']
  #allocation1 [shape = 'u32[72,128]{1,0:T(1,128)}', space=vmem, size = 0x9000, scoped, tag = 'internal scratch']
  #allocation2 [shape = 'f32[8,8,64]{2,1,0:T(8,128)}', space=vmem, size = 0x8000, scoped, tag = 'scratch operand']
  #allocation3 [shape = 'f32[8,8,64]{2,1,0:T(8,128)}', space=vmem, size = 0x8000, scoped, tag = 'scratch operand']
  %s0 = inlined_call_operand.vmem [shape: f32[8,8,512], index: 0, kind: input, shape index: {}]
  %s1 = inlined_call_operand.vmem [shape: f32[8,8,1], index: 1, kind: input, shape index: {}]
  %s2 = inlined_call_operand.vmem [shape: f32[64,256], index: 2, kind: input, shape index: {}]
  %s3 = inlined_call_operand.vmem [shape: f32[64,256], index: 3, kind: input, shape index: {}]
  %s4 = inlined_call_operand.vmem [shape: f32[8,8,128], index: 4, kind: output, shape index: {}]
  %s5 = sld [smem:[#allocation0]]
  $region26: #{_forward_core.2} parent=0
    _
  %s7 = ssub.s32 1, %s5
  %s8 = scalar_select 0, %s7, %s5
  // Predicated region
  $region2: #{_forward_core.2} parent=0 // pred_check
    _
  $region3: #{_forward_core.2} parent=0 // pred_check_branch
    %10 = sbr.rel (0) target = $region5
  $region4: #{_forward_core.2} parent=0 // pred_region
    _
  $region5: #{_forward_core.2} parent=0 // pred_fallthru
    _
  // Predicated region
  $region6: #{_forward_core.2} parent=0 // pred_check
    _
  $region7: #{_forward_core.2} parent=0 // pred_check_branch
    %12 = sbr.rel (0) target = $region9
  $region8: #{_forward_core.2} parent=0 // pred_region
    _
  $region9: #{_forward_core.2} parent=0 // pred_fallthru
    _
  // Predicated region
  $region10: #{_forward_core.2} parent=0 // pred_check
    _
  $region11: #{_forward_core.2} parent=0 // pred_check_branch
    %14 = sbr.rel (0) target = $region13
  $region12: #{_forward_core.2} parent=0 // pred_region
    _
  $region13: #{_forward_core.2} parent=0 // pred_fallthru
    _
  // Predicated region
  $region14: #{_forward_core.2} parent=0 // pred_check
    _
  $region15: #{_forward_core.2} parent=0 // pred_check_branch
    %16 = sbr.rel (0) target = $region17
  $region16: #{_forward_core.2} parent=0 // pred_region
    _
  $region17: #{_forward_core.2} parent=0 // pred_fallthru
    _
  %v17 = vld [vmem:[%s0] sm:$0xff]
  %v18 = vld [vmem:[%s0 + $0x8] sm:$0xff]
  %s19 = scalar_lea.vmem %s0, 224
  %v20 = vld [vmem:[%s19 + $0x10] sm:$0xff]
  %v21 = vld [vmem:[%s19 + $0x18] sm:$0xff]
  %v22 = vld [vmem:[%s1] sm:$0xff]
  %s23 = scalar_lea.vmem %s1, 56
  %v24 = vld [vmem:[%s23] sm:$0xff]
  %v25 = vld [vmem:[%s2] sm:$0xff]
  %v26 = vld [vmem:[%s2 + $0x8] sm:$0xff]
  %v27 = vld [vmem:[%s2 + $0x10] sm:$0xff]
  %v28 = vld [vmem:[%s2 + $0x18] sm:$0xff]
  %v29 = vld [vmem:[%s2 + $0x20] sm:$0xff]
  %v30 = vld [vmem:[%s2 + $0x28] sm:$0xff]
  %v31 = vld [vmem:[%s2 + $0x30] sm:$0xff]
  %v32 = vld [vmem:[%s2 + $0x38] sm:$0xff]
  %v33 = vld [vmem:[%s2 + $0x40] sm:$0xff]
  %v34 = vld [vmem:[%s2 + $0x48] sm:$0xff]
  %v35 = vld [vmem:[%s2 + $0x50] sm:$0xff]
  %v36 = vld [vmem:[%s2 + $0x58] sm:$0xff]
  %v37 = vld [vmem:[%s2 + $0x60] sm:$0xff]
  %v38 = vld [vmem:[%s2 + $0x68] sm:$0xff]
  %v39 = vld [vmem:[%s2 + $0x70] sm:$0xff]
  %v40 = vld [vmem:[%s2 + $0x78] sm:$0xff]
  %vm41 = vcmask 523264
  %v43 = vsel %vm41, 0.0, 0
  %45 = vmatpush.msra.mxu0 0.0
  %46 = vmatpush.msra.mxu0 0.0
  %47 = vmatpush.msra.mxu0 0.0
  %48 = vmatpush.msra.mxu0 0.0
  %49 = vmatpush.msra.mxu0 0.0
  %50 = vmatpush.msra.mxu0 0.0
  %51 = vmatpush.msra.mxu0 0.0
  %52 = vmatpush.msra.mxu0 0.0
  %53 = vmatpush.msra.mxu0 %v39
  %54 = vmatpush.msra.mxu0 %v37
  %55 = vmatpush.msra.mxu0 %v35
  %56 = vmatpush.msra.mxu0 %v33
  %57 = vmatpush.msra.mxu0 %v31
  %58 = vmatpush.msra.mxu0 %v29
  %59 = vmatpush.msra.mxu0 %v27
  %60 = vmatpush.msra.mxu0 %v25
  %61 = vmatmul.f32.gmra.mxu0 %v43
  %v62 = vpop.f32.mrf.mxu0
  %v63 = vadd.f32 0.0, %v62
  %64 = vdwg.mxu0
  %65 = vmatpush.msra.mxu0 0.0
  %66 = vmatpush.msra.mxu0 0.0
  %67 = vmatpush.msra.mxu0 0.0
  %68 = vmatpush.msra.mxu0 0.0
  %69 = vmatpush.msra.mxu0 0.0
  %70 = vmatpush.msra.mxu0 0.0
  %71 = vmatpush.msra.mxu0 0.0
  %72 = vmatpush.msra.mxu0 0.0
  %73 = vmatpush.msra.mxu0 %v40
  %74 = vmatpush.msra.mxu0 %v38
  %75 = vmatpush.msra.mxu0 %v36
  %76 = vmatpush.msra.mxu0 %v34
  %77 = vmatpush.msra.mxu0 %v32
  %78 = vmatpush.msra.mxu0 %v30
  %79 = vmatpush.msra.mxu0 %v28
  %80 = vmatpush.msra.mxu0 %v26
  %81 = vmatmul.f32.gmra.mxu0 %v43
  %v82 = vpop.f32.mrf.mxu0
  %v83 = vadd.f32 0.0, %v82
  %84 = vdwg.mxu0
  %v85 = vadd.f32 %v17, %v63
  %v86 = vadd.f32 %v18, %v83
  %v87 = vld [vmem:[%s3] sm:$0xff]
  %v88 = vld [vmem:[%s3 + $0x8] sm:$0xff]
  %v89 = vld [vmem:[%s3 + $0x10] sm:$0xff]
  %v90 = vld [vmem:[%s3 + $0x18] sm:$0xff]
  %v91 = vld [vmem:[%s3 + $0x20] sm:$0xff]
  %v92 = vld [vmem:[%s3 + $0x28] sm:$0xff]
  %v93 = vld [vmem:[%s3 + $0x30] sm:$0xff]
  %v94 = vld [vmem:[%s3 + $0x38] sm:$0xff]
  %v95 = vld [vmem:[%s3 + $0x40] sm:$0xff]
  %v96 = vld [vmem:[%s3 + $0x48] sm:$0xff]
  %v97 = vld [vmem:[%s3 + $0x50] sm:$0xff]
  %v98 = vld [vmem:[%s3 + $0x58] sm:$0xff]
  %v99 = vld [vmem:[%s3 + $0x60] sm:$0xff]
  %v100 = vld [vmem:[%s3 + $0x68] sm:$0xff]
  %v101 = vld [vmem:[%s3 + $0x70] sm:$0xff]
  %v102 = vld [vmem:[%s3 + $0x78] sm:$0xff]
  %103 = vmatpush.msra.mxu0 0.0
  %104 = vmatpush.msra.mxu0 0.0
  %105 = vmatpush.msra.mxu0 0.0
  %106 = vmatpush.msra.mxu0 0.0
  %107 = vmatpush.msra.mxu0 0.0
  %108 = vmatpush.msra.mxu0 0.0
  %109 = vmatpush.msra.mxu0 0.0
  %110 = vmatpush.msra.mxu0 0.0
  %111 = vmatpush.msra.mxu0 %v101
  %112 = vmatpush.msra.mxu0 %v99
  %113 = vmatpush.msra.mxu0 %v97
  %114 = vmatpush.msra.mxu0 %v95
  %115 = vmatpush.msra.mxu0 %v93
  %116 = vmatpush.msra.mxu0 %v91
  %117 = vmatpush.msra.mxu0 %v89
  %118 = vmatpush.msra.mxu0 %v87
  %119 = vmatmul.f32.gmra.mxu0 %v43
  %v120 = vpop.f32.mrf.mxu0
  %v121 = vadd.f32 0.0, %v120
  %122 = vdwg.mxu0
  %123 = vmatpush.msra.mxu0 0.0
  %124 = vmatpush.msra.mxu0 0.0
  %125 = vmatpush.msra.mxu0 0.0
  %126 = vmatpush.msra.mxu0 0.0
  %127 = vmatpush.msra.mxu0 0.0
  %128 = vmatpush.msra.mxu0 0.0
  %129 = vmatpush.msra.mxu0 0.0
  %130 = vmatpush.msra.mxu0 0.0
  %131 = vmatpush.msra.mxu0 %v102
  %132 = vmatpush.msra.mxu0 %v100
  %133 = vmatpush.msra.mxu0 %v98
  %134 = vmatpush.msra.mxu0 %v96
  %135 = vmatpush.msra.mxu0 %v94
  %136 = vmatpush.msra.mxu0 %v92
  %137 = vmatpush.msra.mxu0 %v90
  %138 = vmatpush.msra.mxu0 %v88
  %139 = vmatmul.f32.gmra.mxu0 %v43
  %v140 = vpop.f32.mrf.mxu0
  %v141 = vadd.f32 0.0, %v140
  %142 = vdwg.mxu0
  %v143 = vadd.f32 %v20, %v121
  %v144 = vadd.f32 %v21, %v141
  %v145 = vxor.u32 %v85, 2147483648
  %v146 = vmul.f32 %v145, 1.442695
  %v147 = vpow.pop %v146
  %v148 = vadd.f32 %v147, 1.0
  %v149 = vrcp.pop %v148
  %v150 = vmul.f32 %v148, %v149
  %v151 = vsub.f32 1.0, %v150
  %v152 = vmul.f32 %v149, %v151
  %v153 = vadd.f32 %v149, %v152
  %vm154 = vweird.f32 %v148
  %vm155 = vweird.f32 %v149
  %vm156 = vmor %vm154, %vm155
  %v157 = vsel %vm156, %v149, %v153
  %v158 = vand.u32 2147483647, %v148
  %vm159 = vcmp.eq.f32.partialorder %v158, 8.507059e+37
  %v160 = vand.u32 %v148, 2147483648
  %v161 = vor.u32 1.1754944e-38, %v160
  %v162 = vsel %vm159, %v161, %v157
  %v163 = vmul.f32 1.0, %v162
  %v164 = vtanh.pop %v86
  %v165 = vxor.u32 %v86, 2147483648
  %v166 = vmul.f32 %v165, 1.442695
  %v167 = vpow.pop %v166
  %v168 = vadd.f32 %v167, 1.0
  %v169 = vrcp.pop %v168
  %v170 = vmul.f32 %v168, %v169
  %v171 = vsub.f32 1.0, %v170
  %v172 = vmul.f32 %v169, %v171
  %v173 = vadd.f32 %v169, %v172
  %vm174 = vweird.f32 %v168
  %vm175 = vweird.f32 %v169
  %vm176 = vmor %vm174, %vm175
  %v177 = vsel %vm176, %v169, %v173
  %v178 = vand.u32 2147483647, %v168
  %vm179 = vcmp.eq.f32.partialorder %v178, 8.507059e+37
  %v180 = vand.u32 %v168, 2147483648
  %v181 = vor.u32 1.1754944e-38, %v180
  %v182 = vsel %vm179, %v181, %v177
  %v183 = vmul.f32 1.0, %v182
  %v184 = vmul.f32 %v163, 0.0
  %v185 = vmul.f32 %v163, %v164
  %187 = vrot.lane.b32.xlu0 %v185, 64
  %v188 = vpop.permute.xlu0 %187
  %v190 = vadd.f32 %v184, %v188
  %v191 = vtanh.pop %v190
  %v192 = vmul.f32 %v183, %v191
  %194 = vset.pattern.permute.xlu0 0
  %195 = vperm.xlu0 %194, %v22
  %v196 = vpop.permute.xlu0 %195
  %v198 = vmul.f32 %v196, %v190
  %v199 = vsub.f32 1.0, %v22
  %201 = vset.pattern.permute.xlu0 0
  %202 = vperm.xlu0 %201, %v199
  %v203 = vpop.permute.xlu0 %202
  %v205 = vmul.f32 %v203, 0.0
  %v206 = vadd.f32 %v198, %v205
  %v207 = vmul.f32 %v196, %v192
  %v208 = vadd.f32 %v207, %v205
  %v209 = vxor.u32 %v143, 2147483648
  %v210 = vmul.f32 %v209, 1.442695
  %v211 = vpow.pop %v210
  %v212 = vadd.f32 %v211, 1.0
  %v213 = vrcp.pop %v212
  %v214 = vmul.f32 %v212, %v213
  %v215 = vsub.f32 1.0, %v214
  %v216 = vmul.f32 %v213, %v215
  %v217 = vadd.f32 %v213, %v216
  %vm218 = vweird.f32 %v212
  %vm219 = vweird.f32 %v213
  %vm220 = vmor %vm218, %vm219
  %v221 = vsel %vm220, %v213, %v217
  %v222 = vand.u32 2147483647, %v212
  %vm223 = vcmp.eq.f32.partialorder %v222, 8.507059e+37
  %v224 = vand.u32 %v212, 2147483648
  %v225 = vor.u32 1.1754944e-38, %v224
  %v226 = vsel %vm223, %v225, %v221
  %v227 = vmul.f32 1.0, %v226
  %v228 = vtanh.pop %v144
  %v229 = vxor.u32 %v144, 2147483648
  %v230 = vmul.f32 %v229, 1.442695
  %v231 = vpow.pop %v230
  %v232 = vadd.f32 %v231, 1.0
  %v233 = vrcp.pop %v232
  %v234 = vmul.f32 %v232, %v233
  %v235 = vsub.f32 1.0, %v234
  %v236 = vmul.f32 %v233, %v235
  %v237 = vadd.f32 %v233, %v236
  %vm238 = vweird.f32 %v232
  %vm239 = vweird.f32 %v233
  %vm240 = vmor %vm238, %vm239
  %v241 = vsel %vm240, %v233, %v237
  %v242 = vand.u32 2147483647, %v232
  %vm243 = vcmp.eq.f32.partialorder %v242, 8.507059e+37
  %v244 = vand.u32 %v232, 2147483648
  %v245 = vor.u32 1.1754944e-38, %v244
  %v246 = vsel %vm243, %v245, %v241
  %v247 = vmul.f32 1.0, %v246
  %v248 = vmul.f32 %v227, 0.0
  %v249 = vmul.f32 %v227, %v228
  %251 = vrot.lane.b32.xlu0 %v249, 64
  %v252 = vpop.permute.xlu0 %251
  %v254 = vadd.f32 %v248, %v252
  %v255 = vtanh.pop %v254
  %v256 = vmul.f32 %v247, %v255
  %258 = vset.pattern.permute.xlu0 0
  %259 = vperm.xlu0 %258, %v24
  %v260 = vpop.permute.xlu0 %259
  %v262 = vmul.f32 %v260, %v254
  %v263 = vsub.f32 1.0, %v24
  %265 = vset.pattern.permute.xlu0 0
  %266 = vperm.xlu0 %265, %v263
  %v267 = vpop.permute.xlu0 %266
  %v269 = vmul.f32 %v267, 0.0
  %v270 = vadd.f32 %v262, %v269
  %v271 = vmul.f32 %v260, %v256
  %v272 = vadd.f32 %v271, %v269
  %274 = vrot.lane.b32.xlu0 %v208, 64
  %v275 = vpop.permute.xlu0 %274
  %277 = vst.msk [vmem:[#allocation2] sm:$0xff] %vm41, %v275
  %279 = vrot.lane.b32.xlu0 %v272, 64
  %v280 = vpop.permute.xlu0 %279
  %s282 = scalar_lea.vmem [#allocation3], 56
  %283 = vst.msk [vmem:[%s282] sm:$0xff] %vm41, %v280
  %s284 = scalar_lea.vmem %s0, 32
  %v285 = vld [vmem:[%s284] sm:$0xff]
  %v286 = vld [vmem:[%s284 + $0x8] sm:$0xff]
  %s287 = scalar_lea.vmem %s0, 192
  %v288 = vld [vmem:[%s287 + $0x10] sm:$0xff]
  %v289 = vld [vmem:[%s287 + $0x18] sm:$0xff]
  %s290 = scalar_lea.vmem %s1, 8
  %v291 = vld [vmem:[%s290] sm:$0xff]
  %s292 = scalar_lea.vmem %s1, 48
  %v293 = vld [vmem:[%s292] sm:$0xff]
  %v294 = vld [vmem:[%s2] sm:$0xff]
  %v295 = vld [vmem:[%s2 + $0x8] sm:$0xff]
  %v296 = vld [vmem:[%s2 + $0x10] sm:$0xff]
  %v297 = vld [vmem:[%s2 + $0x18] sm:$0xff]
  %v298 = vld [vmem:[%s2 + $0x20] sm:$0xff]
  %v299 = vld [vmem:[%s2 + $0x28] sm:$0xff]
  %v300 = vld [vmem:[%s2 + $0x30] sm:$0xff]
  %v301 = vld [vmem:[%s2 + $0x38] sm:$0xff]
  %v302 = vld [vmem:[%s2 + $0x40] sm:$0xff]
  %v303 = vld [vmem:[%s2 + $0x48] sm:$0xff]
  %v304 = vld [vmem:[%s2 + $0x50] sm:$0xff]
  %v305 = vld [vmem:[%s2 + $0x58] sm:$0xff]
  %v306 = vld [vmem:[%s2 + $0x60] sm:$0xff]
  %v307 = vld [vmem:[%s2 + $0x68] sm:$0xff]
  %v308 = vld [vmem:[%s2 + $0x70] sm:$0xff]
  %v309 = vld [vmem:[%s2 + $0x78] sm:$0xff]
  %v310 = vsel %vm41, %v275, 0
  %312 = vmatpush.msra.mxu0 0.0
  %313 = vmatpush.msra.mxu0 0.0
  %314 = vmatpush.msra.mxu0 0.0
  %315 = vmatpush.msra.mxu0 0.0
  %316 = vmatpush.msra.mxu0 0.0
  %317 = vmatpush.msra.mxu0 0.0
  %318 = vmatpush.msra.mxu0 0.0
  %319 = vmatpush.msra.mxu0 0.0
  %320 = vmatpush.msra.mxu0 %v308
  %321 = vmatpush.msra.mxu0 %v306
  %322 = vmatpush.msra.mxu0 %v304
  %323 = vmatpush.msra.mxu0 %v302
  %324 = vmatpush.msra.mxu0 %v300
  %325 = vmatpush.msra.mxu0 %v298
  %326 = vmatpush.msra.mxu0 %v296
  %327 = vmatpush.msra.mxu0 %v294
  %328 = vmatmul.f32.gmra.mxu0 %v310
  %v329 = vpop.f32.mrf.mxu0
  %v330 = vadd.f32 0.0, %v329
  %331 = vdwg.mxu0
  %332 = vmatpush.msra.mxu0 0.0
  %333 = vmatpush.msra.mxu0 0.0
  %334 = vmatpush.msra.mxu0 0.0
  %335 = vmatpush.msra.mxu0 0.0
  %336 = vmatpush.msra.mxu0 0.0
  %337 = vmatpush.msra.mxu0 0.0
  %338 = vmatpush.msra.mxu0 0.0
  %339 = vmatpush.msra.mxu0 0.0
  %340 = vmatpush.msra.mxu0 %v309
  %341 = vmatpush.msra.mxu0 %v307
  %342 = vmatpush.msra.mxu0 %v305
  %343 = vmatpush.msra.mxu0 %v303
  %344 = vmatpush.msra.mxu0 %v301
  %345 = vmatpush.msra.mxu0 %v299
  %346 = vmatpush.msra.mxu0 %v297
  %347 = vmatpush.msra.mxu0 %v295
  %348 = vmatmul.f32.gmra.mxu0 %v310
  %v349 = vpop.f32.mrf.mxu0
  %v350 = vadd.f32 0.0, %v349
  %351 = vdwg.mxu0
  %v352 = vadd.f32 %v285, %v330
  %v353 = vadd.f32 %v286, %v350
  %v354 = vld [vmem:[%s3] sm:$0xff]
  %v355 = vld [vmem:[%s3 + $0x8] sm:$0xff]
  %v356 = vld [vmem:[%s3 + $0x10] sm:$0xff]
  %v357 = vld [vmem:[%s3 + $0x18] sm:$0xff]
  %v358 = vld [vmem:[%s3 + $0x20] sm:$0xff]
  %v359 = vld [vmem:[%s3 + $0x28] sm:$0xff]
  %v360 = vld [vmem:[%s3 + $0x30] sm:$0xff]
  %v361 = vld [vmem:[%s3 + $0x38] sm:$0xff]
  %v362 = vld [vmem:[%s3 + $0x40] sm:$0xff]
  %v363 = vld [vmem:[%s3 + $0x48] sm:$0xff]
  %v364 = vld [vmem:[%s3 + $0x50] sm:$0xff]
  %v365 = vld [vmem:[%s3 + $0x58] sm:$0xff]
  %v366 = vld [vmem:[%s3 + $0x60] sm:$0xff]
  %v367 = vld [vmem:[%s3 + $0x68] sm:$0xff]
  %v368 = vld [vmem:[%s3 + $0x70] sm:$0xff]
  %v369 = vld [vmem:[%s3 + $0x78] sm:$0xff]
  %v370 = vsel %vm41, %v280, 0
  %372 = vmatpush.msra.mxu0 0.0
  %373 = vmatpush.msra.mxu0 0.0
  %374 = vmatpush.msra.mxu0 0.0
  %375 = vmatpush.msra.mxu0 0.0
  %376 = vmatpush.msra.mxu0 0.0
  %377 = vmatpush.msra.mxu0 0.0
  %378 = vmatpush.msra.mxu0 0.0
  %379 = vmatpush.msra.mxu0 0.0
  %380 = vmatpush.msra.mxu0 %v368
  %381 = vmatpush.msra.mxu0 %v366
  %382 = vmatpush.msra.mxu0 %v364
  %383 = vmatpush.msra.mxu0 %v362
  %384 = vmatpush.msra.mxu0 %v360
  %385 = vmatpush.msra.mxu0 %v358
  %386 = vmatpush.msra.mxu0 %v356
  %387 = vmatpush.msra.mxu0 %v354
  %388 = vmatmul.f32.gmra.mxu0 %v370
  %v389 = vpop.f32.mrf.mxu0
  %v390 = vadd.f32 0.0, %v389
  %391 = vdwg.mxu0
  %392 = vmatpush.msra.mxu0 0.0
  %393 = vmatpush.msra.mxu0 0.0
  %394 = vmatpush.msra.mxu0 0.0
  %395 = vmatpush.msra.mxu0 0.0
  %396 = vmatpush.msra.mxu0 0.0
  %397 = vmatpush.msra.mxu0 0.0
  %398 = vmatpush.msra.mxu0 0.0
  %399 = vmatpush.msra.mxu0 0.0
  %400 = vmatpush.msra.mxu0 %v369
  %401 = vmatpush.msra.mxu0 %v367
  %402 = vmatpush.msra.mxu0 %v365
  %403 = vmatpush.msra.mxu0 %v363
  %404 = vmatpush.msra.mxu0 %v361
  %405 = vmatpush.msra.mxu0 %v359
  %406 = vmatpush.msra.mxu0 %v357
  %407 = vmatpush.msra.mxu0 %v355
  %408 = vmatmul.f32.gmra.mxu0 %v370
  %v409 = vpop.f32.mrf.mxu0
  %v410 = vadd.f32 0.0, %v409
  %411 = vdwg.mxu0
  %v412 = vadd.f32 %v288, %v390
  %v413 = vadd.f32 %v289, %v410
  %v414 = vxor.u32 %v352, 2147483648
  %v415 = vmul.f32 %v414, 1.442695
  %v416 = vpow.pop %v415
  %v417 = vadd.f32 %v416, 1.0
  %v418 = vrcp.pop %v417
  %v419 = vmul.f32 %v417, %v418
  %v420 = vsub.f32 1.0, %v419
  %v421 = vmul.f32 %v418, %v420
  %v422 = vadd.f32 %v418, %v421
  %vm423 = vweird.f32 %v417
  %vm424 = vweird.f32 %v418
  %vm425 = vmor %vm423, %vm424
  %v426 = vsel %vm425, %v418, %v422
  %v427 = vand.u32 2147483647, %v417
  %vm428 = vcmp.eq.f32.partialorder %v427, 8.507059e+37
  %v429 = vand.u32 %v417, 2147483648
  %v430 = vor.u32 1.1754944e-38, %v429
  %v431 = vsel %vm428, %v430, %v426
  %v432 = vmul.f32 1.0, %v431
  %v433 = vtanh.pop %v353
  %v434 = vxor.u32 %v353, 2147483648
  %v435 = vmul.f32 %v434, 1.442695
  %v436 = vpow.pop %v435
  %v437 = vadd.f32 %v436, 1.0
  %v438 = vrcp.pop %v437
  %v439 = vmul.f32 %v437, %v438
  %v440 = vsub.f32 1.0, %v439
  %v441 = vmul.f32 %v438, %v440
  %v442 = vadd.f32 %v438, %v441
  %vm443 = vweird.f32 %v437
  %vm444 = vweird.f32 %v438
  %vm445 = vmor %vm443, %vm444
  %v446 = vsel %vm445, %v438, %v442
  %v447 = vand.u32 2147483647, %v437
  %vm448 = vcmp.eq.f32.partialorder %v447, 8.507059e+37
  %v449 = vand.u32 %v437, 2147483648
  %v450 = vor.u32 1.1754944e-38, %v449
  %v451 = vsel %vm448, %v450, %v446
  %v452 = vmul.f32 1.0, %v451
  %v453 = vmul.f32 %v432, %v206
  %v454 = vmul.f32 %v432, %v433
  %456 = vrot.lane.b32.xlu0 %v454, 64
  %v457 = vpop.permute.xlu0 %456
  %v459 = vadd.f32 %v453, %v457
  %v460 = vtanh.pop %v459
  %v461 = vmul.f32 %v452, %v460
  %463 = vset.pattern.permute.xlu0 0
  %464 = vperm.xlu0 %463, %v291
  %v465 = vpop.permute.xlu0 %464
  %v467 = vmul.f32 %v465, %v459
  %v468 = vsub.f32 1.0, %v291
  %470 = vset.pattern.permute.xlu0 0
  %471 = vperm.xlu0 %470, %v468
  %v472 = vpop.permute.xlu0 %471
  %v474 = vmul.f32 %v472, %v206
  %v475 = vadd.f32 %v467, %v474
  %v476 = vmul.f32 %v465, %v461
  %v477 = vmul.f32 %v472, %v208
  %v478 = vadd.f32 %v476, %v477
  %v479 = vxor.u32 %v412, 2147483648
  %v480 = vmul.f32 %v479, 1.442695
  %v481 = vpow.pop %v480
  %v482 = vadd.f32 %v481, 1.0
  %v483 = vrcp.pop %v482
  %v484 = vmul.f32 %v482, %v483
  %v485 = vsub.f32 1.0, %v484
  %v486 = vmul.f32 %v483, %v485
  %v487 = vadd.f32 %v483, %v486
  %vm488 = vweird.f32 %v482
  %vm489 = vweird.f32 %v483
  %vm490 = vmor %vm488, %vm489
  %v491 = vsel %vm490, %v483, %v487
  %v492 = vand.u32 2147483647, %v482
  %vm493 = vcmp.eq.f32.partialorder %v492, 8.507059e+37
  %v494 = vand.u32 %v482, 2147483648
  %v495 = vor.u32 1.1754944e-38, %v494
  %v496 = vsel %vm493, %v495, %v491
  %v497 = vmul.f32 1.0, %v496
  %v498 = vtanh.pop %v413
  %v499 = vxor.u32 %v413, 2147483648
  %v500 = vmul.f32 %v499, 1.442695
  %v501 = vpow.pop %v500
  %v502 = vadd.f32 %v501, 1.0
  %v503 = vrcp.pop %v502
  %v504 = vmul.f32 %v502, %v503
  %v505 = vsub.f32 1.0, %v504
  %v506 = vmul.f32 %v503, %v505
  %v507 = vadd.f32 %v503, %v506
  %vm508 = vweird.f32 %v502
  %vm509 = vweird.f32 %v503
  %vm510 = vmor %vm508, %vm509
  %v511 = vsel %vm510, %v503, %v507
  %v512 = vand.u32 2147483647, %v502
  %vm513 = vcmp.eq.f32.partialorder %v512, 8.507059e+37
  %v514 = vand.u32 %v502, 2147483648
  %v515 = vor.u32 1.1754944e-38, %v514
  %v516 = vsel %vm513, %v515, %v511
  %v517 = vmul.f32 1.0, %v516
  %v518 = vmul.f32 %v497, %v270
  %v519 = vmul.f32 %v497, %v498
  %521 = vrot.lane.b32.xlu0 %v519, 64
  %v522 = vpop.permute.xlu0 %521
  %v524 = vadd.f32 %v518, %v522
  %v525 = vtanh.pop %v524
  %v526 = vmul.f32 %v517, %v525
  %528 = vset.pattern.permute.xlu0 0
  %529 = vperm.xlu0 %528, %v293
  %v530 = vpop.permute.xlu0 %529
  %v532 = vmul.f32 %v530, %v524
  %v533 = vsub.f32 1.0, %v293
  %535 = vset.pattern.permute.xlu0 0
  %536 = vperm.xlu0 %535, %v533
  %v537 = vpop.permute.xlu0 %536
  %v539 = vmul.f32 %v537, %v270
  %v540 = vadd.f32 %v532, %v539
  %v541 = vmul.f32 %v530, %v526
  %v542 = vmul.f32 %v537, %v272
  %v543 = vadd.f32 %v541, %v542
  %545 = vrot.lane.b32.xlu0 %v478, 64
  %v546 = vpop.permute.xlu0 %545
  %s548 = scalar_lea.vmem [#allocation2], 8
  %549 = vst.msk [vmem:[%s548] sm:$0xff] %vm41, %v546
  %551 = vrot.lane.b32.xlu0 %v543, 64
  %v552 = vpop.permute.xlu0 %551
  %s554 = scalar_lea.vmem [#allocation3], 48
  %555 = vst.msk [vmem:[%s554] sm:$0xff] %vm41, %v552
  %s556 = scalar_lea.vmem %s0, 64
  %v557 = vld [vmem:[%s556] sm:$0xff]
  %v558 = vld [vmem:[%s556 + $0x8] sm:$0xff]
  %s559 = scalar_lea.vmem %s0, 160
  %v560 = vld [vmem:[%s559 + $0x10] sm:$0xff]
  %v561 = vld [vmem:[%s559 + $0x18] sm:$0xff]
  %s562 = scalar_lea.vmem %s1, 16
  %v563 = vld [vmem:[%s562] sm:$0xff]
  %s564 = scalar_lea.vmem %s1, 40
  %v565 = vld [vmem:[%s564] sm:$0xff]
  %v566 = vld [vmem:[%s2] sm:$0xff]
  %v567 = vld [vmem:[%s2 + $0x8] sm:$0xff]
  %v568 = vld [vmem:[%s2 + $0x10] sm:$0xff]
  %v569 = vld [vmem:[%s2 + $0x18] sm:$0xff]
  %v570 = vld [vmem:[%s2 + $0x20] sm:$0xff]
  %v571 = vld [vmem:[%s2 + $0x28] sm:$0xff]
  %v572 = vld [vmem:[%s2 + $0x30] sm:$0xff]
  %v573 = vld [vmem:[%s2 + $0x38] sm:$0xff]
  %v574 = vld [vmem:[%s2 + $0x40] sm:$0xff]
  %v575 = vld [vmem:[%s2 + $0x48] sm:$0xff]
  %v576 = vld [vmem:[%s2 + $0x50] sm:$0xff]
  %v577 = vld [vmem:[%s2 + $0x58] sm:$0xff]
  %v578 = vld [vmem:[%s2 + $0x60] sm:$0xff]
  %v579 = vld [vmem:[%s2 + $0x68] sm:$0xff]
  %v580 = vld [vmem:[%s2 + $0x70] sm:$0xff]
  %v581 = vld [vmem:[%s2 + $0x78] sm:$0xff]
  %v582 = vsel %vm41, %v546, 0
  %584 = vmatpush.msra.mxu0 0.0
  %585 = vmatpush.msra.mxu0 0.0
  %586 = vmatpush.msra.mxu0 0.0
  %587 = vmatpush.msra.mxu0 0.0
  %588 = vmatpush.msra.mxu0 0.0
  %589 = vmatpush.msra.mxu0 0.0
  %590 = vmatpush.msra.mxu0 0.0
  %591 = vmatpush.msra.mxu0 0.0
  %592 = vmatpush.msra.mxu0 %v580
  %593 = vmatpush.msra.mxu0 %v578
  %594 = vmatpush.msra.mxu0 %v576
  %595 = vmatpush.msra.mxu0 %v574
  %596 = vmatpush.msra.mxu0 %v572
  %597 = vmatpush.msra.mxu0 %v570
  %598 = vmatpush.msra.mxu0 %v568
  %599 = vmatpush.msra.mxu0 %v566
  %600 = vmatmul.f32.gmra.mxu0 %v582
  %v601 = vpop.f32.mrf.mxu0
  %v602 = vadd.f32 0.0, %v601
  %603 = vdwg.mxu0
  %604 = vmatpush.msra.mxu0 0.0
  %605 = vmatpush.msra.mxu0 0.0
  %606 = vmatpush.msra.mxu0 0.0
  %607 = vmatpush.msra.mxu0 0.0
  %608 = vmatpush.msra.mxu0 0.0
  %609 = vmatpush.msra.mxu0 0.0
  %610 = vmatpush.msra.mxu0 0.0
  %611 = vmatpush.msra.mxu0 0.0
  %612 = vmatpush.msra.mxu0 %v581
  %613 = vmatpush.msra.mxu0 %v579
  %614 = vmatpush.msra.mxu0 %v577
  %615 = vmatpush.msra.mxu0 %v575
  %616 = vmatpush.msra.mxu0 %v573
  %617 = vmatpush.msra.mxu0 %v571
  %618 = vmatpush.msra.mxu0 %v569
  %619 = vmatpush.msra.mxu0 %v567
  %620 = vmatmul.f32.gmra.mxu0 %v582
  %v621 = vpop.f32.mrf.mxu0
  %v622 = vadd.f32 0.0, %v621
  %623 = vdwg.mxu0
  %v624 = vadd.f32 %v557, %v602
  %v625 = vadd.f32 %v558, %v622
  %v626 = vld [vmem:[%s3] sm:$0xff]
  %v627 = vld [vmem:[%s3 + $0x8] sm:$0xff]
  %v628 = vld [vmem:[%s3 + $0x10] sm:$0xff]
  %v629 = vld [vmem:[%s3 + $0x18] sm:$0xff]
  %v630 = vld [vmem:[%s3 + $0x20] sm:$0xff]
  %v631 = vld [vmem:[%s3 + $0x28] sm:$0xff]
  %v632 = vld [vmem:[%s3 + $0x30] sm:$0xff]
  %v633 = vld [vmem:[%s3 + $0x38] sm:$0xff]
  %v634 = vld [vmem:[%s3 + $0x40] sm:$0xff]
  %v635 = vld [vmem:[%s3 + $0x48] sm:$0xff]
  %v636 = vld [vmem:[%s3 + $0x50] sm:$0xff]
  %v637 = vld [vmem:[%s3 + $0x58] sm:$0xff]
  %v638 = vld [vmem:[%s3 + $0x60] sm:$0xff]
  %v639 = vld [vmem:[%s3 + $0x68] sm:$0xff]
  %v640 = vld [vmem:[%s3 + $0x70] sm:$0xff]
  %v641 = vld [vmem:[%s3 + $0x78] sm:$0xff]
  %v642 = vsel %vm41, %v552, 0
  %644 = vmatpush.msra.mxu0 0.0
  %645 = vmatpush.msra.mxu0 0.0
  %646 = vmatpush.msra.mxu0 0.0
  %647 = vmatpush.msra.mxu0 0.0
  %648 = vmatpush.msra.mxu0 0.0
  %649 = vmatpush.msra.mxu0 0.0
  %650 = vmatpush.msra.mxu0 0.0
  %651 = vmatpush.msra.mxu0 0.0
  %652 = vmatpush.msra.mxu0 %v640
  %653 = vmatpush.msra.mxu0 %v638
  %654 = vmatpush.msra.mxu0 %v636
  %655 = vmatpush.msra.mxu0 %v634
  %656 = vmatpush.msra.mxu0 %v632
  %657 = vmatpush.msra.mxu0 %v630
  %658 = vmatpush.msra.mxu0 %v628
  %659 = vmatpush.msra.mxu0 %v626
  %660 = vmatmul.f32.gmra.mxu0 %v642
  %v661 = vpop.f32.mrf.mxu0
  %v662 = vadd.f32 0.0, %v661
  %663 = vdwg.mxu0
  %664 = vmatpush.msra.mxu0 0.0
  %665 = vmatpush.msra.mxu0 0.0
  %666 = vmatpush.msra.mxu0 0.0
  %667 = vmatpush.msra.mxu0 0.0
  %668 = vmatpush.msra.mxu0 0.0
  %669 = vmatpush.msra.mxu0 0.0
  %670 = vmatpush.msra.mxu0 0.0
  %671 = vmatpush.msra.mxu0 0.0
  %672 = vmatpush.msra.mxu0 %v641
  %673 = vmatpush.msra.mxu0 %v639
  %674 = vmatpush.msra.mxu0 %v637
  %675 = vmatpush.msra.mxu0 %v635
  %676 = vmatpush.msra.mxu0 %v633
  %677 = vmatpush.msra.mxu0 %v631
  %678 = vmatpush.msra.mxu0 %v629
  %679 = vmatpush.msra.mxu0 %v627
  %680 = vmatmul.f32.gmra.mxu0 %v642
  %v681 = vpop.f32.mrf.mxu0
  %v682 = vadd.f32 0.0, %v681
  %683 = vdwg.mxu0
  %v684 = vadd.f32 %v560, %v662
  %v685 = vadd.f32 %v561, %v682
  %v686 = vxor.u32 %v624, 2147483648
  %v687 = vmul.f32 %v686, 1.442695
  %v688 = vpow.pop %v687
  %v689 = vadd.f32 %v688, 1.0
  %v690 = vrcp.pop %v689
  %v691 = vmul.f32 %v689, %v690
  %v692 = vsub.f32 1.0, %v691
  %v693 = vmul.f32 %v690, %v692
  %v694 = vadd.f32 %v690, %v693
  %vm695 = vweird.f32 %v689
  %vm696 = vweird.f32 %v690
  %vm697 = vmor %vm695, %vm696
  %v698 = vsel %vm697, %v690, %v694
  %v699 = vand.u32 2147483647, %v689
  %vm700 = vcmp.eq.f32.partialorder %v699, 8.507059e+37
  %v701 = vand.u32 %v689, 2147483648
  %v702 = vor.u32 1.1754944e-38, %v701
  %v703 = vsel %vm700, %v702, %v698
  %v704 = vmul.f32 1.0, %v703
  %v705 = vtanh.pop %v625
  %v706 = vxor.u32 %v625, 2147483648
  %v707 = vmul.f32 %v706, 1.442695
  %v708 = vpow.pop %v707
  %v709 = vadd.f32 %v708, 1.0
  %v710 = vrcp.pop %v709
  %v711 = vmul.f32 %v709, %v710
  %v712 = vsub.f32 1.0, %v711
  %v713 = vmul.f32 %v710, %v712
  %v714 = vadd.f32 %v710, %v713
  %vm715 = vweird.f32 %v709
  %vm716 = vweird.f32 %v710
  %vm717 = vmor %vm715, %vm716
  %v718 = vsel %vm717, %v710, %v714
  %v719 = vand.u32 2147483647, %v709
  %vm720 = vcmp.eq.f32.partialorder %v719, 8.507059e+37
  %v721 = vand.u32 %v709, 2147483648
  %v722 = vor.u32 1.1754944e-38, %v721
  %v723 = vsel %vm720, %v722, %v718
  %v724 = vmul.f32 1.0, %v723
  %v725 = vmul.f32 %v704, %v475
  %v726 = vmul.f32 %v704, %v705
  %728 = vrot.lane.b32.xlu0 %v726, 64
  %v729 = vpop.permute.xlu0 %728
  %v731 = vadd.f32 %v725, %v729
  %v732 = vtanh.pop %v731
  %v733 = vmul.f32 %v724, %v732
  %735 = vset.pattern.permute.xlu0 0
  %736 = vperm.xlu0 %735, %v563
  %v737 = vpop.permute.xlu0 %736
  %v739 = vmul.f32 %v737, %v731
  %v740 = vsub.f32 1.0, %v563
  %742 = vset.pattern.permute.xlu0 0
  %743 = vperm.xlu0 %742, %v740
  %v744 = vpop.permute.xlu0 %743
  %v746 = vmul.f32 %v744, %v475
  %v747 = vadd.f32 %v739, %v746
  %v748 = vmul.f32 %v737, %v733
  %v749 = vmul.f32 %v744, %v478
  %v750 = vadd.f32 %v748, %v749
  %v751 = vxor.u32 %v684, 2147483648
  %v752 = vmul.f32 %v751, 1.442695
  %v753 = vpow.pop %v752
  %v754 = vadd.f32 %v753, 1.0
  %v755 = vrcp.pop %v754
  %v756 = vmul.f32 %v754, %v755
  %v757 = vsub.f32 1.0, %v756
  %v758 = vmul.f32 %v755, %v757
  %v759 = vadd.f32 %v755, %v758
  %vm760 = vweird.f32 %v754
  %vm761 = vweird.f32 %v755
  %vm762 = vmor %vm760, %vm761
  %v763 = vsel %vm762, %v755, %v759
  %v764 = vand.u32 2147483647, %v754
  %vm765 = vcmp.eq.f32.partialorder %v764, 8.507059e+37
  %v766 = vand.u32 %v754, 2147483648
  %v767 = vor.u32 1.1754944e-38, %v766
  %v768 = vsel %vm765, %v767, %v763
  %v769 = vmul.f32 1.0, %v768
  %v770 = vtanh.pop %v685
  %v771 = vxor.u32 %v685, 2147483648
  %v772 = vmul.f32 %v771, 1.442695
  %v773 = vpow.pop %v772
  %v774 = vadd.f32 %v773, 1.0
  %v775 = vrcp.pop %v774
  %v776 = vmul.f32 %v774, %v775
  %v777 = vsub.f32 1.0, %v776
  %v778 = vmul.f32 %v775, %v777
  %v779 = vadd.f32 %v775, %v778
  %vm780 = vweird.f32 %v774
  %vm781 = vweird.f32 %v775
  %vm782 = vmor %vm780, %vm781
  %v783 = vsel %vm782, %v775, %v779
  %v784 = vand.u32 2147483647, %v774
  %vm785 = vcmp.eq.f32.partialorder %v784, 8.507059e+37
  %v786 = vand.u32 %v774, 2147483648
  %v787 = vor.u32 1.1754944e-38, %v786
  %v788 = vsel %vm785, %v787, %v783
  %v789 = vmul.f32 1.0, %v788
  %v790 = vmul.f32 %v769, %v540
  %v791 = vmul.f32 %v769, %v770
  %793 = vrot.lane.b32.xlu0 %v791, 64
  %v794 = vpop.permute.xlu0 %793
  %v796 = vadd.f32 %v790, %v794
  %v797 = vtanh.pop %v796
  %v798 = vmul.f32 %v789, %v797
  %800 = vset.pattern.permute.xlu0 0
  %801 = vperm.xlu0 %800, %v565
  %v802 = vpop.permute.xlu0 %801
  %v804 = vmul.f32 %v802, %v796
  %v805 = vsub.f32 1.0, %v565
  %807 = vset.pattern.permute.xlu0 0
  %808 = vperm.xlu0 %807, %v805
  %v809 = vpop.permute.xlu0 %808
  %v811 = vmul.f32 %v809, %v540
  %v812 = vadd.f32 %v804, %v811
  %v813 = vmul.f32 %v802, %v798
  %v814 = vmul.f32 %v809, %v543
  %v815 = vadd.f32 %v813, %v814
  %817 = vrot.lane.b32.xlu0 %v750, 64
  %v818 = vpop.permute.xlu0 %817
  %s820 = scalar_lea.vmem [#allocation2], 16
  %821 = vst.msk [vmem:[%s820] sm:$0xff] %vm41, %v818
  %823 = vrot.lane.b32.xlu0 %v815, 64
  %v824 = vpop.permute.xlu0 %823
  %s826 = scalar_lea.vmem [#allocation3], 40
  %827 = vst.msk [vmem:[%s826] sm:$0xff] %vm41, %v824
  %s828 = scalar_lea.vmem %s0, 96
  %v829 = vld [vmem:[%s828] sm:$0xff]
  %v830 = vld [vmem:[%s828 + $0x8] sm:$0xff]
  %s831 = scalar_lea.vmem %s0, 128
  %v832 = vld [vmem:[%s831 + $0x10] sm:$0xff]
  %v833 = vld [vmem:[%s831 + $0x18] sm:$0xff]
  %s834 = scalar_lea.vmem %s1, 24
  %v835 = vld [vmem:[%s834] sm:$0xff]
  %s836 = scalar_lea.vmem %s1, 32
  %v837 = vld [vmem:[%s836] sm:$0xff]
  %v838 = vld [vmem:[%s2] sm:$0xff]
  %v839 = vld [vmem:[%s2 + $0x8] sm:$0xff]
  %v840 = vld [vmem:[%s2 + $0x10] sm:$0xff]
  %v841 = vld [vmem:[%s2 + $0x18] sm:$0xff]
  %v842 = vld [vmem:[%s2 + $0x20] sm:$0xff]
  %v843 = vld [vmem:[%s2 + $0x28] sm:$0xff]
  %v844 = vld [vmem:[%s2 + $0x30] sm:$0xff]
  %v845 = vld [vmem:[%s2 + $0x38] sm:$0xff]
  %v846 = vld [vmem:[%s2 + $0x40] sm:$0xff]
  %v847 = vld [vmem:[%s2 + $0x48] sm:$0xff]
  %v848 = vld [vmem:[%s2 + $0x50] sm:$0xff]
  %v849 = vld [vmem:[%s2 + $0x58] sm:$0xff]
  %v850 = vld [vmem:[%s2 + $0x60] sm:$0xff]
  %v851 = vld [vmem:[%s2 + $0x68] sm:$0xff]
  %v852 = vld [vmem:[%s2 + $0x70] sm:$0xff]
  %v853 = vld [vmem:[%s2 + $0x78] sm:$0xff]
  %v854 = vsel %vm41, %v818, 0
  %856 = vmatpush.msra.mxu0 0.0
  %857 = vmatpush.msra.mxu0 0.0
  %858 = vmatpush.msra.mxu0 0.0
  %859 = vmatpush.msra.mxu0 0.0
  %860 = vmatpush.msra.mxu0 0.0
  %861 = vmatpush.msra.mxu0 0.0
  %862 = vmatpush.msra.mxu0 0.0
  %863 = vmatpush.msra.mxu0 0.0
  %864 = vmatpush.msra.mxu0 %v852
  %865 = vmatpush.msra.mxu0 %v850
  %866 = vmatpush.msra.mxu0 %v848
  %867 = vmatpush.msra.mxu0 %v846
  %868 = vmatpush.msra.mxu0 %v844
  %869 = vmatpush.msra.mxu0 %v842
  %870 = vmatpush.msra.mxu0 %v840
  %871 = vmatpush.msra.mxu0 %v838
  %872 = vmatmul.f32.gmra.mxu0 %v854
  %v873 = vpop.f32.mrf.mxu0
  %v874 = vadd.f32 0.0, %v873
  %875 = vdwg.mxu0
  %876 = vmatpush.msra.mxu0 0.0
  %877 = vmatpush.msra.mxu0 0.0
  %878 = vmatpush.msra.mxu0 0.0
  %879 = vmatpush.msra.mxu0 0.0
  %880 = vmatpush.msra.mxu0 0.0
  %881 = vmatpush.msra.mxu0 0.0
  %882 = vmatpush.msra.mxu0 0.0
  %883 = vmatpush.msra.mxu0 0.0
  %884 = vmatpush.msra.mxu0 %v853
  %885 = vmatpush.msra.mxu0 %v851
  %886 = vmatpush.msra.mxu0 %v849
  %887 = vmatpush.msra.mxu0 %v847
  %888 = vmatpush.msra.mxu0 %v845
  %889 = vmatpush.msra.mxu0 %v843
  %890 = vmatpush.msra.mxu0 %v841
  %891 = vmatpush.msra.mxu0 %v839
  %892 = vmatmul.f32.gmra.mxu0 %v854
  %v893 = vpop.f32.mrf.mxu0
  %v894 = vadd.f32 0.0, %v893
  %895 = vdwg.mxu0
  %v896 = vadd.f32 %v829, %v874
  %v897 = vadd.f32 %v830, %v894
  %v898 = vld [vmem:[%s3] sm:$0xff]
  %v899 = vld [vmem:[%s3 + $0x8] sm:$0xff]
  %v900 = vld [vmem:[%s3 + $0x10] sm:$0xff]
  %v901 = vld [vmem:[%s3 + $0x18] sm:$0xff]
  %v902 = vld [vmem:[%s3 + $0x20] sm:$0xff]
  %v903 = vld [vmem:[%s3 + $0x28] sm:$0xff]
  %v904 = vld [vmem:[%s3 + $0x30] sm:$0xff]
  %v905 = vld [vmem:[%s3 + $0x38] sm:$0xff]
  %v906 = vld [vmem:[%s3 + $0x40] sm:$0xff]
  %v907 = vld [vmem:[%s3 + $0x48] sm:$0xff]
  %v908 = vld [vmem:[%s3 + $0x50] sm:$0xff]
  %v909 = vld [vmem:[%s3 + $0x58] sm:$0xff]
  %v910 = vld [vmem:[%s3 + $0x60] sm:$0xff]
  %v911 = vld [vmem:[%s3 + $0x68] sm:$0xff]
  %v912 = vld [vmem:[%s3 + $0x70] sm:$0xff]
  %v913 = vld [vmem:[%s3 + $0x78] sm:$0xff]
  %v914 = vsel %vm41, %v824, 0
  %916 = vmatpush.msra.mxu0 0.0
  %917 = vmatpush.msra.mxu0 0.0
  %918 = vmatpush.msra.mxu0 0.0
  %919 = vmatpush.msra.mxu0 0.0
  %920 = vmatpush.msra.mxu0 0.0
  %921 = vmatpush.msra.mxu0 0.0
  %922 = vmatpush.msra.mxu0 0.0
  %923 = vmatpush.msra.mxu0 0.0
  %924 = vmatpush.msra.mxu0 %v912
  %925 = vmatpush.msra.mxu0 %v910
  %926 = vmatpush.msra.mxu0 %v908
  %927 = vmatpush.msra.mxu0 %v906
  %928 = vmatpush.msra.mxu0 %v904
  %929 = vmatpush.msra.mxu0 %v902
  %930 = vmatpush.msra.mxu0 %v900
  %931 = vmatpush.msra.mxu0 %v898
  %932 = vmatmul.f32.gmra.mxu0 %v914
  %v933 = vpop.f32.mrf.mxu0
  %v934 = vadd.f32 0.0, %v933
  %935 = vdwg.mxu0
  %936 = vmatpush.msra.mxu0 0.0
  %937 = vmatpush.msra.mxu0 0.0
  %938 = vmatpush.msra.mxu0 0.0
  %939 = vmatpush.msra.mxu0 0.0
  %940 = vmatpush.msra.mxu0 0.0
  %941 = vmatpush.msra.mxu0 0.0
  %942 = vmatpush.msra.mxu0 0.0
  %943 = vmatpush.msra.mxu0 0.0
  %944 = vmatpush.msra.mxu0 %v913
  %945 = vmatpush.msra.mxu0 %v911
  %946 = vmatpush.msra.mxu0 %v909
  %947 = vmatpush.msra.mxu0 %v907
  %948 = vmatpush.msra.mxu0 %v905
  %949 = vmatpush.msra.mxu0 %v903
  %950 = vmatpush.msra.mxu0 %v901
  %951 = vmatpush.msra.mxu0 %v899
  %952 = vmatmul.f32.gmra.mxu0 %v914
  %v953 = vpop.f32.mrf.mxu0
  %v954 = vadd.f32 0.0, %v953
  %955 = vdwg.mxu0
  %v956 = vadd.f32 %v832, %v934
  %v957 = vadd.f32 %v833, %v954
  %v958 = vxor.u32 %v896, 2147483648
  %v959 = vmul.f32 %v958, 1.442695
  %v960 = vpow.pop %v959
  %v961 = vadd.f32 %v960, 1.0
  %v962 = vrcp.pop %v961
  %v963 = vmul.f32 %v961, %v962
  %v964 = vsub.f32 1.0, %v963
  %v965 = vmul.f32 %v962, %v964
  %v966 = vadd.f32 %v962, %v965
  %vm967 = vweird.f32 %v961
  %vm968 = vweird.f32 %v962
  %vm969 = vmor %vm967, %vm968
  %v970 = vsel %vm969, %v962, %v966
  %v971 = vand.u32 2147483647, %v961
  %vm972 = vcmp.eq.f32.partialorder %v971, 8.507059e+37
  %v973 = vand.u32 %v961, 2147483648
  %v974 = vor.u32 1.1754944e-38, %v973
  %v975 = vsel %vm972, %v974, %v970
  %v976 = vmul.f32 1.0, %v975
  %v977 = vtanh.pop %v897
  %v978 = vxor.u32 %v897, 2147483648
  %v979 = vmul.f32 %v978, 1.442695
  %v980 = vpow.pop %v979
  %v981 = vadd.f32 %v980, 1.0
  %v982 = vrcp.pop %v981
  %v983 = vmul.f32 %v981, %v982
  %v984 = vsub.f32 1.0, %v983
  %v985 = vmul.f32 %v982, %v984
  %v986 = vadd.f32 %v982, %v985
  %vm987 = vweird.f32 %v981
  %vm988 = vweird.f32 %v982
  %vm989 = vmor %vm987, %vm988
  %v990 = vsel %vm989, %v982, %v986
  %v991 = vand.u32 2147483647, %v981
  %vm992 = vcmp.eq.f32.partialorder %v991, 8.507059e+37
  %v993 = vand.u32 %v981, 2147483648
  %v994 = vor.u32 1.1754944e-38, %v993
  %v995 = vsel %vm992, %v994, %v990
  %v996 = vmul.f32 1.0, %v995
  %v997 = vmul.f32 %v976, %v747
  %v998 = vmul.f32 %v976, %v977
  %1000 = vrot.lane.b32.xlu0 %v998, 64
  %v1001 = vpop.permute.xlu0 %1000
  %v1003 = vadd.f32 %v997, %v1001
  %v1004 = vtanh.pop %v1003
  %v1005 = vmul.f32 %v996, %v1004
  %1007 = vset.pattern.permute.xlu0 0
  %1008 = vperm.xlu0 %1007, %v835
  %v1009 = vpop.permute.xlu0 %1008
  %v1011 = vmul.f32 %v1009, %v1003
  %v1012 = vsub.f32 1.0, %v835
  %1014 = vset.pattern.permute.xlu0 0
  %1015 = vperm.xlu0 %1014, %v1012
  %v1016 = vpop.permute.xlu0 %1015
  %v1018 = vmul.f32 %v1016, %v747
  %v1019 = vadd.f32 %v1011, %v1018
  %v1020 = vmul.f32 %v1009, %v1005
  %v1021 = vmul.f32 %v1016, %v750
  %v1022 = vadd.f32 %v1020, %v1021
  %v1023 = vxor.u32 %v956, 2147483648
  %v1024 = vmul.f32 %v1023, 1.442695
  %v1025 = vpow.pop %v1024
  %v1026 = vadd.f32 %v1025, 1.0
  %v1027 = vrcp.pop %v1026
  %v1028 = vmul.f32 %v1026, %v1027
  %v1029 = vsub.f32 1.0, %v1028
  %v1030 = vmul.f32 %v1027, %v1029
  %v1031 = vadd.f32 %v1027, %v1030
  %vm1032 = vweird.f32 %v1026
  %vm1033 = vweird.f32 %v1027
  %vm1034 = vmor %vm1032, %vm1033
  %v1035 = vsel %vm1034, %v1027, %v1031
  %v1036 = vand.u32 2147483647, %v1026
  %vm1037 = vcmp.eq.f32.partialorder %v1036, 8.507059e+37
  %v1038 = vand.u32 %v1026, 2147483648
  %v1039 = vor.u32 1.1754944e-38, %v1038
  %v1040 = vsel %vm1037, %v1039, %v1035
  %v1041 = vmul.f32 1.0, %v1040
  %v1042 = vtanh.pop %v957
  %v1043 = vxor.u32 %v957, 2147483648
  %v1044 = vmul.f32 %v1043, 1.442695
  %v1045 = vpow.pop %v1044
  %v1046 = vadd.f32 %v1045, 1.0
  %v1047 = vrcp.pop %v1046
  %v1048 = vmul.f32 %v1046, %v1047
  %v1049 = vsub.f32 1.0, %v1048
  %v1050 = vmul.f32 %v1047, %v1049
  %v1051 = vadd.f32 %v1047, %v1050
  %vm1052 = vweird.f32 %v1046
  %vm1053 = vweird.f32 %v1047
  %vm1054 = vmor %vm1052, %vm1053
  %v1055 = vsel %vm1054, %v1047, %v1051
  %v1056 = vand.u32 2147483647, %v1046
  %vm1057 = vcmp.eq.f32.partialorder %v1056, 8.507059e+37
  %v1058 = vand.u32 %v1046, 2147483648
  %v1059 = vor.u32 1.1754944e-38, %v1058
  %v1060 = vsel %vm1057, %v1059, %v1055
  %v1061 = vmul.f32 1.0, %v1060
  %v1062 = vmul.f32 %v1041, %v812
  %v1063 = vmul.f32 %v1041, %v1042
  %1065 = vrot.lane.b32.xlu0 %v1063, 64
  %v1066 = vpop.permute.xlu0 %1065
  %v1068 = vadd.f32 %v1062, %v1066
  %v1069 = vtanh.pop %v1068
  %v1070 = vmul.f32 %v1061, %v1069
  %1072 = vset.pattern.permute.xlu0 0
  %1073 = vperm.xlu0 %1072, %v837
  %v1074 = vpop.permute.xlu0 %1073
  %v1076 = vmul.f32 %v1074, %v1068
  %v1077 = vsub.f32 1.0, %v837
  %1079 = vset.pattern.permute.xlu0 0
  %1080 = vperm.xlu0 %1079, %v1077
  %v1081 = vpop.permute.xlu0 %1080
  %v1083 = vmul.f32 %v1081, %v812
  %v1084 = vadd.f32 %v1076, %v1083
  %v1085 = vmul.f32 %v1074, %v1070
  %v1086 = vmul.f32 %v1081, %v815
  %v1087 = vadd.f32 %v1085, %v1086
  %1089 = vrot.lane.b32.xlu0 %v1022, 64
  %v1090 = vpop.permute.xlu0 %1089
  %s1092 = scalar_lea.vmem [#allocation2], 24
  %1093 = vst.msk [vmem:[%s1092] sm:$0xff] %vm41, %v1090
  %1095 = vrot.lane.b32.xlu0 %v1087, 64
  %v1096 = vpop.permute.xlu0 %1095
  %s1098 = scalar_lea.vmem [#allocation3], 32
  %1099 = vst.msk [vmem:[%s1098] sm:$0xff] %vm41, %v1096
  %v1100 = vld [vmem:[%s831] sm:$0xff]
  %v1101 = vld [vmem:[%s831 + $0x8] sm:$0xff]
  %v1102 = vld [vmem:[%s828 + $0x10] sm:$0xff]
  %v1103 = vld [vmem:[%s828 + $0x18] sm:$0xff]
  %v1104 = vld [vmem:[%s836] sm:$0xff]
  %v1105 = vld [vmem:[%s834] sm:$0xff]
  %v1106 = vld [vmem:[%s2] sm:$0xff]
  %v1107 = vld [vmem:[%s2 + $0x8] sm:$0xff]
  %v1108 = vld [vmem:[%s2 + $0x10] sm:$0xff]
  %v1109 = vld [vmem:[%s2 + $0x18] sm:$0xff]
  %v1110 = vld [vmem:[%s2 + $0x20] sm:$0xff]
  %v1111 = vld [vmem:[%s2 + $0x28] sm:$0xff]
  %v1112 = vld [vmem:[%s2 + $0x30] sm:$0xff]
  %v1113 = vld [vmem:[%s2 + $0x38] sm:$0xff]
  %v1114 = vld [vmem:[%s2 + $0x40] sm:$0xff]
  %v1115 = vld [vmem:[%s2 + $0x48] sm:$0xff]
  %v1116 = vld [vmem:[%s2 + $0x50] sm:$0xff]
  %v1117 = vld [vmem:[%s2 + $0x58] sm:$0xff]
  %v1118 = vld [vmem:[%s2 + $0x60] sm:$0xff]
  %v1119 = vld [vmem:[%s2 + $0x68] sm:$0xff]
  %v1120 = vld [vmem:[%s2 + $0x70] sm:$0xff]
  %v1121 = vld [vmem:[%s2 + $0x78] sm:$0xff]
  %v1122 = vsel %vm41, %v1090, 0
  %1124 = vmatpush.msra.mxu0 0.0
  %1125 = vmatpush.msra.mxu0 0.0
  %1126 = vmatpush.msra.mxu0 0.0
  %1127 = vmatpush.msra.mxu0 0.0
  %1128 = vmatpush.msra.mxu0 0.0
  %1129 = vmatpush.msra.mxu0 0.0
  %1130 = vmatpush.msra.mxu0 0.0
  %1131 = vmatpush.msra.mxu0 0.0
  %1132 = vmatpush.msra.mxu0 %v1120
  %1133 = vmatpush.msra.mxu0 %v1118
  %1134 = vmatpush.msra.mxu0 %v1116
  %1135 = vmatpush.msra.mxu0 %v1114
  %1136 = vmatpush.msra.mxu0 %v1112
  %1137 = vmatpush.msra.mxu0 %v1110
  %1138 = vmatpush.msra.mxu0 %v1108
  %1139 = vmatpush.msra.mxu0 %v1106
  %1140 = vmatmul.f32.gmra.mxu0 %v1122
  %v1141 = vpop.f32.mrf.mxu0
  %v1142 = vadd.f32 0.0, %v1141
  %1143 = vdwg.mxu0
  %1144 = vmatpush.msra.mxu0 0.0
  %1145 = vmatpush.msra.mxu0 0.0
  %1146 = vmatpush.msra.mxu0 0.0
  %1147 = vmatpush.msra.mxu0 0.0
  %1148 = vmatpush.msra.mxu0 0.0
  %1149 = vmatpush.msra.mxu0 0.0
  %1150 = vmatpush.msra.mxu0 0.0
  %1151 = vmatpush.msra.mxu0 0.0
  %1152 = vmatpush.msra.mxu0 %v1121
  %1153 = vmatpush.msra.mxu0 %v1119
  %1154 = vmatpush.msra.mxu0 %v1117
  %1155 = vmatpush.msra.mxu0 %v1115
  %1156 = vmatpush.msra.mxu0 %v1113
  %1157 = vmatpush.msra.mxu0 %v1111
  %1158 = vmatpush.msra.mxu0 %v1109
  %1159 = vmatpush.msra.mxu0 %v1107
  %1160 = vmatmul.f32.gmra.mxu0 %v1122
  %v1161 = vpop.f32.mrf.mxu0
  %v1162 = vadd.f32 0.0, %v1161
  %1163 = vdwg.mxu0
  %v1164 = vadd.f32 %v1100, %v1142
  %v1165 = vadd.f32 %v1101, %v1162
  %v1166 = vld [vmem:[%s3] sm:$0xff]
  %v1167 = vld [vmem:[%s3 + $0x8] sm:$0xff]
  %v1168 = vld [vmem:[%s3 + $0x10] sm:$0xff]
  %v1169 = vld [vmem:[%s3 + $0x18] sm:$0xff]
  %v1170 = vld [vmem:[%s3 + $0x20] sm:$0xff]
  %v1171 = vld [vmem:[%s3 + $0x28] sm:$0xff]
  %v1172 = vld [vmem:[%s3 + $0x30] sm:$0xff]
  %v1173 = vld [vmem:[%s3 + $0x38] sm:$0xff]
  %v1174 = vld [vmem:[%s3 + $0x40] sm:$0xff]
  %v1175 = vld [vmem:[%s3 + $0x48] sm:$0xff]
  %v1176 = vld [vmem:[%s3 + $0x50] sm:$0xff]
  %v1177 = vld [vmem:[%s3 + $0x58] sm:$0xff]
  %v1178 = vld [vmem:[%s3 + $0x60] sm:$0xff]
  %v1179 = vld [vmem:[%s3 + $0x68] sm:$0xff]
  %v1180 = vld [vmem:[%s3 + $0x70] sm:$0xff]
  %v1181 = vld [vmem:[%s3 + $0x78] sm:$0xff]
  %v1182 = vsel %vm41, %v1096, 0
  %1184 = vmatpush.msra.mxu0 0.0
  %1185 = vmatpush.msra.mxu0 0.0
  %1186 = vmatpush.msra.mxu0 0.0
  %1187 = vmatpush.msra.mxu0 0.0
  %1188 = vmatpush.msra.mxu0 0.0
  %1189 = vmatpush.msra.mxu0 0.0
  %1190 = vmatpush.msra.mxu0 0.0
  %1191 = vmatpush.msra.mxu0 0.0
  %1192 = vmatpush.msra.mxu0 %v1180
  %1193 = vmatpush.msra.mxu0 %v1178
  %1194 = vmatpush.msra.mxu0 %v1176
  %1195 = vmatpush.msra.mxu0 %v1174
  %1196 = vmatpush.msra.mxu0 %v1172
  %1197 = vmatpush.msra.mxu0 %v1170
  %1198 = vmatpush.msra.mxu0 %v1168
  %1199 = vmatpush.msra.mxu0 %v1166
  %1200 = vmatmul.f32.gmra.mxu0 %v1182
  %v1201 = vpop.f32.mrf.mxu0
  %v1202 = vadd.f32 0.0, %v1201
  %1203 = vdwg.mxu0
  %1204 = vmatpush.msra.mxu0 0.0
  %1205 = vmatpush.msra.mxu0 0.0
  %1206 = vmatpush.msra.mxu0 0.0
  %1207 = vmatpush.msra.mxu0 0.0
  %1208 = vmatpush.msra.mxu0 0.0
  %1209 = vmatpush.msra.mxu0 0.0
  %1210 = vmatpush.msra.mxu0 0.0
  %1211 = vmatpush.msra.mxu0 0.0
  %1212 = vmatpush.msra.mxu0 %v1181
  %1213 = vmatpush.msra.mxu0 %v1179
  %1214 = vmatpush.msra.mxu0 %v1177
  %1215 = vmatpush.msra.mxu0 %v1175
  %1216 = vmatpush.msra.mxu0 %v1173
  %1217 = vmatpush.msra.mxu0 %v1171
  %1218 = vmatpush.msra.mxu0 %v1169
  %1219 = vmatpush.msra.mxu0 %v1167
  %1220 = vmatmul.f32.gmra.mxu0 %v1182
  %v1221 = vpop.f32.mrf.mxu0
  %v1222 = vadd.f32 0.0, %v1221
  %1223 = vdwg.mxu0
  %v1224 = vadd.f32 %v1102, %v1202
  %v1225 = vadd.f32 %v1103, %v1222
  %v1226 = vxor.u32 %v1164, 2147483648
  %v1227 = vmul.f32 %v1226, 1.442695
  %v1228 = vpow.pop %v1227
  %v1229 = vadd.f32 %v1228, 1.0
  %v1230 = vrcp.pop %v1229
  %v1231 = vmul.f32 %v1229, %v1230
  %v1232 = vsub.f32 1.0, %v1231
  %v1233 = vmul.f32 %v1230, %v1232
  %v1234 = vadd.f32 %v1230, %v1233
  %vm1235 = vweird.f32 %v1229
  %vm1236 = vweird.f32 %v1230
  %vm1237 = vmor %vm1235, %vm1236
  %v1238 = vsel %vm1237, %v1230, %v1234
  %v1239 = vand.u32 2147483647, %v1229
  %vm1240 = vcmp.eq.f32.partialorder %v1239, 8.507059e+37
  %v1241 = vand.u32 %v1229, 2147483648
  %v1242 = vor.u32 1.1754944e-38, %v1241
  %v1243 = vsel %vm1240, %v1242, %v1238
  %v1244 = vmul.f32 1.0, %v1243
  %v1245 = vtanh.pop %v1165
  %v1246 = vxor.u32 %v1165, 2147483648
  %v1247 = vmul.f32 %v1246, 1.442695
  %v1248 = vpow.pop %v1247
  %v1249 = vadd.f32 %v1248, 1.0
  %v1250 = vrcp.pop %v1249
  %v1251 = vmul.f32 %v1249, %v1250
  %v1252 = vsub.f32 1.0, %v1251
  %v1253 = vmul.f32 %v1250, %v1252
  %v1254 = vadd.f32 %v1250, %v1253
  %vm1255 = vweird.f32 %v1249
  %vm1256 = vweird.f32 %v1250
  %vm1257 = vmor %vm1255, %vm1256
  %v1258 = vsel %vm1257, %v1250, %v1254
  %v1259 = vand.u32 2147483647, %v1249
  %vm1260 = vcmp.eq.f32.partialorder %v1259, 8.507059e+37
  %v1261 = vand.u32 %v1249, 2147483648
  %v1262 = vor.u32 1.1754944e-38, %v1261
  %v1263 = vsel %vm1260, %v1262, %v1258
  %v1264 = vmul.f32 1.0, %v1263
  %v1265 = vmul.f32 %v1244, %v1019
  %v1266 = vmul.f32 %v1244, %v1245
  %1268 = vrot.lane.b32.xlu0 %v1266, 64
  %v1269 = vpop.permute.xlu0 %1268
  %v1271 = vadd.f32 %v1265, %v1269
  %v1272 = vtanh.pop %v1271
  %v1273 = vmul.f32 %v1264, %v1272
  %1275 = vset.pattern.permute.xlu0 0
  %1276 = vperm.xlu0 %1275, %v1104
  %v1277 = vpop.permute.xlu0 %1276
  %v1279 = vmul.f32 %v1277, %v1271
  %v1280 = vsub.f32 1.0, %v1104
  %1282 = vset.pattern.permute.xlu0 0
  %1283 = vperm.xlu0 %1282, %v1280
  %v1284 = vpop.permute.xlu0 %1283
  %v1286 = vmul.f32 %v1284, %v1019
  %v1287 = vadd.f32 %v1279, %v1286
  %v1288 = vmul.f32 %v1277, %v1273
  %v1289 = vmul.f32 %v1284, %v1022
  %v1290 = vadd.f32 %v1288, %v1289
  %v1291 = vxor.u32 %v1224, 2147483648
  %v1292 = vmul.f32 %v1291, 1.442695
  %v1293 = vpow.pop %v1292
  %v1294 = vadd.f32 %v1293, 1.0
  %v1295 = vrcp.pop %v1294
  %v1296 = vmul.f32 %v1294, %v1295
  %v1297 = vsub.f32 1.0, %v1296
  %v1298 = vmul.f32 %v1295, %v1297
  %v1299 = vadd.f32 %v1295, %v1298
  %vm1300 = vweird.f32 %v1294
  %vm1301 = vweird.f32 %v1295
  %vm1302 = vmor %vm1300, %vm1301
  %v1303 = vsel %vm1302, %v1295, %v1299
  %v1304 = vand.u32 2147483647, %v1294
  %vm1305 = vcmp.eq.f32.partialorder %v1304, 8.507059e+37
  %v1306 = vand.u32 %v1294, 2147483648
  %v1307 = vor.u32 1.1754944e-38, %v1306
  %v1308 = vsel %vm1305, %v1307, %v1303
  %v1309 = vmul.f32 1.0, %v1308
  %v1310 = vtanh.pop %v1225
  %v1311 = vxor.u32 %v1225, 2147483648
  %v1312 = vmul.f32 %v1311, 1.442695
  %v1313 = vpow.pop %v1312
  %v1314 = vadd.f32 %v1313, 1.0
  %v1315 = vrcp.pop %v1314
  %v1316 = vmul.f32 %v1314, %v1315
  %v1317 = vsub.f32 1.0, %v1316
  %v1318 = vmul.f32 %v1315, %v1317
  %v1319 = vadd.f32 %v1315, %v1318
  %vm1320 = vweird.f32 %v1314
  %vm1321 = vweird.f32 %v1315
  %vm1322 = vmor %vm1320, %vm1321
  %v1323 = vsel %vm1322, %v1315, %v1319
  %v1324 = vand.u32 2147483647, %v1314
  %vm1325 = vcmp.eq.f32.partialorder %v1324, 8.507059e+37
  %v1326 = vand.u32 %v1314, 2147483648
  %v1327 = vor.u32 1.1754944e-38, %v1326
  %v1328 = vsel %vm1325, %v1327, %v1323
  %v1329 = vmul.f32 1.0, %v1328
  %v1330 = vmul.f32 %v1309, %v1084
  %v1331 = vmul.f32 %v1309, %v1310
  %1333 = vrot.lane.b32.xlu0 %v1331, 64
  %v1334 = vpop.permute.xlu0 %1333
  %v1336 = vadd.f32 %v1330, %v1334
  %v1337 = vtanh.pop %v1336
  %v1338 = vmul.f32 %v1329, %v1337
  %1340 = vset.pattern.permute.xlu0 0
  %1341 = vperm.xlu0 %1340, %v1105
  %v1342 = vpop.permute.xlu0 %1341
  %v1344 = vmul.f32 %v1342, %v1336
  %v1345 = vsub.f32 1.0, %v1105
  %1347 = vset.pattern.permute.xlu0 0
  %1348 = vperm.xlu0 %1347, %v1345
  %v1349 = vpop.permute.xlu0 %1348
  %v1351 = vmul.f32 %v1349, %v1084
  %v1352 = vadd.f32 %v1344, %v1351
  %v1353 = vmul.f32 %v1342, %v1338
  %v1354 = vmul.f32 %v1349, %v1087
  %v1355 = vadd.f32 %v1353, %v1354
  %1357 = vrot.lane.b32.xlu0 %v1290, 64
  %v1358 = vpop.permute.xlu0 %1357
  %s1360 = scalar_lea.vmem [#allocation2], 32
  %1361 = vst.msk [vmem:[%s1360] sm:$0xff] %vm41, %v1358
  %1363 = vrot.lane.b32.xlu0 %v1355, 64
  %v1364 = vpop.permute.xlu0 %1363
  %s1366 = scalar_lea.vmem [#allocation3], 24
  %1367 = vst.msk [vmem:[%s1366] sm:$0xff] %vm41, %v1364
  %v1368 = vld [vmem:[%s559] sm:$0xff]
  %v1369 = vld [vmem:[%s559 + $0x8] sm:$0xff]
  %v1370 = vld [vmem:[%s556 + $0x10] sm:$0xff]
  %v1371 = vld [vmem:[%s556 + $0x18] sm:$0xff]
  %v1372 = vld [vmem:[%s564] sm:$0xff]
  %v1373 = vld [vmem:[%s562] sm:$0xff]
  %v1374 = vld [vmem:[%s2] sm:$0xff]
  %v1375 = vld [vmem:[%s2 + $0x8] sm:$0xff]
  %v1376 = vld [vmem:[%s2 + $0x10] sm:$0xff]
  %v1377 = vld [vmem:[%s2 + $0x18] sm:$0xff]
  %v1378 = vld [vmem:[%s2 + $0x20] sm:$0xff]
  %v1379 = vld [vmem:[%s2 + $0x28] sm:$0xff]
  %v1380 = vld [vmem:[%s2 + $0x30] sm:$0xff]
  %v1381 = vld [vmem:[%s2 + $0x38] sm:$0xff]
  %v1382 = vld [vmem:[%s2 + $0x40] sm:$0xff]
  %v1383 = vld [vmem:[%s2 + $0x48] sm:$0xff]
  %v1384 = vld [vmem:[%s2 + $0x50] sm:$0xff]
  %v1385 = vld [vmem:[%s2 + $0x58] sm:$0xff]
  %v1386 = vld [vmem:[%s2 + $0x60] sm:$0xff]
  %v1387 = vld [vmem:[%s2 + $0x68] sm:$0xff]
  %v1388 = vld [vmem:[%s2 + $0x70] sm:$0xff]
  %v1389 = vld [vmem:[%s2 + $0x78] sm:$0xff]
  %v1390 = vsel %vm41, %v1358, 0
  %1392 = vmatpush.msra.mxu0 0.0
  %1393 = vmatpush.msra.mxu0 0.0
  %1394 = vmatpush.msra.mxu0 0.0
  %1395 = vmatpush.msra.mxu0 0.0
  %1396 = vmatpush.msra.mxu0 0.0
  %1397 = vmatpush.msra.mxu0 0.0
  %1398 = vmatpush.msra.mxu0 0.0
  %1399 = vmatpush.msra.mxu0 0.0
  %1400 = vmatpush.msra.mxu0 %v1388
  %1401 = vmatpush.msra.mxu0 %v1386
  %1402 = vmatpush.msra.mxu0 %v1384
  %1403 = vmatpush.msra.mxu0 %v1382
  %1404 = vmatpush.msra.mxu0 %v1380
  %1405 = vmatpush.msra.mxu0 %v1378
  %1406 = vmatpush.msra.mxu0 %v1376
  %1407 = vmatpush.msra.mxu0 %v1374
  %1408 = vmatmul.f32.gmra.mxu0 %v1390
  %v1409 = vpop.f32.mrf.mxu0
  %v1410 = vadd.f32 0.0, %v1409
  %1411 = vdwg.mxu0
  %1412 = vmatpush.msra.mxu0 0.0
  %1413 = vmatpush.msra.mxu0 0.0
  %1414 = vmatpush.msra.mxu0 0.0
  %1415 = vmatpush.msra.mxu0 0.0
  %1416 = vmatpush.msra.mxu0 0.0
  %1417 = vmatpush.msra.mxu0 0.0
  %1418 = vmatpush.msra.mxu0 0.0
  %1419 = vmatpush.msra.mxu0 0.0
  %1420 = vmatpush.msra.mxu0 %v1389
  %1421 = vmatpush.msra.mxu0 %v1387
  %1422 = vmatpush.msra.mxu0 %v1385
  %1423 = vmatpush.msra.mxu0 %v1383
  %1424 = vmatpush.msra.mxu0 %v1381
  %1425 = vmatpush.msra.mxu0 %v1379
  %1426 = vmatpush.msra.mxu0 %v1377
  %1427 = vmatpush.msra.mxu0 %v1375
  %1428 = vmatmul.f32.gmra.mxu0 %v1390
  %v1429 = vpop.f32.mrf.mxu0
  %v1430 = vadd.f32 0.0, %v1429
  %1431 = vdwg.mxu0
  %v1432 = vadd.f32 %v1368, %v1410
  %v1433 = vadd.f32 %v1369, %v1430
  %v1434 = vld [vmem:[%s3] sm:$0xff]
  %v1435 = vld [vmem:[%s3 + $0x8] sm:$0xff]
  %v1436 = vld [vmem:[%s3 + $0x10] sm:$0xff]
  %v1437 = vld [vmem:[%s3 + $0x18] sm:$0xff]
  %v1438 = vld [vmem:[%s3 + $0x20] sm:$0xff]
  %v1439 = vld [vmem:[%s3 + $0x28] sm:$0xff]
  %v1440 = vld [vmem:[%s3 + $0x30] sm:$0xff]
  %v1441 = vld [vmem:[%s3 + $0x38] sm:$0xff]
  %v1442 = vld [vmem:[%s3 + $0x40] sm:$0xff]
  %v1443 = vld [vmem:[%s3 + $0x48] sm:$0xff]
  %v1444 = vld [vmem:[%s3 + $0x50] sm:$0xff]
  %v1445 = vld [vmem:[%s3 + $0x58] sm:$0xff]
  %v1446 = vld [vmem:[%s3 + $0x60] sm:$0xff]
  %v1447 = vld [vmem:[%s3 + $0x68] sm:$0xff]
  %v1448 = vld [vmem:[%s3 + $0x70] sm:$0xff]
  %v1449 = vld [vmem:[%s3 + $0x78] sm:$0xff]
  %v1450 = vsel %vm41, %v1364, 0
  %1452 = vmatpush.msra.mxu0 0.0
  %1453 = vmatpush.msra.mxu0 0.0
  %1454 = vmatpush.msra.mxu0 0.0
  %1455 = vmatpush.msra.mxu0 0.0
  %1456 = vmatpush.msra.mxu0 0.0
  %1457 = vmatpush.msra.mxu0 0.0
  %1458 = vmatpush.msra.mxu0 0.0
  %1459 = vmatpush.msra.mxu0 0.0
  %1460 = vmatpush.msra.mxu0 %v1448
  %1461 = vmatpush.msra.mxu0 %v1446
  %1462 = vmatpush.msra.mxu0 %v1444
  %1463 = vmatpush.msra.mxu0 %v1442
  %1464 = vmatpush.msra.mxu0 %v1440
  %1465 = vmatpush.msra.mxu0 %v1438
  %1466 = vmatpush.msra.mxu0 %v1436
  %1467 = vmatpush.msra.mxu0 %v1434
  %1468 = vmatmul.f32.gmra.mxu0 %v1450
  %v1469 = vpop.f32.mrf.mxu0
  %v1470 = vadd.f32 0.0, %v1469
  %1471 = vdwg.mxu0
  %1472 = vmatpush.msra.mxu0 0.0
  %1473 = vmatpush.msra.mxu0 0.0
  %1474 = vmatpush.msra.mxu0 0.0
  %1475 = vmatpush.msra.mxu0 0.0
  %1476 = vmatpush.msra.mxu0 0.0
  %1477 = vmatpush.msra.mxu0 0.0
  %1478 = vmatpush.msra.mxu0 0.0
  %1479 = vmatpush.msra.mxu0 0.0
  %1480 = vmatpush.msra.mxu0 %v1449
  %1481 = vmatpush.msra.mxu0 %v1447
  %1482 = vmatpush.msra.mxu0 %v1445
  %1483 = vmatpush.msra.mxu0 %v1443
  %1484 = vmatpush.msra.mxu0 %v1441
  %1485 = vmatpush.msra.mxu0 %v1439
  %1486 = vmatpush.msra.mxu0 %v1437
  %1487 = vmatpush.msra.mxu0 %v1435
  %1488 = vmatmul.f32.gmra.mxu0 %v1450
  %v1489 = vpop.f32.mrf.mxu0
  %v1490 = vadd.f32 0.0, %v1489
  %1491 = vdwg.mxu0
  %v1492 = vadd.f32 %v1370, %v1470
  %v1493 = vadd.f32 %v1371, %v1490
  %v1494 = vxor.u32 %v1432, 2147483648
  %v1495 = vmul.f32 %v1494, 1.442695
  %v1496 = vpow.pop %v1495
  %v1497 = vadd.f32 %v1496, 1.0
  %v1498 = vrcp.pop %v1497
  %v1499 = vmul.f32 %v1497, %v1498
  %v1500 = vsub.f32 1.0, %v1499
  %v1501 = vmul.f32 %v1498, %v1500
  %v1502 = vadd.f32 %v1498, %v1501
  %vm1503 = vweird.f32 %v1497
  %vm1504 = vweird.f32 %v1498
  %vm1505 = vmor %vm1503, %vm1504
  %v1506 = vsel %vm1505, %v1498, %v1502
  %v1507 = vand.u32 2147483647, %v1497
  %vm1508 = vcmp.eq.f32.partialorder %v1507, 8.507059e+37
  %v1509 = vand.u32 %v1497, 2147483648
  %v1510 = vor.u32 1.1754944e-38, %v1509
  %v1511 = vsel %vm1508, %v1510, %v1506
  %v1512 = vmul.f32 1.0, %v1511
  %v1513 = vtanh.pop %v1433
  %v1514 = vxor.u32 %v1433, 2147483648
  %v1515 = vmul.f32 %v1514, 1.442695
  %v1516 = vpow.pop %v1515
  %v1517 = vadd.f32 %v1516, 1.0
  %v1518 = vrcp.pop %v1517
  %v1519 = vmul.f32 %v1517, %v1518
  %v1520 = vsub.f32 1.0, %v1519
  %v1521 = vmul.f32 %v1518, %v1520
  %v1522 = vadd.f32 %v1518, %v1521
  %vm1523 = vweird.f32 %v1517
  %vm1524 = vweird.f32 %v1518
  %vm1525 = vmor %vm1523, %vm1524
  %v1526 = vsel %vm1525, %v1518, %v1522
  %v1527 = vand.u32 2147483647, %v1517
  %vm1528 = vcmp.eq.f32.partialorder %v1527, 8.507059e+37
  %v1529 = vand.u32 %v1517, 2147483648
  %v1530 = vor.u32 1.1754944e-38, %v1529
  %v1531 = vsel %vm1528, %v1530, %v1526
  %v1532 = vmul.f32 1.0, %v1531
  %v1533 = vmul.f32 %v1512, %v1287
  %v1534 = vmul.f32 %v1512, %v1513
  %1536 = vrot.lane.b32.xlu0 %v1534, 64
  %v1537 = vpop.permute.xlu0 %1536
  %v1539 = vadd.f32 %v1533, %v1537
  %v1540 = vtanh.pop %v1539
  %v1541 = vmul.f32 %v1532, %v1540
  %1543 = vset.pattern.permute.xlu0 0
  %1544 = vperm.xlu0 %1543, %v1372
  %v1545 = vpop.permute.xlu0 %1544
  %v1547 = vmul.f32 %v1545, %v1539
  %v1548 = vsub.f32 1.0, %v1372
  %1550 = vset.pattern.permute.xlu0 0
  %1551 = vperm.xlu0 %1550, %v1548
  %v1552 = vpop.permute.xlu0 %1551
  %v1554 = vmul.f32 %v1552, %v1287
  %v1555 = vadd.f32 %v1547, %v1554
  %v1556 = vmul.f32 %v1545, %v1541
  %v1557 = vmul.f32 %v1552, %v1290
  %v1558 = vadd.f32 %v1556, %v1557
  %v1559 = vxor.u32 %v1492, 2147483648
  %v1560 = vmul.f32 %v1559, 1.442695
  %v1561 = vpow.pop %v1560
  %v1562 = vadd.f32 %v1561, 1.0
  %v1563 = vrcp.pop %v1562
  %v1564 = vmul.f32 %v1562, %v1563
  %v1565 = vsub.f32 1.0, %v1564
  %v1566 = vmul.f32 %v1563, %v1565
  %v1567 = vadd.f32 %v1563, %v1566
  %vm1568 = vweird.f32 %v1562
  %vm1569 = vweird.f32 %v1563
  %vm1570 = vmor %vm1568, %vm1569
  %v1571 = vsel %vm1570, %v1563, %v1567
  %v1572 = vand.u32 2147483647, %v1562
  %vm1573 = vcmp.eq.f32.partialorder %v1572, 8.507059e+37
  %v1574 = vand.u32 %v1562, 2147483648
  %v1575 = vor.u32 1.1754944e-38, %v1574
  %v1576 = vsel %vm1573, %v1575, %v1571
  %v1577 = vmul.f32 1.0, %v1576
  %v1578 = vtanh.pop %v1493
  %v1579 = vxor.u32 %v1493, 2147483648
  %v1580 = vmul.f32 %v1579, 1.442695
  %v1581 = vpow.pop %v1580
  %v1582 = vadd.f32 %v1581, 1.0
  %v1583 = vrcp.pop %v1582
  %v1584 = vmul.f32 %v1582, %v1583
  %v1585 = vsub.f32 1.0, %v1584
  %v1586 = vmul.f32 %v1583, %v1585
  %v1587 = vadd.f32 %v1583, %v1586
  %vm1588 = vweird.f32 %v1582
  %vm1589 = vweird.f32 %v1583
  %vm1590 = vmor %vm1588, %vm1589
  %v1591 = vsel %vm1590, %v1583, %v1587
  %v1592 = vand.u32 2147483647, %v1582
  %vm1593 = vcmp.eq.f32.partialorder %v1592, 8.507059e+37
  %v1594 = vand.u32 %v1582, 2147483648
  %v1595 = vor.u32 1.1754944e-38, %v1594
  %v1596 = vsel %vm1593, %v1595, %v1591
  %v1597 = vmul.f32 1.0, %v1596
  %v1598 = vmul.f32 %v1577, %v1352
  %v1599 = vmul.f32 %v1577, %v1578
  %1601 = vrot.lane.b32.xlu0 %v1599, 64
  %v1602 = vpop.permute.xlu0 %1601
  %v1604 = vadd.f32 %v1598, %v1602
  %v1605 = vtanh.pop %v1604
  %v1606 = vmul.f32 %v1597, %v1605
  %1608 = vset.pattern.permute.xlu0 0
  %1609 = vperm.xlu0 %1608, %v1373
  %v1610 = vpop.permute.xlu0 %1609
  %v1612 = vmul.f32 %v1610, %v1604
  %v1613 = vsub.f32 1.0, %v1373
  %1615 = vset.pattern.permute.xlu0 0
  %1616 = vperm.xlu0 %1615, %v1613
  %v1617 = vpop.permute.xlu0 %1616
  %v1619 = vmul.f32 %v1617, %v1352
  %v1620 = vadd.f32 %v1612, %v1619
  %v1621 = vmul.f32 %v1610, %v1606
  %v1622 = vmul.f32 %v1617, %v1355
  %v1623 = vadd.f32 %v1621, %v1622
  %1625 = vrot.lane.b32.xlu0 %v1558, 64
  %v1626 = vpop.permute.xlu0 %1625
  %s1628 = scalar_lea.vmem [#allocation2], 40
  %1629 = vst.msk [vmem:[%s1628] sm:$0xff] %vm41, %v1626
  %1631 = vrot.lane.b32.xlu0 %v1623, 64
  %v1632 = vpop.permute.xlu0 %1631
  %s1634 = scalar_lea.vmem [#allocation3], 16
  %1635 = vst.msk [vmem:[%s1634] sm:$0xff] %vm41, %v1632
  %v1636 = vld [vmem:[%s287] sm:$0xff]
  %v1637 = vld [vmem:[%s287 + $0x8] sm:$0xff]
  %v1638 = vld [vmem:[%s284 + $0x10] sm:$0xff]
  %v1639 = vld [vmem:[%s284 + $0x18] sm:$0xff]
  %v1640 = vld [vmem:[%s292] sm:$0xff]
  %v1641 = vld [vmem:[%s290] sm:$0xff]
  %v1642 = vld [vmem:[%s2] sm:$0xff]
  %v1643 = vld [vmem:[%s2 + $0x8] sm:$0xff]
  %v1644 = vld [vmem:[%s2 + $0x10] sm:$0xff]
  %v1645 = vld [vmem:[%s2 + $0x18] sm:$0xff]
  %v1646 = vld [vmem:[%s2 + $0x20] sm:$0xff]
  %v1647 = vld [vmem:[%s2 + $0x28] sm:$0xff]
  %v1648 = vld [vmem:[%s2 + $0x30] sm:$0xff]
  %v1649 = vld [vmem:[%s2 + $0x38] sm:$0xff]
  %v1650 = vld [vmem:[%s2 + $0x40] sm:$0xff]
  %v1651 = vld [vmem:[%s2 + $0x48] sm:$0xff]
  %v1652 = vld [vmem:[%s2 + $0x50] sm:$0xff]
  %v1653 = vld [vmem:[%s2 + $0x58] sm:$0xff]
  %v1654 = vld [vmem:[%s2 + $0x60] sm:$0xff]
  %v1655 = vld [vmem:[%s2 + $0x68] sm:$0xff]
  %v1656 = vld [vmem:[%s2 + $0x70] sm:$0xff]
  %v1657 = vld [vmem:[%s2 + $0x78] sm:$0xff]
  %v1658 = vsel %vm41, %v1626, 0
  %1660 = vmatpush.msra.mxu0 0.0
  %1661 = vmatpush.msra.mxu0 0.0
  %1662 = vmatpush.msra.mxu0 0.0
  %1663 = vmatpush.msra.mxu0 0.0
  %1664 = vmatpush.msra.mxu0 0.0
  %1665 = vmatpush.msra.mxu0 0.0
  %1666 = vmatpush.msra.mxu0 0.0
  %1667 = vmatpush.msra.mxu0 0.0
  %1668 = vmatpush.msra.mxu0 %v1656
  %1669 = vmatpush.msra.mxu0 %v1654
  %1670 = vmatpush.msra.mxu0 %v1652
  %1671 = vmatpush.msra.mxu0 %v1650
  %1672 = vmatpush.msra.mxu0 %v1648
  %1673 = vmatpush.msra.mxu0 %v1646
  %1674 = vmatpush.msra.mxu0 %v1644
  %1675 = vmatpush.msra.mxu0 %v1642
  %1676 = vmatmul.f32.gmra.mxu0 %v1658
  %v1677 = vpop.f32.mrf.mxu0
  %v1678 = vadd.f32 0.0, %v1677
  %1679 = vdwg.mxu0
  %1680 = vmatpush.msra.mxu0 0.0
  %1681 = vmatpush.msra.mxu0 0.0
  %1682 = vmatpush.msra.mxu0 0.0
  %1683 = vmatpush.msra.mxu0 0.0
  %1684 = vmatpush.msra.mxu0 0.0
  %1685 = vmatpush.msra.mxu0 0.0
  %1686 = vmatpush.msra.mxu0 0.0
  %1687 = vmatpush.msra.mxu0 0.0
  %1688 = vmatpush.msra.mxu0 %v1657
  %1689 = vmatpush.msra.mxu0 %v1655
  %1690 = vmatpush.msra.mxu0 %v1653
  %1691 = vmatpush.msra.mxu0 %v1651
  %1692 = vmatpush.msra.mxu0 %v1649
  %1693 = vmatpush.msra.mxu0 %v1647
  %1694 = vmatpush.msra.mxu0 %v1645
  %1695 = vmatpush.msra.mxu0 %v1643
  %1696 = vmatmul.f32.gmra.mxu0 %v1658
  %v1697 = vpop.f32.mrf.mxu0
  %v1698 = vadd.f32 0.0, %v1697
  %1699 = vdwg.mxu0
  %v1700 = vadd.f32 %v1636, %v1678
  %v1701 = vadd.f32 %v1637, %v1698
  %v1702 = vld [vmem:[%s3] sm:$0xff]
  %v1703 = vld [vmem:[%s3 + $0x8] sm:$0xff]
  %v1704 = vld [vmem:[%s3 + $0x10] sm:$0xff]
  %v1705 = vld [vmem:[%s3 + $0x18] sm:$0xff]
  %v1706 = vld [vmem:[%s3 + $0x20] sm:$0xff]
  %v1707 = vld [vmem:[%s3 + $0x28] sm:$0xff]
  %v1708 = vld [vmem:[%s3 + $0x30] sm:$0xff]
  %v1709 = vld [vmem:[%s3 + $0x38] sm:$0xff]
  %v1710 = vld [vmem:[%s3 + $0x40] sm:$0xff]
  %v1711 = vld [vmem:[%s3 + $0x48] sm:$0xff]
  %v1712 = vld [vmem:[%s3 + $0x50] sm:$0xff]
  %v1713 = vld [vmem:[%s3 + $0x58] sm:$0xff]
  %v1714 = vld [vmem:[%s3 + $0x60] sm:$0xff]
  %v1715 = vld [vmem:[%s3 + $0x68] sm:$0xff]
  %v1716 = vld [vmem:[%s3 + $0x70] sm:$0xff]
  %v1717 = vld [vmem:[%s3 + $0x78] sm:$0xff]
  %v1718 = vsel %vm41, %v1632, 0
  %1720 = vmatpush.msra.mxu0 0.0
  %1721 = vmatpush.msra.mxu0 0.0
  %1722 = vmatpush.msra.mxu0 0.0
  %1723 = vmatpush.msra.mxu0 0.0
  %1724 = vmatpush.msra.mxu0 0.0
  %1725 = vmatpush.msra.mxu0 0.0
  %1726 = vmatpush.msra.mxu0 0.0
  %1727 = vmatpush.msra.mxu0 0.0
  %1728 = vmatpush.msra.mxu0 %v1716
  %1729 = vmatpush.msra.mxu0 %v1714
  %1730 = vmatpush.msra.mxu0 %v1712
  %1731 = vmatpush.msra.mxu0 %v1710
  %1732 = vmatpush.msra.mxu0 %v1708
  %1733 = vmatpush.msra.mxu0 %v1706
  %1734 = vmatpush.msra.mxu0 %v1704
  %1735 = vmatpush.msra.mxu0 %v1702
  %1736 = vmatmul.f32.gmra.mxu0 %v1718
  %v1737 = vpop.f32.mrf.mxu0
  %v1738 = vadd.f32 0.0, %v1737
  %1739 = vdwg.mxu0
  %1740 = vmatpush.msra.mxu0 0.0
  %1741 = vmatpush.msra.mxu0 0.0
  %1742 = vmatpush.msra.mxu0 0.0
  %1743 = vmatpush.msra.mxu0 0.0
  %1744 = vmatpush.msra.mxu0 0.0
  %1745 = vmatpush.msra.mxu0 0.0
  %1746 = vmatpush.msra.mxu0 0.0
  %1747 = vmatpush.msra.mxu0 0.0
  %1748 = vmatpush.msra.mxu0 %v1717
  %1749 = vmatpush.msra.mxu0 %v1715
  %1750 = vmatpush.msra.mxu0 %v1713
  %1751 = vmatpush.msra.mxu0 %v1711
  %1752 = vmatpush.msra.mxu0 %v1709
  %1753 = vmatpush.msra.mxu0 %v1707
  %1754 = vmatpush.msra.mxu0 %v1705
  %1755 = vmatpush.msra.mxu0 %v1703
  %1756 = vmatmul.f32.gmra.mxu0 %v1718
  %v1757 = vpop.f32.mrf.mxu0
  %v1758 = vadd.f32 0.0, %v1757
  %1759 = vdwg.mxu0
  %v1760 = vadd.f32 %v1638, %v1738
  %v1761 = vadd.f32 %v1639, %v1758
  %v1762 = vxor.u32 %v1700, 2147483648
  %v1763 = vmul.f32 %v1762, 1.442695
  %v1764 = vpow.pop %v1763
  %v1765 = vadd.f32 %v1764, 1.0
  %v1766 = vrcp.pop %v1765
  %v1767 = vmul.f32 %v1765, %v1766
  %v1768 = vsub.f32 1.0, %v1767
  %v1769 = vmul.f32 %v1766, %v1768
  %v1770 = vadd.f32 %v1766, %v1769
  %vm1771 = vweird.f32 %v1765
  %vm1772 = vweird.f32 %v1766
  %vm1773 = vmor %vm1771, %vm1772
  %v1774 = vsel %vm1773, %v1766, %v1770
  %v1775 = vand.u32 2147483647, %v1765
  %vm1776 = vcmp.eq.f32.partialorder %v1775, 8.507059e+37
  %v1777 = vand.u32 %v1765, 2147483648
  %v1778 = vor.u32 1.1754944e-38, %v1777
  %v1779 = vsel %vm1776, %v1778, %v1774
  %v1780 = vmul.f32 1.0, %v1779
  %v1781 = vtanh.pop %v1701
  %v1782 = vxor.u32 %v1701, 2147483648
  %v1783 = vmul.f32 %v1782, 1.442695
  %v1784 = vpow.pop %v1783
  %v1785 = vadd.f32 %v1784, 1.0
  %v1786 = vrcp.pop %v1785
  %v1787 = vmul.f32 %v1785, %v1786
  %v1788 = vsub.f32 1.0, %v1787
  %v1789 = vmul.f32 %v1786, %v1788
  %v1790 = vadd.f32 %v1786, %v1789
  %vm1791 = vweird.f32 %v1785
  %vm1792 = vweird.f32 %v1786
  %vm1793 = vmor %vm1791, %vm1792
  %v1794 = vsel %vm1793, %v1786, %v1790
  %v1795 = vand.u32 2147483647, %v1785
  %vm1796 = vcmp.eq.f32.partialorder %v1795, 8.507059e+37
  %v1797 = vand.u32 %v1785, 2147483648
  %v1798 = vor.u32 1.1754944e-38, %v1797
  %v1799 = vsel %vm1796, %v1798, %v1794
  %v1800 = vmul.f32 1.0, %v1799
  %v1801 = vmul.f32 %v1780, %v1555
  %v1802 = vmul.f32 %v1780, %v1781
  %1804 = vrot.lane.b32.xlu0 %v1802, 64
  %v1805 = vpop.permute.xlu0 %1804
  %v1807 = vadd.f32 %v1801, %v1805
  %v1808 = vtanh.pop %v1807
  %v1809 = vmul.f32 %v1800, %v1808
  %1811 = vset.pattern.permute.xlu0 0
  %1812 = vperm.xlu0 %1811, %v1640
  %v1813 = vpop.permute.xlu0 %1812
  %v1815 = vmul.f32 %v1813, %v1807
  %v1816 = vsub.f32 1.0, %v1640
  %1818 = vset.pattern.permute.xlu0 0
  %1819 = vperm.xlu0 %1818, %v1816
  %v1820 = vpop.permute.xlu0 %1819
  %v1822 = vmul.f32 %v1820, %v1555
  %v1823 = vadd.f32 %v1815, %v1822
  %v1824 = vmul.f32 %v1813, %v1809
  %v1825 = vmul.f32 %v1820, %v1558
  %v1826 = vadd.f32 %v1824, %v1825
  %v1827 = vxor.u32 %v1760, 2147483648
  %v1828 = vmul.f32 %v1827, 1.442695
  %v1829 = vpow.pop %v1828
  %v1830 = vadd.f32 %v1829, 1.0
  %v1831 = vrcp.pop %v1830
  %v1832 = vmul.f32 %v1830, %v1831
  %v1833 = vsub.f32 1.0, %v1832
  %v1834 = vmul.f32 %v1831, %v1833
  %v1835 = vadd.f32 %v1831, %v1834
  %vm1836 = vweird.f32 %v1830
  %vm1837 = vweird.f32 %v1831
  %vm1838 = vmor %vm1836, %vm1837
  %v1839 = vsel %vm1838, %v1831, %v1835
  %v1840 = vand.u32 2147483647, %v1830
  %vm1841 = vcmp.eq.f32.partialorder %v1840, 8.507059e+37
  %v1842 = vand.u32 %v1830, 2147483648
  %v1843 = vor.u32 1.1754944e-38, %v1842
  %v1844 = vsel %vm1841, %v1843, %v1839
  %v1845 = vmul.f32 1.0, %v1844
  %v1846 = vtanh.pop %v1761
  %v1847 = vxor.u32 %v1761, 2147483648
  %v1848 = vmul.f32 %v1847, 1.442695
  %v1849 = vpow.pop %v1848
  %v1850 = vadd.f32 %v1849, 1.0
  %v1851 = vrcp.pop %v1850
  %v1852 = vmul.f32 %v1850, %v1851
  %v1853 = vsub.f32 1.0, %v1852
  %v1854 = vmul.f32 %v1851, %v1853
  %v1855 = vadd.f32 %v1851, %v1854
  %vm1856 = vweird.f32 %v1850
  %vm1857 = vweird.f32 %v1851
  %vm1858 = vmor %vm1856, %vm1857
  %v1859 = vsel %vm1858, %v1851, %v1855
  %v1860 = vand.u32 2147483647, %v1850
  %vm1861 = vcmp.eq.f32.partialorder %v1860, 8.507059e+37
  %v1862 = vand.u32 %v1850, 2147483648
  %v1863 = vor.u32 1.1754944e-38, %v1862
  %v1864 = vsel %vm1861, %v1863, %v1859
  %v1865 = vmul.f32 1.0, %v1864
  %v1866 = vmul.f32 %v1845, %v1620
  %v1867 = vmul.f32 %v1845, %v1846
  %1869 = vrot.lane.b32.xlu0 %v1867, 64
  %v1870 = vpop.permute.xlu0 %1869
  %v1872 = vadd.f32 %v1866, %v1870
  %v1873 = vtanh.pop %v1872
  %v1874 = vmul.f32 %v1865, %v1873
  %1876 = vset.pattern.permute.xlu0 0
  %1877 = vperm.xlu0 %1876, %v1641
  %v1878 = vpop.permute.xlu0 %1877
  %v1880 = vmul.f32 %v1878, %v1872
  %v1881 = vsub.f32 1.0, %v1641
  %1883 = vset.pattern.permute.xlu0 0
  %1884 = vperm.xlu0 %1883, %v1881
  %v1885 = vpop.permute.xlu0 %1884
  %v1887 = vmul.f32 %v1885, %v1620
  %v1888 = vadd.f32 %v1880, %v1887
  %v1889 = vmul.f32 %v1878, %v1874
  %v1890 = vmul.f32 %v1885, %v1623
  %v1891 = vadd.f32 %v1889, %v1890
  %1893 = vrot.lane.b32.xlu0 %v1826, 64
  %v1894 = vpop.permute.xlu0 %1893
  %s1896 = scalar_lea.vmem [#allocation2], 48
  %1897 = vst.msk [vmem:[%s1896] sm:$0xff] %vm41, %v1894
  %1899 = vrot.lane.b32.xlu0 %v1891, 64
  %v1900 = vpop.permute.xlu0 %1899
  %s1902 = scalar_lea.vmem [#allocation3], 8
  %1903 = vst.msk [vmem:[%s1902] sm:$0xff] %vm41, %v1900
  %v1904 = vld [vmem:[%s19] sm:$0xff]
  %v1905 = vld [vmem:[%s19 + $0x8] sm:$0xff]
  %v1906 = vld [vmem:[%s0 + $0x10] sm:$0xff]
  %v1907 = vld [vmem:[%s0 + $0x18] sm:$0xff]
  %v1908 = vld [vmem:[%s23] sm:$0xff]
  %v1909 = vld [vmem:[%s1] sm:$0xff]
  %v1910 = vld [vmem:[%s2] sm:$0xff]
  %v1911 = vld [vmem:[%s2 + $0x8] sm:$0xff]
  %v1912 = vld [vmem:[%s2 + $0x10] sm:$0xff]
  %v1913 = vld [vmem:[%s2 + $0x18] sm:$0xff]
  %v1914 = vld [vmem:[%s2 + $0x20] sm:$0xff]
  %v1915 = vld [vmem:[%s2 + $0x28] sm:$0xff]
  %v1916 = vld [vmem:[%s2 + $0x30] sm:$0xff]
  %v1917 = vld [vmem:[%s2 + $0x38] sm:$0xff]
  %v1918 = vld [vmem:[%s2 + $0x40] sm:$0xff]
  %v1919 = vld [vmem:[%s2 + $0x48] sm:$0xff]
  %v1920 = vld [vmem:[%s2 + $0x50] sm:$0xff]
  %v1921 = vld [vmem:[%s2 + $0x58] sm:$0xff]
  %v1922 = vld [vmem:[%s2 + $0x60] sm:$0xff]
  %v1923 = vld [vmem:[%s2 + $0x68] sm:$0xff]
  %v1924 = vld [vmem:[%s2 + $0x70] sm:$0xff]
  %v1925 = vld [vmem:[%s2 + $0x78] sm:$0xff]
  %v1926 = vsel %vm41, %v1894, 0
  %1928 = vmatpush.msra.mxu0 0.0
  %1929 = vmatpush.msra.mxu0 0.0
  %1930 = vmatpush.msra.mxu0 0.0
  %1931 = vmatpush.msra.mxu0 0.0
  %1932 = vmatpush.msra.mxu0 0.0
  %1933 = vmatpush.msra.mxu0 0.0
  %1934 = vmatpush.msra.mxu0 0.0
  %1935 = vmatpush.msra.mxu0 0.0
  %1936 = vmatpush.msra.mxu0 %v1924
  %1937 = vmatpush.msra.mxu0 %v1922
  %1938 = vmatpush.msra.mxu0 %v1920
  %1939 = vmatpush.msra.mxu0 %v1918
  %1940 = vmatpush.msra.mxu0 %v1916
  %1941 = vmatpush.msra.mxu0 %v1914
  %1942 = vmatpush.msra.mxu0 %v1912
  %1943 = vmatpush.msra.mxu0 %v1910
  %1944 = vmatmul.f32.gmra.mxu0 %v1926
  %v1945 = vpop.f32.mrf.mxu0
  %v1946 = vadd.f32 0.0, %v1945
  %1947 = vdwg.mxu0
  %1948 = vmatpush.msra.mxu0 0.0
  %1949 = vmatpush.msra.mxu0 0.0
  %1950 = vmatpush.msra.mxu0 0.0
  %1951 = vmatpush.msra.mxu0 0.0
  %1952 = vmatpush.msra.mxu0 0.0
  %1953 = vmatpush.msra.mxu0 0.0
  %1954 = vmatpush.msra.mxu0 0.0
  %1955 = vmatpush.msra.mxu0 0.0
  %1956 = vmatpush.msra.mxu0 %v1925
  %1957 = vmatpush.msra.mxu0 %v1923
  %1958 = vmatpush.msra.mxu0 %v1921
  %1959 = vmatpush.msra.mxu0 %v1919
  %1960 = vmatpush.msra.mxu0 %v1917
  %1961 = vmatpush.msra.mxu0 %v1915
  %1962 = vmatpush.msra.mxu0 %v1913
  %1963 = vmatpush.msra.mxu0 %v1911
  %1964 = vmatmul.f32.gmra.mxu0 %v1926
  %v1965 = vpop.f32.mrf.mxu0
  %v1966 = vadd.f32 0.0, %v1965
  %1967 = vdwg.mxu0
  %v1968 = vadd.f32 %v1904, %v1946
  %v1969 = vadd.f32 %v1905, %v1966
  %v1970 = vld [vmem:[%s3] sm:$0xff]
  %v1971 = vld [vmem:[%s3 + $0x8] sm:$0xff]
  %v1972 = vld [vmem:[%s3 + $0x10] sm:$0xff]
  %v1973 = vld [vmem:[%s3 + $0x18] sm:$0xff]
  %v1974 = vld [vmem:[%s3 + $0x20] sm:$0xff]
  %v1975 = vld [vmem:[%s3 + $0x28] sm:$0xff]
  %v1976 = vld [vmem:[%s3 + $0x30] sm:$0xff]
  %v1977 = vld [vmem:[%s3 + $0x38] sm:$0xff]
  %v1978 = vld [vmem:[%s3 + $0x40] sm:$0xff]
  %v1979 = vld [vmem:[%s3 + $0x48] sm:$0xff]
  %v1980 = vld [vmem:[%s3 + $0x50] sm:$0xff]
  %v1981 = vld [vmem:[%s3 + $0x58] sm:$0xff]
  %v1982 = vld [vmem:[%s3 + $0x60] sm:$0xff]
  %v1983 = vld [vmem:[%s3 + $0x68] sm:$0xff]
  %v1984 = vld [vmem:[%s3 + $0x70] sm:$0xff]
  %v1985 = vld [vmem:[%s3 + $0x78] sm:$0xff]
  %v1986 = vsel %vm41, %v1900, 0
  %1988 = vmatpush.msra.mxu0 0.0
  %1989 = vmatpush.msra.mxu0 0.0
  %1990 = vmatpush.msra.mxu0 0.0
  %1991 = vmatpush.msra.mxu0 0.0
  %1992 = vmatpush.msra.mxu0 0.0
  %1993 = vmatpush.msra.mxu0 0.0
  %1994 = vmatpush.msra.mxu0 0.0
  %1995 = vmatpush.msra.mxu0 0.0
  %1996 = vmatpush.msra.mxu0 %v1984
  %1997 = vmatpush.msra.mxu0 %v1982
  %1998 = vmatpush.msra.mxu0 %v1980
  %1999 = vmatpush.msra.mxu0 %v1978
  %2000 = vmatpush.msra.mxu0 %v1976
  %2001 = vmatpush.msra.mxu0 %v1974
  %2002 = vmatpush.msra.mxu0 %v1972
  %2003 = vmatpush.msra.mxu0 %v1970
  %2004 = vmatmul.f32.gmra.mxu0 %v1986
  %v2005 = vpop.f32.mrf.mxu0
  %v2006 = vadd.f32 0.0, %v2005
  %2007 = vdwg.mxu0
  %2008 = vmatpush.msra.mxu0 0.0
  %2009 = vmatpush.msra.mxu0 0.0
  %2010 = vmatpush.msra.mxu0 0.0
  %2011 = vmatpush.msra.mxu0 0.0
  %2012 = vmatpush.msra.mxu0 0.0
  %2013 = vmatpush.msra.mxu0 0.0
  %2014 = vmatpush.msra.mxu0 0.0
  %2015 = vmatpush.msra.mxu0 0.0
  %2016 = vmatpush.msra.mxu0 %v1985
  %2017 = vmatpush.msra.mxu0 %v1983
  %2018 = vmatpush.msra.mxu0 %v1981
  %2019 = vmatpush.msra.mxu0 %v1979
  %2020 = vmatpush.msra.mxu0 %v1977
  %2021 = vmatpush.msra.mxu0 %v1975
  %2022 = vmatpush.msra.mxu0 %v1973
  %2023 = vmatpush.msra.mxu0 %v1971
  %2024 = vmatmul.f32.gmra.mxu0 %v1986
  %v2025 = vpop.f32.mrf.mxu0
  %v2026 = vadd.f32 0.0, %v2025
  %2027 = vdwg.mxu0
  %v2028 = vadd.f32 %v1906, %v2006
  %v2029 = vadd.f32 %v1907, %v2026
  %v2030 = vxor.u32 %v1968, 2147483648
  %v2031 = vmul.f32 %v2030, 1.442695
  %v2032 = vpow.pop %v2031
  %v2033 = vadd.f32 %v2032, 1.0
  %v2034 = vrcp.pop %v2033
  %v2035 = vmul.f32 %v2033, %v2034
  %v2036 = vsub.f32 1.0, %v2035
  %v2037 = vmul.f32 %v2034, %v2036
  %v2038 = vadd.f32 %v2034, %v2037
  %vm2039 = vweird.f32 %v2033
  %vm2040 = vweird.f32 %v2034
  %vm2041 = vmor %vm2039, %vm2040
  %v2042 = vsel %vm2041, %v2034, %v2038
  %v2043 = vand.u32 2147483647, %v2033
  %vm2044 = vcmp.eq.f32.partialorder %v2043, 8.507059e+37
  %v2045 = vand.u32 %v2033, 2147483648
  %v2046 = vor.u32 1.1754944e-38, %v2045
  %v2047 = vsel %vm2044, %v2046, %v2042
  %v2048 = vmul.f32 1.0, %v2047
  %v2049 = vtanh.pop %v1969
  %v2050 = vxor.u32 %v1969, 2147483648
  %v2051 = vmul.f32 %v2050, 1.442695
  %v2052 = vpow.pop %v2051
  %v2053 = vadd.f32 %v2052, 1.0
  %v2054 = vrcp.pop %v2053
  %v2055 = vmul.f32 %v2053, %v2054
  %v2056 = vsub.f32 1.0, %v2055
  %v2057 = vmul.f32 %v2054, %v2056
  %v2058 = vadd.f32 %v2054, %v2057
  %vm2059 = vweird.f32 %v2053
  %vm2060 = vweird.f32 %v2054
  %vm2061 = vmor %vm2059, %vm2060
  %v2062 = vsel %vm2061, %v2054, %v2058
  %v2063 = vand.u32 2147483647, %v2053
  %vm2064 = vcmp.eq.f32.partialorder %v2063, 8.507059e+37
  %v2065 = vand.u32 %v2053, 2147483648
  %v2066 = vor.u32 1.1754944e-38, %v2065
  %v2067 = vsel %vm2064, %v2066, %v2062
  %v2068 = vmul.f32 1.0, %v2067
  %v2069 = vmul.f32 %v2048, %v1823
  %v2070 = vmul.f32 %v2048, %v2049
  %2072 = vrot.lane.b32.xlu0 %v2070, 64
  %v2073 = vpop.permute.xlu0 %2072
  %v2075 = vadd.f32 %v2069, %v2073
  %v2076 = vtanh.pop %v2075
  %v2077 = vmul.f32 %v2068, %v2076
  %2079 = vset.pattern.permute.xlu0 0
  %2080 = vperm.xlu0 %2079, %v1908
  %v2081 = vpop.permute.xlu0 %2080
  %v2083 = vmul.f32 %v2081, %v2077
  %v2084 = vsub.f32 1.0, %v1908
  %2086 = vset.pattern.permute.xlu0 0
  %2087 = vperm.xlu0 %2086, %v2084
  %v2088 = vpop.permute.xlu0 %2087
  %v2090 = vmul.f32 %v2088, %v1826
  %v2091 = vadd.f32 %v2083, %v2090
  %v2092 = vxor.u32 %v2028, 2147483648
  %v2093 = vmul.f32 %v2092, 1.442695
  %v2094 = vpow.pop %v2093
  %v2095 = vadd.f32 %v2094, 1.0
  %v2096 = vrcp.pop %v2095
  %v2097 = vmul.f32 %v2095, %v2096
  %v2098 = vsub.f32 1.0, %v2097
  %v2099 = vmul.f32 %v2096, %v2098
  %v2100 = vadd.f32 %v2096, %v2099
  %vm2101 = vweird.f32 %v2095
  %vm2102 = vweird.f32 %v2096
  %vm2103 = vmor %vm2101, %vm2102
  %v2104 = vsel %vm2103, %v2096, %v2100
  %v2105 = vand.u32 2147483647, %v2095
  %vm2106 = vcmp.eq.f32.partialorder %v2105, 8.507059e+37
  %v2107 = vand.u32 %v2095, 2147483648
  %v2108 = vor.u32 1.1754944e-38, %v2107
  %v2109 = vsel %vm2106, %v2108, %v2104
  %v2110 = vmul.f32 1.0, %v2109
  %v2111 = vtanh.pop %v2029
  %v2112 = vxor.u32 %v2029, 2147483648
  %v2113 = vmul.f32 %v2112, 1.442695
  %v2114 = vpow.pop %v2113
  %v2115 = vadd.f32 %v2114, 1.0
  %v2116 = vrcp.pop %v2115
  %v2117 = vmul.f32 %v2115, %v2116
  %v2118 = vsub.f32 1.0, %v2117
  %v2119 = vmul.f32 %v2116, %v2118
  %v2120 = vadd.f32 %v2116, %v2119
  %vm2121 = vweird.f32 %v2115
  %vm2122 = vweird.f32 %v2116
  %vm2123 = vmor %vm2121, %vm2122
  %v2124 = vsel %vm2123, %v2116, %v2120
  %v2125 = vand.u32 2147483647, %v2115
  %vm2126 = vcmp.eq.f32.partialorder %v2125, 8.507059e+37
  %v2127 = vand.u32 %v2115, 2147483648
  %v2128 = vor.u32 1.1754944e-38, %v2127
  %v2129 = vsel %vm2126, %v2128, %v2124
  %v2130 = vmul.f32 1.0, %v2129
  %v2131 = vmul.f32 %v2110, %v1888
  %v2132 = vmul.f32 %v2110, %v2111
  %2134 = vrot.lane.b32.xlu0 %v2132, 64
  %v2135 = vpop.permute.xlu0 %2134
  %v2137 = vadd.f32 %v2131, %v2135
  %v2138 = vtanh.pop %v2137
  %v2139 = vmul.f32 %v2130, %v2138
  %2141 = vset.pattern.permute.xlu0 0
  %2142 = vperm.xlu0 %2141, %v1909
  %v2143 = vpop.permute.xlu0 %2142
  %v2145 = vmul.f32 %v2143, %v2139
  %v2146 = vsub.f32 1.0, %v1909
  %2148 = vset.pattern.permute.xlu0 0
  %2149 = vperm.xlu0 %2148, %v2146
  %v2150 = vpop.permute.xlu0 %2149
  %v2152 = vmul.f32 %v2150, %v1891
  %v2153 = vadd.f32 %v2145, %v2152
  %2155 = vrot.lane.b32.xlu0 %v2091, 64
  %v2156 = vpop.permute.xlu0 %2155
  %s2158 = scalar_lea.vmem [#allocation2], 56
  %2159 = vst.msk [vmem:[%s2158] sm:$0xff] %vm41, %v2156
  %2161 = vrot.lane.b32.xlu0 %v2153, 64
  %v2162 = vpop.permute.xlu0 %2161
  %2164 = vst.msk [vmem:[#allocation3] sm:$0xff] %vm41, %v2162
  %v2165 = vld [vmem:[#allocation2] sm:$0xff]
  %v2166 = vld [vmem:[#allocation2 + $0x8] sm:$0xff]
  %v2167 = vld [vmem:[#allocation2 + $0x10] sm:$0xff]
  %v2168 = vld [vmem:[#allocation2 + $0x18] sm:$0xff]
  %v2169 = vld [vmem:[#allocation2 + $0x20] sm:$0xff]
  %v2170 = vld [vmem:[#allocation2 + $0x28] sm:$0xff]
  %v2171 = vld [vmem:[#allocation2 + $0x30] sm:$0xff]
  %v2172 = vld [vmem:[#allocation2 + $0x38] sm:$0xff]
  %2173 = vst.msk [vmem:[%s4] sm:$0xff] %vm41, %v2165
  %2174 = vst.msk [vmem:[%s4 + $0x8] sm:$0xff] %vm41, %v2166
  %2175 = vst.msk [vmem:[%s4 + $0x10] sm:$0xff] %vm41, %v2167
  %2176 = vst.msk [vmem:[%s4 + $0x18] sm:$0xff] %vm41, %v2168
  %2177 = vst.msk [vmem:[%s4 + $0x20] sm:$0xff] %vm41, %v2169
  %2178 = vst.msk [vmem:[%s4 + $0x28] sm:$0xff] %vm41, %v2170
  %2179 = vst.msk [vmem:[%s4 + $0x30] sm:$0xff] %vm41, %v2171
  %2180 = vst.msk [vmem:[%s4 + $0x38] sm:$0xff] %vm41, %v2172
  %v2181 = vld [vmem:[#allocation3] sm:$0xff]
  %v2182 = vld [vmem:[#allocation3 + $0x8] sm:$0xff]
  %v2183 = vld [vmem:[#allocation3 + $0x10] sm:$0xff]
  %v2184 = vld [vmem:[#allocation3 + $0x18] sm:$0xff]
  %v2185 = vld [vmem:[#allocation3 + $0x20] sm:$0xff]
  %v2186 = vld [vmem:[#allocation3 + $0x28] sm:$0xff]
  %v2187 = vld [vmem:[#allocation3 + $0x30] sm:$0xff]
  %v2188 = vld [vmem:[#allocation3 + $0x38] sm:$0xff]
  %2197 = vrot.lane.b32.xlu0 %v2181, 64
  %v2198 = vpop.permute.xlu0 %2197
  %2199 = vrot.lane.b32.xlu0 %v2182, 64
  %v2200 = vpop.permute.xlu0 %2199
  %2201 = vrot.lane.b32.xlu0 %v2183, 64
  %v2202 = vpop.permute.xlu0 %2201
  %2203 = vrot.lane.b32.xlu0 %v2184, 64
  %v2204 = vpop.permute.xlu0 %2203
  %2205 = vrot.lane.b32.xlu0 %v2185, 64
  %v2206 = vpop.permute.xlu0 %2205
  %2207 = vrot.lane.b32.xlu0 %v2186, 64
  %v2208 = vpop.permute.xlu0 %2207
  %2209 = vrot.lane.b32.xlu0 %v2187, 64
  %v2210 = vpop.permute.xlu0 %2209
  %2211 = vrot.lane.b32.xlu0 %v2188, 64
  %v2212 = vpop.permute.xlu0 %2211
  %vm2221 = vcmask 1048064
  %2222 = vst.msk [vmem:[%s4] sm:$0xff] %vm2221, %v2198
  %2223 = vst.msk [vmem:[%s4 + $0x8] sm:$0xff] %vm2221, %v2200
  %2224 = vst.msk [vmem:[%s4 + $0x10] sm:$0xff] %vm2221, %v2202
  %2225 = vst.msk [vmem:[%s4 + $0x18] sm:$0xff] %vm2221, %v2204
  %2226 = vst.msk [vmem:[%s4 + $0x20] sm:$0xff] %vm2221, %v2206
  %2227 = vst.msk [vmem:[%s4 + $0x28] sm:$0xff] %vm2221, %v2208
  %2228 = vst.msk [vmem:[%s4 + $0x30] sm:$0xff] %vm2221, %v2210
  %2229 = vst.msk [vmem:[%s4 + $0x38] sm:$0xff] %vm2221, %v2212
  // Predicated region
  $region18: #{_forward_core.2} parent=0 // pred_check
    _
  $region19: #{_forward_core.2} parent=0 // pred_check_branch
    %2231 = sbr.rel (0) target = $region21
  $region20: #{_forward_core.2} parent=0 // pred_region
    _
  $region21: #{_forward_core.2} parent=0 // pred_fallthru
    _
  // Predicated region
  $region22: #{_forward_core.2} parent=0 // pred_check
    _
  $region23: #{_forward_core.2} parent=0 // pred_check_branch
    %2233 = sbr.rel (0) target = $region25
  $region24: #{_forward_core.2} parent=0 // pred_region
    _
  $region25: #{_forward_core.2} parent=0 // pred_fallthru
    _

</llo_original>
